<compile_context>
chip_gen: v6e
topology: v6e:2x2x1
jax: 0.10.0
libtpu: 0.0.40
codegen_flags: <defaults>
</compile_context>

<pallas_src>
import functools

import jax
import jax.numpy as jnp
from jax.experimental import pallas as pl
from jax.experimental.pallas import tpu as pltpu


def _round_up(v, m):
    return -(-v // m) * m


# ----------------------------------------------------------------------------
# Fused forward kernel: one grid step per block of Bn samples.
# ----------------------------------------------------------------------------
def _fused_kernel(x_ref, w1_ref, w2_ref, mask_ref, o_ref, patch, buf, *,
                  Cp, H, W, Wp, FS, Bn, Lout, Lpad, KK):
    f32 = jnp.float32
    PAD = FS // 2
    PW = PAD * Wp + PAD            # flat offset of padded pixel (PAD, PAD)
    BnL = Bn * Lout

    # Bias group of the patch matrix: row KK = ones, rows KK+1..KK+7 = zeros.
    # (The matching weight columns hold the bias / zeros, so the bias rides
    #  the MXU accumulate.)  Written once per step, reused by both layers.
    patch[KK:KK + 1, :] = jnp.ones((1, BnL), f32)
    patch[KK + 1:KK + 8, :] = jnp.zeros((7, BnL), f32)

    # ---- Layer 1: im2col straight from the pre-padded input block ----------
    # Tap (dy, dx) of sample s is a single lane slice of the flat padded image;
    # it lands in patch rows [t*Cp, (t+1)*Cp) (full sublane tile) and lane
    # columns [s*Lout, (s+1)*Lout) (128-aligned), i.e. dense unmasked stores.
    for s in range(Bn):
        for dy in range(FS):
            for dx in range(FS):
                t = dy * FS + dx
                off = dy * Wp + dx
                patch[t * Cp:(t + 1) * Cp, s * Lout:(s + 1) * Lout] = (
                    x_ref[s, :, off:off + Lout].astype(f32))

    h1 = jnp.dot(w1_ref[...], patch[...], preferred_element_type=f32)
    h1 = jnp.maximum(h1, 0.0)          # bias already folded into the matmul

    # ---- Re-pad the intermediate entirely in VMEM --------------------------
    # mask zeroes the lanes that fall outside the W valid columns of each
    # Wp-wide row, then one wide store per sample places h1 at the interior of
    # the padded layout; only the halo strips need explicit zeroing.
    mask = mask_ref[...]               # (1, Lout)
    for s in range(Bn):
        buf[s, :, 0:PW] = jnp.zeros((Cp, PW), f32)
        buf[s, :, PW + Lout:Lpad] = jnp.zeros((Cp, Lpad - PW - Lout), f32)
        buf[s, :, PW:PW + Lout] = h1[:, s * Lout:(s + 1) * Lout] * mask

    # ---- Layer 2: im2col from buf (bias rows of `patch` are still valid) ---
    for s in range(Bn):
        for dy in range(FS):
            for dx in range(FS):
                t = dy * FS + dx
                off = dy * Wp + dx
                patch[t * Cp:(t + 1) * Cp, s * Lout:(s + 1) * Lout] = (
                    buf[s, :, off:off + Lout])

    y = jnp.dot(w2_ref[...], patch[...], preferred_element_type=f32)  # (2, BnL)
    sig = jax.nn.sigmoid(y)
    prod = sig[0:1, :] * sig[1:2, :]                                   # (1, BnL)
    for s in range(Bn):
        o_ref[s] = prod[:, s * Lout:(s + 1) * Lout].astype(o_ref.dtype)


def fused_forward(x, w1f, w2f, *, FS, block_n=None):
    """x: (N,C,H,W); w1f: (Cp, FS*FS*Cp + 8); w2f: (2, FS*FS*Cp + 8)."""
    N, C, H, W = x.shape
    PAD = FS // 2
    Cp = w1f.shape[0]
    KK = FS * FS * Cp
    KK_tot = KK + 8
    assert w1f.shape[1] == KK_tot and w2f.shape == (2, KK_tot)

    Wp = _round_up(W + 2 * PAD, 32)            # lane-friendly padded row stride
    Lout = H * Wp                              # flat length of one layer output
    Lpad = _round_up((FS - 1) * (Wp + 1) + Lout, 128)   # covers the max tap

    if block_n is None:
        # Keep >= 2 grid steps when N >= 2 so v7x's two TensorCores both get
        # work; the extra ~0.35us step is negligible on single-TC v5e/v6e.
        block_n = max(1, N // 2)
    G = -(-N // block_n)
    Np = G * block_n

    # Pre-padded (channels -> Cp, halo zeros, width -> Wp) flat input, built
    # once by XLA in HBM; the kernel uses it directly as the layer-1 im2col
    # source (no in-kernel scatter of the raw image).
    rows = -(-Lpad // Wp)
    xp = jnp.zeros((Np, Cp, rows, Wp), x.dtype)
    xp = xp.at[:N, :C, PAD:PAD + H, PAD:PAD + W].set(x)
    xp = xp.reshape(Np, Cp, rows * Wp)[:, :, :Lpad]

    # Valid-column mask: 1.0 on the W real columns of each Wp-wide row.
    mask = jnp.tile((jnp.arange(Wp) < W).astype(jnp.float32),
                    (H,)).reshape(1, Lout)

    kernel = functools.partial(_fused_kernel, Cp=Cp, H=H, W=W, Wp=Wp, FS=FS,
                               Bn=block_n, Lout=Lout, Lpad=Lpad, KK=KK)

    out = pl.pallas_call(
        kernel,
        out_shape=jax.ShapeDtypeStruct((Np, 1, Lout), x.dtype),
        grid=(G,),
        in_specs=[
            pl.BlockSpec((block_n, Cp, Lpad), lambda n: (n, 0, 0)),
            # Constant block index -> weights / mask stay VMEM-resident.
            pl.BlockSpec((Cp, KK_tot), lambda n: (0, 0)),
            pl.BlockSpec((2, KK_tot), lambda n: (0, 0)),
            pl.BlockSpec((1, Lout), lambda n: (0, 0)),
        ],
        out_specs=pl.BlockSpec((block_n, 1, Lout), lambda n: (n, 0, 0)),
        scratch_shapes=[
            pltpu.VMEM((KK_tot, block_n * Lout), jnp.float32),   # patch matrix
            pltpu.VMEM((block_n, Cp, Lpad), jnp.float32),        # padded h1
        ],
        compiler_params=pltpu.CompilerParams(
            dimension_semantics=("parallel",)),
    )(xp, w1f, w2f, mask)

    # Strip the width padding (rows are Wp wide inside the kernel).
    return out.reshape(Np, 1, H, Wp)[:N, :, :, :W]


# ----------------------------------------------------------------------------
# Parameter setup glue (plain JAX): DoG filter bank + 1x1 conv weights.
# ----------------------------------------------------------------------------
def make_dog_filters(filter_size, in_channels, k, sigma1, sigma2):
    """Isotropic difference of normalized Gaussians -> (C, k, FS, FS)."""
    half = filter_size // 2
    coords = jnp.arange(filter_size, dtype=jnp.float32) - half
    yy, xx = jnp.meshgrid(coords, coords, indexing="ij")
    r2 = (xx ** 2 + yy ** 2)[None]                      # (1, FS, FS)
    g1 = jnp.exp(-r2 / (2.0 * sigma1[:, None, None] ** 2))
    g1 = g1 / jnp.sum(g1, axis=(1, 2), keepdims=True)
    g2 = jnp.exp(-r2 / (2.0 * sigma2[:, None, None] ** 2))
    g2 = g2 / jnp.sum(g2, axis=(1, 2), keepdims=True)
    dog = g1 - g2                                       # (C*k, FS, FS)
    return dog.reshape(in_channels, k, filter_size, filter_size)


def init_params(key, in_channels, filter_size, k):
    ks = jax.random.split(key, 8)
    ck = in_channels * k
    params = {
        "dog0_filters": make_dog_filters(
            filter_size, in_channels, k,
            jax.random.uniform(ks[0], (ck,), minval=1.0, maxval=2.0),
            jax.random.uniform(ks[1], (ck,), minval=2.0, maxval=4.0)),
        "dog1_filters": make_dog_filters(
            filter_size, in_channels, k,
            jax.random.uniform(ks[2], (ck,), minval=1.0, maxval=2.0),
            jax.random.uniform(ks[3], (ck,), minval=2.0, maxval=4.0)),
        "conv0_w": 0.1 * jax.random.normal(ks[4], (in_channels, ck), jnp.float32),
        "conv0_b": jnp.zeros((in_channels, 1), jnp.float32),
        "final_w": 0.1 * jax.random.normal(ks[5], (2, ck), jnp.float32),
        "final_b": jnp.zeros((2, 1), jnp.float32),
    }
    return params


def deep_network_forward(x, params, *, block_n=None):
    """Matches DeepNetwork.forward: net = [DoG, Conv1x1, ReLU, DoG]; then
    final 1x1 conv -> sigmoid -> ch0*ch1; returns (out, None)."""
    _, C, _, _ = x.shape
    dog0 = params["dog0_filters"]                       # (C, K, FS, FS)
    dog1 = params["dog1_filters"]
    K, FS = dog0.shape[1], dog0.shape[2]
    Cp = _round_up(C, 8)
    hi = jax.lax.Precision.HIGHEST

    # Fold each depthwise DoG bank into the 1x1 conv that follows it (exact:
    # linear-then-linear, the ReLU / sigmoid come after the 1x1):
    #   W_eff[o, i, dy, dx] = sum_k conv_w[o, i*K + k] * dog[i, k, dy, dx]
    w1 = jnp.einsum("oik,ikyx->oiyx", params["conv0_w"].reshape(C, C, K),
                    dog0, precision=hi)
    w2 = jnp.einsum("oik,ikyx->oiyx", params["final_w"].reshape(2, C, K),
                    dog1, precision=hi)

    # Channel-pad to Cp with zeros (exact), flatten to the kernel's im2col
    # row order (dy, dx) outer / ci inner, and append the bias column group
    # (col KK = bias, cols KK+1..KK+7 = 0) so biases ride the MXU.
    w1p = jnp.zeros((Cp, Cp, FS, FS), jnp.float32).at[:C, :C].set(w1)
    w2p = jnp.zeros((2, Cp, FS, FS), jnp.float32).at[:, :C].set(w2)
    w1_flat = w1p.transpose(0, 2, 3, 1).reshape(Cp, FS * FS * Cp)
    w2_flat = w2p.transpose(0, 2, 3, 1).reshape(2, FS * FS * Cp)
    b1col = jnp.zeros((Cp, 8), jnp.float32).at[:C, 0].set(
        params["conv0_b"].reshape(C))
    b2col = jnp.zeros((2, 8), jnp.float32).at[:, 0].set(
        params["final_b"].reshape(2))
    w1f = jnp.concatenate([w1_flat, b1col], axis=1)
    w2f = jnp.concatenate([w2_flat, b2col], axis=1)

    out = fused_forward(x, w1f, w2f, FS=FS, block_n=block_n)
    return out, None


# ----------------------------------------------------------------------------
# Pure-XLA reference of the original (un-folded) module, for validation.
# ----------------------------------------------------------------------------
def reference_forward(x, params):
    C = x.shape[1]
    FS = params["dog0_filters"].shape[2]
    PAD = FS // 2
    hi = jax.lax.Precision.HIGHEST

    def dog(v, filt):
        rhs = filt.reshape(-1, 1, FS, FS)               # (C*K, 1, FS, FS)
        return jax.lax.conv_general_dilated(
            v, rhs, (1, 1), [(PAD, PAD), (PAD, PAD)],
            dimension_numbers=("NCHW", "OIHW", "NCHW"),
            feature_group_count=C, precision=hi)

    def pw(v, w, b):
        return (jnp.einsum("nkhw,ok->nohw", v, w, precision=hi)
                + b.reshape(1, -1, 1, 1))

    h = dog(x, params["dog0_filters"])
    h = jax.nn.relu(pw(h, params["conv0_w"], params["conv0_b"]))
    h = dog(h, params["dog1_filters"])
    y = jax.nn.sigmoid(pw(h, params["final_w"], params["final_b"]))
    return y[:, 0:1] * y[:, 1:2]


if __name__ == "__main__":
    N, C, H, W = 2, 4, 16, 16
    filter_size, k = 9, 5

    key = jax.random.PRNGKey(0)
    k_x, k_p, k_x2 = jax.random.split(key, 3)
    x = jax.random.normal(k_x, (N, C, H, W), jnp.float32)
    params = init_params(k_p, C, filter_size, k)

    # Default path: block_n = N//2 -> grid of 2 parallel steps (v7x-friendly).
    out, aux = jax.jit(deep_network_forward)(x, params)
    out = jax.block_until_ready(out)

    assert out.shape == (N, 1, H, W)
    assert aux is None
    assert bool(jnp.all(jnp.isfinite(out)))

    ref = jax.block_until_ready(jax.jit(reference_forward)(x, params))
    err = float(jnp.max(jnp.abs(out - ref)))
    assert bool(jnp.allclose(out, ref, rtol=1e-4, atol=3e-5)), (
        "max abs err = %g" % err)

    # Multi-sample-per-step path (block_n=2): exercises the lane-concatenated
    # per-sample slabs and the wider MXU N-dim.
    x2 = jax.random.normal(k_x2, (4, C, H, W), jnp.float32)
    out2, _ = jax.jit(functools.partial(deep_network_forward, block_n=2))(
        x2, params)
    out2 = jax.block_until_ready(out2)
    ref2 = jax.block_until_ready(jax.jit(reference_forward)(x2, params))
    err2 = float(jnp.max(jnp.abs(out2 - ref2)))
    assert out2.shape == (4, 1, H, W)
    assert bool(jnp.allclose(out2, ref2, rtol=1e-4, atol=3e-5)), (
        "max abs err (block_n=2) = %g" % err2)

    print("KERNEL_OK")
</pallas_src>

<mosaic_0001>
module attributes {stable_mosaic.version = 11 : i64} {
  func.func @_fused_kernel(%arg0: i32, %arg1: memref<1x8x896xf32, #tpu.memory_space<vmem>>, %arg2: memref<8x656xf32, #tpu.memory_space<vmem>>, %arg3: memref<2x656xf32, #tpu.memory_space<vmem>>, %arg4: memref<1x512xf32, #tpu.memory_space<vmem>>, %arg5: memref<1x1x512xf32, #tpu.memory_space<vmem>>, %arg6: memref<656x512xf32, #tpu.memory_space<vmem>>, %arg7: memref<1x8x896xf32, #tpu.memory_space<vmem>>) attributes {dimension_semantics = [#tpu.dimension_semantics<parallel>], iteration_bounds = array<i64: 2>, scalar_prefetch = 0 : i64, scratch_operands = 2 : i64, tpu.core_type = #tpu.core_type<tc>, window_params = [{transform_indices = @transform_0, window_bounds = array<i64: 1, 8, 896>}, {pipeline_mode = #tpu.pipeline_mode<synchronous>, transform_indices = @transform_1, window_bounds = array<i64: 8, 656>}, {pipeline_mode = #tpu.pipeline_mode<synchronous>, transform_indices = @transform_2, window_bounds = array<i64: 2, 656>}, {pipeline_mode = #tpu.pipeline_mode<synchronous>, transform_indices = @transform_3, window_bounds = array<i64: 1, 512>}, {transform_indices = @transform_4, window_bounds = array<i64: 1, 1, 512>}]} {
    %cst = arith.constant 1.000000e+00 : f32
    %0 = vector.broadcast %cst : f32 to vector<1x512xf32>
    %c648 = arith.constant 648 : index
    %c0 = arith.constant 0 : index
    %1 = vector.load %arg6[%c648, %c0] : memref<656x512xf32, #tpu.memory_space<vmem>>, vector<1x512xf32>
    tpu.vector_store %arg6[%c648, %c0], %0 {strides = array<i32>} : memref<656x512xf32, #tpu.memory_space<vmem>>, vector<1x512xf32>,
    %cst_0 = arith.constant 0.000000e+00 : f32
    %2 = vector.broadcast %cst_0 : f32 to vector<7x512xf32>
    %c649 = arith.constant 649 : index
    %c0_1 = arith.constant 0 : index
    %3 = vector.load %arg6[%c649, %c0_1] : memref<656x512xf32, #tpu.memory_space<vmem>>, vector<7x512xf32>
    tpu.vector_store %arg6[%c649, %c0_1], %2 {strides = array<i32>} : memref<656x512xf32, #tpu.memory_space<vmem>>, vector<7x512xf32>,
    %c0_2 = arith.constant 0 : index
    %c0_3 = arith.constant 0 : index
    %c0_4 = arith.constant 0 : index
    %4 = vector.load %arg1[%c0_2, %c0_3, %c0_4] : memref<1x8x896xf32, #tpu.memory_space<vmem>>, vector<1x8x512xf32>
    %5 = vector.shape_cast %4 : vector<1x8x512xf32> to vector<8x512xf32>
    %c0_5 = arith.constant 0 : index
    %c0_6 = arith.constant 0 : index
    %6 = vector.load %arg6[%c0_5, %c0_6] : memref<656x512xf32, #tpu.memory_space<vmem>>, vector<8x512xf32>
    tpu.vector_store %arg6[%c0_5, %c0_6], %5 {strides = array<i32>} : memref<656x512xf32, #tpu.memory_space<vmem>>, vector<8x512xf32>,
    %c0_7 = arith.constant 0 : index
    %c0_8 = arith.constant 0 : index
    %c1 = arith.constant 1 : index
    %7 = vector.load %arg1[%c0_7, %c0_8, %c1] : memref<1x8x896xf32, #tpu.memory_space<vmem>>, vector<1x8x512xf32>
    %8 = vector.shape_cast %7 : vector<1x8x512xf32> to vector<8x512xf32>
    %c8 = arith.constant 8 : index
    %c0_9 = arith.constant 0 : index
    %9 = vector.load %arg6[%c8, %c0_9] : memref<656x512xf32, #tpu.memory_space<vmem>>, vector<8x512xf32>
    tpu.vector_store %arg6[%c8, %c0_9], %8 {strides = array<i32>} : memref<656x512xf32, #tpu.memory_space<vmem>>, vector<8x512xf32>,
    %c0_10 = arith.constant 0 : index
    %c0_11 = arith.constant 0 : index
    %c2 = arith.constant 2 : index
    %10 = vector.load %arg1[%c0_10, %c0_11, %c2] : memref<1x8x896xf32, #tpu.memory_space<vmem>>, vector<1x8x512xf32>
    %11 = vector.shape_cast %10 : vector<1x8x512xf32> to vector<8x512xf32>
    %c16 = arith.constant 16 : index
    %c0_12 = arith.constant 0 : index
    %12 = vector.load %arg6[%c16, %c0_12] : memref<656x512xf32, #tpu.memory_space<vmem>>, vector<8x512xf32>
    tpu.vector_store %arg6[%c16, %c0_12], %11 {strides = array<i32>} : memref<656x512xf32, #tpu.memory_space<vmem>>, vector<8x512xf32>,
    %c0_13 = arith.constant 0 : index
    %c0_14 = arith.constant 0 : index
    %c3 = arith.constant 3 : index
    %13 = vector.load %arg1[%c0_13, %c0_14, %c3] : memref<1x8x896xf32, #tpu.memory_space<vmem>>, vector<1x8x512xf32>
    %14 = vector.shape_cast %13 : vector<1x8x512xf32> to vector<8x512xf32>
    %c24 = arith.constant 24 : index
    %c0_15 = arith.constant 0 : index
    %15 = vector.load %arg6[%c24, %c0_15] : memref<656x512xf32, #tpu.memory_space<vmem>>, vector<8x512xf32>
    tpu.vector_store %arg6[%c24, %c0_15], %14 {strides = array<i32>} : memref<656x512xf32, #tpu.memory_space<vmem>>, vector<8x512xf32>,
    %c0_16 = arith.constant 0 : index
    %c0_17 = arith.constant 0 : index
    %c4 = arith.constant 4 : index
    %16 = vector.load %arg1[%c0_16, %c0_17, %c4] : memref<1x8x896xf32, #tpu.memory_space<vmem>>, vector<1x8x512xf32>
    %17 = vector.shape_cast %16 : vector<1x8x512xf32> to vector<8x512xf32>
    %c32 = arith.constant 32 : index
    %c0_18 = arith.constant 0 : index
    %18 = vector.load %arg6[%c32, %c0_18] : memref<656x512xf32, #tpu.memory_space<vmem>>, vector<8x512xf32>
    tpu.vector_store %arg6[%c32, %c0_18], %17 {strides = array<i32>} : memref<656x512xf32, #tpu.memory_space<vmem>>, vector<8x512xf32>,
    %c0_19 = arith.constant 0 : index
    %c0_20 = arith.constant 0 : index
    %c5 = arith.constant 5 : index
    %19 = vector.load %arg1[%c0_19, %c0_20, %c5] : memref<1x8x896xf32, #tpu.memory_space<vmem>>, vector<1x8x512xf32>
    %20 = vector.shape_cast %19 : vector<1x8x512xf32> to vector<8x512xf32>
    %c40 = arith.constant 40 : index
    %c0_21 = arith.constant 0 : index
    %21 = vector.load %arg6[%c40, %c0_21] : memref<656x512xf32, #tpu.memory_space<vmem>>, vector<8x512xf32>
    tpu.vector_store %arg6[%c40, %c0_21], %20 {strides = array<i32>} : memref<656x512xf32, #tpu.memory_space<vmem>>, vector<8x512xf32>,
    %c0_22 = arith.constant 0 : index
    %c0_23 = arith.constant 0 : index
    %c6 = arith.constant 6 : index
    %22 = vector.load %arg1[%c0_22, %c0_23, %c6] : memref<1x8x896xf32, #tpu.memory_space<vmem>>, vector<1x8x512xf32>
    %23 = vector.shape_cast %22 : vector<1x8x512xf32> to vector<8x512xf32>
    %c48 = arith.constant 48 : index
    %c0_24 = arith.constant 0 : index
    %24 = vector.load %arg6[%c48, %c0_24] : memref<656x512xf32, #tpu.memory_space<vmem>>, vector<8x512xf32>
    tpu.vector_store %arg6[%c48, %c0_24], %23 {strides = array<i32>} : memref<656x512xf32, #tpu.memory_space<vmem>>, vector<8x512xf32>,
    %c0_25 = arith.constant 0 : index
    %c0_26 = arith.constant 0 : index
    %c7 = arith.constant 7 : index
    %25 = vector.load %arg1[%c0_25, %c0_26, %c7] : memref<1x8x896xf32, #tpu.memory_space<vmem>>, vector<1x8x512xf32>
    %26 = vector.shape_cast %25 : vector<1x8x512xf32> to vector<8x512xf32>
    %c56 = arith.constant 56 : index
    %c0_27 = arith.constant 0 : index
    %27 = vector.load %arg6[%c56, %c0_27] : memref<656x512xf32, #tpu.memory_space<vmem>>, vector<8x512xf32>
    tpu.vector_store %arg6[%c56, %c0_27], %26 {strides = array<i32>} : memref<656x512xf32, #tpu.memory_space<vmem>>, vector<8x512xf32>,
    %c0_28 = arith.constant 0 : index
    %c0_29 = arith.constant 0 : index
    %c8_30 = arith.constant 8 : index
    %28 = vector.load %arg1[%c0_28, %c0_29, %c8_30] : memref<1x8x896xf32, #tpu.memory_space<vmem>>, vector<1x8x512xf32>
    %29 = vector.shape_cast %28 : vector<1x8x512xf32> to vector<8x512xf32>
    %c64 = arith.constant 64 : index
    %c0_31 = arith.constant 0 : index
    %30 = vector.load %arg6[%c64, %c0_31] : memref<656x512xf32, #tpu.memory_space<vmem>>, vector<8x512xf32>
    tpu.vector_store %arg6[%c64, %c0_31], %29 {strides = array<i32>} : memref<656x512xf32, #tpu.memory_space<vmem>>, vector<8x512xf32>,
    %c0_32 = arith.constant 0 : index
    %c0_33 = arith.constant 0 : index
    %c32_34 = arith.constant 32 : index
    %31 = vector.load %arg1[%c0_32, %c0_33, %c32_34] : memref<1x8x896xf32, #tpu.memory_space<vmem>>, vector<1x8x512xf32>
    %32 = vector.shape_cast %31 : vector<1x8x512xf32> to vector<8x512xf32>
    %c72 = arith.constant 72 : index
    %c0_35 = arith.constant 0 : index
    %33 = vector.load %arg6[%c72, %c0_35] : memref<656x512xf32, #tpu.memory_space<vmem>>, vector<8x512xf32>
    tpu.vector_store %arg6[%c72, %c0_35], %32 {strides = array<i32>} : memref<656x512xf32, #tpu.memory_space<vmem>>, vector<8x512xf32>,
    %c0_36 = arith.constant 0 : index
    %c0_37 = arith.constant 0 : index
    %c33 = arith.constant 33 : index
    %34 = vector.load %arg1[%c0_36, %c0_37, %c33] : memref<1x8x896xf32, #tpu.memory_space<vmem>>, vector<1x8x512xf32>
    %35 = vector.shape_cast %34 : vector<1x8x512xf32> to vector<8x512xf32>
    %c80 = arith.constant 80 : index
    %c0_38 = arith.constant 0 : index
    %36 = vector.load %arg6[%c80, %c0_38] : memref<656x512xf32, #tpu.memory_space<vmem>>, vector<8x512xf32>
    tpu.vector_store %arg6[%c80, %c0_38], %35 {strides = array<i32>} : memref<656x512xf32, #tpu.memory_space<vmem>>, vector<8x512xf32>,
    %c0_39 = arith.constant 0 : index
    %c0_40 = arith.constant 0 : index
    %c34 = arith.constant 34 : index
    %37 = vector.load %arg1[%c0_39, %c0_40, %c34] : memref<1x8x896xf32, #tpu.memory_space<vmem>>, vector<1x8x512xf32>
    %38 = vector.shape_cast %37 : vector<1x8x512xf32> to vector<8x512xf32>
    %c88 = arith.constant 88 : index
    %c0_41 = arith.constant 0 : index
    %39 = vector.load %arg6[%c88, %c0_41] : memref<656x512xf32, #tpu.memory_space<vmem>>, vector<8x512xf32>
    tpu.vector_store %arg6[%c88, %c0_41], %38 {strides = array<i32>} : memref<656x512xf32, #tpu.memory_space<vmem>>, vector<8x512xf32>,
    %c0_42 = arith.constant 0 : index
    %c0_43 = arith.constant 0 : index
    %c35 = arith.constant 35 : index
    %40 = vector.load %arg1[%c0_42, %c0_43, %c35] : memref<1x8x896xf32, #tpu.memory_space<vmem>>, vector<1x8x512xf32>
    %41 = vector.shape_cast %40 : vector<1x8x512xf32> to vector<8x512xf32>
    %c96 = arith.constant 96 : index
    %c0_44 = arith.constant 0 : index
    %42 = vector.load %arg6[%c96, %c0_44] : memref<656x512xf32, #tpu.memory_space<vmem>>, vector<8x512xf32>
    tpu.vector_store %arg6[%c96, %c0_44], %41 {strides = array<i32>} : memref<656x512xf32, #tpu.memory_space<vmem>>, vector<8x512xf32>,
    %c0_45 = arith.constant 0 : index
    %c0_46 = arith.constant 0 : index
    %c36 = arith.constant 36 : index
    %43 = vector.load %arg1[%c0_45, %c0_46, %c36] : memref<1x8x896xf32, #tpu.memory_space<vmem>>, vector<1x8x512xf32>
    %44 = vector.shape_cast %43 : vector<1x8x512xf32> to vector<8x512xf32>
    %c104 = arith.constant 104 : index
    %c0_47 = arith.constant 0 : index
    %45 = vector.load %arg6[%c104, %c0_47] : memref<656x512xf32, #tpu.memory_space<vmem>>, vector<8x512xf32>
    tpu.vector_store %arg6[%c104, %c0_47], %44 {strides = array<i32>} : memref<656x512xf32, #tpu.memory_space<vmem>>, vector<8x512xf32>,
    %c0_48 = arith.constant 0 : index
    %c0_49 = arith.constant 0 : index
    %c37 = arith.constant 37 : index
    %46 = vector.load %arg1[%c0_48, %c0_49, %c37] : memref<1x8x896xf32, #tpu.memory_space<vmem>>, vector<1x8x512xf32>
    %47 = vector.shape_cast %46 : vector<1x8x512xf32> to vector<8x512xf32>
    %c112 = arith.constant 112 : index
    %c0_50 = arith.constant 0 : index
    %48 = vector.load %arg6[%c112, %c0_50] : memref<656x512xf32, #tpu.memory_space<vmem>>, vector<8x512xf32>
    tpu.vector_store %arg6[%c112, %c0_50], %47 {strides = array<i32>} : memref<656x512xf32, #tpu.memory_space<vmem>>, vector<8x512xf32>,
    %c0_51 = arith.constant 0 : index
    %c0_52 = arith.constant 0 : index
    %c38 = arith.constant 38 : index
    %49 = vector.load %arg1[%c0_51, %c0_52, %c38] : memref<1x8x896xf32, #tpu.memory_space<vmem>>, vector<1x8x512xf32>
    %50 = vector.shape_cast %49 : vector<1x8x512xf32> to vector<8x512xf32>
    %c120 = arith.constant 120 : index
    %c0_53 = arith.constant 0 : index
    %51 = vector.load %arg6[%c120, %c0_53] : memref<656x512xf32, #tpu.memory_space<vmem>>, vector<8x512xf32>
    tpu.vector_store %arg6[%c120, %c0_53], %50 {strides = array<i32>} : memref<656x512xf32, #tpu.memory_space<vmem>>, vector<8x512xf32>,
    %c0_54 = arith.constant 0 : index
    %c0_55 = arith.constant 0 : index
    %c39 = arith.constant 39 : index
    %52 = vector.load %arg1[%c0_54, %c0_55, %c39] : memref<1x8x896xf32, #tpu.memory_space<vmem>>, vector<1x8x512xf32>
    %53 = vector.shape_cast %52 : vector<1x8x512xf32> to vector<8x512xf32>
    %c128 = arith.constant 128 : index
    %c0_56 = arith.constant 0 : index
    %54 = vector.load %arg6[%c128, %c0_56] : memref<656x512xf32, #tpu.memory_space<vmem>>, vector<8x512xf32>
    tpu.vector_store %arg6[%c128, %c0_56], %53 {strides = array<i32>} : memref<656x512xf32, #tpu.memory_space<vmem>>, vector<8x512xf32>,
    %c0_57 = arith.constant 0 : index
    %c0_58 = arith.constant 0 : index
    %c40_59 = arith.constant 40 : index
    %55 = vector.load %arg1[%c0_57, %c0_58, %c40_59] : memref<1x8x896xf32, #tpu.memory_space<vmem>>, vector<1x8x512xf32>
    %56 = vector.shape_cast %55 : vector<1x8x512xf32> to vector<8x512xf32>
    %c136 = arith.constant 136 : index
    %c0_60 = arith.constant 0 : index
    %57 = vector.load %arg6[%c136, %c0_60] : memref<656x512xf32, #tpu.memory_space<vmem>>, vector<8x512xf32>
    tpu.vector_store %arg6[%c136, %c0_60], %56 {strides = array<i32>} : memref<656x512xf32, #tpu.memory_space<vmem>>, vector<8x512xf32>,
    %c0_61 = arith.constant 0 : index
    %c0_62 = arith.constant 0 : index
    %c64_63 = arith.constant 64 : index
    %58 = vector.load %arg1[%c0_61, %c0_62, %c64_63] : memref<1x8x896xf32, #tpu.memory_space<vmem>>, vector<1x8x512xf32>
    %59 = vector.shape_cast %58 : vector<1x8x512xf32> to vector<8x512xf32>
    %c144 = arith.constant 144 : index
    %c0_64 = arith.constant 0 : index
    %60 = vector.load %arg6[%c144, %c0_64] : memref<656x512xf32, #tpu.memory_space<vmem>>, vector<8x512xf32>
    tpu.vector_store %arg6[%c144, %c0_64], %59 {strides = array<i32>} : memref<656x512xf32, #tpu.memory_space<vmem>>, vector<8x512xf32>,
    %c0_65 = arith.constant 0 : index
    %c0_66 = arith.constant 0 : index
    %c65 = arith.constant 65 : index
    %61 = vector.load %arg1[%c0_65, %c0_66, %c65] : memref<1x8x896xf32, #tpu.memory_space<vmem>>, vector<1x8x512xf32>
    %62 = vector.shape_cast %61 : vector<1x8x512xf32> to vector<8x512xf32>
    %c152 = arith.constant 152 : index
    %c0_67 = arith.constant 0 : index
    %63 = vector.load %arg6[%c152, %c0_67] : memref<656x512xf32, #tpu.memory_space<vmem>>, vector<8x512xf32>
    tpu.vector_store %arg6[%c152, %c0_67], %62 {strides = array<i32>} : memref<656x512xf32, #tpu.memory_space<vmem>>, vector<8x512xf32>,
    %c0_68 = arith.constant 0 : index
    %c0_69 = arith.constant 0 : index
    %c66 = arith.constant 66 : index
    %64 = vector.load %arg1[%c0_68, %c0_69, %c66] : memref<1x8x896xf32, #tpu.memory_space<vmem>>, vector<1x8x512xf32>
    %65 = vector.shape_cast %64 : vector<1x8x512xf32> to vector<8x512xf32>
    %c160 = arith.constant 160 : index
    %c0_70 = arith.constant 0 : index
    %66 = vector.load %arg6[%c160, %c0_70] : memref<656x512xf32, #tpu.memory_space<vmem>>, vector<8x512xf32>
    tpu.vector_store %arg6[%c160, %c0_70], %65 {strides = array<i32>} : memref<656x512xf32, #tpu.memory_space<vmem>>, vector<8x512xf32>,
    %c0_71 = arith.constant 0 : index
    %c0_72 = arith.constant 0 : index
    %c67 = arith.constant 67 : index
    %67 = vector.load %arg1[%c0_71, %c0_72, %c67] : memref<1x8x896xf32, #tpu.memory_space<vmem>>, vector<1x8x512xf32>
    %68 = vector.shape_cast %67 : vector<1x8x512xf32> to vector<8x512xf32>
    %c168 = arith.constant 168 : index
    %c0_73 = arith.constant 0 : index
    %69 = vector.load %arg6[%c168, %c0_73] : memref<656x512xf32, #tpu.memory_space<vmem>>, vector<8x512xf32>
    tpu.vector_store %arg6[%c168, %c0_73], %68 {strides = array<i32>} : memref<656x512xf32, #tpu.memory_space<vmem>>, vector<8x512xf32>,
    %c0_74 = arith.constant 0 : index
    %c0_75 = arith.constant 0 : index
    %c68 = arith.constant 68 : index
    %70 = vector.load %arg1[%c0_74, %c0_75, %c68] : memref<1x8x896xf32, #tpu.memory_space<vmem>>, vector<1x8x512xf32>
    %71 = vector.shape_cast %70 : vector<1x8x512xf32> to vector<8x512xf32>
    %c176 = arith.constant 176 : index
    %c0_76 = arith.constant 0 : index
    %72 = vector.load %arg6[%c176, %c0_76] : memref<656x512xf32, #tpu.memory_space<vmem>>, vector<8x512xf32>
    tpu.vector_store %arg6[%c176, %c0_76], %71 {strides = array<i32>} : memref<656x512xf32, #tpu.memory_space<vmem>>, vector<8x512xf32>,
    %c0_77 = arith.constant 0 : index
    %c0_78 = arith.constant 0 : index
    %c69 = arith.constant 69 : index
    %73 = vector.load %arg1[%c0_77, %c0_78, %c69] : memref<1x8x896xf32, #tpu.memory_space<vmem>>, vector<1x8x512xf32>
    %74 = vector.shape_cast %73 : vector<1x8x512xf32> to vector<8x512xf32>
    %c184 = arith.constant 184 : index
    %c0_79 = arith.constant 0 : index
    %75 = vector.load %arg6[%c184, %c0_79] : memref<656x512xf32, #tpu.memory_space<vmem>>, vector<8x512xf32>
    tpu.vector_store %arg6[%c184, %c0_79], %74 {strides = array<i32>} : memref<656x512xf32, #tpu.memory_space<vmem>>, vector<8x512xf32>,
    %c0_80 = arith.constant 0 : index
    %c0_81 = arith.constant 0 : index
    %c70 = arith.constant 70 : index
    %76 = vector.load %arg1[%c0_80, %c0_81, %c70] : memref<1x8x896xf32, #tpu.memory_space<vmem>>, vector<1x8x512xf32>
    %77 = vector.shape_cast %76 : vector<1x8x512xf32> to vector<8x512xf32>
    %c192 = arith.constant 192 : index
    %c0_82 = arith.constant 0 : index
    %78 = vector.load %arg6[%c192, %c0_82] : memref<656x512xf32, #tpu.memory_space<vmem>>, vector<8x512xf32>
    tpu.vector_store %arg6[%c192, %c0_82], %77 {strides = array<i32>} : memref<656x512xf32, #tpu.memory_space<vmem>>, vector<8x512xf32>,
    %c0_83 = arith.constant 0 : index
    %c0_84 = arith.constant 0 : index
    %c71 = arith.constant 71 : index
    %79 = vector.load %arg1[%c0_83, %c0_84, %c71] : memref<1x8x896xf32, #tpu.memory_space<vmem>>, vector<1x8x512xf32>
    %80 = vector.shape_cast %79 : vector<1x8x512xf32> to vector<8x512xf32>
    %c200 = arith.constant 200 : index
    %c0_85 = arith.constant 0 : index
    %81 = vector.load %arg6[%c200, %c0_85] : memref<656x512xf32, #tpu.memory_space<vmem>>, vector<8x512xf32>
    tpu.vector_store %arg6[%c200, %c0_85], %80 {strides = array<i32>} : memref<656x512xf32, #tpu.memory_space<vmem>>, vector<8x512xf32>,
    %c0_86 = arith.constant 0 : index
    %c0_87 = arith.constant 0 : index
    %c72_88 = arith.constant 72 : index
    %82 = vector.load %arg1[%c0_86, %c0_87, %c72_88] : memref<1x8x896xf32, #tpu.memory_space<vmem>>, vector<1x8x512xf32>
    %83 = vector.shape_cast %82 : vector<1x8x512xf32> to vector<8x512xf32>
    %c208 = arith.constant 208 : index
    %c0_89 = arith.constant 0 : index
    %84 = vector.load %arg6[%c208, %c0_89] : memref<656x512xf32, #tpu.memory_space<vmem>>, vector<8x512xf32>
    tpu.vector_store %arg6[%c208, %c0_89], %83 {strides = array<i32>} : memref<656x512xf32, #tpu.memory_space<vmem>>, vector<8x512xf32>,
    %c0_90 = arith.constant 0 : index
    %c0_91 = arith.constant 0 : index
    %c96_92 = arith.constant 96 : index
    %85 = vector.load %arg1[%c0_90, %c0_91, %c96_92] : memref<1x8x896xf32, #tpu.memory_space<vmem>>, vector<1x8x512xf32>
    %86 = vector.shape_cast %85 : vector<1x8x512xf32> to vector<8x512xf32>
    %c216 = arith.constant 216 : index
    %c0_93 = arith.constant 0 : index
    %87 = vector.load %arg6[%c216, %c0_93] : memref<656x512xf32, #tpu.memory_space<vmem>>, vector<8x512xf32>
    tpu.vector_store %arg6[%c216, %c0_93], %86 {strides = array<i32>} : memref<656x512xf32, #tpu.memory_space<vmem>>, vector<8x512xf32>,
    %c0_94 = arith.constant 0 : index
    %c0_95 = arith.constant 0 : index
    %c97 = arith.constant 97 : index
    %88 = vector.load %arg1[%c0_94, %c0_95, %c97] : memref<1x8x896xf32, #tpu.memory_space<vmem>>, vector<1x8x512xf32>
    %89 = vector.shape_cast %88 : vector<1x8x512xf32> to vector<8x512xf32>
    %c224 = arith.constant 224 : index
    %c0_96 = arith.constant 0 : index
    %90 = vector.load %arg6[%c224, %c0_96] : memref<656x512xf32, #tpu.memory_space<vmem>>, vector<8x512xf32>
    tpu.vector_store %arg6[%c224, %c0_96], %89 {strides = array<i32>} : memref<656x512xf32, #tpu.memory_space<vmem>>, vector<8x512xf32>,
    %c0_97 = arith.constant 0 : index
    %c0_98 = arith.constant 0 : index
    %c98 = arith.constant 98 : index
    %91 = vector.load %arg1[%c0_97, %c0_98, %c98] : memref<1x8x896xf32, #tpu.memory_space<vmem>>, vector<1x8x512xf32>
    %92 = vector.shape_cast %91 : vector<1x8x512xf32> to vector<8x512xf32>
    %c232 = arith.constant 232 : index
    %c0_99 = arith.constant 0 : index
    %93 = vector.load %arg6[%c232, %c0_99] : memref<656x512xf32, #tpu.memory_space<vmem>>, vector<8x512xf32>
    tpu.vector_store %arg6[%c232, %c0_99], %92 {strides = array<i32>} : memref<656x512xf32, #tpu.memory_space<vmem>>, vector<8x512xf32>,
    %c0_100 = arith.constant 0 : index
    %c0_101 = arith.constant 0 : index
    %c99 = arith.constant 99 : index
    %94 = vector.load %arg1[%c0_100, %c0_101, %c99] : memref<1x8x896xf32, #tpu.memory_space<vmem>>, vector<1x8x512xf32>
    %95 = vector.shape_cast %94 : vector<1x8x512xf32> to vector<8x512xf32>
    %c240 = arith.constant 240 : index
    %c0_102 = arith.constant 0 : index
    %96 = vector.load %arg6[%c240, %c0_102] : memref<656x512xf32, #tpu.memory_space<vmem>>, vector<8x512xf32>
    tpu.vector_store %arg6[%c240, %c0_102], %95 {strides = array<i32>} : memref<656x512xf32, #tpu.memory_space<vmem>>, vector<8x512xf32>,
    %c0_103 = arith.constant 0 : index
    %c0_104 = arith.constant 0 : index
    %c100 = arith.constant 100 : index
    %97 = vector.load %arg1[%c0_103, %c0_104, %c100] : memref<1x8x896xf32, #tpu.memory_space<vmem>>, vector<1x8x512xf32>
    %98 = vector.shape_cast %97 : vector<1x8x512xf32> to vector<8x512xf32>
    %c248 = arith.constant 248 : index
    %c0_105 = arith.constant 0 : index
    %99 = vector.load %arg6[%c248, %c0_105] : memref<656x512xf32, #tpu.memory_space<vmem>>, vector<8x512xf32>
    tpu.vector_store %arg6[%c248, %c0_105], %98 {strides = array<i32>} : memref<656x512xf32, #tpu.memory_space<vmem>>, vector<8x512xf32>,
    %c0_106 = arith.constant 0 : index
    %c0_107 = arith.constant 0 : index
    %c101 = arith.constant 101 : index
    %100 = vector.load %arg1[%c0_106, %c0_107, %c101] : memref<1x8x896xf32, #tpu.memory_space<vmem>>, vector<1x8x512xf32>
    %101 = vector.shape_cast %100 : vector<1x8x512xf32> to vector<8x512xf32>
    %c256 = arith.constant 256 : index
    %c0_108 = arith.constant 0 : index
    %102 = vector.load %arg6[%c256, %c0_108] : memref<656x512xf32, #tpu.memory_space<vmem>>, vector<8x512xf32>
    tpu.vector_store %arg6[%c256, %c0_108], %101 {strides = array<i32>} : memref<656x512xf32, #tpu.memory_space<vmem>>, vector<8x512xf32>,
    %c0_109 = arith.constant 0 : index
    %c0_110 = arith.constant 0 : index
    %c102 = arith.constant 102 : index
    %103 = vector.load %arg1[%c0_109, %c0_110, %c102] : memref<1x8x896xf32, #tpu.memory_space<vmem>>, vector<1x8x512xf32>
    %104 = vector.shape_cast %103 : vector<1x8x512xf32> to vector<8x512xf32>
    %c264 = arith.constant 264 : index
    %c0_111 = arith.constant 0 : index
    %105 = vector.load %arg6[%c264, %c0_111] : memref<656x512xf32, #tpu.memory_space<vmem>>, vector<8x512xf32>
    tpu.vector_store %arg6[%c264, %c0_111], %104 {strides = array<i32>} : memref<656x512xf32, #tpu.memory_space<vmem>>, vector<8x512xf32>,
    %c0_112 = arith.constant 0 : index
    %c0_113 = arith.constant 0 : index
    %c103 = arith.constant 103 : index
    %106 = vector.load %arg1[%c0_112, %c0_113, %c103] : memref<1x8x896xf32, #tpu.memory_space<vmem>>, vector<1x8x512xf32>
    %107 = vector.shape_cast %106 : vector<1x8x512xf32> to vector<8x512xf32>
    %c272 = arith.constant 272 : index
    %c0_114 = arith.constant 0 : index
    %108 = vector.load %arg6[%c272, %c0_114] : memref<656x512xf32, #tpu.memory_space<vmem>>, vector<8x512xf32>
    tpu.vector_store %arg6[%c272, %c0_114], %107 {strides = array<i32>} : memref<656x512xf32, #tpu.memory_space<vmem>>, vector<8x512xf32>,
    %c0_115 = arith.constant 0 : index
    %c0_116 = arith.constant 0 : index
    %c104_117 = arith.constant 104 : index
    %109 = vector.load %arg1[%c0_115, %c0_116, %c104_117] : memref<1x8x896xf32, #tpu.memory_space<vmem>>, vector<1x8x512xf32>
    %110 = vector.shape_cast %109 : vector<1x8x512xf32> to vector<8x512xf32>
    %c280 = arith.constant 280 : index
    %c0_118 = arith.constant 0 : index
    %111 = vector.load %arg6[%c280, %c0_118] : memref<656x512xf32, #tpu.memory_space<vmem>>, vector<8x512xf32>
    tpu.vector_store %arg6[%c280, %c0_118], %110 {strides = array<i32>} : memref<656x512xf32, #tpu.memory_space<vmem>>, vector<8x512xf32>,
    %c0_119 = arith.constant 0 : index
    %c0_120 = arith.constant 0 : index
    %c128_121 = arith.constant 128 : index
    %112 = vector.load %arg1[%c0_119, %c0_120, %c128_121] : memref<1x8x896xf32, #tpu.memory_space<vmem>>, vector<1x8x512xf32>
    %113 = vector.shape_cast %112 : vector<1x8x512xf32> to vector<8x512xf32>
    %c288 = arith.constant 288 : index
    %c0_122 = arith.constant 0 : index
    %114 = vector.load %arg6[%c288, %c0_122] : memref<656x512xf32, #tpu.memory_space<vmem>>, vector<8x512xf32>
    tpu.vector_store %arg6[%c288, %c0_122], %113 {strides = array<i32>} : memref<656x512xf32, #tpu.memory_space<vmem>>, vector<8x512xf32>,
    %c0_123 = arith.constant 0 : index
    %c0_124 = arith.constant 0 : index
    %c129 = arith.constant 129 : index
    %115 = vector.load %arg1[%c0_123, %c0_124, %c129] : memref<1x8x896xf32, #tpu.memory_space<vmem>>, vector<1x8x512xf32>
    %116 = vector.shape_cast %115 : vector<1x8x512xf32> to vector<8x512xf32>
    %c296 = arith.constant 296 : index
    %c0_125 = arith.constant 0 : index
    %117 = vector.load %arg6[%c296, %c0_125] : memref<656x512xf32, #tpu.memory_space<vmem>>, vector<8x512xf32>
    tpu.vector_store %arg6[%c296, %c0_125], %116 {strides = array<i32>} : memref<656x512xf32, #tpu.memory_space<vmem>>, vector<8x512xf32>,
    %c0_126 = arith.constant 0 : index
    %c0_127 = arith.constant 0 : index
    %c130 = arith.constant 130 : index
    %118 = vector.load %arg1[%c0_126, %c0_127, %c130] : memref<1x8x896xf32, #tpu.memory_space<vmem>>, vector<1x8x512xf32>
    %119 = vector.shape_cast %118 : vector<1x8x512xf32> to vector<8x512xf32>
    %c304 = arith.constant 304 : index
    %c0_128 = arith.constant 0 : index
    %120 = vector.load %arg6[%c304, %c0_128] : memref<656x512xf32, #tpu.memory_space<vmem>>, vector<8x512xf32>
    tpu.vector_store %arg6[%c304, %c0_128], %119 {strides = array<i32>} : memref<656x512xf32, #tpu.memory_space<vmem>>, vector<8x512xf32>,
    %c0_129 = arith.constant 0 : index
    %c0_130 = arith.constant 0 : index
    %c131 = arith.constant 131 : index
    %121 = vector.load %arg1[%c0_129, %c0_130, %c131] : memref<1x8x896xf32, #tpu.memory_space<vmem>>, vector<1x8x512xf32>
    %122 = vector.shape_cast %121 : vector<1x8x512xf32> to vector<8x512xf32>
    %c312 = arith.constant 312 : index
    %c0_131 = arith.constant 0 : index
    %123 = vector.load %arg6[%c312, %c0_131] : memref<656x512xf32, #tpu.memory_space<vmem>>, vector<8x512xf32>
    tpu.vector_store %arg6[%c312, %c0_131], %122 {strides = array<i32>} : memref<656x512xf32, #tpu.memory_space<vmem>>, vector<8x512xf32>,
    %c0_132 = arith.constant 0 : index
    %c0_133 = arith.constant 0 : index
    %c132 = arith.constant 132 : index
    %124 = vector.load %arg1[%c0_132, %c0_133, %c132] : memref<1x8x896xf32, #tpu.memory_space<vmem>>, vector<1x8x512xf32>
    %125 = vector.shape_cast %124 : vector<1x8x512xf32> to vector<8x512xf32>
    %c320 = arith.constant 320 : index
    %c0_134 = arith.constant 0 : index
    %126 = vector.load %arg6[%c320, %c0_134] : memref<656x512xf32, #tpu.memory_space<vmem>>, vector<8x512xf32>
    tpu.vector_store %arg6[%c320, %c0_134], %125 {strides = array<i32>} : memref<656x512xf32, #tpu.memory_space<vmem>>, vector<8x512xf32>,
    %c0_135 = arith.constant 0 : index
    %c0_136 = arith.constant 0 : index
    %c133 = arith.constant 133 : index
    %127 = vector.load %arg1[%c0_135, %c0_136, %c133] : memref<1x8x896xf32, #tpu.memory_space<vmem>>, vector<1x8x512xf32>
    %128 = vector.shape_cast %127 : vector<1x8x512xf32> to vector<8x512xf32>
    %c328 = arith.constant 328 : index
    %c0_137 = arith.constant 0 : index
    %129 = vector.load %arg6[%c328, %c0_137] : memref<656x512xf32, #tpu.memory_space<vmem>>, vector<8x512xf32>
    tpu.vector_store %arg6[%c328, %c0_137], %128 {strides = array<i32>} : memref<656x512xf32, #tpu.memory_space<vmem>>, vector<8x512xf32>,
    %c0_138 = arith.constant 0 : index
    %c0_139 = arith.constant 0 : index
    %c134 = arith.constant 134 : index
    %130 = vector.load %arg1[%c0_138, %c0_139, %c134] : memref<1x8x896xf32, #tpu.memory_space<vmem>>, vector<1x8x512xf32>
    %131 = vector.shape_cast %130 : vector<1x8x512xf32> to vector<8x512xf32>
    %c336 = arith.constant 336 : index
    %c0_140 = arith.constant 0 : index
    %132 = vector.load %arg6[%c336, %c0_140] : memref<656x512xf32, #tpu.memory_space<vmem>>, vector<8x512xf32>
    tpu.vector_store %arg6[%c336, %c0_140], %131 {strides = array<i32>} : memref<656x512xf32, #tpu.memory_space<vmem>>, vector<8x512xf32>,
    %c0_141 = arith.constant 0 : index
    %c0_142 = arith.constant 0 : index
    %c135 = arith.constant 135 : index
    %133 = vector.load %arg1[%c0_141, %c0_142, %c135] : memref<1x8x896xf32, #tpu.memory_space<vmem>>, vector<1x8x512xf32>
    %134 = vector.shape_cast %133 : vector<1x8x512xf32> to vector<8x512xf32>
    %c344 = arith.constant 344 : index
    %c0_143 = arith.constant 0 : index
    %135 = vector.load %arg6[%c344, %c0_143] : memref<656x512xf32, #tpu.memory_space<vmem>>, vector<8x512xf32>
    tpu.vector_store %arg6[%c344, %c0_143], %134 {strides = array<i32>} : memref<656x512xf32, #tpu.memory_space<vmem>>, vector<8x512xf32>,
    %c0_144 = arith.constant 0 : index
    %c0_145 = arith.constant 0 : index
    %c136_146 = arith.constant 136 : index
    %136 = vector.load %arg1[%c0_144, %c0_145, %c136_146] : memref<1x8x896xf32, #tpu.memory_space<vmem>>, vector<1x8x512xf32>
    %137 = vector.shape_cast %136 : vector<1x8x512xf32> to vector<8x512xf32>
    %c352 = arith.constant 352 : index
    %c0_147 = arith.constant 0 : index
    %138 = vector.load %arg6[%c352, %c0_147] : memref<656x512xf32, #tpu.memory_space<vmem>>, vector<8x512xf32>
    tpu.vector_store %arg6[%c352, %c0_147], %137 {strides = array<i32>} : memref<656x512xf32, #tpu.memory_space<vmem>>, vector<8x512xf32>,
    %c0_148 = arith.constant 0 : index
    %c0_149 = arith.constant 0 : index
    %c160_150 = arith.constant 160 : index
    %139 = vector.load %arg1[%c0_148, %c0_149, %c160_150] : memref<1x8x896xf32, #tpu.memory_space<vmem>>, vector<1x8x512xf32>
    %140 = vector.shape_cast %139 : vector<1x8x512xf32> to vector<8x512xf32>
    %c360 = arith.constant 360 : index
    %c0_151 = arith.constant 0 : index
    %141 = vector.load %arg6[%c360, %c0_151] : memref<656x512xf32, #tpu.memory_space<vmem>>, vector<8x512xf32>
    tpu.vector_store %arg6[%c360, %c0_151], %140 {strides = array<i32>} : memref<656x512xf32, #tpu.memory_space<vmem>>, vector<8x512xf32>,
    %c0_152 = arith.constant 0 : index
    %c0_153 = arith.constant 0 : index
    %c161 = arith.constant 161 : index
    %142 = vector.load %arg1[%c0_152, %c0_153, %c161] : memref<1x8x896xf32, #tpu.memory_space<vmem>>, vector<1x8x512xf32>
    %143 = vector.shape_cast %142 : vector<1x8x512xf32> to vector<8x512xf32>
    %c368 = arith.constant 368 : index
    %c0_154 = arith.constant 0 : index
    %144 = vector.load %arg6[%c368, %c0_154] : memref<656x512xf32, #tpu.memory_space<vmem>>, vector<8x512xf32>
    tpu.vector_store %arg6[%c368, %c0_154], %143 {strides = array<i32>} : memref<656x512xf32, #tpu.memory_space<vmem>>, vector<8x512xf32>,
    %c0_155 = arith.constant 0 : index
    %c0_156 = arith.constant 0 : index
    %c162 = arith.constant 162 : index
    %145 = vector.load %arg1[%c0_155, %c0_156, %c162] : memref<1x8x896xf32, #tpu.memory_space<vmem>>, vector<1x8x512xf32>
    %146 = vector.shape_cast %145 : vector<1x8x512xf32> to vector<8x512xf32>
    %c376 = arith.constant 376 : index
    %c0_157 = arith.constant 0 : index
    %147 = vector.load %arg6[%c376, %c0_157] : memref<656x512xf32, #tpu.memory_space<vmem>>, vector<8x512xf32>
    tpu.vector_store %arg6[%c376, %c0_157], %146 {strides = array<i32>} : memref<656x512xf32, #tpu.memory_space<vmem>>, vector<8x512xf32>,
    %c0_158 = arith.constant 0 : index
    %c0_159 = arith.constant 0 : index
    %c163 = arith.constant 163 : index
    %148 = vector.load %arg1[%c0_158, %c0_159, %c163] : memref<1x8x896xf32, #tpu.memory_space<vmem>>, vector<1x8x512xf32>
    %149 = vector.shape_cast %148 : vector<1x8x512xf32> to vector<8x512xf32>
    %c384 = arith.constant 384 : index
    %c0_160 = arith.constant 0 : index
    %150 = vector.load %arg6[%c384, %c0_160] : memref<656x512xf32, #tpu.memory_space<vmem>>, vector<8x512xf32>
    tpu.vector_store %arg6[%c384, %c0_160], %149 {strides = array<i32>} : memref<656x512xf32, #tpu.memory_space<vmem>>, vector<8x512xf32>,
    %c0_161 = arith.constant 0 : index
    %c0_162 = arith.constant 0 : index
    %c164 = arith.constant 164 : index
    %151 = vector.load %arg1[%c0_161, %c0_162, %c164] : memref<1x8x896xf32, #tpu.memory_space<vmem>>, vector<1x8x512xf32>
    %152 = vector.shape_cast %151 : vector<1x8x512xf32> to vector<8x512xf32>
    %c392 = arith.constant 392 : index
    %c0_163 = arith.constant 0 : index
    %153 = vector.load %arg6[%c392, %c0_163] : memref<656x512xf32, #tpu.memory_space<vmem>>, vector<8x512xf32>
    tpu.vector_store %arg6[%c392, %c0_163], %152 {strides = array<i32>} : memref<656x512xf32, #tpu.memory_space<vmem>>, vector<8x512xf32>,
    %c0_164 = arith.constant 0 : index
    %c0_165 = arith.constant 0 : index
    %c165 = arith.constant 165 : index
    %154 = vector.load %arg1[%c0_164, %c0_165, %c165] : memref<1x8x896xf32, #tpu.memory_space<vmem>>, vector<1x8x512xf32>
    %155 = vector.shape_cast %154 : vector<1x8x512xf32> to vector<8x512xf32>
    %c400 = arith.constant 400 : index
    %c0_166 = arith.constant 0 : index
    %156 = vector.load %arg6[%c400, %c0_166] : memref<656x512xf32, #tpu.memory_space<vmem>>, vector<8x512xf32>
    tpu.vector_store %arg6[%c400, %c0_166], %155 {strides = array<i32>} : memref<656x512xf32, #tpu.memory_space<vmem>>, vector<8x512xf32>,
    %c0_167 = arith.constant 0 : index
    %c0_168 = arith.constant 0 : index
    %c166 = arith.constant 166 : index
    %157 = vector.load %arg1[%c0_167, %c0_168, %c166] : memref<1x8x896xf32, #tpu.memory_space<vmem>>, vector<1x8x512xf32>
    %158 = vector.shape_cast %157 : vector<1x8x512xf32> to vector<8x512xf32>
    %c408 = arith.constant 408 : index
    %c0_169 = arith.constant 0 : index
    %159 = vector.load %arg6[%c408, %c0_169] : memref<656x512xf32, #tpu.memory_space<vmem>>, vector<8x512xf32>
    tpu.vector_store %arg6[%c408, %c0_169], %158 {strides = array<i32>} : memref<656x512xf32, #tpu.memory_space<vmem>>, vector<8x512xf32>,
    %c0_170 = arith.constant 0 : index
    %c0_171 = arith.constant 0 : index
    %c167 = arith.constant 167 : index
    %160 = vector.load %arg1[%c0_170, %c0_171, %c167] : memref<1x8x896xf32, #tpu.memory_space<vmem>>, vector<1x8x512xf32>
    %161 = vector.shape_cast %160 : vector<1x8x512xf32> to vector<8x512xf32>
    %c416 = arith.constant 416 : index
    %c0_172 = arith.constant 0 : index
    %162 = vector.load %arg6[%c416, %c0_172] : memref<656x512xf32, #tpu.memory_space<vmem>>, vector<8x512xf32>
    tpu.vector_store %arg6[%c416, %c0_172], %161 {strides = array<i32>} : memref<656x512xf32, #tpu.memory_space<vmem>>, vector<8x512xf32>,
    %c0_173 = arith.constant 0 : index
    %c0_174 = arith.constant 0 : index
    %c168_175 = arith.constant 168 : index
    %163 = vector.load %arg1[%c0_173, %c0_174, %c168_175] : memref<1x8x896xf32, #tpu.memory_space<vmem>>, vector<1x8x512xf32>
    %164 = vector.shape_cast %163 : vector<1x8x512xf32> to vector<8x512xf32>
    %c424 = arith.constant 424 : index
    %c0_176 = arith.constant 0 : index
    %165 = vector.load %arg6[%c424, %c0_176] : memref<656x512xf32, #tpu.memory_space<vmem>>, vector<8x512xf32>
    tpu.vector_store %arg6[%c424, %c0_176], %164 {strides = array<i32>} : memref<656x512xf32, #tpu.memory_space<vmem>>, vector<8x512xf32>,
    %c0_177 = arith.constant 0 : index
    %c0_178 = arith.constant 0 : index
    %c192_179 = arith.constant 192 : index
    %166 = vector.load %arg1[%c0_177, %c0_178, %c192_179] : memref<1x8x896xf32, #tpu.memory_space<vmem>>, vector<1x8x512xf32>
    %167 = vector.shape_cast %166 : vector<1x8x512xf32> to vector<8x512xf32>
    %c432 = arith.constant 432 : index
    %c0_180 = arith.constant 0 : index
    %168 = vector.load %arg6[%c432, %c0_180] : memref<656x512xf32, #tpu.memory_space<vmem>>, vector<8x512xf32>
    tpu.vector_store %arg6[%c432, %c0_180], %167 {strides = array<i32>} : memref<656x512xf32, #tpu.memory_space<vmem>>, vector<8x512xf32>,
    %c0_181 = arith.constant 0 : index
    %c0_182 = arith.constant 0 : index
    %c193 = arith.constant 193 : index
    %169 = vector.load %arg1[%c0_181, %c0_182, %c193] : memref<1x8x896xf32, #tpu.memory_space<vmem>>, vector<1x8x512xf32>
    %170 = vector.shape_cast %169 : vector<1x8x512xf32> to vector<8x512xf32>
    %c440 = arith.constant 440 : index
    %c0_183 = arith.constant 0 : index
    %171 = vector.load %arg6[%c440, %c0_183] : memref<656x512xf32, #tpu.memory_space<vmem>>, vector<8x512xf32>
    tpu.vector_store %arg6[%c440, %c0_183], %170 {strides = array<i32>} : memref<656x512xf32, #tpu.memory_space<vmem>>, vector<8x512xf32>,
    %c0_184 = arith.constant 0 : index
    %c0_185 = arith.constant 0 : index
    %c194 = arith.constant 194 : index
    %172 = vector.load %arg1[%c0_184, %c0_185, %c194] : memref<1x8x896xf32, #tpu.memory_space<vmem>>, vector<1x8x512xf32>
    %173 = vector.shape_cast %172 : vector<1x8x512xf32> to vector<8x512xf32>
    %c448 = arith.constant 448 : index
    %c0_186 = arith.constant 0 : index
    %174 = vector.load %arg6[%c448, %c0_186] : memref<656x512xf32, #tpu.memory_space<vmem>>, vector<8x512xf32>
    tpu.vector_store %arg6[%c448, %c0_186], %173 {strides = array<i32>} : memref<656x512xf32, #tpu.memory_space<vmem>>, vector<8x512xf32>,
    %c0_187 = arith.constant 0 : index
    %c0_188 = arith.constant 0 : index
    %c195 = arith.constant 195 : index
    %175 = vector.load %arg1[%c0_187, %c0_188, %c195] : memref<1x8x896xf32, #tpu.memory_space<vmem>>, vector<1x8x512xf32>
    %176 = vector.shape_cast %175 : vector<1x8x512xf32> to vector<8x512xf32>
    %c456 = arith.constant 456 : index
    %c0_189 = arith.constant 0 : index
    %177 = vector.load %arg6[%c456, %c0_189] : memref<656x512xf32, #tpu.memory_space<vmem>>, vector<8x512xf32>
    tpu.vector_store %arg6[%c456, %c0_189], %176 {strides = array<i32>} : memref<656x512xf32, #tpu.memory_space<vmem>>, vector<8x512xf32>,
    %c0_190 = arith.constant 0 : index
    %c0_191 = arith.constant 0 : index
    %c196 = arith.constant 196 : index
    %178 = vector.load %arg1[%c0_190, %c0_191, %c196] : memref<1x8x896xf32, #tpu.memory_space<vmem>>, vector<1x8x512xf32>
    %179 = vector.shape_cast %178 : vector<1x8x512xf32> to vector<8x512xf32>
    %c464 = arith.constant 464 : index
    %c0_192 = arith.constant 0 : index
    %180 = vector.load %arg6[%c464, %c0_192] : memref<656x512xf32, #tpu.memory_space<vmem>>, vector<8x512xf32>
    tpu.vector_store %arg6[%c464, %c0_192], %179 {strides = array<i32>} : memref<656x512xf32, #tpu.memory_space<vmem>>, vector<8x512xf32>,
    %c0_193 = arith.constant 0 : index
    %c0_194 = arith.constant 0 : index
    %c197 = arith.constant 197 : index
    %181 = vector.load %arg1[%c0_193, %c0_194, %c197] : memref<1x8x896xf32, #tpu.memory_space<vmem>>, vector<1x8x512xf32>
    %182 = vector.shape_cast %181 : vector<1x8x512xf32> to vector<8x512xf32>
    %c472 = arith.constant 472 : index
    %c0_195 = arith.constant 0 : index
    %183 = vector.load %arg6[%c472, %c0_195] : memref<656x512xf32, #tpu.memory_space<vmem>>, vector<8x512xf32>
    tpu.vector_store %arg6[%c472, %c0_195], %182 {strides = array<i32>} : memref<656x512xf32, #tpu.memory_space<vmem>>, vector<8x512xf32>,
    %c0_196 = arith.constant 0 : index
    %c0_197 = arith.constant 0 : index
    %c198 = arith.constant 198 : index
    %184 = vector.load %arg1[%c0_196, %c0_197, %c198] : memref<1x8x896xf32, #tpu.memory_space<vmem>>, vector<1x8x512xf32>
    %185 = vector.shape_cast %184 : vector<1x8x512xf32> to vector<8x512xf32>
    %c480 = arith.constant 480 : index
    %c0_198 = arith.constant 0 : index
    %186 = vector.load %arg6[%c480, %c0_198] : memref<656x512xf32, #tpu.memory_space<vmem>>, vector<8x512xf32>
    tpu.vector_store %arg6[%c480, %c0_198], %185 {strides = array<i32>} : memref<656x512xf32, #tpu.memory_space<vmem>>, vector<8x512xf32>,
    %c0_199 = arith.constant 0 : index
    %c0_200 = arith.constant 0 : index
    %c199 = arith.constant 199 : index
    %187 = vector.load %arg1[%c0_199, %c0_200, %c199] : memref<1x8x896xf32, #tpu.memory_space<vmem>>, vector<1x8x512xf32>
    %188 = vector.shape_cast %187 : vector<1x8x512xf32> to vector<8x512xf32>
    %c488 = arith.constant 488 : index
    %c0_201 = arith.constant 0 : index
    %189 = vector.load %arg6[%c488, %c0_201] : memref<656x512xf32, #tpu.memory_space<vmem>>, vector<8x512xf32>
    tpu.vector_store %arg6[%c488, %c0_201], %188 {strides = array<i32>} : memref<656x512xf32, #tpu.memory_space<vmem>>, vector<8x512xf32>,
    %c0_202 = arith.constant 0 : index
    %c0_203 = arith.constant 0 : index
    %c200_204 = arith.constant 200 : index
    %190 = vector.load %arg1[%c0_202, %c0_203, %c200_204] : memref<1x8x896xf32, #tpu.memory_space<vmem>>, vector<1x8x512xf32>
    %191 = vector.shape_cast %190 : vector<1x8x512xf32> to vector<8x512xf32>
    %c496 = arith.constant 496 : index
    %c0_205 = arith.constant 0 : index
    %192 = vector.load %arg6[%c496, %c0_205] : memref<656x512xf32, #tpu.memory_space<vmem>>, vector<8x512xf32>
    tpu.vector_store %arg6[%c496, %c0_205], %191 {strides = array<i32>} : memref<656x512xf32, #tpu.memory_space<vmem>>, vector<8x512xf32>,
    %c0_206 = arith.constant 0 : index
    %c0_207 = arith.constant 0 : index
    %c224_208 = arith.constant 224 : index
    %193 = vector.load %arg1[%c0_206, %c0_207, %c224_208] : memref<1x8x896xf32, #tpu.memory_space<vmem>>, vector<1x8x512xf32>
    %194 = vector.shape_cast %193 : vector<1x8x512xf32> to vector<8x512xf32>
    %c504 = arith.constant 504 : index
    %c0_209 = arith.constant 0 : index
    %195 = vector.load %arg6[%c504, %c0_209] : memref<656x512xf32, #tpu.memory_space<vmem>>, vector<8x512xf32>
    tpu.vector_store %arg6[%c504, %c0_209], %194 {strides = array<i32>} : memref<656x512xf32, #tpu.memory_space<vmem>>, vector<8x512xf32>,
    %c0_210 = arith.constant 0 : index
    %c0_211 = arith.constant 0 : index
    %c225 = arith.constant 225 : index
    %196 = vector.load %arg1[%c0_210, %c0_211, %c225] : memref<1x8x896xf32, #tpu.memory_space<vmem>>, vector<1x8x512xf32>
    %197 = vector.shape_cast %196 : vector<1x8x512xf32> to vector<8x512xf32>
    %c512 = arith.constant 512 : index
    %c0_212 = arith.constant 0 : index
    %198 = vector.load %arg6[%c512, %c0_212] : memref<656x512xf32, #tpu.memory_space<vmem>>, vector<8x512xf32>
    tpu.vector_store %arg6[%c512, %c0_212], %197 {strides = array<i32>} : memref<656x512xf32, #tpu.memory_space<vmem>>, vector<8x512xf32>,
    %c0_213 = arith.constant 0 : index
    %c0_214 = arith.constant 0 : index
    %c226 = arith.constant 226 : index
    %199 = vector.load %arg1[%c0_213, %c0_214, %c226] : memref<1x8x896xf32, #tpu.memory_space<vmem>>, vector<1x8x512xf32>
    %200 = vector.shape_cast %199 : vector<1x8x512xf32> to vector<8x512xf32>
    %c520 = arith.constant 520 : index
    %c0_215 = arith.constant 0 : index
    %201 = vector.load %arg6[%c520, %c0_215] : memref<656x512xf32, #tpu.memory_space<vmem>>, vector<8x512xf32>
    tpu.vector_store %arg6[%c520, %c0_215], %200 {strides = array<i32>} : memref<656x512xf32, #tpu.memory_space<vmem>>, vector<8x512xf32>,
    %c0_216 = arith.constant 0 : index
    %c0_217 = arith.constant 0 : index
    %c227 = arith.constant 227 : index
    %202 = vector.load %arg1[%c0_216, %c0_217, %c227] : memref<1x8x896xf32, #tpu.memory_space<vmem>>, vector<1x8x512xf32>
    %203 = vector.shape_cast %202 : vector<1x8x512xf32> to vector<8x512xf32>
    %c528 = arith.constant 528 : index
    %c0_218 = arith.constant 0 : index
    %204 = vector.load %arg6[%c528, %c0_218] : memref<656x512xf32, #tpu.memory_space<vmem>>, vector<8x512xf32>
    tpu.vector_store %arg6[%c528, %c0_218], %203 {strides = array<i32>} : memref<656x512xf32, #tpu.memory_space<vmem>>, vector<8x512xf32>,
    %c0_219 = arith.constant 0 : index
    %c0_220 = arith.constant 0 : index
    %c228 = arith.constant 228 : index
    %205 = vector.load %arg1[%c0_219, %c0_220, %c228] : memref<1x8x896xf32, #tpu.memory_space<vmem>>, vector<1x8x512xf32>
    %206 = vector.shape_cast %205 : vector<1x8x512xf32> to vector<8x512xf32>
    %c536 = arith.constant 536 : index
    %c0_221 = arith.constant 0 : index
    %207 = vector.load %arg6[%c536, %c0_221] : memref<656x512xf32, #tpu.memory_space<vmem>>, vector<8x512xf32>
    tpu.vector_store %arg6[%c536, %c0_221], %206 {strides = array<i32>} : memref<656x512xf32, #tpu.memory_space<vmem>>, vector<8x512xf32>,
    %c0_222 = arith.constant 0 : index
    %c0_223 = arith.constant 0 : index
    %c229 = arith.constant 229 : index
    %208 = vector.load %arg1[%c0_222, %c0_223, %c229] : memref<1x8x896xf32, #tpu.memory_space<vmem>>, vector<1x8x512xf32>
    %209 = vector.shape_cast %208 : vector<1x8x512xf32> to vector<8x512xf32>
    %c544 = arith.constant 544 : index
    %c0_224 = arith.constant 0 : index
    %210 = vector.load %arg6[%c544, %c0_224] : memref<656x512xf32, #tpu.memory_space<vmem>>, vector<8x512xf32>
    tpu.vector_store %arg6[%c544, %c0_224], %209 {strides = array<i32>} : memref<656x512xf32, #tpu.memory_space<vmem>>, vector<8x512xf32>,
    %c0_225 = arith.constant 0 : index
    %c0_226 = arith.constant 0 : index
    %c230 = arith.constant 230 : index
    %211 = vector.load %arg1[%c0_225, %c0_226, %c230] : memref<1x8x896xf32, #tpu.memory_space<vmem>>, vector<1x8x512xf32>
    %212 = vector.shape_cast %211 : vector<1x8x512xf32> to vector<8x512xf32>
    %c552 = arith.constant 552 : index
    %c0_227 = arith.constant 0 : index
    %213 = vector.load %arg6[%c552, %c0_227] : memref<656x512xf32, #tpu.memory_space<vmem>>, vector<8x512xf32>
    tpu.vector_store %arg6[%c552, %c0_227], %212 {strides = array<i32>} : memref<656x512xf32, #tpu.memory_space<vmem>>, vector<8x512xf32>,
    %c0_228 = arith.constant 0 : index
    %c0_229 = arith.constant 0 : index
    %c231 = arith.constant 231 : index
    %214 = vector.load %arg1[%c0_228, %c0_229, %c231] : memref<1x8x896xf32, #tpu.memory_space<vmem>>, vector<1x8x512xf32>
    %215 = vector.shape_cast %214 : vector<1x8x512xf32> to vector<8x512xf32>
    %c560 = arith.constant 560 : index
    %c0_230 = arith.constant 0 : index
    %216 = vector.load %arg6[%c560, %c0_230] : memref<656x512xf32, #tpu.memory_space<vmem>>, vector<8x512xf32>
    tpu.vector_store %arg6[%c560, %c0_230], %215 {strides = array<i32>} : memref<656x512xf32, #tpu.memory_space<vmem>>, vector<8x512xf32>,
    %c0_231 = arith.constant 0 : index
    %c0_232 = arith.constant 0 : index
    %c232_233 = arith.constant 232 : index
    %217 = vector.load %arg1[%c0_231, %c0_232, %c232_233] : memref<1x8x896xf32, #tpu.memory_space<vmem>>, vector<1x8x512xf32>
    %218 = vector.shape_cast %217 : vector<1x8x512xf32> to vector<8x512xf32>
    %c568 = arith.constant 568 : index
    %c0_234 = arith.constant 0 : index
    %219 = vector.load %arg6[%c568, %c0_234] : memref<656x512xf32, #tpu.memory_space<vmem>>, vector<8x512xf32>
    tpu.vector_store %arg6[%c568, %c0_234], %218 {strides = array<i32>} : memref<656x512xf32, #tpu.memory_space<vmem>>, vector<8x512xf32>,
    %c0_235 = arith.constant 0 : index
    %c0_236 = arith.constant 0 : index
    %c256_237 = arith.constant 256 : index
    %220 = vector.load %arg1[%c0_235, %c0_236, %c256_237] : memref<1x8x896xf32, #tpu.memory_space<vmem>>, vector<1x8x512xf32>
    %221 = vector.shape_cast %220 : vector<1x8x512xf32> to vector<8x512xf32>
    %c576 = arith.constant 576 : index
    %c0_238 = arith.constant 0 : index
    %222 = vector.load %arg6[%c576, %c0_238] : memref<656x512xf32, #tpu.memory_space<vmem>>, vector<8x512xf32>
    tpu.vector_store %arg6[%c576, %c0_238], %221 {strides = array<i32>} : memref<656x512xf32, #tpu.memory_space<vmem>>, vector<8x512xf32>,
    %c0_239 = arith.constant 0 : index
    %c0_240 = arith.constant 0 : index
    %c257 = arith.constant 257 : index
    %223 = vector.load %arg1[%c0_239, %c0_240, %c257] : memref<1x8x896xf32, #tpu.memory_space<vmem>>, vector<1x8x512xf32>
    %224 = vector.shape_cast %223 : vector<1x8x512xf32> to vector<8x512xf32>
    %c584 = arith.constant 584 : index
    %c0_241 = arith.constant 0 : index
    %225 = vector.load %arg6[%c584, %c0_241] : memref<656x512xf32, #tpu.memory_space<vmem>>, vector<8x512xf32>
    tpu.vector_store %arg6[%c584, %c0_241], %224 {strides = array<i32>} : memref<656x512xf32, #tpu.memory_space<vmem>>, vector<8x512xf32>,
    %c0_242 = arith.constant 0 : index
    %c0_243 = arith.constant 0 : index
    %c258 = arith.constant 258 : index
    %226 = vector.load %arg1[%c0_242, %c0_243, %c258] : memref<1x8x896xf32, #tpu.memory_space<vmem>>, vector<1x8x512xf32>
    %227 = vector.shape_cast %226 : vector<1x8x512xf32> to vector<8x512xf32>
    %c592 = arith.constant 592 : index
    %c0_244 = arith.constant 0 : index
    %228 = vector.load %arg6[%c592, %c0_244] : memref<656x512xf32, #tpu.memory_space<vmem>>, vector<8x512xf32>
    tpu.vector_store %arg6[%c592, %c0_244], %227 {strides = array<i32>} : memref<656x512xf32, #tpu.memory_space<vmem>>, vector<8x512xf32>,
    %c0_245 = arith.constant 0 : index
    %c0_246 = arith.constant 0 : index
    %c259 = arith.constant 259 : index
    %229 = vector.load %arg1[%c0_245, %c0_246, %c259] : memref<1x8x896xf32, #tpu.memory_space<vmem>>, vector<1x8x512xf32>
    %230 = vector.shape_cast %229 : vector<1x8x512xf32> to vector<8x512xf32>
    %c600 = arith.constant 600 : index
    %c0_247 = arith.constant 0 : index
    %231 = vector.load %arg6[%c600, %c0_247] : memref<656x512xf32, #tpu.memory_space<vmem>>, vector<8x512xf32>
    tpu.vector_store %arg6[%c600, %c0_247], %230 {strides = array<i32>} : memref<656x512xf32, #tpu.memory_space<vmem>>, vector<8x512xf32>,
    %c0_248 = arith.constant 0 : index
    %c0_249 = arith.constant 0 : index
    %c260 = arith.constant 260 : index
    %232 = vector.load %arg1[%c0_248, %c0_249, %c260] : memref<1x8x896xf32, #tpu.memory_space<vmem>>, vector<1x8x512xf32>
    %233 = vector.shape_cast %232 : vector<1x8x512xf32> to vector<8x512xf32>
    %c608 = arith.constant 608 : index
    %c0_250 = arith.constant 0 : index
    %234 = vector.load %arg6[%c608, %c0_250] : memref<656x512xf32, #tpu.memory_space<vmem>>, vector<8x512xf32>
    tpu.vector_store %arg6[%c608, %c0_250], %233 {strides = array<i32>} : memref<656x512xf32, #tpu.memory_space<vmem>>, vector<8x512xf32>,
    %c0_251 = arith.constant 0 : index
    %c0_252 = arith.constant 0 : index
    %c261 = arith.constant 261 : index
    %235 = vector.load %arg1[%c0_251, %c0_252, %c261] : memref<1x8x896xf32, #tpu.memory_space<vmem>>, vector<1x8x512xf32>
    %236 = vector.shape_cast %235 : vector<1x8x512xf32> to vector<8x512xf32>
    %c616 = arith.constant 616 : index
    %c0_253 = arith.constant 0 : index
    %237 = vector.load %arg6[%c616, %c0_253] : memref<656x512xf32, #tpu.memory_space<vmem>>, vector<8x512xf32>
    tpu.vector_store %arg6[%c616, %c0_253], %236 {strides = array<i32>} : memref<656x512xf32, #tpu.memory_space<vmem>>, vector<8x512xf32>,
    %c0_254 = arith.constant 0 : index
    %c0_255 = arith.constant 0 : index
    %c262 = arith.constant 262 : index
    %238 = vector.load %arg1[%c0_254, %c0_255, %c262] : memref<1x8x896xf32, #tpu.memory_space<vmem>>, vector<1x8x512xf32>
    %239 = vector.shape_cast %238 : vector<1x8x512xf32> to vector<8x512xf32>
    %c624 = arith.constant 624 : index
    %c0_256 = arith.constant 0 : index
    %240 = vector.load %arg6[%c624, %c0_256] : memref<656x512xf32, #tpu.memory_space<vmem>>, vector<8x512xf32>
    tpu.vector_store %arg6[%c624, %c0_256], %239 {strides = array<i32>} : memref<656x512xf32, #tpu.memory_space<vmem>>, vector<8x512xf32>,
    %c0_257 = arith.constant 0 : index
    %c0_258 = arith.constant 0 : index
    %c263 = arith.constant 263 : index
    %241 = vector.load %arg1[%c0_257, %c0_258, %c263] : memref<1x8x896xf32, #tpu.memory_space<vmem>>, vector<1x8x512xf32>
    %242 = vector.shape_cast %241 : vector<1x8x512xf32> to vector<8x512xf32>
    %c632 = arith.constant 632 : index
    %c0_259 = arith.constant 0 : index
    %243 = vector.load %arg6[%c632, %c0_259] : memref<656x512xf32, #tpu.memory_space<vmem>>, vector<8x512xf32>
    tpu.vector_store %arg6[%c632, %c0_259], %242 {strides = array<i32>} : memref<656x512xf32, #tpu.memory_space<vmem>>, vector<8x512xf32>,
    %c0_260 = arith.constant 0 : index
    %c0_261 = arith.constant 0 : index
    %c264_262 = arith.constant 264 : index
    %244 = vector.load %arg1[%c0_260, %c0_261, %c264_262] : memref<1x8x896xf32, #tpu.memory_space<vmem>>, vector<1x8x512xf32>
    %245 = vector.shape_cast %244 : vector<1x8x512xf32> to vector<8x512xf32>
    %c640 = arith.constant 640 : index
    %c0_263 = arith.constant 0 : index
    %246 = vector.load %arg6[%c640, %c0_263] : memref<656x512xf32, #tpu.memory_space<vmem>>, vector<8x512xf32>
    tpu.vector_store %arg6[%c640, %c0_263], %245 {strides = array<i32>} : memref<656x512xf32, #tpu.memory_space<vmem>>, vector<8x512xf32>,
    %c0_264 = arith.constant 0 : index
    %c0_265 = arith.constant 0 : index
    %247 = vector.load %arg2[%c0_264, %c0_265] : memref<8x656xf32, #tpu.memory_space<vmem>>, vector<8x656xf32>
    %c0_266 = arith.constant 0 : index
    %c0_267 = arith.constant 0 : index
    %248 = vector.load %arg6[%c0_266, %c0_267] : memref<656x512xf32, #tpu.memory_space<vmem>>, vector<656x512xf32>
    %cst_268 = arith.constant dense<0.000000e+00> : vector<8x512xf32>
    %249 = tpu.matmul %247, %248, %cst_268 {dimension_numbers = #tpu.dot_dimension_numbers<[1], [0], [0], [1], [0, 0, 1, 1], [], []>} : vector<8x656xf32>, vector<656x512xf32>, vector<8x512xf32> -> vector<8x512xf32>
    %cst_269 = arith.constant 0.000000e+00 : f32
    %250 = vector.broadcast %cst_269 : f32 to vector<8x512xf32>
    %251 = arith.maximumf %249, %250 : vector<8x512xf32>
    %c0_270 = arith.constant 0 : index
    %c0_271 = arith.constant 0 : index
    %252 = vector.load %arg4[%c0_270, %c0_271] : memref<1x512xf32, #tpu.memory_space<vmem>>, vector<1x512xf32>
    %cst_272 = arith.constant 0.000000e+00 : f32
    %253 = vector.broadcast %cst_272 : f32 to vector<8x132xf32>
    %c0_273 = arith.constant 0 : index
    %c0_274 = arith.constant 0 : index
    %c0_275 = arith.constant 0 : index
    %254 = vector.load %arg7[%c0_273, %c0_274, %c0_275] : memref<1x8x896xf32, #tpu.memory_space<vmem>>, vector<1x8x132xf32>
    %255 = vector.shape_cast %254 : vector<1x8x132xf32> to vector<8x132xf32>
    %256 = vector.shape_cast %253 : vector<8x132xf32> to vector<1x8x132xf32>
    tpu.vector_store %arg7[%c0_273, %c0_274, %c0_275], %256 {strides = array<i32>} : memref<1x8x896xf32, #tpu.memory_space<vmem>>, vector<1x8x132xf32>,
    %cst_276 = arith.constant 0.000000e+00 : f32
    %257 = vector.broadcast %cst_276 : f32 to vector<8x252xf32>
    %c0_277 = arith.constant 0 : index
    %c0_278 = arith.constant 0 : index
    %c644 = arith.constant 644 : index
    %258 = vector.load %arg7[%c0_277, %c0_278, %c644] : memref<1x8x896xf32, #tpu.memory_space<vmem>>, vector<1x8x252xf32>
    %259 = vector.shape_cast %258 : vector<1x8x252xf32> to vector<8x252xf32>
    %260 = vector.shape_cast %257 : vector<8x252xf32> to vector<1x8x252xf32>
    tpu.vector_store %arg7[%c0_277, %c0_278, %c644], %260 {strides = array<i32>} : memref<1x8x896xf32, #tpu.memory_space<vmem>>, vector<1x8x252xf32>,
    %261 = vector.broadcast %252 : vector<1x512xf32> to vector<8x512xf32>
    %262 = arith.mulf %251, %261 : vector<8x512xf32>
    %c0_279 = arith.constant 0 : index
    %c0_280 = arith.constant 0 : index
    %c132_281 = arith.constant 132 : index
    %263 = vector.load %arg7[%c0_279, %c0_280, %c132_281] : memref<1x8x896xf32, #tpu.memory_space<vmem>>, vector<1x8x512xf32>
    %264 = vector.shape_cast %263 : vector<1x8x512xf32> to vector<8x512xf32>
    %265 = vector.shape_cast %262 : vector<8x512xf32> to vector<1x8x512xf32>
    tpu.vector_store %arg7[%c0_279, %c0_280, %c132_281], %265 {strides = array<i32>} : memref<1x8x896xf32, #tpu.memory_space<vmem>>, vector<1x8x512xf32>,
    %c0_282 = arith.constant 0 : index
    %c0_283 = arith.constant 0 : index
    %c0_284 = arith.constant 0 : index
    %266 = vector.load %arg7[%c0_282, %c0_283, %c0_284] : memref<1x8x896xf32, #tpu.memory_space<vmem>>, vector<1x8x512xf32>
    %267 = vector.shape_cast %266 : vector<1x8x512xf32> to vector<8x512xf32>
    %c0_285 = arith.constant 0 : index
    %c0_286 = arith.constant 0 : index
    %268 = vector.load %arg6[%c0_285, %c0_286] : memref<656x512xf32, #tpu.memory_space<vmem>>, vector<8x512xf32>
    tpu.vector_store %arg6[%c0_285, %c0_286], %267 {strides = array<i32>} : memref<656x512xf32, #tpu.memory_space<vmem>>, vector<8x512xf32>,
    %c0_287 = arith.constant 0 : index
    %c0_288 = arith.constant 0 : index
    %c1_289 = arith.constant 1 : index
    %269 = vector.load %arg7[%c0_287, %c0_288, %c1_289] : memref<1x8x896xf32, #tpu.memory_space<vmem>>, vector<1x8x512xf32>
    %270 = vector.shape_cast %269 : vector<1x8x512xf32> to vector<8x512xf32>
    %c8_290 = arith.constant 8 : index
    %c0_291 = arith.constant 0 : index
    %271 = vector.load %arg6[%c8_290, %c0_291] : memref<656x512xf32, #tpu.memory_space<vmem>>, vector<8x512xf32>
    tpu.vector_store %arg6[%c8_290, %c0_291], %270 {strides = array<i32>} : memref<656x512xf32, #tpu.memory_space<vmem>>, vector<8x512xf32>,
    %c0_292 = arith.constant 0 : index
    %c0_293 = arith.constant 0 : index
    %c2_294 = arith.constant 2 : index
    %272 = vector.load %arg7[%c0_292, %c0_293, %c2_294] : memref<1x8x896xf32, #tpu.memory_space<vmem>>, vector<1x8x512xf32>
    %273 = vector.shape_cast %272 : vector<1x8x512xf32> to vector<8x512xf32>
    %c16_295 = arith.constant 16 : index
    %c0_296 = arith.constant 0 : index
    %274 = vector.load %arg6[%c16_295, %c0_296] : memref<656x512xf32, #tpu.memory_space<vmem>>, vector<8x512xf32>
    tpu.vector_store %arg6[%c16_295, %c0_296], %273 {strides = array<i32>} : memref<656x512xf32, #tpu.memory_space<vmem>>, vector<8x512xf32>,
    %c0_297 = arith.constant 0 : index
    %c0_298 = arith.constant 0 : index
    %c3_299 = arith.constant 3 : index
    %275 = vector.load %arg7[%c0_297, %c0_298, %c3_299] : memref<1x8x896xf32, #tpu.memory_space<vmem>>, vector<1x8x512xf32>
    %276 = vector.shape_cast %275 : vector<1x8x512xf32> to vector<8x512xf32>
    %c24_300 = arith.constant 24 : index
    %c0_301 = arith.constant 0 : index
    %277 = vector.load %arg6[%c24_300, %c0_301] : memref<656x512xf32, #tpu.memory_space<vmem>>, vector<8x512xf32>
    tpu.vector_store %arg6[%c24_300, %c0_301], %276 {strides = array<i32>} : memref<656x512xf32, #tpu.memory_space<vmem>>, vector<8x512xf32>,
    %c0_302 = arith.constant 0 : index
    %c0_303 = arith.constant 0 : index
    %c4_304 = arith.constant 4 : index
    %278 = vector.load %arg7[%c0_302, %c0_303, %c4_304] : memref<1x8x896xf32, #tpu.memory_space<vmem>>, vector<1x8x512xf32>
    %279 = vector.shape_cast %278 : vector<1x8x512xf32> to vector<8x512xf32>
    %c32_305 = arith.constant 32 : index
    %c0_306 = arith.constant 0 : index
    %280 = vector.load %arg6[%c32_305, %c0_306] : memref<656x512xf32, #tpu.memory_space<vmem>>, vector<8x512xf32>
    tpu.vector_store %arg6[%c32_305, %c0_306], %279 {strides = array<i32>} : memref<656x512xf32, #tpu.memory_space<vmem>>, vector<8x512xf32>,
    %c0_307 = arith.constant 0 : index
    %c0_308 = arith.constant 0 : index
    %c5_309 = arith.constant 5 : index
    %281 = vector.load %arg7[%c0_307, %c0_308, %c5_309] : memref<1x8x896xf32, #tpu.memory_space<vmem>>, vector<1x8x512xf32>
    %282 = vector.shape_cast %281 : vector<1x8x512xf32> to vector<8x512xf32>
    %c40_310 = arith.constant 40 : index
    %c0_311 = arith.constant 0 : index
    %283 = vector.load %arg6[%c40_310, %c0_311] : memref<656x512xf32, #tpu.memory_space<vmem>>, vector<8x512xf32>
    tpu.vector_store %arg6[%c40_310, %c0_311], %282 {strides = array<i32>} : memref<656x512xf32, #tpu.memory_space<vmem>>, vector<8x512xf32>,
    %c0_312 = arith.constant 0 : index
    %c0_313 = arith.constant 0 : index
    %c6_314 = arith.constant 6 : index
    %284 = vector.load %arg7[%c0_312, %c0_313, %c6_314] : memref<1x8x896xf32, #tpu.memory_space<vmem>>, vector<1x8x512xf32>
    %285 = vector.shape_cast %284 : vector<1x8x512xf32> to vector<8x512xf32>
    %c48_315 = arith.constant 48 : index
    %c0_316 = arith.constant 0 : index
    %286 = vector.load %arg6[%c48_315, %c0_316] : memref<656x512xf32, #tpu.memory_space<vmem>>, vector<8x512xf32>
    tpu.vector_store %arg6[%c48_315, %c0_316], %285 {strides = array<i32>} : memref<656x512xf32, #tpu.memory_space<vmem>>, vector<8x512xf32>,
    %c0_317 = arith.constant 0 : index
    %c0_318 = arith.constant 0 : index
    %c7_319 = arith.constant 7 : index
    %287 = vector.load %arg7[%c0_317, %c0_318, %c7_319] : memref<1x8x896xf32, #tpu.memory_space<vmem>>, vector<1x8x512xf32>
    %288 = vector.shape_cast %287 : vector<1x8x512xf32> to vector<8x512xf32>
    %c56_320 = arith.constant 56 : index
    %c0_321 = arith.constant 0 : index
    %289 = vector.load %arg6[%c56_320, %c0_321] : memref<656x512xf32, #tpu.memory_space<vmem>>, vector<8x512xf32>
    tpu.vector_store %arg6[%c56_320, %c0_321], %288 {strides = array<i32>} : memref<656x512xf32, #tpu.memory_space<vmem>>, vector<8x512xf32>,
    %c0_322 = arith.constant 0 : index
    %c0_323 = arith.constant 0 : index
    %c8_324 = arith.constant 8 : index
    %290 = vector.load %arg7[%c0_322, %c0_323, %c8_324] : memref<1x8x896xf32, #tpu.memory_space<vmem>>, vector<1x8x512xf32>
    %291 = vector.shape_cast %290 : vector<1x8x512xf32> to vector<8x512xf32>
    %c64_325 = arith.constant 64 : index
    %c0_326 = arith.constant 0 : index
    %292 = vector.load %arg6[%c64_325, %c0_326] : memref<656x512xf32, #tpu.memory_space<vmem>>, vector<8x512xf32>
    tpu.vector_store %arg6[%c64_325, %c0_326], %291 {strides = array<i32>} : memref<656x512xf32, #tpu.memory_space<vmem>>, vector<8x512xf32>,
    %c0_327 = arith.constant 0 : index
    %c0_328 = arith.constant 0 : index
    %c32_329 = arith.constant 32 : index
    %293 = vector.load %arg7[%c0_327, %c0_328, %c32_329] : memref<1x8x896xf32, #tpu.memory_space<vmem>>, vector<1x8x512xf32>
    %294 = vector.shape_cast %293 : vector<1x8x512xf32> to vector<8x512xf32>
    %c72_330 = arith.constant 72 : index
    %c0_331 = arith.constant 0 : index
    %295 = vector.load %arg6[%c72_330, %c0_331] : memref<656x512xf32, #tpu.memory_space<vmem>>, vector<8x512xf32>
    tpu.vector_store %arg6[%c72_330, %c0_331], %294 {strides = array<i32>} : memref<656x512xf32, #tpu.memory_space<vmem>>, vector<8x512xf32>,
    %c0_332 = arith.constant 0 : index
    %c0_333 = arith.constant 0 : index
    %c33_334 = arith.constant 33 : index
    %296 = vector.load %arg7[%c0_332, %c0_333, %c33_334] : memref<1x8x896xf32, #tpu.memory_space<vmem>>, vector<1x8x512xf32>
    %297 = vector.shape_cast %296 : vector<1x8x512xf32> to vector<8x512xf32>
    %c80_335 = arith.constant 80 : index
    %c0_336 = arith.constant 0 : index
    %298 = vector.load %arg6[%c80_335, %c0_336] : memref<656x512xf32, #tpu.memory_space<vmem>>, vector<8x512xf32>
    tpu.vector_store %arg6[%c80_335, %c0_336], %297 {strides = array<i32>} : memref<656x512xf32, #tpu.memory_space<vmem>>, vector<8x512xf32>,
    %c0_337 = arith.constant 0 : index
    %c0_338 = arith.constant 0 : index
    %c34_339 = arith.constant 34 : index
    %299 = vector.load %arg7[%c0_337, %c0_338, %c34_339] : memref<1x8x896xf32, #tpu.memory_space<vmem>>, vector<1x8x512xf32>
    %300 = vector.shape_cast %299 : vector<1x8x512xf32> to vector<8x512xf32>
    %c88_340 = arith.constant 88 : index
    %c0_341 = arith.constant 0 : index
    %301 = vector.load %arg6[%c88_340, %c0_341] : memref<656x512xf32, #tpu.memory_space<vmem>>, vector<8x512xf32>
    tpu.vector_store %arg6[%c88_340, %c0_341], %300 {strides = array<i32>} : memref<656x512xf32, #tpu.memory_space<vmem>>, vector<8x512xf32>,
    %c0_342 = arith.constant 0 : index
    %c0_343 = arith.constant 0 : index
    %c35_344 = arith.constant 35 : index
    %302 = vector.load %arg7[%c0_342, %c0_343, %c35_344] : memref<1x8x896xf32, #tpu.memory_space<vmem>>, vector<1x8x512xf32>
    %303 = vector.shape_cast %302 : vector<1x8x512xf32> to vector<8x512xf32>
    %c96_345 = arith.constant 96 : index
    %c0_346 = arith.constant 0 : index
    %304 = vector.load %arg6[%c96_345, %c0_346] : memref<656x512xf32, #tpu.memory_space<vmem>>, vector<8x512xf32>
    tpu.vector_store %arg6[%c96_345, %c0_346], %303 {strides = array<i32>} : memref<656x512xf32, #tpu.memory_space<vmem>>, vector<8x512xf32>,
    %c0_347 = arith.constant 0 : index
    %c0_348 = arith.constant 0 : index
    %c36_349 = arith.constant 36 : index
    %305 = vector.load %arg7[%c0_347, %c0_348, %c36_349] : memref<1x8x896xf32, #tpu.memory_space<vmem>>, vector<1x8x512xf32>
    %306 = vector.shape_cast %305 : vector<1x8x512xf32> to vector<8x512xf32>
    %c104_350 = arith.constant 104 : index
    %c0_351 = arith.constant 0 : index
    %307 = vector.load %arg6[%c104_350, %c0_351] : memref<656x512xf32, #tpu.memory_space<vmem>>, vector<8x512xf32>
    tpu.vector_store %arg6[%c104_350, %c0_351], %306 {strides = array<i32>} : memref<656x512xf32, #tpu.memory_space<vmem>>, vector<8x512xf32>,
    %c0_352 = arith.constant 0 : index
    %c0_353 = arith.constant 0 : index
    %c37_354 = arith.constant 37 : index
    %308 = vector.load %arg7[%c0_352, %c0_353, %c37_354] : memref<1x8x896xf32, #tpu.memory_space<vmem>>, vector<1x8x512xf32>
    %309 = vector.shape_cast %308 : vector<1x8x512xf32> to vector<8x512xf32>
    %c112_355 = arith.constant 112 : index
    %c0_356 = arith.constant 0 : index
    %310 = vector.load %arg6[%c112_355, %c0_356] : memref<656x512xf32, #tpu.memory_space<vmem>>, vector<8x512xf32>
    tpu.vector_store %arg6[%c112_355, %c0_356], %309 {strides = array<i32>} : memref<656x512xf32, #tpu.memory_space<vmem>>, vector<8x512xf32>,
    %c0_357 = arith.constant 0 : index
    %c0_358 = arith.constant 0 : index
    %c38_359 = arith.constant 38 : index
    %311 = vector.load %arg7[%c0_357, %c0_358, %c38_359] : memref<1x8x896xf32, #tpu.memory_space<vmem>>, vector<1x8x512xf32>
    %312 = vector.shape_cast %311 : vector<1x8x512xf32> to vector<8x512xf32>
    %c120_360 = arith.constant 120 : index
    %c0_361 = arith.constant 0 : index
    %313 = vector.load %arg6[%c120_360, %c0_361] : memref<656x512xf32, #tpu.memory_space<vmem>>, vector<8x512xf32>
    tpu.vector_store %arg6[%c120_360, %c0_361], %312 {strides = array<i32>} : memref<656x512xf32, #tpu.memory_space<vmem>>, vector<8x512xf32>,
    %c0_362 = arith.constant 0 : index
    %c0_363 = arith.constant 0 : index
    %c39_364 = arith.constant 39 : index
    %314 = vector.load %arg7[%c0_362, %c0_363, %c39_364] : memref<1x8x896xf32, #tpu.memory_space<vmem>>, vector<1x8x512xf32>
    %315 = vector.shape_cast %314 : vector<1x8x512xf32> to vector<8x512xf32>
    %c128_365 = arith.constant 128 : index
    %c0_366 = arith.constant 0 : index
    %316 = vector.load %arg6[%c128_365, %c0_366] : memref<656x512xf32, #tpu.memory_space<vmem>>, vector<8x512xf32>
    tpu.vector_store %arg6[%c128_365, %c0_366], %315 {strides = array<i32>} : memref<656x512xf32, #tpu.memory_space<vmem>>, vector<8x512xf32>,
    %c0_367 = arith.constant 0 : index
    %c0_368 = arith.constant 0 : index
    %c40_369 = arith.constant 40 : index
    %317 = vector.load %arg7[%c0_367, %c0_368, %c40_369] : memref<1x8x896xf32, #tpu.memory_space<vmem>>, vector<1x8x512xf32>
    %318 = vector.shape_cast %317 : vector<1x8x512xf32> to vector<8x512xf32>
    %c136_370 = arith.constant 136 : index
    %c0_371 = arith.constant 0 : index
    %319 = vector.load %arg6[%c136_370, %c0_371] : memref<656x512xf32, #tpu.memory_space<vmem>>, vector<8x512xf32>
    tpu.vector_store %arg6[%c136_370, %c0_371], %318 {strides = array<i32>} : memref<656x512xf32, #tpu.memory_space<vmem>>, vector<8x512xf32>,
    %c0_372 = arith.constant 0 : index
    %c0_373 = arith.constant 0 : index
    %c64_374 = arith.constant 64 : index
    %320 = vector.load %arg7[%c0_372, %c0_373, %c64_374] : memref<1x8x896xf32, #tpu.memory_space<vmem>>, vector<1x8x512xf32>
    %321 = vector.shape_cast %320 : vector<1x8x512xf32> to vector<8x512xf32>
    %c144_375 = arith.constant 144 : index
    %c0_376 = arith.constant 0 : index
    %322 = vector.load %arg6[%c144_375, %c0_376] : memref<656x512xf32, #tpu.memory_space<vmem>>, vector<8x512xf32>
    tpu.vector_store %arg6[%c144_375, %c0_376], %321 {strides = array<i32>} : memref<656x512xf32, #tpu.memory_space<vmem>>, vector<8x512xf32>,
    %c0_377 = arith.constant 0 : index
    %c0_378 = arith.constant 0 : index
    %c65_379 = arith.constant 65 : index
    %323 = vector.load %arg7[%c0_377, %c0_378, %c65_379] : memref<1x8x896xf32, #tpu.memory_space<vmem>>, vector<1x8x512xf32>
    %324 = vector.shape_cast %323 : vector<1x8x512xf32> to vector<8x512xf32>
    %c152_380 = arith.constant 152 : index
    %c0_381 = arith.constant 0 : index
    %325 = vector.load %arg6[%c152_380, %c0_381] : memref<656x512xf32, #tpu.memory_space<vmem>>, vector<8x512xf32>
    tpu.vector_store %arg6[%c152_380, %c0_381], %324 {strides = array<i32>} : memref<656x512xf32, #tpu.memory_space<vmem>>, vector<8x512xf32>,
    %c0_382 = arith.constant 0 : index
    %c0_383 = arith.constant 0 : index
    %c66_384 = arith.constant 66 : index
    %326 = vector.load %arg7[%c0_382, %c0_383, %c66_384] : memref<1x8x896xf32, #tpu.memory_space<vmem>>, vector<1x8x512xf32>
    %327 = vector.shape_cast %326 : vector<1x8x512xf32> to vector<8x512xf32>
    %c160_385 = arith.constant 160 : index
    %c0_386 = arith.constant 0 : index
    %328 = vector.load %arg6[%c160_385, %c0_386] : memref<656x512xf32, #tpu.memory_space<vmem>>, vector<8x512xf32>
    tpu.vector_store %arg6[%c160_385, %c0_386], %327 {strides = array<i32>} : memref<656x512xf32, #tpu.memory_space<vmem>>, vector<8x512xf32>,
    %c0_387 = arith.constant 0 : index
    %c0_388 = arith.constant 0 : index
    %c67_389 = arith.constant 67 : index
    %329 = vector.load %arg7[%c0_387, %c0_388, %c67_389] : memref<1x8x896xf32, #tpu.memory_space<vmem>>, vector<1x8x512xf32>
    %330 = vector.shape_cast %329 : vector<1x8x512xf32> to vector<8x512xf32>
    %c168_390 = arith.constant 168 : index
    %c0_391 = arith.constant 0 : index
    %331 = vector.load %arg6[%c168_390, %c0_391] : memref<656x512xf32, #tpu.memory_space<vmem>>, vector<8x512xf32>
    tpu.vector_store %arg6[%c168_390, %c0_391], %330 {strides = array<i32>} : memref<656x512xf32, #tpu.memory_space<vmem>>, vector<8x512xf32>,
    %c0_392 = arith.constant 0 : index
    %c0_393 = arith.constant 0 : index
    %c68_394 = arith.constant 68 : index
    %332 = vector.load %arg7[%c0_392, %c0_393, %c68_394] : memref<1x8x896xf32, #tpu.memory_space<vmem>>, vector<1x8x512xf32>
    %333 = vector.shape_cast %332 : vector<1x8x512xf32> to vector<8x512xf32>
    %c176_395 = arith.constant 176 : index
    %c0_396 = arith.constant 0 : index
    %334 = vector.load %arg6[%c176_395, %c0_396] : memref<656x512xf32, #tpu.memory_space<vmem>>, vector<8x512xf32>
    tpu.vector_store %arg6[%c176_395, %c0_396], %333 {strides = array<i32>} : memref<656x512xf32, #tpu.memory_space<vmem>>, vector<8x512xf32>,
    %c0_397 = arith.constant 0 : index
    %c0_398 = arith.constant 0 : index
    %c69_399 = arith.constant 69 : index
    %335 = vector.load %arg7[%c0_397, %c0_398, %c69_399] : memref<1x8x896xf32, #tpu.memory_space<vmem>>, vector<1x8x512xf32>
    %336 = vector.shape_cast %335 : vector<1x8x512xf32> to vector<8x512xf32>
    %c184_400 = arith.constant 184 : index
    %c0_401 = arith.constant 0 : index
    %337 = vector.load %arg6[%c184_400, %c0_401] : memref<656x512xf32, #tpu.memory_space<vmem>>, vector<8x512xf32>
    tpu.vector_store %arg6[%c184_400, %c0_401], %336 {strides = array<i32>} : memref<656x512xf32, #tpu.memory_space<vmem>>, vector<8x512xf32>,
    %c0_402 = arith.constant 0 : index
    %c0_403 = arith.constant 0 : index
    %c70_404 = arith.constant 70 : index
    %338 = vector.load %arg7[%c0_402, %c0_403, %c70_404] : memref<1x8x896xf32, #tpu.memory_space<vmem>>, vector<1x8x512xf32>
    %339 = vector.shape_cast %338 : vector<1x8x512xf32> to vector<8x512xf32>
    %c192_405 = arith.constant 192 : index
    %c0_406 = arith.constant 0 : index
    %340 = vector.load %arg6[%c192_405, %c0_406] : memref<656x512xf32, #tpu.memory_space<vmem>>, vector<8x512xf32>
    tpu.vector_store %arg6[%c192_405, %c0_406], %339 {strides = array<i32>} : memref<656x512xf32, #tpu.memory_space<vmem>>, vector<8x512xf32>,
    %c0_407 = arith.constant 0 : index
    %c0_408 = arith.constant 0 : index
    %c71_409 = arith.constant 71 : index
    %341 = vector.load %arg7[%c0_407, %c0_408, %c71_409] : memref<1x8x896xf32, #tpu.memory_space<vmem>>, vector<1x8x512xf32>
    %342 = vector.shape_cast %341 : vector<1x8x512xf32> to vector<8x512xf32>
    %c200_410 = arith.constant 200 : index
    %c0_411 = arith.constant 0 : index
    %343 = vector.load %arg6[%c200_410, %c0_411] : memref<656x512xf32, #tpu.memory_space<vmem>>, vector<8x512xf32>
    tpu.vector_store %arg6[%c200_410, %c0_411], %342 {strides = array<i32>} : memref<656x512xf32, #tpu.memory_space<vmem>>, vector<8x512xf32>,
    %c0_412 = arith.constant 0 : index
    %c0_413 = arith.constant 0 : index
    %c72_414 = arith.constant 72 : index
    %344 = vector.load %arg7[%c0_412, %c0_413, %c72_414] : memref<1x8x896xf32, #tpu.memory_space<vmem>>, vector<1x8x512xf32>
    %345 = vector.shape_cast %344 : vector<1x8x512xf32> to vector<8x512xf32>
    %c208_415 = arith.constant 208 : index
    %c0_416 = arith.constant 0 : index
    %346 = vector.load %arg6[%c208_415, %c0_416] : memref<656x512xf32, #tpu.memory_space<vmem>>, vector<8x512xf32>
    tpu.vector_store %arg6[%c208_415, %c0_416], %345 {strides = array<i32>} : memref<656x512xf32, #tpu.memory_space<vmem>>, vector<8x512xf32>,
    %c0_417 = arith.constant 0 : index
    %c0_418 = arith.constant 0 : index
    %c96_419 = arith.constant 96 : index
    %347 = vector.load %arg7[%c0_417, %c0_418, %c96_419] : memref<1x8x896xf32, #tpu.memory_space<vmem>>, vector<1x8x512xf32>
    %348 = vector.shape_cast %347 : vector<1x8x512xf32> to vector<8x512xf32>
    %c216_420 = arith.constant 216 : index
    %c0_421 = arith.constant 0 : index
    %349 = vector.load %arg6[%c216_420, %c0_421] : memref<656x512xf32, #tpu.memory_space<vmem>>, vector<8x512xf32>
    tpu.vector_store %arg6[%c216_420, %c0_421], %348 {strides = array<i32>} : memref<656x512xf32, #tpu.memory_space<vmem>>, vector<8x512xf32>,
    %c0_422 = arith.constant 0 : index
    %c0_423 = arith.constant 0 : index
    %c97_424 = arith.constant 97 : index
    %350 = vector.load %arg7[%c0_422, %c0_423, %c97_424] : memref<1x8x896xf32, #tpu.memory_space<vmem>>, vector<1x8x512xf32>
    %351 = vector.shape_cast %350 : vector<1x8x512xf32> to vector<8x512xf32>
    %c224_425 = arith.constant 224 : index
    %c0_426 = arith.constant 0 : index
    %352 = vector.load %arg6[%c224_425, %c0_426] : memref<656x512xf32, #tpu.memory_space<vmem>>, vector<8x512xf32>
    tpu.vector_store %arg6[%c224_425, %c0_426], %351 {strides = array<i32>} : memref<656x512xf32, #tpu.memory_space<vmem>>, vector<8x512xf32>,
    %c0_427 = arith.constant 0 : index
    %c0_428 = arith.constant 0 : index
    %c98_429 = arith.constant 98 : index
    %353 = vector.load %arg7[%c0_427, %c0_428, %c98_429] : memref<1x8x896xf32, #tpu.memory_space<vmem>>, vector<1x8x512xf32>
    %354 = vector.shape_cast %353 : vector<1x8x512xf32> to vector<8x512xf32>
    %c232_430 = arith.constant 232 : index
    %c0_431 = arith.constant 0 : index
    %355 = vector.load %arg6[%c232_430, %c0_431] : memref<656x512xf32, #tpu.memory_space<vmem>>, vector<8x512xf32>
    tpu.vector_store %arg6[%c232_430, %c0_431], %354 {strides = array<i32>} : memref<656x512xf32, #tpu.memory_space<vmem>>, vector<8x512xf32>,
    %c0_432 = arith.constant 0 : index
    %c0_433 = arith.constant 0 : index
    %c99_434 = arith.constant 99 : index
    %356 = vector.load %arg7[%c0_432, %c0_433, %c99_434] : memref<1x8x896xf32, #tpu.memory_space<vmem>>, vector<1x8x512xf32>
    %357 = vector.shape_cast %356 : vector<1x8x512xf32> to vector<8x512xf32>
    %c240_435 = arith.constant 240 : index
    %c0_436 = arith.constant 0 : index
    %358 = vector.load %arg6[%c240_435, %c0_436] : memref<656x512xf32, #tpu.memory_space<vmem>>, vector<8x512xf32>
    tpu.vector_store %arg6[%c240_435, %c0_436], %357 {strides = array<i32>} : memref<656x512xf32, #tpu.memory_space<vmem>>, vector<8x512xf32>,
    %c0_437 = arith.constant 0 : index
    %c0_438 = arith.constant 0 : index
    %c100_439 = arith.constant 100 : index
    %359 = vector.load %arg7[%c0_437, %c0_438, %c100_439] : memref<1x8x896xf32, #tpu.memory_space<vmem>>, vector<1x8x512xf32>
    %360 = vector.shape_cast %359 : vector<1x8x512xf32> to vector<8x512xf32>
    %c248_440 = arith.constant 248 : index
    %c0_441 = arith.constant 0 : index
    %361 = vector.load %arg6[%c248_440, %c0_441] : memref<656x512xf32, #tpu.memory_space<vmem>>, vector<8x512xf32>
    tpu.vector_store %arg6[%c248_440, %c0_441], %360 {strides = array<i32>} : memref<656x512xf32, #tpu.memory_space<vmem>>, vector<8x512xf32>,
    %c0_442 = arith.constant 0 : index
    %c0_443 = arith.constant 0 : index
    %c101_444 = arith.constant 101 : index
    %362 = vector.load %arg7[%c0_442, %c0_443, %c101_444] : memref<1x8x896xf32, #tpu.memory_space<vmem>>, vector<1x8x512xf32>
    %363 = vector.shape_cast %362 : vector<1x8x512xf32> to vector<8x512xf32>
    %c256_445 = arith.constant 256 : index
    %c0_446 = arith.constant 0 : index
    %364 = vector.load %arg6[%c256_445, %c0_446] : memref<656x512xf32, #tpu.memory_space<vmem>>, vector<8x512xf32>
    tpu.vector_store %arg6[%c256_445, %c0_446], %363 {strides = array<i32>} : memref<656x512xf32, #tpu.memory_space<vmem>>, vector<8x512xf32>,
    %c0_447 = arith.constant 0 : index
    %c0_448 = arith.constant 0 : index
    %c102_449 = arith.constant 102 : index
    %365 = vector.load %arg7[%c0_447, %c0_448, %c102_449] : memref<1x8x896xf32, #tpu.memory_space<vmem>>, vector<1x8x512xf32>
    %366 = vector.shape_cast %365 : vector<1x8x512xf32> to vector<8x512xf32>
    %c264_450 = arith.constant 264 : index
    %c0_451 = arith.constant 0 : index
    %367 = vector.load %arg6[%c264_450, %c0_451] : memref<656x512xf32, #tpu.memory_space<vmem>>, vector<8x512xf32>
    tpu.vector_store %arg6[%c264_450, %c0_451], %366 {strides = array<i32>} : memref<656x512xf32, #tpu.memory_space<vmem>>, vector<8x512xf32>,
    %c0_452 = arith.constant 0 : index
    %c0_453 = arith.constant 0 : index
    %c103_454 = arith.constant 103 : index
    %368 = vector.load %arg7[%c0_452, %c0_453, %c103_454] : memref<1x8x896xf32, #tpu.memory_space<vmem>>, vector<1x8x512xf32>
    %369 = vector.shape_cast %368 : vector<1x8x512xf32> to vector<8x512xf32>
    %c272_455 = arith.constant 272 : index
    %c0_456 = arith.constant 0 : index
    %370 = vector.load %arg6[%c272_455, %c0_456] : memref<656x512xf32, #tpu.memory_space<vmem>>, vector<8x512xf32>
    tpu.vector_store %arg6[%c272_455, %c0_456], %369 {strides = array<i32>} : memref<656x512xf32, #tpu.memory_space<vmem>>, vector<8x512xf32>,
    %c0_457 = arith.constant 0 : index
    %c0_458 = arith.constant 0 : index
    %c104_459 = arith.constant 104 : index
    %371 = vector.load %arg7[%c0_457, %c0_458, %c104_459] : memref<1x8x896xf32, #tpu.memory_space<vmem>>, vector<1x8x512xf32>
    %372 = vector.shape_cast %371 : vector<1x8x512xf32> to vector<8x512xf32>
    %c280_460 = arith.constant 280 : index
    %c0_461 = arith.constant 0 : index
    %373 = vector.load %arg6[%c280_460, %c0_461] : memref<656x512xf32, #tpu.memory_space<vmem>>, vector<8x512xf32>
    tpu.vector_store %arg6[%c280_460, %c0_461], %372 {strides = array<i32>} : memref<656x512xf32, #tpu.memory_space<vmem>>, vector<8x512xf32>,
    %c0_462 = arith.constant 0 : index
    %c0_463 = arith.constant 0 : index
    %c128_464 = arith.constant 128 : index
    %374 = vector.load %arg7[%c0_462, %c0_463, %c128_464] : memref<1x8x896xf32, #tpu.memory_space<vmem>>, vector<1x8x512xf32>
    %375 = vector.shape_cast %374 : vector<1x8x512xf32> to vector<8x512xf32>
    %c288_465 = arith.constant 288 : index
    %c0_466 = arith.constant 0 : index
    %376 = vector.load %arg6[%c288_465, %c0_466] : memref<656x512xf32, #tpu.memory_space<vmem>>, vector<8x512xf32>
    tpu.vector_store %arg6[%c288_465, %c0_466], %375 {strides = array<i32>} : memref<656x512xf32, #tpu.memory_space<vmem>>, vector<8x512xf32>,
    %c0_467 = arith.constant 0 : index
    %c0_468 = arith.constant 0 : index
    %c129_469 = arith.constant 129 : index
    %377 = vector.load %arg7[%c0_467, %c0_468, %c129_469] : memref<1x8x896xf32, #tpu.memory_space<vmem>>, vector<1x8x512xf32>
    %378 = vector.shape_cast %377 : vector<1x8x512xf32> to vector<8x512xf32>
    %c296_470 = arith.constant 296 : index
    %c0_471 = arith.constant 0 : index
    %379 = vector.load %arg6[%c296_470, %c0_471] : memref<656x512xf32, #tpu.memory_space<vmem>>, vector<8x512xf32>
    tpu.vector_store %arg6[%c296_470, %c0_471], %378 {strides = array<i32>} : memref<656x512xf32, #tpu.memory_space<vmem>>, vector<8x512xf32>,
    %c0_472 = arith.constant 0 : index
    %c0_473 = arith.constant 0 : index
    %c130_474 = arith.constant 130 : index
    %380 = vector.load %arg7[%c0_472, %c0_473, %c130_474] : memref<1x8x896xf32, #tpu.memory_space<vmem>>, vector<1x8x512xf32>
    %381 = vector.shape_cast %380 : vector<1x8x512xf32> to vector<8x512xf32>
    %c304_475 = arith.constant 304 : index
    %c0_476 = arith.constant 0 : index
    %382 = vector.load %arg6[%c304_475, %c0_476] : memref<656x512xf32, #tpu.memory_space<vmem>>, vector<8x512xf32>
    tpu.vector_store %arg6[%c304_475, %c0_476], %381 {strides = array<i32>} : memref<656x512xf32, #tpu.memory_space<vmem>>, vector<8x512xf32>,
    %c0_477 = arith.constant 0 : index
    %c0_478 = arith.constant 0 : index
    %c131_479 = arith.constant 131 : index
    %383 = vector.load %arg7[%c0_477, %c0_478, %c131_479] : memref<1x8x896xf32, #tpu.memory_space<vmem>>, vector<1x8x512xf32>
    %384 = vector.shape_cast %383 : vector<1x8x512xf32> to vector<8x512xf32>
    %c312_480 = arith.constant 312 : index
    %c0_481 = arith.constant 0 : index
    %385 = vector.load %arg6[%c312_480, %c0_481] : memref<656x512xf32, #tpu.memory_space<vmem>>, vector<8x512xf32>
    tpu.vector_store %arg6[%c312_480, %c0_481], %384 {strides = array<i32>} : memref<656x512xf32, #tpu.memory_space<vmem>>, vector<8x512xf32>,
    %c0_482 = arith.constant 0 : index
    %c0_483 = arith.constant 0 : index
    %c132_484 = arith.constant 132 : index
    %386 = vector.load %arg7[%c0_482, %c0_483, %c132_484] : memref<1x8x896xf32, #tpu.memory_space<vmem>>, vector<1x8x512xf32>
    %387 = vector.shape_cast %386 : vector<1x8x512xf32> to vector<8x512xf32>
    %c320_485 = arith.constant 320 : index
    %c0_486 = arith.constant 0 : index
    %388 = vector.load %arg6[%c320_485, %c0_486] : memref<656x512xf32, #tpu.memory_space<vmem>>, vector<8x512xf32>
    tpu.vector_store %arg6[%c320_485, %c0_486], %387 {strides = array<i32>} : memref<656x512xf32, #tpu.memory_space<vmem>>, vector<8x512xf32>,
    %c0_487 = arith.constant 0 : index
    %c0_488 = arith.constant 0 : index
    %c133_489 = arith.constant 133 : index
    %389 = vector.load %arg7[%c0_487, %c0_488, %c133_489] : memref<1x8x896xf32, #tpu.memory_space<vmem>>, vector<1x8x512xf32>
    %390 = vector.shape_cast %389 : vector<1x8x512xf32> to vector<8x512xf32>
    %c328_490 = arith.constant 328 : index
    %c0_491 = arith.constant 0 : index
    %391 = vector.load %arg6[%c328_490, %c0_491] : memref<656x512xf32, #tpu.memory_space<vmem>>, vector<8x512xf32>
    tpu.vector_store %arg6[%c328_490, %c0_491], %390 {strides = array<i32>} : memref<656x512xf32, #tpu.memory_space<vmem>>, vector<8x512xf32>,
    %c0_492 = arith.constant 0 : index
    %c0_493 = arith.constant 0 : index
    %c134_494 = arith.constant 134 : index
    %392 = vector.load %arg7[%c0_492, %c0_493, %c134_494] : memref<1x8x896xf32, #tpu.memory_space<vmem>>, vector<1x8x512xf32>
    %393 = vector.shape_cast %392 : vector<1x8x512xf32> to vector<8x512xf32>
    %c336_495 = arith.constant 336 : index
    %c0_496 = arith.constant 0 : index
    %394 = vector.load %arg6[%c336_495, %c0_496] : memref<656x512xf32, #tpu.memory_space<vmem>>, vector<8x512xf32>
    tpu.vector_store %arg6[%c336_495, %c0_496], %393 {strides = array<i32>} : memref<656x512xf32, #tpu.memory_space<vmem>>, vector<8x512xf32>,
    %c0_497 = arith.constant 0 : index
    %c0_498 = arith.constant 0 : index
    %c135_499 = arith.constant 135 : index
    %395 = vector.load %arg7[%c0_497, %c0_498, %c135_499] : memref<1x8x896xf32, #tpu.memory_space<vmem>>, vector<1x8x512xf32>
    %396 = vector.shape_cast %395 : vector<1x8x512xf32> to vector<8x512xf32>
    %c344_500 = arith.constant 344 : index
    %c0_501 = arith.constant 0 : index
    %397 = vector.load %arg6[%c344_500, %c0_501] : memref<656x512xf32, #tpu.memory_space<vmem>>, vector<8x512xf32>
    tpu.vector_store %arg6[%c344_500, %c0_501], %396 {strides = array<i32>} : memref<656x512xf32, #tpu.memory_space<vmem>>, vector<8x512xf32>,
    %c0_502 = arith.constant 0 : index
    %c0_503 = arith.constant 0 : index
    %c136_504 = arith.constant 136 : index
    %398 = vector.load %arg7[%c0_502, %c0_503, %c136_504] : memref<1x8x896xf32, #tpu.memory_space<vmem>>, vector<1x8x512xf32>
    %399 = vector.shape_cast %398 : vector<1x8x512xf32> to vector<8x512xf32>
    %c352_505 = arith.constant 352 : index
    %c0_506 = arith.constant 0 : index
    %400 = vector.load %arg6[%c352_505, %c0_506] : memref<656x512xf32, #tpu.memory_space<vmem>>, vector<8x512xf32>
    tpu.vector_store %arg6[%c352_505, %c0_506], %399 {strides = array<i32>} : memref<656x512xf32, #tpu.memory_space<vmem>>, vector<8x512xf32>,
    %c0_507 = arith.constant 0 : index
    %c0_508 = arith.constant 0 : index
    %c160_509 = arith.constant 160 : index
    %401 = vector.load %arg7[%c0_507, %c0_508, %c160_509] : memref<1x8x896xf32, #tpu.memory_space<vmem>>, vector<1x8x512xf32>
    %402 = vector.shape_cast %401 : vector<1x8x512xf32> to vector<8x512xf32>
    %c360_510 = arith.constant 360 : index
    %c0_511 = arith.constant 0 : index
    %403 = vector.load %arg6[%c360_510, %c0_511] : memref<656x512xf32, #tpu.memory_space<vmem>>, vector<8x512xf32>
    tpu.vector_store %arg6[%c360_510, %c0_511], %402 {strides = array<i32>} : memref<656x512xf32, #tpu.memory_space<vmem>>, vector<8x512xf32>,
    %c0_512 = arith.constant 0 : index
    %c0_513 = arith.constant 0 : index
    %c161_514 = arith.constant 161 : index
    %404 = vector.load %arg7[%c0_512, %c0_513, %c161_514] : memref<1x8x896xf32, #tpu.memory_space<vmem>>, vector<1x8x512xf32>
    %405 = vector.shape_cast %404 : vector<1x8x512xf32> to vector<8x512xf32>
    %c368_515 = arith.constant 368 : index
    %c0_516 = arith.constant 0 : index
    %406 = vector.load %arg6[%c368_515, %c0_516] : memref<656x512xf32, #tpu.memory_space<vmem>>, vector<8x512xf32>
    tpu.vector_store %arg6[%c368_515, %c0_516], %405 {strides = array<i32>} : memref<656x512xf32, #tpu.memory_space<vmem>>, vector<8x512xf32>,
    %c0_517 = arith.constant 0 : index
    %c0_518 = arith.constant 0 : index
    %c162_519 = arith.constant 162 : index
    %407 = vector.load %arg7[%c0_517, %c0_518, %c162_519] : memref<1x8x896xf32, #tpu.memory_space<vmem>>, vector<1x8x512xf32>
    %408 = vector.shape_cast %407 : vector<1x8x512xf32> to vector<8x512xf32>
    %c376_520 = arith.constant 376 : index
    %c0_521 = arith.constant 0 : index
    %409 = vector.load %arg6[%c376_520, %c0_521] : memref<656x512xf32, #tpu.memory_space<vmem>>, vector<8x512xf32>
    tpu.vector_store %arg6[%c376_520, %c0_521], %408 {strides = array<i32>} : memref<656x512xf32, #tpu.memory_space<vmem>>, vector<8x512xf32>,
    %c0_522 = arith.constant 0 : index
    %c0_523 = arith.constant 0 : index
    %c163_524 = arith.constant 163 : index
    %410 = vector.load %arg7[%c0_522, %c0_523, %c163_524] : memref<1x8x896xf32, #tpu.memory_space<vmem>>, vector<1x8x512xf32>
    %411 = vector.shape_cast %410 : vector<1x8x512xf32> to vector<8x512xf32>
    %c384_525 = arith.constant 384 : index
    %c0_526 = arith.constant 0 : index
    %412 = vector.load %arg6[%c384_525, %c0_526] : memref<656x512xf32, #tpu.memory_space<vmem>>, vector<8x512xf32>
    tpu.vector_store %arg6[%c384_525, %c0_526], %411 {strides = array<i32>} : memref<656x512xf32, #tpu.memory_space<vmem>>, vector<8x512xf32>,
    %c0_527 = arith.constant 0 : index
    %c0_528 = arith.constant 0 : index
    %c164_529 = arith.constant 164 : index
    %413 = vector.load %arg7[%c0_527, %c0_528, %c164_529] : memref<1x8x896xf32, #tpu.memory_space<vmem>>, vector<1x8x512xf32>
    %414 = vector.shape_cast %413 : vector<1x8x512xf32> to vector<8x512xf32>
    %c392_530 = arith.constant 392 : index
    %c0_531 = arith.constant 0 : index
    %415 = vector.load %arg6[%c392_530, %c0_531] : memref<656x512xf32, #tpu.memory_space<vmem>>, vector<8x512xf32>
    tpu.vector_store %arg6[%c392_530, %c0_531], %414 {strides = array<i32>} : memref<656x512xf32, #tpu.memory_space<vmem>>, vector<8x512xf32>,
    %c0_532 = arith.constant 0 : index
    %c0_533 = arith.constant 0 : index
    %c165_534 = arith.constant 165 : index
    %416 = vector.load %arg7[%c0_532, %c0_533, %c165_534] : memref<1x8x896xf32, #tpu.memory_space<vmem>>, vector<1x8x512xf32>
    %417 = vector.shape_cast %416 : vector<1x8x512xf32> to vector<8x512xf32>
    %c400_535 = arith.constant 400 : index
    %c0_536 = arith.constant 0 : index
    %418 = vector.load %arg6[%c400_535, %c0_536] : memref<656x512xf32, #tpu.memory_space<vmem>>, vector<8x512xf32>
    tpu.vector_store %arg6[%c400_535, %c0_536], %417 {strides = array<i32>} : memref<656x512xf32, #tpu.memory_space<vmem>>, vector<8x512xf32>,
    %c0_537 = arith.constant 0 : index
    %c0_538 = arith.constant 0 : index
    %c166_539 = arith.constant 166 : index
    %419 = vector.load %arg7[%c0_537, %c0_538, %c166_539] : memref<1x8x896xf32, #tpu.memory_space<vmem>>, vector<1x8x512xf32>
    %420 = vector.shape_cast %419 : vector<1x8x512xf32> to vector<8x512xf32>
    %c408_540 = arith.constant 408 : index
    %c0_541 = arith.constant 0 : index
    %421 = vector.load %arg6[%c408_540, %c0_541] : memref<656x512xf32, #tpu.memory_space<vmem>>, vector<8x512xf32>
    tpu.vector_store %arg6[%c408_540, %c0_541], %420 {strides = array<i32>} : memref<656x512xf32, #tpu.memory_space<vmem>>, vector<8x512xf32>,
    %c0_542 = arith.constant 0 : index
    %c0_543 = arith.constant 0 : index
    %c167_544 = arith.constant 167 : index
    %422 = vector.load %arg7[%c0_542, %c0_543, %c167_544] : memref<1x8x896xf32, #tpu.memory_space<vmem>>, vector<1x8x512xf32>
    %423 = vector.shape_cast %422 : vector<1x8x512xf32> to vector<8x512xf32>
    %c416_545 = arith.constant 416 : index
    %c0_546 = arith.constant 0 : index
    %424 = vector.load %arg6[%c416_545, %c0_546] : memref<656x512xf32, #tpu.memory_space<vmem>>, vector<8x512xf32>
    tpu.vector_store %arg6[%c416_545, %c0_546], %423 {strides = array<i32>} : memref<656x512xf32, #tpu.memory_space<vmem>>, vector<8x512xf32>,
    %c0_547 = arith.constant 0 : index
    %c0_548 = arith.constant 0 : index
    %c168_549 = arith.constant 168 : index
    %425 = vector.load %arg7[%c0_547, %c0_548, %c168_549] : memref<1x8x896xf32, #tpu.memory_space<vmem>>, vector<1x8x512xf32>
    %426 = vector.shape_cast %425 : vector<1x8x512xf32> to vector<8x512xf32>
    %c424_550 = arith.constant 424 : index
    %c0_551 = arith.constant 0 : index
    %427 = vector.load %arg6[%c424_550, %c0_551] : memref<656x512xf32, #tpu.memory_space<vmem>>, vector<8x512xf32>
    tpu.vector_store %arg6[%c424_550, %c0_551], %426 {strides = array<i32>} : memref<656x512xf32, #tpu.memory_space<vmem>>, vector<8x512xf32>,
    %c0_552 = arith.constant 0 : index
    %c0_553 = arith.constant 0 : index
    %c192_554 = arith.constant 192 : index
    %428 = vector.load %arg7[%c0_552, %c0_553, %c192_554] : memref<1x8x896xf32, #tpu.memory_space<vmem>>, vector<1x8x512xf32>
    %429 = vector.shape_cast %428 : vector<1x8x512xf32> to vector<8x512xf32>
    %c432_555 = arith.constant 432 : index
    %c0_556 = arith.constant 0 : index
    %430 = vector.load %arg6[%c432_555, %c0_556] : memref<656x512xf32, #tpu.memory_space<vmem>>, vector<8x512xf32>
    tpu.vector_store %arg6[%c432_555, %c0_556], %429 {strides = array<i32>} : memref<656x512xf32, #tpu.memory_space<vmem>>, vector<8x512xf32>,
    %c0_557 = arith.constant 0 : index
    %c0_558 = arith.constant 0 : index
    %c193_559 = arith.constant 193 : index
    %431 = vector.load %arg7[%c0_557, %c0_558, %c193_559] : memref<1x8x896xf32, #tpu.memory_space<vmem>>, vector<1x8x512xf32>
    %432 = vector.shape_cast %431 : vector<1x8x512xf32> to vector<8x512xf32>
    %c440_560 = arith.constant 440 : index
    %c0_561 = arith.constant 0 : index
    %433 = vector.load %arg6[%c440_560, %c0_561] : memref<656x512xf32, #tpu.memory_space<vmem>>, vector<8x512xf32>
    tpu.vector_store %arg6[%c440_560, %c0_561], %432 {strides = array<i32>} : memref<656x512xf32, #tpu.memory_space<vmem>>, vector<8x512xf32>,
    %c0_562 = arith.constant 0 : index
    %c0_563 = arith.constant 0 : index
    %c194_564 = arith.constant 194 : index
    %434 = vector.load %arg7[%c0_562, %c0_563, %c194_564] : memref<1x8x896xf32, #tpu.memory_space<vmem>>, vector<1x8x512xf32>
    %435 = vector.shape_cast %434 : vector<1x8x512xf32> to vector<8x512xf32>
    %c448_565 = arith.constant 448 : index
    %c0_566 = arith.constant 0 : index
    %436 = vector.load %arg6[%c448_565, %c0_566] : memref<656x512xf32, #tpu.memory_space<vmem>>, vector<8x512xf32>
    tpu.vector_store %arg6[%c448_565, %c0_566], %435 {strides = array<i32>} : memref<656x512xf32, #tpu.memory_space<vmem>>, vector<8x512xf32>,
    %c0_567 = arith.constant 0 : index
    %c0_568 = arith.constant 0 : index
    %c195_569 = arith.constant 195 : index
    %437 = vector.load %arg7[%c0_567, %c0_568, %c195_569] : memref<1x8x896xf32, #tpu.memory_space<vmem>>, vector<1x8x512xf32>
    %438 = vector.shape_cast %437 : vector<1x8x512xf32> to vector<8x512xf32>
    %c456_570 = arith.constant 456 : index
    %c0_571 = arith.constant 0 : index
    %439 = vector.load %arg6[%c456_570, %c0_571] : memref<656x512xf32, #tpu.memory_space<vmem>>, vector<8x512xf32>
    tpu.vector_store %arg6[%c456_570, %c0_571], %438 {strides = array<i32>} : memref<656x512xf32, #tpu.memory_space<vmem>>, vector<8x512xf32>,
    %c0_572 = arith.constant 0 : index
    %c0_573 = arith.constant 0 : index
    %c196_574 = arith.constant 196 : index
    %440 = vector.load %arg7[%c0_572, %c0_573, %c196_574] : memref<1x8x896xf32, #tpu.memory_space<vmem>>, vector<1x8x512xf32>
    %441 = vector.shape_cast %440 : vector<1x8x512xf32> to vector<8x512xf32>
    %c464_575 = arith.constant 464 : index
    %c0_576 = arith.constant 0 : index
    %442 = vector.load %arg6[%c464_575, %c0_576] : memref<656x512xf32, #tpu.memory_space<vmem>>, vector<8x512xf32>
    tpu.vector_store %arg6[%c464_575, %c0_576], %441 {strides = array<i32>} : memref<656x512xf32, #tpu.memory_space<vmem>>, vector<8x512xf32>,
    %c0_577 = arith.constant 0 : index
    %c0_578 = arith.constant 0 : index
    %c197_579 = arith.constant 197 : index
    %443 = vector.load %arg7[%c0_577, %c0_578, %c197_579] : memref<1x8x896xf32, #tpu.memory_space<vmem>>, vector<1x8x512xf32>
    %444 = vector.shape_cast %443 : vector<1x8x512xf32> to vector<8x512xf32>
    %c472_580 = arith.constant 472 : index
    %c0_581 = arith.constant 0 : index
    %445 = vector.load %arg6[%c472_580, %c0_581] : memref<656x512xf32, #tpu.memory_space<vmem>>, vector<8x512xf32>
    tpu.vector_store %arg6[%c472_580, %c0_581], %444 {strides = array<i32>} : memref<656x512xf32, #tpu.memory_space<vmem>>, vector<8x512xf32>,
    %c0_582 = arith.constant 0 : index
    %c0_583 = arith.constant 0 : index
    %c198_584 = arith.constant 198 : index
    %446 = vector.load %arg7[%c0_582, %c0_583, %c198_584] : memref<1x8x896xf32, #tpu.memory_space<vmem>>, vector<1x8x512xf32>
    %447 = vector.shape_cast %446 : vector<1x8x512xf32> to vector<8x512xf32>
    %c480_585 = arith.constant 480 : index
    %c0_586 = arith.constant 0 : index
    %448 = vector.load %arg6[%c480_585, %c0_586] : memref<656x512xf32, #tpu.memory_space<vmem>>, vector<8x512xf32>
    tpu.vector_store %arg6[%c480_585, %c0_586], %447 {strides = array<i32>} : memref<656x512xf32, #tpu.memory_space<vmem>>, vector<8x512xf32>,
    %c0_587 = arith.constant 0 : index
    %c0_588 = arith.constant 0 : index
    %c199_589 = arith.constant 199 : index
    %449 = vector.load %arg7[%c0_587, %c0_588, %c199_589] : memref<1x8x896xf32, #tpu.memory_space<vmem>>, vector<1x8x512xf32>
    %450 = vector.shape_cast %449 : vector<1x8x512xf32> to vector<8x512xf32>
    %c488_590 = arith.constant 488 : index
    %c0_591 = arith.constant 0 : index
    %451 = vector.load %arg6[%c488_590, %c0_591] : memref<656x512xf32, #tpu.memory_space<vmem>>, vector<8x512xf32>
    tpu.vector_store %arg6[%c488_590, %c0_591], %450 {strides = array<i32>} : memref<656x512xf32, #tpu.memory_space<vmem>>, vector<8x512xf32>,
    %c0_592 = arith.constant 0 : index
    %c0_593 = arith.constant 0 : index
    %c200_594 = arith.constant 200 : index
    %452 = vector.load %arg7[%c0_592, %c0_593, %c200_594] : memref<1x8x896xf32, #tpu.memory_space<vmem>>, vector<1x8x512xf32>
    %453 = vector.shape_cast %452 : vector<1x8x512xf32> to vector<8x512xf32>
    %c496_595 = arith.constant 496 : index
    %c0_596 = arith.constant 0 : index
    %454 = vector.load %arg6[%c496_595, %c0_596] : memref<656x512xf32, #tpu.memory_space<vmem>>, vector<8x512xf32>
    tpu.vector_store %arg6[%c496_595, %c0_596], %453 {strides = array<i32>} : memref<656x512xf32, #tpu.memory_space<vmem>>, vector<8x512xf32>,
    %c0_597 = arith.constant 0 : index
    %c0_598 = arith.constant 0 : index
    %c224_599 = arith.constant 224 : index
    %455 = vector.load %arg7[%c0_597, %c0_598, %c224_599] : memref<1x8x896xf32, #tpu.memory_space<vmem>>, vector<1x8x512xf32>
    %456 = vector.shape_cast %455 : vector<1x8x512xf32> to vector<8x512xf32>
    %c504_600 = arith.constant 504 : index
    %c0_601 = arith.constant 0 : index
    %457 = vector.load %arg6[%c504_600, %c0_601] : memref<656x512xf32, #tpu.memory_space<vmem>>, vector<8x512xf32>
    tpu.vector_store %arg6[%c504_600, %c0_601], %456 {strides = array<i32>} : memref<656x512xf32, #tpu.memory_space<vmem>>, vector<8x512xf32>,
    %c0_602 = arith.constant 0 : index
    %c0_603 = arith.constant 0 : index
    %c225_604 = arith.constant 225 : index
    %458 = vector.load %arg7[%c0_602, %c0_603, %c225_604] : memref<1x8x896xf32, #tpu.memory_space<vmem>>, vector<1x8x512xf32>
    %459 = vector.shape_cast %458 : vector<1x8x512xf32> to vector<8x512xf32>
    %c512_605 = arith.constant 512 : index
    %c0_606 = arith.constant 0 : index
    %460 = vector.load %arg6[%c512_605, %c0_606] : memref<656x512xf32, #tpu.memory_space<vmem>>, vector<8x512xf32>
    tpu.vector_store %arg6[%c512_605, %c0_606], %459 {strides = array<i32>} : memref<656x512xf32, #tpu.memory_space<vmem>>, vector<8x512xf32>,
    %c0_607 = arith.constant 0 : index
    %c0_608 = arith.constant 0 : index
    %c226_609 = arith.constant 226 : index
    %461 = vector.load %arg7[%c0_607, %c0_608, %c226_609] : memref<1x8x896xf32, #tpu.memory_space<vmem>>, vector<1x8x512xf32>
    %462 = vector.shape_cast %461 : vector<1x8x512xf32> to vector<8x512xf32>
    %c520_610 = arith.constant 520 : index
    %c0_611 = arith.constant 0 : index
    %463 = vector.load %arg6[%c520_610, %c0_611] : memref<656x512xf32, #tpu.memory_space<vmem>>, vector<8x512xf32>
    tpu.vector_store %arg6[%c520_610, %c0_611], %462 {strides = array<i32>} : memref<656x512xf32, #tpu.memory_space<vmem>>, vector<8x512xf32>,
    %c0_612 = arith.constant 0 : index
    %c0_613 = arith.constant 0 : index
    %c227_614 = arith.constant 227 : index
    %464 = vector.load %arg7[%c0_612, %c0_613, %c227_614] : memref<1x8x896xf32, #tpu.memory_space<vmem>>, vector<1x8x512xf32>
    %465 = vector.shape_cast %464 : vector<1x8x512xf32> to vector<8x512xf32>
    %c528_615 = arith.constant 528 : index
    %c0_616 = arith.constant 0 : index
    %466 = vector.load %arg6[%c528_615, %c0_616] : memref<656x512xf32, #tpu.memory_space<vmem>>, vector<8x512xf32>
    tpu.vector_store %arg6[%c528_615, %c0_616], %465 {strides = array<i32>} : memref<656x512xf32, #tpu.memory_space<vmem>>, vector<8x512xf32>,
    %c0_617 = arith.constant 0 : index
    %c0_618 = arith.constant 0 : index
    %c228_619 = arith.constant 228 : index
    %467 = vector.load %arg7[%c0_617, %c0_618, %c228_619] : memref<1x8x896xf32, #tpu.memory_space<vmem>>, vector<1x8x512xf32>
    %468 = vector.shape_cast %467 : vector<1x8x512xf32> to vector<8x512xf32>
    %c536_620 = arith.constant 536 : index
    %c0_621 = arith.constant 0 : index
    %469 = vector.load %arg6[%c536_620, %c0_621] : memref<656x512xf32, #tpu.memory_space<vmem>>, vector<8x512xf32>
    tpu.vector_store %arg6[%c536_620, %c0_621], %468 {strides = array<i32>} : memref<656x512xf32, #tpu.memory_space<vmem>>, vector<8x512xf32>,
    %c0_622 = arith.constant 0 : index
    %c0_623 = arith.constant 0 : index
    %c229_624 = arith.constant 229 : index
    %470 = vector.load %arg7[%c0_622, %c0_623, %c229_624] : memref<1x8x896xf32, #tpu.memory_space<vmem>>, vector<1x8x512xf32>
    %471 = vector.shape_cast %470 : vector<1x8x512xf32> to vector<8x512xf32>
    %c544_625 = arith.constant 544 : index
    %c0_626 = arith.constant 0 : index
    %472 = vector.load %arg6[%c544_625, %c0_626] : memref<656x512xf32, #tpu.memory_space<vmem>>, vector<8x512xf32>
    tpu.vector_store %arg6[%c544_625, %c0_626], %471 {strides = array<i32>} : memref<656x512xf32, #tpu.memory_space<vmem>>, vector<8x512xf32>,
    %c0_627 = arith.constant 0 : index
    %c0_628 = arith.constant 0 : index
    %c230_629 = arith.constant 230 : index
    %473 = vector.load %arg7[%c0_627, %c0_628, %c230_629] : memref<1x8x896xf32, #tpu.memory_space<vmem>>, vector<1x8x512xf32>
    %474 = vector.shape_cast %473 : vector<1x8x512xf32> to vector<8x512xf32>
    %c552_630 = arith.constant 552 : index
    %c0_631 = arith.constant 0 : index
    %475 = vector.load %arg6[%c552_630, %c0_631] : memref<656x512xf32, #tpu.memory_space<vmem>>, vector<8x512xf32>
    tpu.vector_store %arg6[%c552_630, %c0_631], %474 {strides = array<i32>} : memref<656x512xf32, #tpu.memory_space<vmem>>, vector<8x512xf32>,
    %c0_632 = arith.constant 0 : index
    %c0_633 = arith.constant 0 : index
    %c231_634 = arith.constant 231 : index
    %476 = vector.load %arg7[%c0_632, %c0_633, %c231_634] : memref<1x8x896xf32, #tpu.memory_space<vmem>>, vector<1x8x512xf32>
    %477 = vector.shape_cast %476 : vector<1x8x512xf32> to vector<8x512xf32>
    %c560_635 = arith.constant 560 : index
    %c0_636 = arith.constant 0 : index
    %478 = vector.load %arg6[%c560_635, %c0_636] : memref<656x512xf32, #tpu.memory_space<vmem>>, vector<8x512xf32>
    tpu.vector_store %arg6[%c560_635, %c0_636], %477 {strides = array<i32>} : memref<656x512xf32, #tpu.memory_space<vmem>>, vector<8x512xf32>,
    %c0_637 = arith.constant 0 : index
    %c0_638 = arith.constant 0 : index
    %c232_639 = arith.constant 232 : index
    %479 = vector.load %arg7[%c0_637, %c0_638, %c232_639] : memref<1x8x896xf32, #tpu.memory_space<vmem>>, vector<1x8x512xf32>
    %480 = vector.shape_cast %479 : vector<1x8x512xf32> to vector<8x512xf32>
    %c568_640 = arith.constant 568 : index
    %c0_641 = arith.constant 0 : index
    %481 = vector.load %arg6[%c568_640, %c0_641] : memref<656x512xf32, #tpu.memory_space<vmem>>, vector<8x512xf32>
    tpu.vector_store %arg6[%c568_640, %c0_641], %480 {strides = array<i32>} : memref<656x512xf32, #tpu.memory_space<vmem>>, vector<8x512xf32>,
    %c0_642 = arith.constant 0 : index
    %c0_643 = arith.constant 0 : index
    %c256_644 = arith.constant 256 : index
    %482 = vector.load %arg7[%c0_642, %c0_643, %c256_644] : memref<1x8x896xf32, #tpu.memory_space<vmem>>, vector<1x8x512xf32>
    %483 = vector.shape_cast %482 : vector<1x8x512xf32> to vector<8x512xf32>
    %c576_645 = arith.constant 576 : index
    %c0_646 = arith.constant 0 : index
    %484 = vector.load %arg6[%c576_645, %c0_646] : memref<656x512xf32, #tpu.memory_space<vmem>>, vector<8x512xf32>
    tpu.vector_store %arg6[%c576_645, %c0_646], %483 {strides = array<i32>} : memref<656x512xf32, #tpu.memory_space<vmem>>, vector<8x512xf32>,
    %c0_647 = arith.constant 0 : index
    %c0_648 = arith.constant 0 : index
    %c257_649 = arith.constant 257 : index
    %485 = vector.load %arg7[%c0_647, %c0_648, %c257_649] : memref<1x8x896xf32, #tpu.memory_space<vmem>>, vector<1x8x512xf32>
    %486 = vector.shape_cast %485 : vector<1x8x512xf32> to vector<8x512xf32>
    %c584_650 = arith.constant 584 : index
    %c0_651 = arith.constant 0 : index
    %487 = vector.load %arg6[%c584_650, %c0_651] : memref<656x512xf32, #tpu.memory_space<vmem>>, vector<8x512xf32>
    tpu.vector_store %arg6[%c584_650, %c0_651], %486 {strides = array<i32>} : memref<656x512xf32, #tpu.memory_space<vmem>>, vector<8x512xf32>,
    %c0_652 = arith.constant 0 : index
    %c0_653 = arith.constant 0 : index
    %c258_654 = arith.constant 258 : index
    %488 = vector.load %arg7[%c0_652, %c0_653, %c258_654] : memref<1x8x896xf32, #tpu.memory_space<vmem>>, vector<1x8x512xf32>
    %489 = vector.shape_cast %488 : vector<1x8x512xf32> to vector<8x512xf32>
    %c592_655 = arith.constant 592 : index
    %c0_656 = arith.constant 0 : index
    %490 = vector.load %arg6[%c592_655, %c0_656] : memref<656x512xf32, #tpu.memory_space<vmem>>, vector<8x512xf32>
    tpu.vector_store %arg6[%c592_655, %c0_656], %489 {strides = array<i32>} : memref<656x512xf32, #tpu.memory_space<vmem>>, vector<8x512xf32>,
    %c0_657 = arith.constant 0 : index
    %c0_658 = arith.constant 0 : index
    %c259_659 = arith.constant 259 : index
    %491 = vector.load %arg7[%c0_657, %c0_658, %c259_659] : memref<1x8x896xf32, #tpu.memory_space<vmem>>, vector<1x8x512xf32>
    %492 = vector.shape_cast %491 : vector<1x8x512xf32> to vector<8x512xf32>
    %c600_660 = arith.constant 600 : index
    %c0_661 = arith.constant 0 : index
    %493 = vector.load %arg6[%c600_660, %c0_661] : memref<656x512xf32, #tpu.memory_space<vmem>>, vector<8x512xf32>
    tpu.vector_store %arg6[%c600_660, %c0_661], %492 {strides = array<i32>} : memref<656x512xf32, #tpu.memory_space<vmem>>, vector<8x512xf32>,
    %c0_662 = arith.constant 0 : index
    %c0_663 = arith.constant 0 : index
    %c260_664 = arith.constant 260 : index
    %494 = vector.load %arg7[%c0_662, %c0_663, %c260_664] : memref<1x8x896xf32, #tpu.memory_space<vmem>>, vector<1x8x512xf32>
    %495 = vector.shape_cast %494 : vector<1x8x512xf32> to vector<8x512xf32>
    %c608_665 = arith.constant 608 : index
    %c0_666 = arith.constant 0 : index
    %496 = vector.load %arg6[%c608_665, %c0_666] : memref<656x512xf32, #tpu.memory_space<vmem>>, vector<8x512xf32>
    tpu.vector_store %arg6[%c608_665, %c0_666], %495 {strides = array<i32>} : memref<656x512xf32, #tpu.memory_space<vmem>>, vector<8x512xf32>,
    %c0_667 = arith.constant 0 : index
    %c0_668 = arith.constant 0 : index
    %c261_669 = arith.constant 261 : index
    %497 = vector.load %arg7[%c0_667, %c0_668, %c261_669] : memref<1x8x896xf32, #tpu.memory_space<vmem>>, vector<1x8x512xf32>
    %498 = vector.shape_cast %497 : vector<1x8x512xf32> to vector<8x512xf32>
    %c616_670 = arith.constant 616 : index
    %c0_671 = arith.constant 0 : index
    %499 = vector.load %arg6[%c616_670, %c0_671] : memref<656x512xf32, #tpu.memory_space<vmem>>, vector<8x512xf32>
    tpu.vector_store %arg6[%c616_670, %c0_671], %498 {strides = array<i32>} : memref<656x512xf32, #tpu.memory_space<vmem>>, vector<8x512xf32>,
    %c0_672 = arith.constant 0 : index
    %c0_673 = arith.constant 0 : index
    %c262_674 = arith.constant 262 : index
    %500 = vector.load %arg7[%c0_672, %c0_673, %c262_674] : memref<1x8x896xf32, #tpu.memory_space<vmem>>, vector<1x8x512xf32>
    %501 = vector.shape_cast %500 : vector<1x8x512xf32> to vector<8x512xf32>
    %c624_675 = arith.constant 624 : index
    %c0_676 = arith.constant 0 : index
    %502 = vector.load %arg6[%c624_675, %c0_676] : memref<656x512xf32, #tpu.memory_space<vmem>>, vector<8x512xf32>
    tpu.vector_store %arg6[%c624_675, %c0_676], %501 {strides = array<i32>} : memref<656x512xf32, #tpu.memory_space<vmem>>, vector<8x512xf32>,
    %c0_677 = arith.constant 0 : index
    %c0_678 = arith.constant 0 : index
    %c263_679 = arith.constant 263 : index
    %503 = vector.load %arg7[%c0_677, %c0_678, %c263_679] : memref<1x8x896xf32, #tpu.memory_space<vmem>>, vector<1x8x512xf32>
    %504 = vector.shape_cast %503 : vector<1x8x512xf32> to vector<8x512xf32>
    %c632_680 = arith.constant 632 : index
    %c0_681 = arith.constant 0 : index
    %505 = vector.load %arg6[%c632_680, %c0_681] : memref<656x512xf32, #tpu.memory_space<vmem>>, vector<8x512xf32>
    tpu.vector_store %arg6[%c632_680, %c0_681], %504 {strides = array<i32>} : memref<656x512xf32, #tpu.memory_space<vmem>>, vector<8x512xf32>,
    %c0_682 = arith.constant 0 : index
    %c0_683 = arith.constant 0 : index
    %c264_684 = arith.constant 264 : index
    %506 = vector.load %arg7[%c0_682, %c0_683, %c264_684] : memref<1x8x896xf32, #tpu.memory_space<vmem>>, vector<1x8x512xf32>
    %507 = vector.shape_cast %506 : vector<1x8x512xf32> to vector<8x512xf32>
    %c640_685 = arith.constant 640 : index
    %c0_686 = arith.constant 0 : index
    %508 = vector.load %arg6[%c640_685, %c0_686] : memref<656x512xf32, #tpu.memory_space<vmem>>, vector<8x512xf32>
    tpu.vector_store %arg6[%c640_685, %c0_686], %507 {strides = array<i32>} : memref<656x512xf32, #tpu.memory_space<vmem>>, vector<8x512xf32>,
    %c0_687 = arith.constant 0 : index
    %c0_688 = arith.constant 0 : index
    %509 = vector.load %arg3[%c0_687, %c0_688] : memref<2x656xf32, #tpu.memory_space<vmem>>, vector<2x656xf32>
    %c0_689 = arith.constant 0 : index
    %c0_690 = arith.constant 0 : index
    %510 = vector.load %arg6[%c0_689, %c0_690] : memref<656x512xf32, #tpu.memory_space<vmem>>, vector<656x512xf32>
    %cst_691 = arith.constant dense<0.000000e+00> : vector<2x512xf32>
    %511 = tpu.matmul %509, %510, %cst_691 {dimension_numbers = #tpu.dot_dimension_numbers<[1], [0], [0], [1], [0, 0, 1, 1], [], []>} : vector<2x656xf32>, vector<656x512xf32>, vector<2x512xf32> -> vector<2x512xf32>
    %512 = arith.negf %511 : vector<2x512xf32>
    %513 = math.exp %512 : vector<2x512xf32>
    %cst_692 = arith.constant 1.000000e+00 : f32
    %514 = vector.broadcast %cst_692 : f32 to vector<2x512xf32>
    %515 = arith.addf %514, %513 : vector<2x512xf32>
    %516 = arith.divf %514, %515 : vector<2x512xf32>
    %517 = vector.extract_strided_slice %516 {offsets = [0, 0], sizes = [1, 512], strides = [1, 1]} : vector<2x512xf32> to vector<1x512xf32>
    %518 = vector.extract_strided_slice %516 {offsets = [1, 0], sizes = [1, 512], strides = [1, 1]} : vector<2x512xf32> to vector<1x512xf32>
    %519 = arith.mulf %517, %518 : vector<1x512xf32>
    %c0_693 = arith.constant 0 : index
    %c0_694 = arith.constant 0 : index
    %c0_695 = arith.constant 0 : index
    %520 = vector.load %arg5[%c0_693, %c0_694, %c0_695] : memref<1x1x512xf32, #tpu.memory_space<vmem>>, vector<1x1x512xf32>
    %521 = vector.shape_cast %520 : vector<1x1x512xf32> to vector<1x512xf32>
    %522 = vector.shape_cast %519 : vector<1x512xf32> to vector<1x1x512xf32>
    tpu.vector_store %arg5[%c0_693, %c0_694, %c0_695], %522 {strides = array<i32>} : memref<1x1x512xf32, #tpu.memory_space<vmem>>, vector<1x1x512xf32>,
    return
  }
  func.func @transform_0(%arg0: i32) -> (i32, i32, i32) {
    %c0_i32 = arith.constant 0 : i32
    %c0_i32_0 = arith.constant 0 : i32
    %c0_i32_1 = arith.constant 0 : i32
    return %arg0, %c0_i32, %c0_i32_0 : i32, i32, i32
  }
  func.func @transform_1(%arg0: i32) -> (i32, i32) {
    %c0_i32 = arith.constant 0 : i32
    %c0_i32_0 = arith.constant 0 : i32
    %c0_i32_1 = arith.constant 0 : i32
    return %c0_i32, %c0_i32_0 : i32, i32
  }
  func.func @transform_2(%arg0: i32) -> (i32, i32) {
    %c0_i32 = arith.constant 0 : i32
    %c0_i32_0 = arith.constant 0 : i32
    %c0_i32_1 = arith.constant 0 : i32
    return %c0_i32, %c0_i32_0 : i32, i32
  }
  func.func @transform_3(%arg0: i32) -> (i32, i32) {
    %c0_i32 = arith.constant 0 : i32
    %c0_i32_0 = arith.constant 0 : i32
    %c0_i32_1 = arith.constant 0 : i32
    return %c0_i32, %c0_i32_0 : i32, i32
  }
  func.func @transform_4(%arg0: i32) -> (i32, i32, i32) {
    %c0_i32 = arith.constant 0 : i32
    %c0_i32_0 = arith.constant 0 : i32
    %c0_i32_1 = arith.constant 0 : i32
    return %arg0, %c0_i32, %c0_i32_0 : i32, i32, i32
  }
}

</mosaic_0001>

<llo_original>
// kernel: tile.8
$region0: #{tile.8}
  #allocation0 [shape = 's32[1]{0}', space=sflag, size = 0x4, scoped, tag = 'scoped memory for tile.8']
  %s0 = inlined_call_operand.vmem [shape: f32[32], index: 0, kind: input, shape index: {}]
  %s1 = inlined_call_operand.vmem [shape: f32[16,32], index: 1, kind: output, shape index: {}]
  // Predicated region
  $region2: #{tile.8} parent=0 // pred_check
    _
  $region3: #{tile.8} parent=0 // pred_check_branch
    %3 = sbr.rel (0) target = $region5
  $region4: #{tile.8} parent=0 // pred_region
    _
  $region5: #{tile.8} parent=0 // pred_fallthru
    _
  %v4 = vld [vmem:[%s0] ss:$0 sm:$0xff]
  %5 = vst [vmem:[%s1] sm:$0xff] %v4
  %s6 = scalar_lea.vmem %s1, 8
  %7 = vst [vmem:[%s6] sm:$0xff] %v4

// kernel: tile.9
$region0: #{tile.9}
  %s0 = inlined_call_operand.vmem [shape: f32[16,32], index: 0, kind: input, shape index: {}]
  %s1 = inlined_call_operand.vmem [shape: f32[1,512], index: 1, kind: output, shape index: {}]
  $region1: #{tile.9} parent=0
    #allocation0 [shape = 'u8[16384]{0}', space=vmem, size = 0x4000, scoped, tag = 'scoped mem for output reshape']
    %v2 = vld [vmem:[%s0] ss:$4 sm:$0xf]
    %vm3 = vcmask 261120
    %4 = vst.msk [vmem:[#allocation0] ss:$8 sm:$0xf] %vm3, %v2
    %s5 = scalar_lea.vmem %s0, 3
    %v6 = vld [vmem:[%s5] ss:$4 sm:$0xf]
    %7 = vrot.lane.b32.xlu0 %v6, 96
    %v8 = vpop.permute.xlu0 %7
    %vm9 = vcmask 1048320
    %10 = vst.msk [vmem:[#allocation0] ss:$8 sm:$0xf] %vm9, %v8
    %s11 = scalar_lea.vmem %s0, 2
    %v12 = vld [vmem:[%s11] ss:$4 sm:$0xf]
    %13 = vrot.lane.b32.xlu0 %v12, 64
    %v14 = vpop.permute.xlu0 %13
    %vm15 = vcmask 785920
    %16 = vst.msk [vmem:[#allocation0] ss:$8 sm:$0xf] %vm15, %v14
    %s17 = scalar_lea.vmem %s0, 1
    %v18 = vld [vmem:[%s17] ss:$4 sm:$0xf]
    %19 = vrot.lane.b32.xlu0 %v18, 32
    %v20 = vpop.permute.xlu0 %19
    %vm21 = vcmask 523520
    %22 = vst.msk [vmem:[#allocation0] ss:$8 sm:$0xf] %vm21, %v20
    %s24 = sshll.u32 1, 1
    %s25 = ssub.s32 %s24, 1
    %v27 = vld [vmem:[#allocation0] sm:%s25]
    %s28 = sshll.u32 1, 1
    %s29 = ssub.s32 %s28, 1
    %30 = vst [vmem:[%s1] sm:%s29] %v27
    %s31 = scalar_lea.vmem [#allocation0], 8
    %v32 = vld [vmem:[%s31] sm:%s25]
    %s33 = sshll.u32 1, 1
    %s34 = ssub.s32 %s33, 1
    %s35 = scalar_lea.vmem %s1, 1
    %36 = vst [vmem:[%s35] sm:%s34] %v32
    %s37 = scalar_lea.vmem [#allocation0], 16
    %v38 = vld [vmem:[%s37] sm:%s25]
    %s39 = sshll.u32 1, 1
    %s40 = ssub.s32 %s39, 1
    %s41 = smul.addr 1, 2
    %s42 = scalar_lea.vmem %s1, %s41
    %43 = vst [vmem:[%s42] sm:%s40] %v38
    %s44 = scalar_lea.vmem [#allocation0], 24
    %v45 = vld [vmem:[%s44] sm:%s25]
    %s46 = sshll.u32 1, 1
    %s47 = ssub.s32 %s46, 1
    %s48 = smul.addr 1, 3
    %s49 = scalar_lea.vmem %s1, %s48
    %50 = vst [vmem:[%s49] sm:%s47] %v45

// kernel: deep_network_forward.1
$region0: #{deep_network_forward.1}
  #allocation0 [shape = 'u32[]', space=smem, size = 0x4, offset = 0x4, fixed_abs, tag = 'smem constant byte address 0x4 - core index']
  #allocation1 [shape = 'u32[144,128]{1,0:T(1,128)}', space=vmem, size = 0x12000, scoped, tag = 'internal scratch']
  #allocation2 [shape = 'f32[656,512]{1,0:T(8,128)}', space=vmem, size = 0x148000, scoped, tag = 'scratch operand']
  #allocation3 [shape = 'f32[1,8,896]{2,1,0:T(8,128)}', space=vmem, size = 0x7000, scoped, tag = 'scratch operand']
  %s0 = inlined_call_operand.vmem [shape: f32[2,8,896], index: 0, kind: input, shape index: {}]
  %s1 = inlined_call_operand.vmem [shape: f32[8,656], index: 1, kind: input, shape index: {}]
  %s2 = inlined_call_operand.vmem [shape: f32[2,656], index: 2, kind: input, shape index: {}]
  %s3 = inlined_call_operand.vmem [shape: f32[1,512], index: 3, kind: input, shape index: {}]
  %s4 = inlined_call_operand.vmem [shape: f32[2,1,512], index: 4, kind: output, shape index: {}]
  %s5 = sld [smem:[#allocation0]]
  $region49: #{deep_network_forward.1} parent=0
    _
  %s7 = ssub.s32 1, %s5
  %s8 = scalar_select 0, %s7, %s5
  loop: start=0, step=1, limit=4
  $region2: #{deep_network_forward.1} parent=0 // loop_pre_header
    _
  $region3: #{deep_network_forward.1} parent=0 // loop_header
    %s10 = sphi 0, %s14
    %p11 = scmp.ge.s32.totalorder %s10, 4
    %s20 = sphi 0, %s22
    %s23 = sphi 0, %s20
    %s24 = sphi 0, %s23
    %s40 = sphi 0, %s24
    %s44 = sphi 0, %s44
    %s46 = sphi 0, %s44
    %s47 = sphi 0, %s46
    %s61 = sphi 0, %s47
    %s65 = sphi 0, %s65
    %s67 = sphi 0, %s65
    %s68 = sphi 0, %s67
    %s82 = sphi 0, %s68
    %s86 = sphi 0, %s86
    %s88 = sphi 0, %s86
    %s89 = sphi 0, %s88
    %s103 = sphi 0, %s89
    %s109 = sphi 0, %s111
    %s112 = sphi 0, %s109
    %s113 = sphi 0, %s112
    %s129 = sphi 0, %s113
  $region4: #{deep_network_forward.1} parent=0 // loop_header_branch
    %13 = sbr.rel (%p11) target = $region8
  $region5: #{deep_network_forward.1} parent=0 // loop_body
    %s15 = ssub.s32 %s10, 1
    %s16 = ssub.s32 %s10, 2
    %s17 = sadd.s32 %s10, 1
    %s18 = ssub.s32 %s10, %s17
    %p19 = scmp.eq.s32.totalorder %s18, 0
    %s21 = sadd.s32 %s20, 1
    %s22 = scalar_select %p19, %s20, %s21
    %p25 = pneg %p19
    %p26 = scmp.eq.s32.totalorder %s10, 1
    %p27 = por %p25, %p26
    %p28 = scmp.ne.s32.totalorder %s20, %s23
    %p29 = scmp.eq.s32.totalorder %s10, 0
    %p30 = por %p28, %p29
    %p31 = scmp.ne.s32.totalorder %s20, %s23
    %p32 = scmp.eq.s32.totalorder %s15, 1
    %p33 = por %p31, %p32
    %p34 = scmp.ne.s32.totalorder %s23, %s24
    %p35 = scmp.eq.s32.totalorder %s15, 0
    %p36 = por %p34, %p35
    %p37 = scmp.ne.s32.totalorder %s23, %s24
    %p38 = scmp.eq.s32.totalorder %s16, 1
    %p39 = por %p37, %p38
    %p41 = scmp.ne.s32.totalorder %s24, %s40
    %p42 = scmp.eq.s32.totalorder %s16, 0
    %p43 = por %p41, %p42
    %s45 = sadd.s32 %s44, 1
    %p48 = scmp.eq.s32.totalorder %s10, 1
    %p49 = scmp.ne.s32.totalorder %s44, %s46
    %p50 = scmp.eq.s32.totalorder %s10, 0
    %p51 = por %p49, %p50
    %p52 = scmp.ne.s32.totalorder %s44, %s46
    %p53 = scmp.eq.s32.totalorder %s15, 1
    %p54 = por %p52, %p53
    %p55 = scmp.ne.s32.totalorder %s46, %s47
    %p56 = scmp.eq.s32.totalorder %s15, 0
    %p57 = por %p55, %p56
    %p58 = scmp.ne.s32.totalorder %s46, %s47
    %p59 = scmp.eq.s32.totalorder %s16, 1
    %p60 = por %p58, %p59
    %p62 = scmp.ne.s32.totalorder %s47, %s61
    %p63 = scmp.eq.s32.totalorder %s16, 0
    %p64 = por %p62, %p63
    %s66 = sadd.s32 %s65, 1
    %p69 = scmp.eq.s32.totalorder %s10, 1
    %p70 = scmp.ne.s32.totalorder %s65, %s67
    %p71 = scmp.eq.s32.totalorder %s10, 0
    %p72 = por %p70, %p71
    %p73 = scmp.ne.s32.totalorder %s65, %s67
    %p74 = scmp.eq.s32.totalorder %s15, 1
    %p75 = por %p73, %p74
    %p76 = scmp.ne.s32.totalorder %s67, %s68
    %p77 = scmp.eq.s32.totalorder %s15, 0
    %p78 = por %p76, %p77
    %p79 = scmp.ne.s32.totalorder %s67, %s68
    %p80 = scmp.eq.s32.totalorder %s16, 1
    %p81 = por %p79, %p80
    %p83 = scmp.ne.s32.totalorder %s68, %s82
    %p84 = scmp.eq.s32.totalorder %s16, 0
    %p85 = por %p83, %p84
    %s87 = sadd.s32 %s86, 1
    %p90 = scmp.eq.s32.totalorder %s10, 1
    %p91 = scmp.ne.s32.totalorder %s86, %s88
    %p92 = scmp.eq.s32.totalorder %s10, 0
    %p93 = por %p91, %p92
    %p94 = scmp.ne.s32.totalorder %s86, %s88
    %p95 = scmp.eq.s32.totalorder %s15, 1
    %p96 = por %p94, %p95
    %p97 = scmp.ne.s32.totalorder %s88, %s89
    %p98 = scmp.eq.s32.totalorder %s15, 0
    %p99 = por %p97, %p98
    %p100 = scmp.ne.s32.totalorder %s88, %s89
    %p101 = scmp.eq.s32.totalorder %s16, 1
    %p102 = por %p100, %p101
    %p104 = scmp.ne.s32.totalorder %s89, %s103
    %p105 = scmp.eq.s32.totalorder %s16, 0
    %p106 = por %p104, %p105
    %s107 = ssub.s32 %s10, %s17
    %p108 = scmp.eq.s32.totalorder %s107, 0
    %s110 = sadd.s32 %s109, 1
    %s111 = scalar_select %p108, %s109, %s110
    %p114 = pneg %p108
    %p115 = scmp.eq.s32.totalorder %s10, 1
    %p116 = por %p114, %p115
    %p117 = scmp.ne.s32.totalorder %s109, %s112
    %p118 = scmp.eq.s32.totalorder %s10, 0
    %p119 = por %p117, %p118
    %p120 = scmp.ne.s32.totalorder %s109, %s112
    %p121 = scmp.eq.s32.totalorder %s15, 1
    %p122 = por %p120, %p121
    %p123 = scmp.ne.s32.totalorder %s112, %s113
    %p124 = scmp.eq.s32.totalorder %s15, 0
    %p125 = por %p123, %p124
    %p126 = scmp.ne.s32.totalorder %s112, %s113
    %p127 = scmp.eq.s32.totalorder %s16, 1
    %p128 = por %p126, %p127
    %p130 = scmp.ne.s32.totalorder %s113, %s129
    %p131 = scmp.eq.s32.totalorder %s16, 0
    %p132 = por %p130, %p131
    %p133 = scmp.le.s32.totalorder 1, %s10
    %p134 = scmp.lt.s32.totalorder %s10, 3
    %p135 = pnand %p133, %p134
    %p136 = pneg %p135
    // Predicated region
    $region9: #{deep_network_forward.1} parent=5 // pred_check
      _
    $region10: #{deep_network_forward.1} parent=5 // pred_check_branch
      %138 = sbr.rel (%p135) target = $region12
    $region11: #{deep_network_forward.1} parent=5 // pred_region
      %s139 = ssub.s32 %s10, 1
      // Predicated region
      $region13: #{deep_network_forward.1} parent=11 // pred_check
        %p140 = pneg %p57
      $region14: #{deep_network_forward.1} parent=11 // pred_check_branch
        %142 = sbr.rel (%p140) target = $region16
      $region15: #{deep_network_forward.1} parent=11 // pred_region
        _
      $region16: #{deep_network_forward.1} parent=11 // pred_fallthru
        _
      // Predicated region
      $region17: #{deep_network_forward.1} parent=11 // pred_check
        %p143 = pneg %p78
      $region18: #{deep_network_forward.1} parent=11 // pred_check_branch
        %145 = sbr.rel (%p143) target = $region20
      $region19: #{deep_network_forward.1} parent=11 // pred_region
        _
      $region20: #{deep_network_forward.1} parent=11 // pred_fallthru
        _
      // Predicated region
      $region21: #{deep_network_forward.1} parent=11 // pred_check
        %p146 = pneg %p99
      $region22: #{deep_network_forward.1} parent=11 // pred_check_branch
        %148 = sbr.rel (%p146) target = $region24
      $region23: #{deep_network_forward.1} parent=11 // pred_region
        _
      $region24: #{deep_network_forward.1} parent=11 // pred_fallthru
        _
    $region12: #{deep_network_forward.1} parent=5 // pred_fallthru
      _
    %p149 = scmp.lt.s32.totalorder %s10, 2
    // Predicated region
    $region25: #{deep_network_forward.1} parent=5 // pred_check
      %p150 = pneg %p149
    $region26: #{deep_network_forward.1} parent=5 // pred_check_branch
      %152 = sbr.rel (%p150) target = $region28
    $region27: #{deep_network_forward.1} parent=5 // pred_region
      // Predicated region
      $region29: #{deep_network_forward.1} parent=27 // pred_check
        %p153 = pneg %p30
      $region30: #{deep_network_forward.1} parent=27 // pred_check_branch
        %155 = sbr.rel (%p153) target = $region32
      $region31: #{deep_network_forward.1} parent=27 // pred_region
        %p156 = scmp.lt.s32.totalorder %s10, 1
        %s157 = scalar_select %p156, %s10, 1
        %s158 = smul.addr %s157, 7
        %s159 = smul.addr %s158, 8
        %s160 = scalar_lea.vmem %s0, %s159
      $region32: #{deep_network_forward.1} parent=27 // pred_fallthru
        _
    $region28: #{deep_network_forward.1} parent=5 // pred_fallthru
      _
    %p161 = scmp.le.s32.totalorder 1, %s10
    %p162 = scmp.lt.s32.totalorder %s10, 3
    %p163 = pnand %p161, %p162
    %p164 = pneg %p163
    // Predicated region
    $region33: #{deep_network_forward.1} parent=5 // pred_check
      _
    $region34: #{deep_network_forward.1} parent=5 // pred_check_branch
      %166 = sbr.rel (%p163) target = $region36
    $region35: #{deep_network_forward.1} parent=5 // pred_region
      %s167 = ssub.s32 %s10, 1
      %p168 = scmp.lt.s32.totalorder %s15, 1
      %s169 = scalar_select %p168, %s15, 1
      %s170 = smul.addr %s169, 7
      %s171 = smul.addr %s170, 8
      %s172 = scalar_lea.vmem %s0, %s171
      %p173 = pneg %p36
      %p174 = pneg %p33
      %p175 = pneg %p57
      %p176 = pneg %p54
      %p177 = pneg %p78
      %p178 = pneg %p75
      %p179 = pneg %p99
      %p180 = pneg %p96
      %p181 = pneg %p125
      %p182 = pneg %p122
      %p183 = scmp.lt.s32.totalorder %s15, 1
      %s184 = scalar_select %p183, %s15, 1
      %s185 = smul.addr %s184, 4
      %s186 = scalar_lea.vmem %s4, %s185
      %p187 = scmp.lt.s32.totalorder %s15, 1
      %s188 = scalar_select %p187, %s15, 1
      %s189 = smul.addr %s188, 7
      %s190 = smul.addr %s189, 8
      %s191 = scalar_lea.vmem %s0, %s190
      %p192 = scmp.lt.s32.totalorder %s15, 1
      %s193 = scalar_select %p192, %s15, 1
      %s194 = smul.addr %s193, 4
      %s195 = scalar_lea.vmem %s4, %s194
      %v196 = vlaneseq
      %vm197 = vcmp.ge.s32.totalorder %v196, 0
      %vm198 = vcmp.lt.s32.totalorder %v196, 512
      %vm199 = vmand %vm197, %vm198
      %s200 = scalar_lea.vmem [#allocation2], 2592
      %201 = vst.msk [vmem:[%s200] ss:$8 sm:$0xf] %vm199, 1.0
      %202 = vst.msk [vmem:[%s200] ss:$8 sm:$0x0] %vm199, 1.0
      %203 = vst [vmem:[#allocation2 + $0xa20] sm:$0xfe] 0.0
      %204 = vst [vmem:[#allocation2 + $0xa28] sm:$0xfe] 0.0
      %205 = vst [vmem:[#allocation2 + $0xa30] sm:$0xfe] 0.0
      %206 = vst [vmem:[#allocation2 + $0xa38] sm:$0xfe] 0.0
      %v207 = vld [vmem:[%s191] sm:$0xff]
      %v208 = vld [vmem:[%s191 + $0x8] sm:$0xff]
      %v209 = vld [vmem:[%s191 + $0x10] sm:$0xff]
      %v210 = vld [vmem:[%s191 + $0x18] sm:$0xff]
      %211 = vst [vmem:[#allocation2] sm:$0xff] %v207
      %212 = vst [vmem:[#allocation2 + $0x8] sm:$0xff] %v208
      %213 = vst [vmem:[#allocation2 + $0x10] sm:$0xff] %v209
      %214 = vst [vmem:[#allocation2 + $0x18] sm:$0xff] %v210
      %v215 = vld [vmem:[%s191] sm:$0xff]
      %v216 = vld [vmem:[%s191 + $0x8] sm:$0xff]
      %v217 = vld [vmem:[%s191 + $0x10] sm:$0xff]
      %v218 = vld [vmem:[%s191 + $0x18] sm:$0xff]
      %v219 = vld [vmem:[%s191 + $0x20] sm:$0xff]
      %225 = vrot.lane.b32.xlu0 %v215, 127
      %v226 = vpop.permute.xlu0 %225
      %227 = vrot.lane.b32.xlu0 %v216, 127
      %v228 = vpop.permute.xlu0 %227
      %229 = vrot.lane.b32.xlu0 %v217, 127
      %v230 = vpop.permute.xlu0 %229
      %231 = vrot.lane.b32.xlu0 %v218, 127
      %v232 = vpop.permute.xlu0 %231
      %233 = vrot.lane.b32.xlu0 %v219, 127
      %v234 = vpop.permute.xlu0 %233
      %vm235 = vcmask 1039360
      %v236 = vsel %vm235, %v226, %v228
      %v237 = vsel %vm235, %v228, %v230
      %v238 = vsel %vm235, %v230, %v232
      %v239 = vsel %vm235, %v232, %v234
      %244 = vst [vmem:[#allocation2 + $0x20] sm:$0xff] %v236
      %245 = vst [vmem:[#allocation2 + $0x28] sm:$0xff] %v237
      %246 = vst [vmem:[#allocation2 + $0x30] sm:$0xff] %v238
      %247 = vst [vmem:[#allocation2 + $0x38] sm:$0xff] %v239
      %v248 = vld [vmem:[%s191] sm:$0xff]
      %v249 = vld [vmem:[%s191 + $0x8] sm:$0xff]
      %v250 = vld [vmem:[%s191 + $0x10] sm:$0xff]
      %v251 = vld [vmem:[%s191 + $0x18] sm:$0xff]
      %v252 = vld [vmem:[%s191 + $0x20] sm:$0xff]
      %258 = vrot.lane.b32.xlu0 %v248, 126
      %v259 = vpop.permute.xlu0 %258
      %260 = vrot.lane.b32.xlu0 %v249, 126
      %v261 = vpop.permute.xlu0 %260
      %262 = vrot.lane.b32.xlu0 %v250, 126
      %v263 = vpop.permute.xlu0 %262
      %264 = vrot.lane.b32.xlu0 %v251, 126
      %v265 = vpop.permute.xlu0 %264
      %266 = vrot.lane.b32.xlu0 %v252, 126
      %v267 = vpop.permute.xlu0 %266
      %vm268 = vcmask 1031168
      %v269 = vsel %vm268, %v259, %v261
      %v270 = vsel %vm268, %v261, %v263
      %v271 = vsel %vm268, %v263, %v265
      %v272 = vsel %vm268, %v265, %v267
      %277 = vst [vmem:[#allocation2 + $0x40] sm:$0xff] %v269
      %278 = vst [vmem:[#allocation2 + $0x48] sm:$0xff] %v270
      %279 = vst [vmem:[#allocation2 + $0x50] sm:$0xff] %v271
      %280 = vst [vmem:[#allocation2 + $0x58] sm:$0xff] %v272
      %v281 = vld [vmem:[%s191] sm:$0xff]
      %v282 = vld [vmem:[%s191 + $0x8] sm:$0xff]
      %v283 = vld [vmem:[%s191 + $0x10] sm:$0xff]
      %v284 = vld [vmem:[%s191 + $0x18] sm:$0xff]
      %v285 = vld [vmem:[%s191 + $0x20] sm:$0xff]
      %291 = vrot.lane.b32.xlu0 %v281, 125
      %v292 = vpop.permute.xlu0 %291
      %293 = vrot.lane.b32.xlu0 %v282, 125
      %v294 = vpop.permute.xlu0 %293
      %295 = vrot.lane.b32.xlu0 %v283, 125
      %v296 = vpop.permute.xlu0 %295
      %297 = vrot.lane.b32.xlu0 %v284, 125
      %v298 = vpop.permute.xlu0 %297
      %299 = vrot.lane.b32.xlu0 %v285, 125
      %v300 = vpop.permute.xlu0 %299
      %vm301 = vcmask 1022976
      %v302 = vsel %vm301, %v292, %v294
      %v303 = vsel %vm301, %v294, %v296
      %v304 = vsel %vm301, %v296, %v298
      %v305 = vsel %vm301, %v298, %v300
      %310 = vst [vmem:[#allocation2 + $0x60] sm:$0xff] %v302
      %311 = vst [vmem:[#allocation2 + $0x68] sm:$0xff] %v303
      %312 = vst [vmem:[#allocation2 + $0x70] sm:$0xff] %v304
      %313 = vst [vmem:[#allocation2 + $0x78] sm:$0xff] %v305
      %v314 = vld [vmem:[%s191] sm:$0xff]
      %v315 = vld [vmem:[%s191 + $0x8] sm:$0xff]
      %v316 = vld [vmem:[%s191 + $0x10] sm:$0xff]
      %v317 = vld [vmem:[%s191 + $0x18] sm:$0xff]
      %v318 = vld [vmem:[%s191 + $0x20] sm:$0xff]
      %324 = vrot.lane.b32.xlu0 %v314, 124
      %v325 = vpop.permute.xlu0 %324
      %326 = vrot.lane.b32.xlu0 %v315, 124
      %v327 = vpop.permute.xlu0 %326
      %328 = vrot.lane.b32.xlu0 %v316, 124
      %v329 = vpop.permute.xlu0 %328
      %330 = vrot.lane.b32.xlu0 %v317, 124
      %v331 = vpop.permute.xlu0 %330
      %332 = vrot.lane.b32.xlu0 %v318, 124
      %v333 = vpop.permute.xlu0 %332
      %vm334 = vcmask 1014784
      %v335 = vsel %vm334, %v325, %v327
      %v336 = vsel %vm334, %v327, %v329
      %v337 = vsel %vm334, %v329, %v331
      %v338 = vsel %vm334, %v331, %v333
      %343 = vst [vmem:[#allocation2 + $0x80] sm:$0xff] %v335
      %344 = vst [vmem:[#allocation2 + $0x88] sm:$0xff] %v336
      %345 = vst [vmem:[#allocation2 + $0x90] sm:$0xff] %v337
      %346 = vst [vmem:[#allocation2 + $0x98] sm:$0xff] %v338
      %v347 = vld [vmem:[%s191] sm:$0xff]
      %v348 = vld [vmem:[%s191 + $0x8] sm:$0xff]
      %v349 = vld [vmem:[%s191 + $0x10] sm:$0xff]
      %v350 = vld [vmem:[%s191 + $0x18] sm:$0xff]
      %v351 = vld [vmem:[%s191 + $0x20] sm:$0xff]
      %357 = vrot.lane.b32.xlu0 %v347, 123
      %v358 = vpop.permute.xlu0 %357
      %359 = vrot.lane.b32.xlu0 %v348, 123
      %v360 = vpop.permute.xlu0 %359
      %361 = vrot.lane.b32.xlu0 %v349, 123
      %v362 = vpop.permute.xlu0 %361
      %363 = vrot.lane.b32.xlu0 %v350, 123
      %v364 = vpop.permute.xlu0 %363
      %365 = vrot.lane.b32.xlu0 %v351, 123
      %v366 = vpop.permute.xlu0 %365
      %vm367 = vcmask 1006592
      %v368 = vsel %vm367, %v358, %v360
      %v369 = vsel %vm367, %v360, %v362
      %v370 = vsel %vm367, %v362, %v364
      %v371 = vsel %vm367, %v364, %v366
      %376 = vst [vmem:[#allocation2 + $0xa0] sm:$0xff] %v368
      %377 = vst [vmem:[#allocation2 + $0xa8] sm:$0xff] %v369
      %378 = vst [vmem:[#allocation2 + $0xb0] sm:$0xff] %v370
      %379 = vst [vmem:[#allocation2 + $0xb8] sm:$0xff] %v371
      %v380 = vld [vmem:[%s191] sm:$0xff]
      %v381 = vld [vmem:[%s191 + $0x8] sm:$0xff]
      %v382 = vld [vmem:[%s191 + $0x10] sm:$0xff]
      %v383 = vld [vmem:[%s191 + $0x18] sm:$0xff]
      %v384 = vld [vmem:[%s191 + $0x20] sm:$0xff]
      %390 = vrot.lane.b32.xlu0 %v380, 122
      %v391 = vpop.permute.xlu0 %390
      %392 = vrot.lane.b32.xlu0 %v381, 122
      %v393 = vpop.permute.xlu0 %392
      %394 = vrot.lane.b32.xlu0 %v382, 122
      %v395 = vpop.permute.xlu0 %394
      %396 = vrot.lane.b32.xlu0 %v383, 122
      %v397 = vpop.permute.xlu0 %396
      %398 = vrot.lane.b32.xlu0 %v384, 122
      %v399 = vpop.permute.xlu0 %398
      %vm400 = vcmask 998400
      %v401 = vsel %vm400, %v391, %v393
      %v402 = vsel %vm400, %v393, %v395
      %v403 = vsel %vm400, %v395, %v397
      %v404 = vsel %vm400, %v397, %v399
      %409 = vst [vmem:[#allocation2 + $0xc0] sm:$0xff] %v401
      %410 = vst [vmem:[#allocation2 + $0xc8] sm:$0xff] %v402
      %411 = vst [vmem:[#allocation2 + $0xd0] sm:$0xff] %v403
      %412 = vst [vmem:[#allocation2 + $0xd8] sm:$0xff] %v404
      %v413 = vld [vmem:[%s191] sm:$0xff]
      %v414 = vld [vmem:[%s191 + $0x8] sm:$0xff]
      %v415 = vld [vmem:[%s191 + $0x10] sm:$0xff]
      %v416 = vld [vmem:[%s191 + $0x18] sm:$0xff]
      %v417 = vld [vmem:[%s191 + $0x20] sm:$0xff]
      %423 = vrot.lane.b32.xlu0 %v413, 121
      %v424 = vpop.permute.xlu0 %423
      %425 = vrot.lane.b32.xlu0 %v414, 121
      %v426 = vpop.permute.xlu0 %425
      %427 = vrot.lane.b32.xlu0 %v415, 121
      %v428 = vpop.permute.xlu0 %427
      %429 = vrot.lane.b32.xlu0 %v416, 121
      %v430 = vpop.permute.xlu0 %429
      %431 = vrot.lane.b32.xlu0 %v417, 121
      %v432 = vpop.permute.xlu0 %431
      %vm433 = vcmask 990208
      %v434 = vsel %vm433, %v424, %v426
      %v435 = vsel %vm433, %v426, %v428
      %v436 = vsel %vm433, %v428, %v430
      %v437 = vsel %vm433, %v430, %v432
      %442 = vst [vmem:[#allocation2 + $0xe0] sm:$0xff] %v434
      %443 = vst [vmem:[#allocation2 + $0xe8] sm:$0xff] %v435
      %444 = vst [vmem:[#allocation2 + $0xf0] sm:$0xff] %v436
      %445 = vst [vmem:[#allocation2 + $0xf8] sm:$0xff] %v437
      %v446 = vld [vmem:[%s191] sm:$0xff]
      %v447 = vld [vmem:[%s191 + $0x8] sm:$0xff]
      %v448 = vld [vmem:[%s191 + $0x10] sm:$0xff]
      %v449 = vld [vmem:[%s191 + $0x18] sm:$0xff]
      %v450 = vld [vmem:[%s191 + $0x20] sm:$0xff]
      %456 = vrot.lane.b32.xlu0 %v446, 120
      %v457 = vpop.permute.xlu0 %456
      %458 = vrot.lane.b32.xlu0 %v447, 120
      %v459 = vpop.permute.xlu0 %458
      %460 = vrot.lane.b32.xlu0 %v448, 120
      %v461 = vpop.permute.xlu0 %460
      %462 = vrot.lane.b32.xlu0 %v449, 120
      %v463 = vpop.permute.xlu0 %462
      %464 = vrot.lane.b32.xlu0 %v450, 120
      %v465 = vpop.permute.xlu0 %464
      %vm466 = vcmask 982016
      %v467 = vsel %vm466, %v457, %v459
      %v468 = vsel %vm466, %v459, %v461
      %v469 = vsel %vm466, %v461, %v463
      %v470 = vsel %vm466, %v463, %v465
      %475 = vst [vmem:[#allocation2 + $0x100] sm:$0xff] %v467
      %476 = vst [vmem:[#allocation2 + $0x108] sm:$0xff] %v468
      %477 = vst [vmem:[#allocation2 + $0x110] sm:$0xff] %v469
      %478 = vst [vmem:[#allocation2 + $0x118] sm:$0xff] %v470
      %v479 = vld [vmem:[%s191] sm:$0xff]
      %v480 = vld [vmem:[%s191 + $0x8] sm:$0xff]
      %v481 = vld [vmem:[%s191 + $0x10] sm:$0xff]
      %v482 = vld [vmem:[%s191 + $0x18] sm:$0xff]
      %v483 = vld [vmem:[%s191 + $0x20] sm:$0xff]
      %489 = vrot.lane.b32.xlu0 %v479, 96
      %v490 = vpop.permute.xlu0 %489
      %491 = vrot.lane.b32.xlu0 %v480, 96
      %v492 = vpop.permute.xlu0 %491
      %493 = vrot.lane.b32.xlu0 %v481, 96
      %v494 = vpop.permute.xlu0 %493
      %495 = vrot.lane.b32.xlu0 %v482, 96
      %v496 = vpop.permute.xlu0 %495
      %497 = vrot.lane.b32.xlu0 %v483, 96
      %v498 = vpop.permute.xlu0 %497
      %vm499 = vcmask 785408
      %v500 = vsel %vm499, %v490, %v492
      %v501 = vsel %vm499, %v492, %v494
      %v502 = vsel %vm499, %v494, %v496
      %v503 = vsel %vm499, %v496, %v498
      %508 = vst [vmem:[#allocation2 + $0x120] sm:$0xff] %v500
      %509 = vst [vmem:[#allocation2 + $0x128] sm:$0xff] %v501
      %510 = vst [vmem:[#allocation2 + $0x130] sm:$0xff] %v502
      %511 = vst [vmem:[#allocation2 + $0x138] sm:$0xff] %v503
      %v512 = vld [vmem:[%s191] sm:$0xff]
      %v513 = vld [vmem:[%s191 + $0x8] sm:$0xff]
      %v514 = vld [vmem:[%s191 + $0x10] sm:$0xff]
      %v515 = vld [vmem:[%s191 + $0x18] sm:$0xff]
      %v516 = vld [vmem:[%s191 + $0x20] sm:$0xff]
      %522 = vrot.lane.b32.xlu0 %v512, 95
      %v523 = vpop.permute.xlu0 %522
      %524 = vrot.lane.b32.xlu0 %v513, 95
      %v525 = vpop.permute.xlu0 %524
      %526 = vrot.lane.b32.xlu0 %v514, 95
      %v527 = vpop.permute.xlu0 %526
      %528 = vrot.lane.b32.xlu0 %v515, 95
      %v529 = vpop.permute.xlu0 %528
      %530 = vrot.lane.b32.xlu0 %v516, 95
      %v531 = vpop.permute.xlu0 %530
      %vm532 = vcmask 777216
      %v533 = vsel %vm532, %v523, %v525
      %v534 = vsel %vm532, %v525, %v527
      %v535 = vsel %vm532, %v527, %v529
      %v536 = vsel %vm532, %v529, %v531
      %541 = vst [vmem:[#allocation2 + $0x140] sm:$0xff] %v533
      %542 = vst [vmem:[#allocation2 + $0x148] sm:$0xff] %v534
      %543 = vst [vmem:[#allocation2 + $0x150] sm:$0xff] %v535
      %544 = vst [vmem:[#allocation2 + $0x158] sm:$0xff] %v536
      %v545 = vld [vmem:[%s191] sm:$0xff]
      %v546 = vld [vmem:[%s191 + $0x8] sm:$0xff]
      %v547 = vld [vmem:[%s191 + $0x10] sm:$0xff]
      %v548 = vld [vmem:[%s191 + $0x18] sm:$0xff]
      %v549 = vld [vmem:[%s191 + $0x20] sm:$0xff]
      %555 = vrot.lane.b32.xlu0 %v545, 94
      %v556 = vpop.permute.xlu0 %555
      %557 = vrot.lane.b32.xlu0 %v546, 94
      %v558 = vpop.permute.xlu0 %557
      %559 = vrot.lane.b32.xlu0 %v547, 94
      %v560 = vpop.permute.xlu0 %559
      %561 = vrot.lane.b32.xlu0 %v548, 94
      %v562 = vpop.permute.xlu0 %561
      %563 = vrot.lane.b32.xlu0 %v549, 94
      %v564 = vpop.permute.xlu0 %563
      %vm565 = vcmask 769024
      %v566 = vsel %vm565, %v556, %v558
      %v567 = vsel %vm565, %v558, %v560
      %v568 = vsel %vm565, %v560, %v562
      %v569 = vsel %vm565, %v562, %v564
      %574 = vst [vmem:[#allocation2 + $0x160] sm:$0xff] %v566
      %575 = vst [vmem:[#allocation2 + $0x168] sm:$0xff] %v567
      %576 = vst [vmem:[#allocation2 + $0x170] sm:$0xff] %v568
      %577 = vst [vmem:[#allocation2 + $0x178] sm:$0xff] %v569
      %v578 = vld [vmem:[%s191] sm:$0xff]
      %v579 = vld [vmem:[%s191 + $0x8] sm:$0xff]
      %v580 = vld [vmem:[%s191 + $0x10] sm:$0xff]
      %v581 = vld [vmem:[%s191 + $0x18] sm:$0xff]
      %v582 = vld [vmem:[%s191 + $0x20] sm:$0xff]
      %588 = vrot.lane.b32.xlu0 %v578, 93
      %v589 = vpop.permute.xlu0 %588
      %590 = vrot.lane.b32.xlu0 %v579, 93
      %v591 = vpop.permute.xlu0 %590
      %592 = vrot.lane.b32.xlu0 %v580, 93
      %v593 = vpop.permute.xlu0 %592
      %594 = vrot.lane.b32.xlu0 %v581, 93
      %v595 = vpop.permute.xlu0 %594
      %596 = vrot.lane.b32.xlu0 %v582, 93
      %v597 = vpop.permute.xlu0 %596
      %vm598 = vcmask 760832
      %v599 = vsel %vm598, %v589, %v591
      %v600 = vsel %vm598, %v591, %v593
      %v601 = vsel %vm598, %v593, %v595
      %v602 = vsel %vm598, %v595, %v597
      %607 = vst [vmem:[#allocation2 + $0x180] sm:$0xff] %v599
      %608 = vst [vmem:[#allocation2 + $0x188] sm:$0xff] %v600
      %609 = vst [vmem:[#allocation2 + $0x190] sm:$0xff] %v601
      %610 = vst [vmem:[#allocation2 + $0x198] sm:$0xff] %v602
      %v611 = vld [vmem:[%s191] sm:$0xff]
      %v612 = vld [vmem:[%s191 + $0x8] sm:$0xff]
      %v613 = vld [vmem:[%s191 + $0x10] sm:$0xff]
      %v614 = vld [vmem:[%s191 + $0x18] sm:$0xff]
      %v615 = vld [vmem:[%s191 + $0x20] sm:$0xff]
      %621 = vrot.lane.b32.xlu0 %v611, 92
      %v622 = vpop.permute.xlu0 %621
      %623 = vrot.lane.b32.xlu0 %v612, 92
      %v624 = vpop.permute.xlu0 %623
      %625 = vrot.lane.b32.xlu0 %v613, 92
      %v626 = vpop.permute.xlu0 %625
      %627 = vrot.lane.b32.xlu0 %v614, 92
      %v628 = vpop.permute.xlu0 %627
      %629 = vrot.lane.b32.xlu0 %v615, 92
      %v630 = vpop.permute.xlu0 %629
      %vm631 = vcmask 752640
      %v632 = vsel %vm631, %v622, %v624
      %v633 = vsel %vm631, %v624, %v626
      %v634 = vsel %vm631, %v626, %v628
      %v635 = vsel %vm631, %v628, %v630
      %640 = vst [vmem:[#allocation2 + $0x1a0] sm:$0xff] %v632
      %641 = vst [vmem:[#allocation2 + $0x1a8] sm:$0xff] %v633
      %642 = vst [vmem:[#allocation2 + $0x1b0] sm:$0xff] %v634
      %643 = vst [vmem:[#allocation2 + $0x1b8] sm:$0xff] %v635
      %v644 = vld [vmem:[%s191] sm:$0xff]
      %v645 = vld [vmem:[%s191 + $0x8] sm:$0xff]
      %v646 = vld [vmem:[%s191 + $0x10] sm:$0xff]
      %v647 = vld [vmem:[%s191 + $0x18] sm:$0xff]
      %v648 = vld [vmem:[%s191 + $0x20] sm:$0xff]
      %654 = vrot.lane.b32.xlu0 %v644, 91
      %v655 = vpop.permute.xlu0 %654
      %656 = vrot.lane.b32.xlu0 %v645, 91
      %v657 = vpop.permute.xlu0 %656
      %658 = vrot.lane.b32.xlu0 %v646, 91
      %v659 = vpop.permute.xlu0 %658
      %660 = vrot.lane.b32.xlu0 %v647, 91
      %v661 = vpop.permute.xlu0 %660
      %662 = vrot.lane.b32.xlu0 %v648, 91
      %v663 = vpop.permute.xlu0 %662
      %vm664 = vcmask 744448
      %v665 = vsel %vm664, %v655, %v657
      %v666 = vsel %vm664, %v657, %v659
      %v667 = vsel %vm664, %v659, %v661
      %v668 = vsel %vm664, %v661, %v663
      %673 = vst [vmem:[#allocation2 + $0x1c0] sm:$0xff] %v665
      %674 = vst [vmem:[#allocation2 + $0x1c8] sm:$0xff] %v666
      %675 = vst [vmem:[#allocation2 + $0x1d0] sm:$0xff] %v667
      %676 = vst [vmem:[#allocation2 + $0x1d8] sm:$0xff] %v668
      %v677 = vld [vmem:[%s191] sm:$0xff]
      %v678 = vld [vmem:[%s191 + $0x8] sm:$0xff]
      %v679 = vld [vmem:[%s191 + $0x10] sm:$0xff]
      %v680 = vld [vmem:[%s191 + $0x18] sm:$0xff]
      %v681 = vld [vmem:[%s191 + $0x20] sm:$0xff]
      %687 = vrot.lane.b32.xlu0 %v677, 90
      %v688 = vpop.permute.xlu0 %687
      %689 = vrot.lane.b32.xlu0 %v678, 90
      %v690 = vpop.permute.xlu0 %689
      %691 = vrot.lane.b32.xlu0 %v679, 90
      %v692 = vpop.permute.xlu0 %691
      %693 = vrot.lane.b32.xlu0 %v680, 90
      %v694 = vpop.permute.xlu0 %693
      %695 = vrot.lane.b32.xlu0 %v681, 90
      %v696 = vpop.permute.xlu0 %695
      %vm697 = vcmask 736256
      %v698 = vsel %vm697, %v688, %v690
      %v699 = vsel %vm697, %v690, %v692
      %v700 = vsel %vm697, %v692, %v694
      %v701 = vsel %vm697, %v694, %v696
      %706 = vst [vmem:[#allocation2 + $0x1e0] sm:$0xff] %v698
      %707 = vst [vmem:[#allocation2 + $0x1e8] sm:$0xff] %v699
      %708 = vst [vmem:[#allocation2 + $0x1f0] sm:$0xff] %v700
      %709 = vst [vmem:[#allocation2 + $0x1f8] sm:$0xff] %v701
      %v710 = vld [vmem:[%s191] sm:$0xff]
      %v711 = vld [vmem:[%s191 + $0x8] sm:$0xff]
      %v712 = vld [vmem:[%s191 + $0x10] sm:$0xff]
      %v713 = vld [vmem:[%s191 + $0x18] sm:$0xff]
      %v714 = vld [vmem:[%s191 + $0x20] sm:$0xff]
      %720 = vrot.lane.b32.xlu0 %v710, 89
      %v721 = vpop.permute.xlu0 %720
      %722 = vrot.lane.b32.xlu0 %v711, 89
      %v723 = vpop.permute.xlu0 %722
      %724 = vrot.lane.b32.xlu0 %v712, 89
      %v725 = vpop.permute.xlu0 %724
      %726 = vrot.lane.b32.xlu0 %v713, 89
      %v727 = vpop.permute.xlu0 %726
      %728 = vrot.lane.b32.xlu0 %v714, 89
      %v729 = vpop.permute.xlu0 %728
      %vm730 = vcmask 728064
      %v731 = vsel %vm730, %v721, %v723
      %v732 = vsel %vm730, %v723, %v725
      %v733 = vsel %vm730, %v725, %v727
      %v734 = vsel %vm730, %v727, %v729
      %739 = vst [vmem:[#allocation2 + $0x200] sm:$0xff] %v731
      %740 = vst [vmem:[#allocation2 + $0x208] sm:$0xff] %v732
      %741 = vst [vmem:[#allocation2 + $0x210] sm:$0xff] %v733
      %742 = vst [vmem:[#allocation2 + $0x218] sm:$0xff] %v734
      %v743 = vld [vmem:[%s191] sm:$0xff]
      %v744 = vld [vmem:[%s191 + $0x8] sm:$0xff]
      %v745 = vld [vmem:[%s191 + $0x10] sm:$0xff]
      %v746 = vld [vmem:[%s191 + $0x18] sm:$0xff]
      %v747 = vld [vmem:[%s191 + $0x20] sm:$0xff]
      %753 = vrot.lane.b32.xlu0 %v743, 88
      %v754 = vpop.permute.xlu0 %753
      %755 = vrot.lane.b32.xlu0 %v744, 88
      %v756 = vpop.permute.xlu0 %755
      %757 = vrot.lane.b32.xlu0 %v745, 88
      %v758 = vpop.permute.xlu0 %757
      %759 = vrot.lane.b32.xlu0 %v746, 88
      %v760 = vpop.permute.xlu0 %759
      %761 = vrot.lane.b32.xlu0 %v747, 88
      %v762 = vpop.permute.xlu0 %761
      %vm763 = vcmask 719872
      %v764 = vsel %vm763, %v754, %v756
      %v765 = vsel %vm763, %v756, %v758
      %v766 = vsel %vm763, %v758, %v760
      %v767 = vsel %vm763, %v760, %v762
      %772 = vst [vmem:[#allocation2 + $0x220] sm:$0xff] %v764
      %773 = vst [vmem:[#allocation2 + $0x228] sm:$0xff] %v765
      %774 = vst [vmem:[#allocation2 + $0x230] sm:$0xff] %v766
      %775 = vst [vmem:[#allocation2 + $0x238] sm:$0xff] %v767
      %v776 = vld [vmem:[%s191] sm:$0xff]
      %v777 = vld [vmem:[%s191 + $0x8] sm:$0xff]
      %v778 = vld [vmem:[%s191 + $0x10] sm:$0xff]
      %v779 = vld [vmem:[%s191 + $0x18] sm:$0xff]
      %v780 = vld [vmem:[%s191 + $0x20] sm:$0xff]
      %786 = vrot.lane.b32.xlu0 %v776, 64
      %v787 = vpop.permute.xlu0 %786
      %788 = vrot.lane.b32.xlu0 %v777, 64
      %v789 = vpop.permute.xlu0 %788
      %790 = vrot.lane.b32.xlu0 %v778, 64
      %v791 = vpop.permute.xlu0 %790
      %792 = vrot.lane.b32.xlu0 %v779, 64
      %v793 = vpop.permute.xlu0 %792
      %794 = vrot.lane.b32.xlu0 %v780, 64
      %v795 = vpop.permute.xlu0 %794
      %vm796 = vcmask 523264
      %v797 = vsel %vm796, %v787, %v789
      %v798 = vsel %vm796, %v789, %v791
      %v799 = vsel %vm796, %v791, %v793
      %v800 = vsel %vm796, %v793, %v795
      %805 = vst [vmem:[#allocation2 + $0x240] sm:$0xff] %v797
      %806 = vst [vmem:[#allocation2 + $0x248] sm:$0xff] %v798
      %807 = vst [vmem:[#allocation2 + $0x250] sm:$0xff] %v799
      %808 = vst [vmem:[#allocation2 + $0x258] sm:$0xff] %v800
      %v809 = vld [vmem:[%s191] sm:$0xff]
      %v810 = vld [vmem:[%s191 + $0x8] sm:$0xff]
      %v811 = vld [vmem:[%s191 + $0x10] sm:$0xff]
      %v812 = vld [vmem:[%s191 + $0x18] sm:$0xff]
      %v813 = vld [vmem:[%s191 + $0x20] sm:$0xff]
      %819 = vrot.lane.b32.xlu0 %v809, 63
      %v820 = vpop.permute.xlu0 %819
      %821 = vrot.lane.b32.xlu0 %v810, 63
      %v822 = vpop.permute.xlu0 %821
      %823 = vrot.lane.b32.xlu0 %v811, 63
      %v824 = vpop.permute.xlu0 %823
      %825 = vrot.lane.b32.xlu0 %v812, 63
      %v826 = vpop.permute.xlu0 %825
      %827 = vrot.lane.b32.xlu0 %v813, 63
      %v828 = vpop.permute.xlu0 %827
      %vm829 = vcmask 515072
      %v830 = vsel %vm829, %v820, %v822
      %v831 = vsel %vm829, %v822, %v824
      %v832 = vsel %vm829, %v824, %v826
      %v833 = vsel %vm829, %v826, %v828
      %838 = vst [vmem:[#allocation2 + $0x260] sm:$0xff] %v830
      %839 = vst [vmem:[#allocation2 + $0x268] sm:$0xff] %v831
      %840 = vst [vmem:[#allocation2 + $0x270] sm:$0xff] %v832
      %841 = vst [vmem:[#allocation2 + $0x278] sm:$0xff] %v833
      %v842 = vld [vmem:[%s191] sm:$0xff]
      %v843 = vld [vmem:[%s191 + $0x8] sm:$0xff]
      %v844 = vld [vmem:[%s191 + $0x10] sm:$0xff]
      %v845 = vld [vmem:[%s191 + $0x18] sm:$0xff]
      %v846 = vld [vmem:[%s191 + $0x20] sm:$0xff]
      %852 = vrot.lane.b32.xlu0 %v842, 62
      %v853 = vpop.permute.xlu0 %852
      %854 = vrot.lane.b32.xlu0 %v843, 62
      %v855 = vpop.permute.xlu0 %854
      %856 = vrot.lane.b32.xlu0 %v844, 62
      %v857 = vpop.permute.xlu0 %856
      %858 = vrot.lane.b32.xlu0 %v845, 62
      %v859 = vpop.permute.xlu0 %858
      %860 = vrot.lane.b32.xlu0 %v846, 62
      %v861 = vpop.permute.xlu0 %860
      %vm862 = vcmask 506880
      %v863 = vsel %vm862, %v853, %v855
      %v864 = vsel %vm862, %v855, %v857
      %v865 = vsel %vm862, %v857, %v859
      %v866 = vsel %vm862, %v859, %v861
      %871 = vst [vmem:[#allocation2 + $0x280] sm:$0xff] %v863
      %872 = vst [vmem:[#allocation2 + $0x288] sm:$0xff] %v864
      %873 = vst [vmem:[#allocation2 + $0x290] sm:$0xff] %v865
      %874 = vst [vmem:[#allocation2 + $0x298] sm:$0xff] %v866
      %v875 = vld [vmem:[%s191] sm:$0xff]
      %v876 = vld [vmem:[%s191 + $0x8] sm:$0xff]
      %v877 = vld [vmem:[%s191 + $0x10] sm:$0xff]
      %v878 = vld [vmem:[%s191 + $0x18] sm:$0xff]
      %v879 = vld [vmem:[%s191 + $0x20] sm:$0xff]
      %885 = vrot.lane.b32.xlu0 %v875, 61
      %v886 = vpop.permute.xlu0 %885
      %887 = vrot.lane.b32.xlu0 %v876, 61
      %v888 = vpop.permute.xlu0 %887
      %889 = vrot.lane.b32.xlu0 %v877, 61
      %v890 = vpop.permute.xlu0 %889
      %891 = vrot.lane.b32.xlu0 %v878, 61
      %v892 = vpop.permute.xlu0 %891
      %893 = vrot.lane.b32.xlu0 %v879, 61
      %v894 = vpop.permute.xlu0 %893
      %vm895 = vcmask 498688
      %v896 = vsel %vm895, %v886, %v888
      %v897 = vsel %vm895, %v888, %v890
      %v898 = vsel %vm895, %v890, %v892
      %v899 = vsel %vm895, %v892, %v894
      %904 = vst [vmem:[#allocation2 + $0x2a0] sm:$0xff] %v896
      %905 = vst [vmem:[#allocation2 + $0x2a8] sm:$0xff] %v897
      %906 = vst [vmem:[#allocation2 + $0x2b0] sm:$0xff] %v898
      %907 = vst [vmem:[#allocation2 + $0x2b8] sm:$0xff] %v899
      %v908 = vld [vmem:[%s191] sm:$0xff]
      %v909 = vld [vmem:[%s191 + $0x8] sm:$0xff]
      %v910 = vld [vmem:[%s191 + $0x10] sm:$0xff]
      %v911 = vld [vmem:[%s191 + $0x18] sm:$0xff]
      %v912 = vld [vmem:[%s191 + $0x20] sm:$0xff]
      %918 = vrot.lane.b32.xlu0 %v908, 60
      %v919 = vpop.permute.xlu0 %918
      %920 = vrot.lane.b32.xlu0 %v909, 60
      %v921 = vpop.permute.xlu0 %920
      %922 = vrot.lane.b32.xlu0 %v910, 60
      %v923 = vpop.permute.xlu0 %922
      %924 = vrot.lane.b32.xlu0 %v911, 60
      %v925 = vpop.permute.xlu0 %924
      %926 = vrot.lane.b32.xlu0 %v912, 60
      %v927 = vpop.permute.xlu0 %926
      %vm928 = vcmask 490496
      %v929 = vsel %vm928, %v919, %v921
      %v930 = vsel %vm928, %v921, %v923
      %v931 = vsel %vm928, %v923, %v925
      %v932 = vsel %vm928, %v925, %v927
      %937 = vst [vmem:[#allocation2 + $0x2c0] sm:$0xff] %v929
      %938 = vst [vmem:[#allocation2 + $0x2c8] sm:$0xff] %v930
      %939 = vst [vmem:[#allocation2 + $0x2d0] sm:$0xff] %v931
      %940 = vst [vmem:[#allocation2 + $0x2d8] sm:$0xff] %v932
      %v941 = vld [vmem:[%s191] sm:$0xff]
      %v942 = vld [vmem:[%s191 + $0x8] sm:$0xff]
      %v943 = vld [vmem:[%s191 + $0x10] sm:$0xff]
      %v944 = vld [vmem:[%s191 + $0x18] sm:$0xff]
      %v945 = vld [vmem:[%s191 + $0x20] sm:$0xff]
      %951 = vrot.lane.b32.xlu0 %v941, 59
      %v952 = vpop.permute.xlu0 %951
      %953 = vrot.lane.b32.xlu0 %v942, 59
      %v954 = vpop.permute.xlu0 %953
      %955 = vrot.lane.b32.xlu0 %v943, 59
      %v956 = vpop.permute.xlu0 %955
      %957 = vrot.lane.b32.xlu0 %v944, 59
      %v958 = vpop.permute.xlu0 %957
      %959 = vrot.lane.b32.xlu0 %v945, 59
      %v960 = vpop.permute.xlu0 %959
      %vm961 = vcmask 482304
      %v962 = vsel %vm961, %v952, %v954
      %v963 = vsel %vm961, %v954, %v956
      %v964 = vsel %vm961, %v956, %v958
      %v965 = vsel %vm961, %v958, %v960
      %970 = vst [vmem:[#allocation2 + $0x2e0] sm:$0xff] %v962
      %971 = vst [vmem:[#allocation2 + $0x2e8] sm:$0xff] %v963
      %972 = vst [vmem:[#allocation2 + $0x2f0] sm:$0xff] %v964
      %973 = vst [vmem:[#allocation2 + $0x2f8] sm:$0xff] %v965
      %v974 = vld [vmem:[%s191] sm:$0xff]
      %v975 = vld [vmem:[%s191 + $0x8] sm:$0xff]
      %v976 = vld [vmem:[%s191 + $0x10] sm:$0xff]
      %v977 = vld [vmem:[%s191 + $0x18] sm:$0xff]
      %v978 = vld [vmem:[%s191 + $0x20] sm:$0xff]
      %984 = vrot.lane.b32.xlu0 %v974, 58
      %v985 = vpop.permute.xlu0 %984
      %986 = vrot.lane.b32.xlu0 %v975, 58
      %v987 = vpop.permute.xlu0 %986
      %988 = vrot.lane.b32.xlu0 %v976, 58
      %v989 = vpop.permute.xlu0 %988
      %990 = vrot.lane.b32.xlu0 %v977, 58
      %v991 = vpop.permute.xlu0 %990
      %992 = vrot.lane.b32.xlu0 %v978, 58
      %v993 = vpop.permute.xlu0 %992
      %vm994 = vcmask 474112
      %v995 = vsel %vm994, %v985, %v987
      %v996 = vsel %vm994, %v987, %v989
      %v997 = vsel %vm994, %v989, %v991
      %v998 = vsel %vm994, %v991, %v993
      %1003 = vst [vmem:[#allocation2 + $0x300] sm:$0xff] %v995
      %1004 = vst [vmem:[#allocation2 + $0x308] sm:$0xff] %v996
      %1005 = vst [vmem:[#allocation2 + $0x310] sm:$0xff] %v997
      %1006 = vst [vmem:[#allocation2 + $0x318] sm:$0xff] %v998
      %v1007 = vld [vmem:[%s191] sm:$0xff]
      %v1008 = vld [vmem:[%s191 + $0x8] sm:$0xff]
      %v1009 = vld [vmem:[%s191 + $0x10] sm:$0xff]
      %v1010 = vld [vmem:[%s191 + $0x18] sm:$0xff]
      %v1011 = vld [vmem:[%s191 + $0x20] sm:$0xff]
      %1017 = vrot.lane.b32.xlu0 %v1007, 57
      %v1018 = vpop.permute.xlu0 %1017
      %1019 = vrot.lane.b32.xlu0 %v1008, 57
      %v1020 = vpop.permute.xlu0 %1019
      %1021 = vrot.lane.b32.xlu0 %v1009, 57
      %v1022 = vpop.permute.xlu0 %1021
      %1023 = vrot.lane.b32.xlu0 %v1010, 57
      %v1024 = vpop.permute.xlu0 %1023
      %1025 = vrot.lane.b32.xlu0 %v1011, 57
      %v1026 = vpop.permute.xlu0 %1025
      %vm1027 = vcmask 465920
      %v1028 = vsel %vm1027, %v1018, %v1020
      %v1029 = vsel %vm1027, %v1020, %v1022
      %v1030 = vsel %vm1027, %v1022, %v1024
      %v1031 = vsel %vm1027, %v1024, %v1026
      %1036 = vst [vmem:[#allocation2 + $0x320] sm:$0xff] %v1028
      %1037 = vst [vmem:[#allocation2 + $0x328] sm:$0xff] %v1029
      %1038 = vst [vmem:[#allocation2 + $0x330] sm:$0xff] %v1030
      %1039 = vst [vmem:[#allocation2 + $0x338] sm:$0xff] %v1031
      %v1040 = vld [vmem:[%s191] sm:$0xff]
      %v1041 = vld [vmem:[%s191 + $0x8] sm:$0xff]
      %v1042 = vld [vmem:[%s191 + $0x10] sm:$0xff]
      %v1043 = vld [vmem:[%s191 + $0x18] sm:$0xff]
      %v1044 = vld [vmem:[%s191 + $0x20] sm:$0xff]
      %1050 = vrot.lane.b32.xlu0 %v1040, 56
      %v1051 = vpop.permute.xlu0 %1050
      %1052 = vrot.lane.b32.xlu0 %v1041, 56
      %v1053 = vpop.permute.xlu0 %1052
      %1054 = vrot.lane.b32.xlu0 %v1042, 56
      %v1055 = vpop.permute.xlu0 %1054
      %1056 = vrot.lane.b32.xlu0 %v1043, 56
      %v1057 = vpop.permute.xlu0 %1056
      %1058 = vrot.lane.b32.xlu0 %v1044, 56
      %v1059 = vpop.permute.xlu0 %1058
      %vm1060 = vcmask 457728
      %v1061 = vsel %vm1060, %v1051, %v1053
      %v1062 = vsel %vm1060, %v1053, %v1055
      %v1063 = vsel %vm1060, %v1055, %v1057
      %v1064 = vsel %vm1060, %v1057, %v1059
      %1069 = vst [vmem:[#allocation2 + $0x340] sm:$0xff] %v1061
      %1070 = vst [vmem:[#allocation2 + $0x348] sm:$0xff] %v1062
      %1071 = vst [vmem:[#allocation2 + $0x350] sm:$0xff] %v1063
      %1072 = vst [vmem:[#allocation2 + $0x358] sm:$0xff] %v1064
      %v1073 = vld [vmem:[%s191] sm:$0xff]
      %v1074 = vld [vmem:[%s191 + $0x8] sm:$0xff]
      %v1075 = vld [vmem:[%s191 + $0x10] sm:$0xff]
      %v1076 = vld [vmem:[%s191 + $0x18] sm:$0xff]
      %v1077 = vld [vmem:[%s191 + $0x20] sm:$0xff]
      %1083 = vrot.lane.b32.xlu0 %v1073, 32
      %v1084 = vpop.permute.xlu0 %1083
      %1085 = vrot.lane.b32.xlu0 %v1074, 32
      %v1086 = vpop.permute.xlu0 %1085
      %1087 = vrot.lane.b32.xlu0 %v1075, 32
      %v1088 = vpop.permute.xlu0 %1087
      %1089 = vrot.lane.b32.xlu0 %v1076, 32
      %v1090 = vpop.permute.xlu0 %1089
      %1091 = vrot.lane.b32.xlu0 %v1077, 32
      %v1092 = vpop.permute.xlu0 %1091
      %vm1093 = vcmask 261120
      %v1094 = vsel %vm1093, %v1084, %v1086
      %v1095 = vsel %vm1093, %v1086, %v1088
      %v1096 = vsel %vm1093, %v1088, %v1090
      %v1097 = vsel %vm1093, %v1090, %v1092
      %1102 = vst [vmem:[#allocation2 + $0x360] sm:$0xff] %v1094
      %1103 = vst [vmem:[#allocation2 + $0x368] sm:$0xff] %v1095
      %1104 = vst [vmem:[#allocation2 + $0x370] sm:$0xff] %v1096
      %1105 = vst [vmem:[#allocation2 + $0x378] sm:$0xff] %v1097
      %v1106 = vld [vmem:[%s191] sm:$0xff]
      %v1107 = vld [vmem:[%s191 + $0x8] sm:$0xff]
      %v1108 = vld [vmem:[%s191 + $0x10] sm:$0xff]
      %v1109 = vld [vmem:[%s191 + $0x18] sm:$0xff]
      %v1110 = vld [vmem:[%s191 + $0x20] sm:$0xff]
      %1116 = vrot.lane.b32.xlu0 %v1106, 31
      %v1117 = vpop.permute.xlu0 %1116
      %1118 = vrot.lane.b32.xlu0 %v1107, 31
      %v1119 = vpop.permute.xlu0 %1118
      %1120 = vrot.lane.b32.xlu0 %v1108, 31
      %v1121 = vpop.permute.xlu0 %1120
      %1122 = vrot.lane.b32.xlu0 %v1109, 31
      %v1123 = vpop.permute.xlu0 %1122
      %1124 = vrot.lane.b32.xlu0 %v1110, 31
      %v1125 = vpop.permute.xlu0 %1124
      %vm1126 = vcmask 252928
      %v1127 = vsel %vm1126, %v1117, %v1119
      %v1128 = vsel %vm1126, %v1119, %v1121
      %v1129 = vsel %vm1126, %v1121, %v1123
      %v1130 = vsel %vm1126, %v1123, %v1125
      %1135 = vst [vmem:[#allocation2 + $0x380] sm:$0xff] %v1127
      %1136 = vst [vmem:[#allocation2 + $0x388] sm:$0xff] %v1128
      %1137 = vst [vmem:[#allocation2 + $0x390] sm:$0xff] %v1129
      %1138 = vst [vmem:[#allocation2 + $0x398] sm:$0xff] %v1130
      %v1139 = vld [vmem:[%s191] sm:$0xff]
      %v1140 = vld [vmem:[%s191 + $0x8] sm:$0xff]
      %v1141 = vld [vmem:[%s191 + $0x10] sm:$0xff]
      %v1142 = vld [vmem:[%s191 + $0x18] sm:$0xff]
      %v1143 = vld [vmem:[%s191 + $0x20] sm:$0xff]
      %1149 = vrot.lane.b32.xlu0 %v1139, 30
      %v1150 = vpop.permute.xlu0 %1149
      %1151 = vrot.lane.b32.xlu0 %v1140, 30
      %v1152 = vpop.permute.xlu0 %1151
      %1153 = vrot.lane.b32.xlu0 %v1141, 30
      %v1154 = vpop.permute.xlu0 %1153
      %1155 = vrot.lane.b32.xlu0 %v1142, 30
      %v1156 = vpop.permute.xlu0 %1155
      %1157 = vrot.lane.b32.xlu0 %v1143, 30
      %v1158 = vpop.permute.xlu0 %1157
      %vm1159 = vcmask 244736
      %v1160 = vsel %vm1159, %v1150, %v1152
      %v1161 = vsel %vm1159, %v1152, %v1154
      %v1162 = vsel %vm1159, %v1154, %v1156
      %v1163 = vsel %vm1159, %v1156, %v1158
      %1168 = vst [vmem:[#allocation2 + $0x3a0] sm:$0xff] %v1160
      %1169 = vst [vmem:[#allocation2 + $0x3a8] sm:$0xff] %v1161
      %1170 = vst [vmem:[#allocation2 + $0x3b0] sm:$0xff] %v1162
      %1171 = vst [vmem:[#allocation2 + $0x3b8] sm:$0xff] %v1163
      %v1172 = vld [vmem:[%s191] sm:$0xff]
      %v1173 = vld [vmem:[%s191 + $0x8] sm:$0xff]
      %v1174 = vld [vmem:[%s191 + $0x10] sm:$0xff]
      %v1175 = vld [vmem:[%s191 + $0x18] sm:$0xff]
      %v1176 = vld [vmem:[%s191 + $0x20] sm:$0xff]
      %1182 = vrot.lane.b32.xlu0 %v1172, 29
      %v1183 = vpop.permute.xlu0 %1182
      %1184 = vrot.lane.b32.xlu0 %v1173, 29
      %v1185 = vpop.permute.xlu0 %1184
      %1186 = vrot.lane.b32.xlu0 %v1174, 29
      %v1187 = vpop.permute.xlu0 %1186
      %1188 = vrot.lane.b32.xlu0 %v1175, 29
      %v1189 = vpop.permute.xlu0 %1188
      %1190 = vrot.lane.b32.xlu0 %v1176, 29
      %v1191 = vpop.permute.xlu0 %1190
      %vm1192 = vcmask 236544
      %v1193 = vsel %vm1192, %v1183, %v1185
      %v1194 = vsel %vm1192, %v1185, %v1187
      %v1195 = vsel %vm1192, %v1187, %v1189
      %v1196 = vsel %vm1192, %v1189, %v1191
      %1201 = vst [vmem:[#allocation2 + $0x3c0] sm:$0xff] %v1193
      %1202 = vst [vmem:[#allocation2 + $0x3c8] sm:$0xff] %v1194
      %1203 = vst [vmem:[#allocation2 + $0x3d0] sm:$0xff] %v1195
      %1204 = vst [vmem:[#allocation2 + $0x3d8] sm:$0xff] %v1196
      %v1205 = vld [vmem:[%s191] sm:$0xff]
      %v1206 = vld [vmem:[%s191 + $0x8] sm:$0xff]
      %v1207 = vld [vmem:[%s191 + $0x10] sm:$0xff]
      %v1208 = vld [vmem:[%s191 + $0x18] sm:$0xff]
      %v1209 = vld [vmem:[%s191 + $0x20] sm:$0xff]
      %1215 = vrot.lane.b32.xlu0 %v1205, 28
      %v1216 = vpop.permute.xlu0 %1215
      %1217 = vrot.lane.b32.xlu0 %v1206, 28
      %v1218 = vpop.permute.xlu0 %1217
      %1219 = vrot.lane.b32.xlu0 %v1207, 28
      %v1220 = vpop.permute.xlu0 %1219
      %1221 = vrot.lane.b32.xlu0 %v1208, 28
      %v1222 = vpop.permute.xlu0 %1221
      %1223 = vrot.lane.b32.xlu0 %v1209, 28
      %v1224 = vpop.permute.xlu0 %1223
      %vm1225 = vcmask 228352
      %v1226 = vsel %vm1225, %v1216, %v1218
      %v1227 = vsel %vm1225, %v1218, %v1220
      %v1228 = vsel %vm1225, %v1220, %v1222
      %v1229 = vsel %vm1225, %v1222, %v1224
      %1234 = vst [vmem:[#allocation2 + $0x3e0] sm:$0xff] %v1226
      %1235 = vst [vmem:[#allocation2 + $0x3e8] sm:$0xff] %v1227
      %1236 = vst [vmem:[#allocation2 + $0x3f0] sm:$0xff] %v1228
      %1237 = vst [vmem:[#allocation2 + $0x3f8] sm:$0xff] %v1229
      %v1238 = vld [vmem:[%s191] sm:$0xff]
      %v1239 = vld [vmem:[%s191 + $0x8] sm:$0xff]
      %v1240 = vld [vmem:[%s191 + $0x10] sm:$0xff]
      %v1241 = vld [vmem:[%s191 + $0x18] sm:$0xff]
      %v1242 = vld [vmem:[%s191 + $0x20] sm:$0xff]
      %1248 = vrot.lane.b32.xlu0 %v1238, 27
      %v1249 = vpop.permute.xlu0 %1248
      %1250 = vrot.lane.b32.xlu0 %v1239, 27
      %v1251 = vpop.permute.xlu0 %1250
      %1252 = vrot.lane.b32.xlu0 %v1240, 27
      %v1253 = vpop.permute.xlu0 %1252
      %1254 = vrot.lane.b32.xlu0 %v1241, 27
      %v1255 = vpop.permute.xlu0 %1254
      %1256 = vrot.lane.b32.xlu0 %v1242, 27
      %v1257 = vpop.permute.xlu0 %1256
      %vm1258 = vcmask 220160
      %v1259 = vsel %vm1258, %v1249, %v1251
      %v1260 = vsel %vm1258, %v1251, %v1253
      %v1261 = vsel %vm1258, %v1253, %v1255
      %v1262 = vsel %vm1258, %v1255, %v1257
      %1267 = vst [vmem:[#allocation2 + $0x400] sm:$0xff] %v1259
      %1268 = vst [vmem:[#allocation2 + $0x408] sm:$0xff] %v1260
      %1269 = vst [vmem:[#allocation2 + $0x410] sm:$0xff] %v1261
      %1270 = vst [vmem:[#allocation2 + $0x418] sm:$0xff] %v1262
      %v1271 = vld [vmem:[%s191] sm:$0xff]
      %v1272 = vld [vmem:[%s191 + $0x8] sm:$0xff]
      %v1273 = vld [vmem:[%s191 + $0x10] sm:$0xff]
      %v1274 = vld [vmem:[%s191 + $0x18] sm:$0xff]
      %v1275 = vld [vmem:[%s191 + $0x20] sm:$0xff]
      %1281 = vrot.lane.b32.xlu0 %v1271, 26
      %v1282 = vpop.permute.xlu0 %1281
      %1283 = vrot.lane.b32.xlu0 %v1272, 26
      %v1284 = vpop.permute.xlu0 %1283
      %1285 = vrot.lane.b32.xlu0 %v1273, 26
      %v1286 = vpop.permute.xlu0 %1285
      %1287 = vrot.lane.b32.xlu0 %v1274, 26
      %v1288 = vpop.permute.xlu0 %1287
      %1289 = vrot.lane.b32.xlu0 %v1275, 26
      %v1290 = vpop.permute.xlu0 %1289
      %vm1291 = vcmask 211968
      %v1292 = vsel %vm1291, %v1282, %v1284
      %v1293 = vsel %vm1291, %v1284, %v1286
      %v1294 = vsel %vm1291, %v1286, %v1288
      %v1295 = vsel %vm1291, %v1288, %v1290
      %1300 = vst [vmem:[#allocation2 + $0x420] sm:$0xff] %v1292
      %1301 = vst [vmem:[#allocation2 + $0x428] sm:$0xff] %v1293
      %1302 = vst [vmem:[#allocation2 + $0x430] sm:$0xff] %v1294
      %1303 = vst [vmem:[#allocation2 + $0x438] sm:$0xff] %v1295
      %v1304 = vld [vmem:[%s191] sm:$0xff]
      %v1305 = vld [vmem:[%s191 + $0x8] sm:$0xff]
      %v1306 = vld [vmem:[%s191 + $0x10] sm:$0xff]
      %v1307 = vld [vmem:[%s191 + $0x18] sm:$0xff]
      %v1308 = vld [vmem:[%s191 + $0x20] sm:$0xff]
      %1314 = vrot.lane.b32.xlu0 %v1304, 25
      %v1315 = vpop.permute.xlu0 %1314
      %1316 = vrot.lane.b32.xlu0 %v1305, 25
      %v1317 = vpop.permute.xlu0 %1316
      %1318 = vrot.lane.b32.xlu0 %v1306, 25
      %v1319 = vpop.permute.xlu0 %1318
      %1320 = vrot.lane.b32.xlu0 %v1307, 25
      %v1321 = vpop.permute.xlu0 %1320
      %1322 = vrot.lane.b32.xlu0 %v1308, 25
      %v1323 = vpop.permute.xlu0 %1322
      %vm1324 = vcmask 203776
      %v1325 = vsel %vm1324, %v1315, %v1317
      %v1326 = vsel %vm1324, %v1317, %v1319
      %v1327 = vsel %vm1324, %v1319, %v1321
      %v1328 = vsel %vm1324, %v1321, %v1323
      %1333 = vst [vmem:[#allocation2 + $0x440] sm:$0xff] %v1325
      %1334 = vst [vmem:[#allocation2 + $0x448] sm:$0xff] %v1326
      %1335 = vst [vmem:[#allocation2 + $0x450] sm:$0xff] %v1327
      %1336 = vst [vmem:[#allocation2 + $0x458] sm:$0xff] %v1328
      %v1337 = vld [vmem:[%s191] sm:$0xff]
      %v1338 = vld [vmem:[%s191 + $0x8] sm:$0xff]
      %v1339 = vld [vmem:[%s191 + $0x10] sm:$0xff]
      %v1340 = vld [vmem:[%s191 + $0x18] sm:$0xff]
      %v1341 = vld [vmem:[%s191 + $0x20] sm:$0xff]
      %1347 = vrot.lane.b32.xlu0 %v1337, 24
      %v1348 = vpop.permute.xlu0 %1347
      %1349 = vrot.lane.b32.xlu0 %v1338, 24
      %v1350 = vpop.permute.xlu0 %1349
      %1351 = vrot.lane.b32.xlu0 %v1339, 24
      %v1352 = vpop.permute.xlu0 %1351
      %1353 = vrot.lane.b32.xlu0 %v1340, 24
      %v1354 = vpop.permute.xlu0 %1353
      %1355 = vrot.lane.b32.xlu0 %v1341, 24
      %v1356 = vpop.permute.xlu0 %1355
      %vm1357 = vcmask 195584
      %v1358 = vsel %vm1357, %v1348, %v1350
      %v1359 = vsel %vm1357, %v1350, %v1352
      %v1360 = vsel %vm1357, %v1352, %v1354
      %v1361 = vsel %vm1357, %v1354, %v1356
      %1366 = vst [vmem:[#allocation2 + $0x460] sm:$0xff] %v1358
      %1367 = vst [vmem:[#allocation2 + $0x468] sm:$0xff] %v1359
      %1368 = vst [vmem:[#allocation2 + $0x470] sm:$0xff] %v1360
      %1369 = vst [vmem:[#allocation2 + $0x478] sm:$0xff] %v1361
      %v1370 = vld [vmem:[%s191 + $0x8] sm:$0xff]
      %v1371 = vld [vmem:[%s191 + $0x10] sm:$0xff]
      %v1372 = vld [vmem:[%s191 + $0x18] sm:$0xff]
      %v1373 = vld [vmem:[%s191 + $0x20] sm:$0xff]
      %1374 = vst [vmem:[#allocation2 + $0x480] sm:$0xff] %v1370
      %1375 = vst [vmem:[#allocation2 + $0x488] sm:$0xff] %v1371
      %1376 = vst [vmem:[#allocation2 + $0x490] sm:$0xff] %v1372
      %1377 = vst [vmem:[#allocation2 + $0x498] sm:$0xff] %v1373
      %v1378 = vld [vmem:[%s191 + $0x8] sm:$0xff]
      %v1379 = vld [vmem:[%s191 + $0x10] sm:$0xff]
      %v1380 = vld [vmem:[%s191 + $0x18] sm:$0xff]
      %v1381 = vld [vmem:[%s191 + $0x20] sm:$0xff]
      %v1382 = vld [vmem:[%s191 + $0x28] sm:$0xff]
      %1388 = vrot.lane.b32.xlu0 %v1378, 127
      %v1389 = vpop.permute.xlu0 %1388
      %1390 = vrot.lane.b32.xlu0 %v1379, 127
      %v1391 = vpop.permute.xlu0 %1390
      %1392 = vrot.lane.b32.xlu0 %v1380, 127
      %v1393 = vpop.permute.xlu0 %1392
      %1394 = vrot.lane.b32.xlu0 %v1381, 127
      %v1395 = vpop.permute.xlu0 %1394
      %1396 = vrot.lane.b32.xlu0 %v1382, 127
      %v1397 = vpop.permute.xlu0 %1396
      %v1398 = vsel %vm235, %v1389, %v1391
      %v1399 = vsel %vm235, %v1391, %v1393
      %v1400 = vsel %vm235, %v1393, %v1395
      %v1401 = vsel %vm235, %v1395, %v1397
      %1406 = vst [vmem:[#allocation2 + $0x4a0] sm:$0xff] %v1398
      %1407 = vst [vmem:[#allocation2 + $0x4a8] sm:$0xff] %v1399
      %1408 = vst [vmem:[#allocation2 + $0x4b0] sm:$0xff] %v1400
      %1409 = vst [vmem:[#allocation2 + $0x4b8] sm:$0xff] %v1401
      %v1410 = vld [vmem:[%s191 + $0x8] sm:$0xff]
      %v1411 = vld [vmem:[%s191 + $0x10] sm:$0xff]
      %v1412 = vld [vmem:[%s191 + $0x18] sm:$0xff]
      %v1413 = vld [vmem:[%s191 + $0x20] sm:$0xff]
      %v1414 = vld [vmem:[%s191 + $0x28] sm:$0xff]
      %1420 = vrot.lane.b32.xlu0 %v1410, 126
      %v1421 = vpop.permute.xlu0 %1420
      %1422 = vrot.lane.b32.xlu0 %v1411, 126
      %v1423 = vpop.permute.xlu0 %1422
      %1424 = vrot.lane.b32.xlu0 %v1412, 126
      %v1425 = vpop.permute.xlu0 %1424
      %1426 = vrot.lane.b32.xlu0 %v1413, 126
      %v1427 = vpop.permute.xlu0 %1426
      %1428 = vrot.lane.b32.xlu0 %v1414, 126
      %v1429 = vpop.permute.xlu0 %1428
      %v1430 = vsel %vm268, %v1421, %v1423
      %v1431 = vsel %vm268, %v1423, %v1425
      %v1432 = vsel %vm268, %v1425, %v1427
      %v1433 = vsel %vm268, %v1427, %v1429
      %1438 = vst [vmem:[#allocation2 + $0x4c0] sm:$0xff] %v1430
      %1439 = vst [vmem:[#allocation2 + $0x4c8] sm:$0xff] %v1431
      %1440 = vst [vmem:[#allocation2 + $0x4d0] sm:$0xff] %v1432
      %1441 = vst [vmem:[#allocation2 + $0x4d8] sm:$0xff] %v1433
      %v1442 = vld [vmem:[%s191 + $0x8] sm:$0xff]
      %v1443 = vld [vmem:[%s191 + $0x10] sm:$0xff]
      %v1444 = vld [vmem:[%s191 + $0x18] sm:$0xff]
      %v1445 = vld [vmem:[%s191 + $0x20] sm:$0xff]
      %v1446 = vld [vmem:[%s191 + $0x28] sm:$0xff]
      %1452 = vrot.lane.b32.xlu0 %v1442, 125
      %v1453 = vpop.permute.xlu0 %1452
      %1454 = vrot.lane.b32.xlu0 %v1443, 125
      %v1455 = vpop.permute.xlu0 %1454
      %1456 = vrot.lane.b32.xlu0 %v1444, 125
      %v1457 = vpop.permute.xlu0 %1456
      %1458 = vrot.lane.b32.xlu0 %v1445, 125
      %v1459 = vpop.permute.xlu0 %1458
      %1460 = vrot.lane.b32.xlu0 %v1446, 125
      %v1461 = vpop.permute.xlu0 %1460
      %v1462 = vsel %vm301, %v1453, %v1455
      %v1463 = vsel %vm301, %v1455, %v1457
      %v1464 = vsel %vm301, %v1457, %v1459
      %v1465 = vsel %vm301, %v1459, %v1461
      %1470 = vst [vmem:[#allocation2 + $0x4e0] sm:$0xff] %v1462
      %1471 = vst [vmem:[#allocation2 + $0x4e8] sm:$0xff] %v1463
      %1472 = vst [vmem:[#allocation2 + $0x4f0] sm:$0xff] %v1464
      %1473 = vst [vmem:[#allocation2 + $0x4f8] sm:$0xff] %v1465
      %v1474 = vld [vmem:[%s191 + $0x8] sm:$0xff]
      %v1475 = vld [vmem:[%s191 + $0x10] sm:$0xff]
      %v1476 = vld [vmem:[%s191 + $0x18] sm:$0xff]
      %v1477 = vld [vmem:[%s191 + $0x20] sm:$0xff]
      %v1478 = vld [vmem:[%s191 + $0x28] sm:$0xff]
      %1484 = vrot.lane.b32.xlu0 %v1474, 124
      %v1485 = vpop.permute.xlu0 %1484
      %1486 = vrot.lane.b32.xlu0 %v1475, 124
      %v1487 = vpop.permute.xlu0 %1486
      %1488 = vrot.lane.b32.xlu0 %v1476, 124
      %v1489 = vpop.permute.xlu0 %1488
      %1490 = vrot.lane.b32.xlu0 %v1477, 124
      %v1491 = vpop.permute.xlu0 %1490
      %1492 = vrot.lane.b32.xlu0 %v1478, 124
      %v1493 = vpop.permute.xlu0 %1492
      %v1494 = vsel %vm334, %v1485, %v1487
      %v1495 = vsel %vm334, %v1487, %v1489
      %v1496 = vsel %vm334, %v1489, %v1491
      %v1497 = vsel %vm334, %v1491, %v1493
      %1502 = vst [vmem:[#allocation2 + $0x500] sm:$0xff] %v1494
      %1503 = vst [vmem:[#allocation2 + $0x508] sm:$0xff] %v1495
      %1504 = vst [vmem:[#allocation2 + $0x510] sm:$0xff] %v1496
      %1505 = vst [vmem:[#allocation2 + $0x518] sm:$0xff] %v1497
      %v1506 = vld [vmem:[%s191 + $0x8] sm:$0xff]
      %v1507 = vld [vmem:[%s191 + $0x10] sm:$0xff]
      %v1508 = vld [vmem:[%s191 + $0x18] sm:$0xff]
      %v1509 = vld [vmem:[%s191 + $0x20] sm:$0xff]
      %v1510 = vld [vmem:[%s191 + $0x28] sm:$0xff]
      %1516 = vrot.lane.b32.xlu0 %v1506, 123
      %v1517 = vpop.permute.xlu0 %1516
      %1518 = vrot.lane.b32.xlu0 %v1507, 123
      %v1519 = vpop.permute.xlu0 %1518
      %1520 = vrot.lane.b32.xlu0 %v1508, 123
      %v1521 = vpop.permute.xlu0 %1520
      %1522 = vrot.lane.b32.xlu0 %v1509, 123
      %v1523 = vpop.permute.xlu0 %1522
      %1524 = vrot.lane.b32.xlu0 %v1510, 123
      %v1525 = vpop.permute.xlu0 %1524
      %v1526 = vsel %vm367, %v1517, %v1519
      %v1527 = vsel %vm367, %v1519, %v1521
      %v1528 = vsel %vm367, %v1521, %v1523
      %v1529 = vsel %vm367, %v1523, %v1525
      %1534 = vst [vmem:[#allocation2 + $0x520] sm:$0xff] %v1526
      %1535 = vst [vmem:[#allocation2 + $0x528] sm:$0xff] %v1527
      %1536 = vst [vmem:[#allocation2 + $0x530] sm:$0xff] %v1528
      %1537 = vst [vmem:[#allocation2 + $0x538] sm:$0xff] %v1529
      %v1538 = vld [vmem:[%s191 + $0x8] sm:$0xff]
      %v1539 = vld [vmem:[%s191 + $0x10] sm:$0xff]
      %v1540 = vld [vmem:[%s191 + $0x18] sm:$0xff]
      %v1541 = vld [vmem:[%s191 + $0x20] sm:$0xff]
      %v1542 = vld [vmem:[%s191 + $0x28] sm:$0xff]
      %1548 = vrot.lane.b32.xlu0 %v1538, 122
      %v1549 = vpop.permute.xlu0 %1548
      %1550 = vrot.lane.b32.xlu0 %v1539, 122
      %v1551 = vpop.permute.xlu0 %1550
      %1552 = vrot.lane.b32.xlu0 %v1540, 122
      %v1553 = vpop.permute.xlu0 %1552
      %1554 = vrot.lane.b32.xlu0 %v1541, 122
      %v1555 = vpop.permute.xlu0 %1554
      %1556 = vrot.lane.b32.xlu0 %v1542, 122
      %v1557 = vpop.permute.xlu0 %1556
      %v1558 = vsel %vm400, %v1549, %v1551
      %v1559 = vsel %vm400, %v1551, %v1553
      %v1560 = vsel %vm400, %v1553, %v1555
      %v1561 = vsel %vm400, %v1555, %v1557
      %1566 = vst [vmem:[#allocation2 + $0x540] sm:$0xff] %v1558
      %1567 = vst [vmem:[#allocation2 + $0x548] sm:$0xff] %v1559
      %1568 = vst [vmem:[#allocation2 + $0x550] sm:$0xff] %v1560
      %1569 = vst [vmem:[#allocation2 + $0x558] sm:$0xff] %v1561
      %v1570 = vld [vmem:[%s191 + $0x8] sm:$0xff]
      %v1571 = vld [vmem:[%s191 + $0x10] sm:$0xff]
      %v1572 = vld [vmem:[%s191 + $0x18] sm:$0xff]
      %v1573 = vld [vmem:[%s191 + $0x20] sm:$0xff]
      %v1574 = vld [vmem:[%s191 + $0x28] sm:$0xff]
      %1580 = vrot.lane.b32.xlu0 %v1570, 121
      %v1581 = vpop.permute.xlu0 %1580
      %1582 = vrot.lane.b32.xlu0 %v1571, 121
      %v1583 = vpop.permute.xlu0 %1582
      %1584 = vrot.lane.b32.xlu0 %v1572, 121
      %v1585 = vpop.permute.xlu0 %1584
      %1586 = vrot.lane.b32.xlu0 %v1573, 121
      %v1587 = vpop.permute.xlu0 %1586
      %1588 = vrot.lane.b32.xlu0 %v1574, 121
      %v1589 = vpop.permute.xlu0 %1588
      %v1590 = vsel %vm433, %v1581, %v1583
      %v1591 = vsel %vm433, %v1583, %v1585
      %v1592 = vsel %vm433, %v1585, %v1587
      %v1593 = vsel %vm433, %v1587, %v1589
      %1598 = vst [vmem:[#allocation2 + $0x560] sm:$0xff] %v1590
      %1599 = vst [vmem:[#allocation2 + $0x568] sm:$0xff] %v1591
      %1600 = vst [vmem:[#allocation2 + $0x570] sm:$0xff] %v1592
      %1601 = vst [vmem:[#allocation2 + $0x578] sm:$0xff] %v1593
      %v1602 = vld [vmem:[%s191 + $0x8] sm:$0xff]
      %v1603 = vld [vmem:[%s191 + $0x10] sm:$0xff]
      %v1604 = vld [vmem:[%s191 + $0x18] sm:$0xff]
      %v1605 = vld [vmem:[%s191 + $0x20] sm:$0xff]
      %v1606 = vld [vmem:[%s191 + $0x28] sm:$0xff]
      %1612 = vrot.lane.b32.xlu0 %v1602, 120
      %v1613 = vpop.permute.xlu0 %1612
      %1614 = vrot.lane.b32.xlu0 %v1603, 120
      %v1615 = vpop.permute.xlu0 %1614
      %1616 = vrot.lane.b32.xlu0 %v1604, 120
      %v1617 = vpop.permute.xlu0 %1616
      %1618 = vrot.lane.b32.xlu0 %v1605, 120
      %v1619 = vpop.permute.xlu0 %1618
      %1620 = vrot.lane.b32.xlu0 %v1606, 120
      %v1621 = vpop.permute.xlu0 %1620
      %v1622 = vsel %vm466, %v1613, %v1615
      %v1623 = vsel %vm466, %v1615, %v1617
      %v1624 = vsel %vm466, %v1617, %v1619
      %v1625 = vsel %vm466, %v1619, %v1621
      %1630 = vst [vmem:[#allocation2 + $0x580] sm:$0xff] %v1622
      %1631 = vst [vmem:[#allocation2 + $0x588] sm:$0xff] %v1623
      %1632 = vst [vmem:[#allocation2 + $0x590] sm:$0xff] %v1624
      %1633 = vst [vmem:[#allocation2 + $0x598] sm:$0xff] %v1625
      %v1634 = vld [vmem:[%s191 + $0x8] sm:$0xff]
      %v1635 = vld [vmem:[%s191 + $0x10] sm:$0xff]
      %v1636 = vld [vmem:[%s191 + $0x18] sm:$0xff]
      %v1637 = vld [vmem:[%s191 + $0x20] sm:$0xff]
      %v1638 = vld [vmem:[%s191 + $0x28] sm:$0xff]
      %1644 = vrot.lane.b32.xlu0 %v1634, 96
      %v1645 = vpop.permute.xlu0 %1644
      %1646 = vrot.lane.b32.xlu0 %v1635, 96
      %v1647 = vpop.permute.xlu0 %1646
      %1648 = vrot.lane.b32.xlu0 %v1636, 96
      %v1649 = vpop.permute.xlu0 %1648
      %1650 = vrot.lane.b32.xlu0 %v1637, 96
      %v1651 = vpop.permute.xlu0 %1650
      %1652 = vrot.lane.b32.xlu0 %v1638, 96
      %v1653 = vpop.permute.xlu0 %1652
      %v1654 = vsel %vm499, %v1645, %v1647
      %v1655 = vsel %vm499, %v1647, %v1649
      %v1656 = vsel %vm499, %v1649, %v1651
      %v1657 = vsel %vm499, %v1651, %v1653
      %1662 = vst [vmem:[#allocation2 + $0x5a0] sm:$0xff] %v1654
      %1663 = vst [vmem:[#allocation2 + $0x5a8] sm:$0xff] %v1655
      %1664 = vst [vmem:[#allocation2 + $0x5b0] sm:$0xff] %v1656
      %1665 = vst [vmem:[#allocation2 + $0x5b8] sm:$0xff] %v1657
      %v1666 = vld [vmem:[%s191 + $0x8] sm:$0xff]
      %v1667 = vld [vmem:[%s191 + $0x10] sm:$0xff]
      %v1668 = vld [vmem:[%s191 + $0x18] sm:$0xff]
      %v1669 = vld [vmem:[%s191 + $0x20] sm:$0xff]
      %v1670 = vld [vmem:[%s191 + $0x28] sm:$0xff]
      %1676 = vrot.lane.b32.xlu0 %v1666, 95
      %v1677 = vpop.permute.xlu0 %1676
      %1678 = vrot.lane.b32.xlu0 %v1667, 95
      %v1679 = vpop.permute.xlu0 %1678
      %1680 = vrot.lane.b32.xlu0 %v1668, 95
      %v1681 = vpop.permute.xlu0 %1680
      %1682 = vrot.lane.b32.xlu0 %v1669, 95
      %v1683 = vpop.permute.xlu0 %1682
      %1684 = vrot.lane.b32.xlu0 %v1670, 95
      %v1685 = vpop.permute.xlu0 %1684
      %v1686 = vsel %vm532, %v1677, %v1679
      %v1687 = vsel %vm532, %v1679, %v1681
      %v1688 = vsel %vm532, %v1681, %v1683
      %v1689 = vsel %vm532, %v1683, %v1685
      %1694 = vst [vmem:[#allocation2 + $0x5c0] sm:$0xff] %v1686
      %1695 = vst [vmem:[#allocation2 + $0x5c8] sm:$0xff] %v1687
      %1696 = vst [vmem:[#allocation2 + $0x5d0] sm:$0xff] %v1688
      %1697 = vst [vmem:[#allocation2 + $0x5d8] sm:$0xff] %v1689
      %v1698 = vld [vmem:[%s191 + $0x8] sm:$0xff]
      %v1699 = vld [vmem:[%s191 + $0x10] sm:$0xff]
      %v1700 = vld [vmem:[%s191 + $0x18] sm:$0xff]
      %v1701 = vld [vmem:[%s191 + $0x20] sm:$0xff]
      %v1702 = vld [vmem:[%s191 + $0x28] sm:$0xff]
      %1708 = vrot.lane.b32.xlu0 %v1698, 94
      %v1709 = vpop.permute.xlu0 %1708
      %1710 = vrot.lane.b32.xlu0 %v1699, 94
      %v1711 = vpop.permute.xlu0 %1710
      %1712 = vrot.lane.b32.xlu0 %v1700, 94
      %v1713 = vpop.permute.xlu0 %1712
      %1714 = vrot.lane.b32.xlu0 %v1701, 94
      %v1715 = vpop.permute.xlu0 %1714
      %1716 = vrot.lane.b32.xlu0 %v1702, 94
      %v1717 = vpop.permute.xlu0 %1716
      %v1718 = vsel %vm565, %v1709, %v1711
      %v1719 = vsel %vm565, %v1711, %v1713
      %v1720 = vsel %vm565, %v1713, %v1715
      %v1721 = vsel %vm565, %v1715, %v1717
      %1726 = vst [vmem:[#allocation2 + $0x5e0] sm:$0xff] %v1718
      %1727 = vst [vmem:[#allocation2 + $0x5e8] sm:$0xff] %v1719
      %1728 = vst [vmem:[#allocation2 + $0x5f0] sm:$0xff] %v1720
      %1729 = vst [vmem:[#allocation2 + $0x5f8] sm:$0xff] %v1721
      %v1730 = vld [vmem:[%s191 + $0x8] sm:$0xff]
      %v1731 = vld [vmem:[%s191 + $0x10] sm:$0xff]
      %v1732 = vld [vmem:[%s191 + $0x18] sm:$0xff]
      %v1733 = vld [vmem:[%s191 + $0x20] sm:$0xff]
      %v1734 = vld [vmem:[%s191 + $0x28] sm:$0xff]
      %1740 = vrot.lane.b32.xlu0 %v1730, 93
      %v1741 = vpop.permute.xlu0 %1740
      %1742 = vrot.lane.b32.xlu0 %v1731, 93
      %v1743 = vpop.permute.xlu0 %1742
      %1744 = vrot.lane.b32.xlu0 %v1732, 93
      %v1745 = vpop.permute.xlu0 %1744
      %1746 = vrot.lane.b32.xlu0 %v1733, 93
      %v1747 = vpop.permute.xlu0 %1746
      %1748 = vrot.lane.b32.xlu0 %v1734, 93
      %v1749 = vpop.permute.xlu0 %1748
      %v1750 = vsel %vm598, %v1741, %v1743
      %v1751 = vsel %vm598, %v1743, %v1745
      %v1752 = vsel %vm598, %v1745, %v1747
      %v1753 = vsel %vm598, %v1747, %v1749
      %1758 = vst [vmem:[#allocation2 + $0x600] sm:$0xff] %v1750
      %1759 = vst [vmem:[#allocation2 + $0x608] sm:$0xff] %v1751
      %1760 = vst [vmem:[#allocation2 + $0x610] sm:$0xff] %v1752
      %1761 = vst [vmem:[#allocation2 + $0x618] sm:$0xff] %v1753
      %v1762 = vld [vmem:[%s191 + $0x8] sm:$0xff]
      %v1763 = vld [vmem:[%s191 + $0x10] sm:$0xff]
      %v1764 = vld [vmem:[%s191 + $0x18] sm:$0xff]
      %v1765 = vld [vmem:[%s191 + $0x20] sm:$0xff]
      %v1766 = vld [vmem:[%s191 + $0x28] sm:$0xff]
      %1772 = vrot.lane.b32.xlu0 %v1762, 92
      %v1773 = vpop.permute.xlu0 %1772
      %1774 = vrot.lane.b32.xlu0 %v1763, 92
      %v1775 = vpop.permute.xlu0 %1774
      %1776 = vrot.lane.b32.xlu0 %v1764, 92
      %v1777 = vpop.permute.xlu0 %1776
      %1778 = vrot.lane.b32.xlu0 %v1765, 92
      %v1779 = vpop.permute.xlu0 %1778
      %1780 = vrot.lane.b32.xlu0 %v1766, 92
      %v1781 = vpop.permute.xlu0 %1780
      %v1782 = vsel %vm631, %v1773, %v1775
      %v1783 = vsel %vm631, %v1775, %v1777
      %v1784 = vsel %vm631, %v1777, %v1779
      %v1785 = vsel %vm631, %v1779, %v1781
      %1790 = vst [vmem:[#allocation2 + $0x620] sm:$0xff] %v1782
      %1791 = vst [vmem:[#allocation2 + $0x628] sm:$0xff] %v1783
      %1792 = vst [vmem:[#allocation2 + $0x630] sm:$0xff] %v1784
      %1793 = vst [vmem:[#allocation2 + $0x638] sm:$0xff] %v1785
      %v1794 = vld [vmem:[%s191 + $0x8] sm:$0xff]
      %v1795 = vld [vmem:[%s191 + $0x10] sm:$0xff]
      %v1796 = vld [vmem:[%s191 + $0x18] sm:$0xff]
      %v1797 = vld [vmem:[%s191 + $0x20] sm:$0xff]
      %v1798 = vld [vmem:[%s191 + $0x28] sm:$0xff]
      %1804 = vrot.lane.b32.xlu0 %v1794, 91
      %v1805 = vpop.permute.xlu0 %1804
      %1806 = vrot.lane.b32.xlu0 %v1795, 91
      %v1807 = vpop.permute.xlu0 %1806
      %1808 = vrot.lane.b32.xlu0 %v1796, 91
      %v1809 = vpop.permute.xlu0 %1808
      %1810 = vrot.lane.b32.xlu0 %v1797, 91
      %v1811 = vpop.permute.xlu0 %1810
      %1812 = vrot.lane.b32.xlu0 %v1798, 91
      %v1813 = vpop.permute.xlu0 %1812
      %v1814 = vsel %vm664, %v1805, %v1807
      %v1815 = vsel %vm664, %v1807, %v1809
      %v1816 = vsel %vm664, %v1809, %v1811
      %v1817 = vsel %vm664, %v1811, %v1813
      %1822 = vst [vmem:[#allocation2 + $0x640] sm:$0xff] %v1814
      %1823 = vst [vmem:[#allocation2 + $0x648] sm:$0xff] %v1815
      %1824 = vst [vmem:[#allocation2 + $0x650] sm:$0xff] %v1816
      %1825 = vst [vmem:[#allocation2 + $0x658] sm:$0xff] %v1817
      %v1826 = vld [vmem:[%s191 + $0x8] sm:$0xff]
      %v1827 = vld [vmem:[%s191 + $0x10] sm:$0xff]
      %v1828 = vld [vmem:[%s191 + $0x18] sm:$0xff]
      %v1829 = vld [vmem:[%s191 + $0x20] sm:$0xff]
      %v1830 = vld [vmem:[%s191 + $0x28] sm:$0xff]
      %1836 = vrot.lane.b32.xlu0 %v1826, 90
      %v1837 = vpop.permute.xlu0 %1836
      %1838 = vrot.lane.b32.xlu0 %v1827, 90
      %v1839 = vpop.permute.xlu0 %1838
      %1840 = vrot.lane.b32.xlu0 %v1828, 90
      %v1841 = vpop.permute.xlu0 %1840
      %1842 = vrot.lane.b32.xlu0 %v1829, 90
      %v1843 = vpop.permute.xlu0 %1842
      %1844 = vrot.lane.b32.xlu0 %v1830, 90
      %v1845 = vpop.permute.xlu0 %1844
      %v1846 = vsel %vm697, %v1837, %v1839
      %v1847 = vsel %vm697, %v1839, %v1841
      %v1848 = vsel %vm697, %v1841, %v1843
      %v1849 = vsel %vm697, %v1843, %v1845
      %1854 = vst [vmem:[#allocation2 + $0x660] sm:$0xff] %v1846
      %1855 = vst [vmem:[#allocation2 + $0x668] sm:$0xff] %v1847
      %1856 = vst [vmem:[#allocation2 + $0x670] sm:$0xff] %v1848
      %1857 = vst [vmem:[#allocation2 + $0x678] sm:$0xff] %v1849
      %v1858 = vld [vmem:[%s191 + $0x8] sm:$0xff]
      %v1859 = vld [vmem:[%s191 + $0x10] sm:$0xff]
      %v1860 = vld [vmem:[%s191 + $0x18] sm:$0xff]
      %v1861 = vld [vmem:[%s191 + $0x20] sm:$0xff]
      %v1862 = vld [vmem:[%s191 + $0x28] sm:$0xff]
      %1868 = vrot.lane.b32.xlu0 %v1858, 89
      %v1869 = vpop.permute.xlu0 %1868
      %1870 = vrot.lane.b32.xlu0 %v1859, 89
      %v1871 = vpop.permute.xlu0 %1870
      %1872 = vrot.lane.b32.xlu0 %v1860, 89
      %v1873 = vpop.permute.xlu0 %1872
      %1874 = vrot.lane.b32.xlu0 %v1861, 89
      %v1875 = vpop.permute.xlu0 %1874
      %1876 = vrot.lane.b32.xlu0 %v1862, 89
      %v1877 = vpop.permute.xlu0 %1876
      %v1878 = vsel %vm730, %v1869, %v1871
      %v1879 = vsel %vm730, %v1871, %v1873
      %v1880 = vsel %vm730, %v1873, %v1875
      %v1881 = vsel %vm730, %v1875, %v1877
      %1886 = vst [vmem:[#allocation2 + $0x680] sm:$0xff] %v1878
      %1887 = vst [vmem:[#allocation2 + $0x688] sm:$0xff] %v1879
      %1888 = vst [vmem:[#allocation2 + $0x690] sm:$0xff] %v1880
      %1889 = vst [vmem:[#allocation2 + $0x698] sm:$0xff] %v1881
      %v1890 = vld [vmem:[%s191 + $0x8] sm:$0xff]
      %v1891 = vld [vmem:[%s191 + $0x10] sm:$0xff]
      %v1892 = vld [vmem:[%s191 + $0x18] sm:$0xff]
      %v1893 = vld [vmem:[%s191 + $0x20] sm:$0xff]
      %v1894 = vld [vmem:[%s191 + $0x28] sm:$0xff]
      %1900 = vrot.lane.b32.xlu0 %v1890, 88
      %v1901 = vpop.permute.xlu0 %1900
      %1902 = vrot.lane.b32.xlu0 %v1891, 88
      %v1903 = vpop.permute.xlu0 %1902
      %1904 = vrot.lane.b32.xlu0 %v1892, 88
      %v1905 = vpop.permute.xlu0 %1904
      %1906 = vrot.lane.b32.xlu0 %v1893, 88
      %v1907 = vpop.permute.xlu0 %1906
      %1908 = vrot.lane.b32.xlu0 %v1894, 88
      %v1909 = vpop.permute.xlu0 %1908
      %v1910 = vsel %vm763, %v1901, %v1903
      %v1911 = vsel %vm763, %v1903, %v1905
      %v1912 = vsel %vm763, %v1905, %v1907
      %v1913 = vsel %vm763, %v1907, %v1909
      %1918 = vst [vmem:[#allocation2 + $0x6a0] sm:$0xff] %v1910
      %1919 = vst [vmem:[#allocation2 + $0x6a8] sm:$0xff] %v1911
      %1920 = vst [vmem:[#allocation2 + $0x6b0] sm:$0xff] %v1912
      %1921 = vst [vmem:[#allocation2 + $0x6b8] sm:$0xff] %v1913
      %v1922 = vld [vmem:[%s191 + $0x8] sm:$0xff]
      %v1923 = vld [vmem:[%s191 + $0x10] sm:$0xff]
      %v1924 = vld [vmem:[%s191 + $0x18] sm:$0xff]
      %v1925 = vld [vmem:[%s191 + $0x20] sm:$0xff]
      %v1926 = vld [vmem:[%s191 + $0x28] sm:$0xff]
      %1932 = vrot.lane.b32.xlu0 %v1922, 64
      %v1933 = vpop.permute.xlu0 %1932
      %1934 = vrot.lane.b32.xlu0 %v1923, 64
      %v1935 = vpop.permute.xlu0 %1934
      %1936 = vrot.lane.b32.xlu0 %v1924, 64
      %v1937 = vpop.permute.xlu0 %1936
      %1938 = vrot.lane.b32.xlu0 %v1925, 64
      %v1939 = vpop.permute.xlu0 %1938
      %1940 = vrot.lane.b32.xlu0 %v1926, 64
      %v1941 = vpop.permute.xlu0 %1940
      %v1942 = vsel %vm796, %v1933, %v1935
      %v1943 = vsel %vm796, %v1935, %v1937
      %v1944 = vsel %vm796, %v1937, %v1939
      %v1945 = vsel %vm796, %v1939, %v1941
      %1950 = vst [vmem:[#allocation2 + $0x6c0] sm:$0xff] %v1942
      %1951 = vst [vmem:[#allocation2 + $0x6c8] sm:$0xff] %v1943
      %1952 = vst [vmem:[#allocation2 + $0x6d0] sm:$0xff] %v1944
      %1953 = vst [vmem:[#allocation2 + $0x6d8] sm:$0xff] %v1945
      %v1954 = vld [vmem:[%s191 + $0x8] sm:$0xff]
      %v1955 = vld [vmem:[%s191 + $0x10] sm:$0xff]
      %v1956 = vld [vmem:[%s191 + $0x18] sm:$0xff]
      %v1957 = vld [vmem:[%s191 + $0x20] sm:$0xff]
      %v1958 = vld [vmem:[%s191 + $0x28] sm:$0xff]
      %1964 = vrot.lane.b32.xlu0 %v1954, 63
      %v1965 = vpop.permute.xlu0 %1964
      %1966 = vrot.lane.b32.xlu0 %v1955, 63
      %v1967 = vpop.permute.xlu0 %1966
      %1968 = vrot.lane.b32.xlu0 %v1956, 63
      %v1969 = vpop.permute.xlu0 %1968
      %1970 = vrot.lane.b32.xlu0 %v1957, 63
      %v1971 = vpop.permute.xlu0 %1970
      %1972 = vrot.lane.b32.xlu0 %v1958, 63
      %v1973 = vpop.permute.xlu0 %1972
      %v1974 = vsel %vm829, %v1965, %v1967
      %v1975 = vsel %vm829, %v1967, %v1969
      %v1976 = vsel %vm829, %v1969, %v1971
      %v1977 = vsel %vm829, %v1971, %v1973
      %1982 = vst [vmem:[#allocation2 + $0x6e0] sm:$0xff] %v1974
      %1983 = vst [vmem:[#allocation2 + $0x6e8] sm:$0xff] %v1975
      %1984 = vst [vmem:[#allocation2 + $0x6f0] sm:$0xff] %v1976
      %1985 = vst [vmem:[#allocation2 + $0x6f8] sm:$0xff] %v1977
      %v1986 = vld [vmem:[%s191 + $0x8] sm:$0xff]
      %v1987 = vld [vmem:[%s191 + $0x10] sm:$0xff]
      %v1988 = vld [vmem:[%s191 + $0x18] sm:$0xff]
      %v1989 = vld [vmem:[%s191 + $0x20] sm:$0xff]
      %v1990 = vld [vmem:[%s191 + $0x28] sm:$0xff]
      %1996 = vrot.lane.b32.xlu0 %v1986, 62
      %v1997 = vpop.permute.xlu0 %1996
      %1998 = vrot.lane.b32.xlu0 %v1987, 62
      %v1999 = vpop.permute.xlu0 %1998
      %2000 = vrot.lane.b32.xlu0 %v1988, 62
      %v2001 = vpop.permute.xlu0 %2000
      %2002 = vrot.lane.b32.xlu0 %v1989, 62
      %v2003 = vpop.permute.xlu0 %2002
      %2004 = vrot.lane.b32.xlu0 %v1990, 62
      %v2005 = vpop.permute.xlu0 %2004
      %v2006 = vsel %vm862, %v1997, %v1999
      %v2007 = vsel %vm862, %v1999, %v2001
      %v2008 = vsel %vm862, %v2001, %v2003
      %v2009 = vsel %vm862, %v2003, %v2005
      %2014 = vst [vmem:[#allocation2 + $0x700] sm:$0xff] %v2006
      %2015 = vst [vmem:[#allocation2 + $0x708] sm:$0xff] %v2007
      %2016 = vst [vmem:[#allocation2 + $0x710] sm:$0xff] %v2008
      %2017 = vst [vmem:[#allocation2 + $0x718] sm:$0xff] %v2009
      %v2018 = vld [vmem:[%s191 + $0x8] sm:$0xff]
      %v2019 = vld [vmem:[%s191 + $0x10] sm:$0xff]
      %v2020 = vld [vmem:[%s191 + $0x18] sm:$0xff]
      %v2021 = vld [vmem:[%s191 + $0x20] sm:$0xff]
      %v2022 = vld [vmem:[%s191 + $0x28] sm:$0xff]
      %2028 = vrot.lane.b32.xlu0 %v2018, 61
      %v2029 = vpop.permute.xlu0 %2028
      %2030 = vrot.lane.b32.xlu0 %v2019, 61
      %v2031 = vpop.permute.xlu0 %2030
      %2032 = vrot.lane.b32.xlu0 %v2020, 61
      %v2033 = vpop.permute.xlu0 %2032
      %2034 = vrot.lane.b32.xlu0 %v2021, 61
      %v2035 = vpop.permute.xlu0 %2034
      %2036 = vrot.lane.b32.xlu0 %v2022, 61
      %v2037 = vpop.permute.xlu0 %2036
      %v2038 = vsel %vm895, %v2029, %v2031
      %v2039 = vsel %vm895, %v2031, %v2033
      %v2040 = vsel %vm895, %v2033, %v2035
      %v2041 = vsel %vm895, %v2035, %v2037
      %2046 = vst [vmem:[#allocation2 + $0x720] sm:$0xff] %v2038
      %2047 = vst [vmem:[#allocation2 + $0x728] sm:$0xff] %v2039
      %2048 = vst [vmem:[#allocation2 + $0x730] sm:$0xff] %v2040
      %2049 = vst [vmem:[#allocation2 + $0x738] sm:$0xff] %v2041
      %v2050 = vld [vmem:[%s191 + $0x8] sm:$0xff]
      %v2051 = vld [vmem:[%s191 + $0x10] sm:$0xff]
      %v2052 = vld [vmem:[%s191 + $0x18] sm:$0xff]
      %v2053 = vld [vmem:[%s191 + $0x20] sm:$0xff]
      %v2054 = vld [vmem:[%s191 + $0x28] sm:$0xff]
      %2060 = vrot.lane.b32.xlu0 %v2050, 60
      %v2061 = vpop.permute.xlu0 %2060
      %2062 = vrot.lane.b32.xlu0 %v2051, 60
      %v2063 = vpop.permute.xlu0 %2062
      %2064 = vrot.lane.b32.xlu0 %v2052, 60
      %v2065 = vpop.permute.xlu0 %2064
      %2066 = vrot.lane.b32.xlu0 %v2053, 60
      %v2067 = vpop.permute.xlu0 %2066
      %2068 = vrot.lane.b32.xlu0 %v2054, 60
      %v2069 = vpop.permute.xlu0 %2068
      %v2070 = vsel %vm928, %v2061, %v2063
      %v2071 = vsel %vm928, %v2063, %v2065
      %v2072 = vsel %vm928, %v2065, %v2067
      %v2073 = vsel %vm928, %v2067, %v2069
      %2078 = vst [vmem:[#allocation2 + $0x740] sm:$0xff] %v2070
      %2079 = vst [vmem:[#allocation2 + $0x748] sm:$0xff] %v2071
      %2080 = vst [vmem:[#allocation2 + $0x750] sm:$0xff] %v2072
      %2081 = vst [vmem:[#allocation2 + $0x758] sm:$0xff] %v2073
      %v2082 = vld [vmem:[%s191 + $0x8] sm:$0xff]
      %v2083 = vld [vmem:[%s191 + $0x10] sm:$0xff]
      %v2084 = vld [vmem:[%s191 + $0x18] sm:$0xff]
      %v2085 = vld [vmem:[%s191 + $0x20] sm:$0xff]
      %v2086 = vld [vmem:[%s191 + $0x28] sm:$0xff]
      %2092 = vrot.lane.b32.xlu0 %v2082, 59
      %v2093 = vpop.permute.xlu0 %2092
      %2094 = vrot.lane.b32.xlu0 %v2083, 59
      %v2095 = vpop.permute.xlu0 %2094
      %2096 = vrot.lane.b32.xlu0 %v2084, 59
      %v2097 = vpop.permute.xlu0 %2096
      %2098 = vrot.lane.b32.xlu0 %v2085, 59
      %v2099 = vpop.permute.xlu0 %2098
      %2100 = vrot.lane.b32.xlu0 %v2086, 59
      %v2101 = vpop.permute.xlu0 %2100
      %v2102 = vsel %vm961, %v2093, %v2095
      %v2103 = vsel %vm961, %v2095, %v2097
      %v2104 = vsel %vm961, %v2097, %v2099
      %v2105 = vsel %vm961, %v2099, %v2101
      %2110 = vst [vmem:[#allocation2 + $0x760] sm:$0xff] %v2102
      %2111 = vst [vmem:[#allocation2 + $0x768] sm:$0xff] %v2103
      %2112 = vst [vmem:[#allocation2 + $0x770] sm:$0xff] %v2104
      %2113 = vst [vmem:[#allocation2 + $0x778] sm:$0xff] %v2105
      %v2114 = vld [vmem:[%s191 + $0x8] sm:$0xff]
      %v2115 = vld [vmem:[%s191 + $0x10] sm:$0xff]
      %v2116 = vld [vmem:[%s191 + $0x18] sm:$0xff]
      %v2117 = vld [vmem:[%s191 + $0x20] sm:$0xff]
      %v2118 = vld [vmem:[%s191 + $0x28] sm:$0xff]
      %2124 = vrot.lane.b32.xlu0 %v2114, 58
      %v2125 = vpop.permute.xlu0 %2124
      %2126 = vrot.lane.b32.xlu0 %v2115, 58
      %v2127 = vpop.permute.xlu0 %2126
      %2128 = vrot.lane.b32.xlu0 %v2116, 58
      %v2129 = vpop.permute.xlu0 %2128
      %2130 = vrot.lane.b32.xlu0 %v2117, 58
      %v2131 = vpop.permute.xlu0 %2130
      %2132 = vrot.lane.b32.xlu0 %v2118, 58
      %v2133 = vpop.permute.xlu0 %2132
      %v2134 = vsel %vm994, %v2125, %v2127
      %v2135 = vsel %vm994, %v2127, %v2129
      %v2136 = vsel %vm994, %v2129, %v2131
      %v2137 = vsel %vm994, %v2131, %v2133
      %2142 = vst [vmem:[#allocation2 + $0x780] sm:$0xff] %v2134
      %2143 = vst [vmem:[#allocation2 + $0x788] sm:$0xff] %v2135
      %2144 = vst [vmem:[#allocation2 + $0x790] sm:$0xff] %v2136
      %2145 = vst [vmem:[#allocation2 + $0x798] sm:$0xff] %v2137
      %v2146 = vld [vmem:[%s191 + $0x8] sm:$0xff]
      %v2147 = vld [vmem:[%s191 + $0x10] sm:$0xff]
      %v2148 = vld [vmem:[%s191 + $0x18] sm:$0xff]
      %v2149 = vld [vmem:[%s191 + $0x20] sm:$0xff]
      %v2150 = vld [vmem:[%s191 + $0x28] sm:$0xff]
      %2156 = vrot.lane.b32.xlu0 %v2146, 57
      %v2157 = vpop.permute.xlu0 %2156
      %2158 = vrot.lane.b32.xlu0 %v2147, 57
      %v2159 = vpop.permute.xlu0 %2158
      %2160 = vrot.lane.b32.xlu0 %v2148, 57
      %v2161 = vpop.permute.xlu0 %2160
      %2162 = vrot.lane.b32.xlu0 %v2149, 57
      %v2163 = vpop.permute.xlu0 %2162
      %2164 = vrot.lane.b32.xlu0 %v2150, 57
      %v2165 = vpop.permute.xlu0 %2164
      %v2166 = vsel %vm1027, %v2157, %v2159
      %v2167 = vsel %vm1027, %v2159, %v2161
      %v2168 = vsel %vm1027, %v2161, %v2163
      %v2169 = vsel %vm1027, %v2163, %v2165
      %2174 = vst [vmem:[#allocation2 + $0x7a0] sm:$0xff] %v2166
      %2175 = vst [vmem:[#allocation2 + $0x7a8] sm:$0xff] %v2167
      %2176 = vst [vmem:[#allocation2 + $0x7b0] sm:$0xff] %v2168
      %2177 = vst [vmem:[#allocation2 + $0x7b8] sm:$0xff] %v2169
      %v2178 = vld [vmem:[%s191 + $0x8] sm:$0xff]
      %v2179 = vld [vmem:[%s191 + $0x10] sm:$0xff]
      %v2180 = vld [vmem:[%s191 + $0x18] sm:$0xff]
      %v2181 = vld [vmem:[%s191 + $0x20] sm:$0xff]
      %v2182 = vld [vmem:[%s191 + $0x28] sm:$0xff]
      %2188 = vrot.lane.b32.xlu0 %v2178, 56
      %v2189 = vpop.permute.xlu0 %2188
      %2190 = vrot.lane.b32.xlu0 %v2179, 56
      %v2191 = vpop.permute.xlu0 %2190
      %2192 = vrot.lane.b32.xlu0 %v2180, 56
      %v2193 = vpop.permute.xlu0 %2192
      %2194 = vrot.lane.b32.xlu0 %v2181, 56
      %v2195 = vpop.permute.xlu0 %2194
      %2196 = vrot.lane.b32.xlu0 %v2182, 56
      %v2197 = vpop.permute.xlu0 %2196
      %v2198 = vsel %vm1060, %v2189, %v2191
      %v2199 = vsel %vm1060, %v2191, %v2193
      %v2200 = vsel %vm1060, %v2193, %v2195
      %v2201 = vsel %vm1060, %v2195, %v2197
      %2206 = vst [vmem:[#allocation2 + $0x7c0] sm:$0xff] %v2198
      %2207 = vst [vmem:[#allocation2 + $0x7c8] sm:$0xff] %v2199
      %2208 = vst [vmem:[#allocation2 + $0x7d0] sm:$0xff] %v2200
      %2209 = vst [vmem:[#allocation2 + $0x7d8] sm:$0xff] %v2201
      %v2210 = vld [vmem:[%s191 + $0x8] sm:$0xff]
      %v2211 = vld [vmem:[%s191 + $0x10] sm:$0xff]
      %v2212 = vld [vmem:[%s191 + $0x18] sm:$0xff]
      %v2213 = vld [vmem:[%s191 + $0x20] sm:$0xff]
      %v2214 = vld [vmem:[%s191 + $0x28] sm:$0xff]
      %2220 = vrot.lane.b32.xlu0 %v2210, 32
      %v2221 = vpop.permute.xlu0 %2220
      %2222 = vrot.lane.b32.xlu0 %v2211, 32
      %v2223 = vpop.permute.xlu0 %2222
      %2224 = vrot.lane.b32.xlu0 %v2212, 32
      %v2225 = vpop.permute.xlu0 %2224
      %2226 = vrot.lane.b32.xlu0 %v2213, 32
      %v2227 = vpop.permute.xlu0 %2226
      %2228 = vrot.lane.b32.xlu0 %v2214, 32
      %v2229 = vpop.permute.xlu0 %2228
      %v2230 = vsel %vm1093, %v2221, %v2223
      %v2231 = vsel %vm1093, %v2223, %v2225
      %v2232 = vsel %vm1093, %v2225, %v2227
      %v2233 = vsel %vm1093, %v2227, %v2229
      %2238 = vst [vmem:[#allocation2 + $0x7e0] sm:$0xff] %v2230
      %2239 = vst [vmem:[#allocation2 + $0x7e8] sm:$0xff] %v2231
      %2240 = vst [vmem:[#allocation2 + $0x7f0] sm:$0xff] %v2232
      %2241 = vst [vmem:[#allocation2 + $0x7f8] sm:$0xff] %v2233
      %v2242 = vld [vmem:[%s191 + $0x8] sm:$0xff]
      %v2243 = vld [vmem:[%s191 + $0x10] sm:$0xff]
      %v2244 = vld [vmem:[%s191 + $0x18] sm:$0xff]
      %v2245 = vld [vmem:[%s191 + $0x20] sm:$0xff]
      %v2246 = vld [vmem:[%s191 + $0x28] sm:$0xff]
      %2252 = vrot.lane.b32.xlu0 %v2242, 31
      %v2253 = vpop.permute.xlu0 %2252
      %2254 = vrot.lane.b32.xlu0 %v2243, 31
      %v2255 = vpop.permute.xlu0 %2254
      %2256 = vrot.lane.b32.xlu0 %v2244, 31
      %v2257 = vpop.permute.xlu0 %2256
      %2258 = vrot.lane.b32.xlu0 %v2245, 31
      %v2259 = vpop.permute.xlu0 %2258
      %2260 = vrot.lane.b32.xlu0 %v2246, 31
      %v2261 = vpop.permute.xlu0 %2260
      %v2262 = vsel %vm1126, %v2253, %v2255
      %v2263 = vsel %vm1126, %v2255, %v2257
      %v2264 = vsel %vm1126, %v2257, %v2259
      %v2265 = vsel %vm1126, %v2259, %v2261
      %2270 = vst [vmem:[#allocation2 + $0x800] sm:$0xff] %v2262
      %2271 = vst [vmem:[#allocation2 + $0x808] sm:$0xff] %v2263
      %2272 = vst [vmem:[#allocation2 + $0x810] sm:$0xff] %v2264
      %2273 = vst [vmem:[#allocation2 + $0x818] sm:$0xff] %v2265
      %v2274 = vld [vmem:[%s191 + $0x8] sm:$0xff]
      %v2275 = vld [vmem:[%s191 + $0x10] sm:$0xff]
      %v2276 = vld [vmem:[%s191 + $0x18] sm:$0xff]
      %v2277 = vld [vmem:[%s191 + $0x20] sm:$0xff]
      %v2278 = vld [vmem:[%s191 + $0x28] sm:$0xff]
      %2284 = vrot.lane.b32.xlu0 %v2274, 30
      %v2285 = vpop.permute.xlu0 %2284
      %2286 = vrot.lane.b32.xlu0 %v2275, 30
      %v2287 = vpop.permute.xlu0 %2286
      %2288 = vrot.lane.b32.xlu0 %v2276, 30
      %v2289 = vpop.permute.xlu0 %2288
      %2290 = vrot.lane.b32.xlu0 %v2277, 30
      %v2291 = vpop.permute.xlu0 %2290
      %2292 = vrot.lane.b32.xlu0 %v2278, 30
      %v2293 = vpop.permute.xlu0 %2292
      %v2294 = vsel %vm1159, %v2285, %v2287
      %v2295 = vsel %vm1159, %v2287, %v2289
      %v2296 = vsel %vm1159, %v2289, %v2291
      %v2297 = vsel %vm1159, %v2291, %v2293
      %2302 = vst [vmem:[#allocation2 + $0x820] sm:$0xff] %v2294
      %2303 = vst [vmem:[#allocation2 + $0x828] sm:$0xff] %v2295
      %2304 = vst [vmem:[#allocation2 + $0x830] sm:$0xff] %v2296
      %2305 = vst [vmem:[#allocation2 + $0x838] sm:$0xff] %v2297
      %v2306 = vld [vmem:[%s191 + $0x8] sm:$0xff]
      %v2307 = vld [vmem:[%s191 + $0x10] sm:$0xff]
      %v2308 = vld [vmem:[%s191 + $0x18] sm:$0xff]
      %v2309 = vld [vmem:[%s191 + $0x20] sm:$0xff]
      %v2310 = vld [vmem:[%s191 + $0x28] sm:$0xff]
      %2316 = vrot.lane.b32.xlu0 %v2306, 29
      %v2317 = vpop.permute.xlu0 %2316
      %2318 = vrot.lane.b32.xlu0 %v2307, 29
      %v2319 = vpop.permute.xlu0 %2318
      %2320 = vrot.lane.b32.xlu0 %v2308, 29
      %v2321 = vpop.permute.xlu0 %2320
      %2322 = vrot.lane.b32.xlu0 %v2309, 29
      %v2323 = vpop.permute.xlu0 %2322
      %2324 = vrot.lane.b32.xlu0 %v2310, 29
      %v2325 = vpop.permute.xlu0 %2324
      %v2326 = vsel %vm1192, %v2317, %v2319
      %v2327 = vsel %vm1192, %v2319, %v2321
      %v2328 = vsel %vm1192, %v2321, %v2323
      %v2329 = vsel %vm1192, %v2323, %v2325
      %2334 = vst [vmem:[#allocation2 + $0x840] sm:$0xff] %v2326
      %2335 = vst [vmem:[#allocation2 + $0x848] sm:$0xff] %v2327
      %2336 = vst [vmem:[#allocation2 + $0x850] sm:$0xff] %v2328
      %2337 = vst [vmem:[#allocation2 + $0x858] sm:$0xff] %v2329
      %v2338 = vld [vmem:[%s191 + $0x8] sm:$0xff]
      %v2339 = vld [vmem:[%s191 + $0x10] sm:$0xff]
      %v2340 = vld [vmem:[%s191 + $0x18] sm:$0xff]
      %v2341 = vld [vmem:[%s191 + $0x20] sm:$0xff]
      %v2342 = vld [vmem:[%s191 + $0x28] sm:$0xff]
      %2348 = vrot.lane.b32.xlu0 %v2338, 28
      %v2349 = vpop.permute.xlu0 %2348
      %2350 = vrot.lane.b32.xlu0 %v2339, 28
      %v2351 = vpop.permute.xlu0 %2350
      %2352 = vrot.lane.b32.xlu0 %v2340, 28
      %v2353 = vpop.permute.xlu0 %2352
      %2354 = vrot.lane.b32.xlu0 %v2341, 28
      %v2355 = vpop.permute.xlu0 %2354
      %2356 = vrot.lane.b32.xlu0 %v2342, 28
      %v2357 = vpop.permute.xlu0 %2356
      %v2358 = vsel %vm1225, %v2349, %v2351
      %v2359 = vsel %vm1225, %v2351, %v2353
      %v2360 = vsel %vm1225, %v2353, %v2355
      %v2361 = vsel %vm1225, %v2355, %v2357
      %2366 = vst [vmem:[#allocation2 + $0x860] sm:$0xff] %v2358
      %2367 = vst [vmem:[#allocation2 + $0x868] sm:$0xff] %v2359
      %2368 = vst [vmem:[#allocation2 + $0x870] sm:$0xff] %v2360
      %2369 = vst [vmem:[#allocation2 + $0x878] sm:$0xff] %v2361
      %v2370 = vld [vmem:[%s191 + $0x8] sm:$0xff]
      %v2371 = vld [vmem:[%s191 + $0x10] sm:$0xff]
      %v2372 = vld [vmem:[%s191 + $0x18] sm:$0xff]
      %v2373 = vld [vmem:[%s191 + $0x20] sm:$0xff]
      %v2374 = vld [vmem:[%s191 + $0x28] sm:$0xff]
      %2380 = vrot.lane.b32.xlu0 %v2370, 27
      %v2381 = vpop.permute.xlu0 %2380
      %2382 = vrot.lane.b32.xlu0 %v2371, 27
      %v2383 = vpop.permute.xlu0 %2382
      %2384 = vrot.lane.b32.xlu0 %v2372, 27
      %v2385 = vpop.permute.xlu0 %2384
      %2386 = vrot.lane.b32.xlu0 %v2373, 27
      %v2387 = vpop.permute.xlu0 %2386
      %2388 = vrot.lane.b32.xlu0 %v2374, 27
      %v2389 = vpop.permute.xlu0 %2388
      %v2390 = vsel %vm1258, %v2381, %v2383
      %v2391 = vsel %vm1258, %v2383, %v2385
      %v2392 = vsel %vm1258, %v2385, %v2387
      %v2393 = vsel %vm1258, %v2387, %v2389
      %2398 = vst [vmem:[#allocation2 + $0x880] sm:$0xff] %v2390
      %2399 = vst [vmem:[#allocation2 + $0x888] sm:$0xff] %v2391
      %2400 = vst [vmem:[#allocation2 + $0x890] sm:$0xff] %v2392
      %2401 = vst [vmem:[#allocation2 + $0x898] sm:$0xff] %v2393
      %v2402 = vld [vmem:[%s191 + $0x8] sm:$0xff]
      %v2403 = vld [vmem:[%s191 + $0x10] sm:$0xff]
      %v2404 = vld [vmem:[%s191 + $0x18] sm:$0xff]
      %v2405 = vld [vmem:[%s191 + $0x20] sm:$0xff]
      %v2406 = vld [vmem:[%s191 + $0x28] sm:$0xff]
      %2412 = vrot.lane.b32.xlu0 %v2402, 26
      %v2413 = vpop.permute.xlu0 %2412
      %2414 = vrot.lane.b32.xlu0 %v2403, 26
      %v2415 = vpop.permute.xlu0 %2414
      %2416 = vrot.lane.b32.xlu0 %v2404, 26
      %v2417 = vpop.permute.xlu0 %2416
      %2418 = vrot.lane.b32.xlu0 %v2405, 26
      %v2419 = vpop.permute.xlu0 %2418
      %2420 = vrot.lane.b32.xlu0 %v2406, 26
      %v2421 = vpop.permute.xlu0 %2420
      %v2422 = vsel %vm1291, %v2413, %v2415
      %v2423 = vsel %vm1291, %v2415, %v2417
      %v2424 = vsel %vm1291, %v2417, %v2419
      %v2425 = vsel %vm1291, %v2419, %v2421
      %2430 = vst [vmem:[#allocation2 + $0x8a0] sm:$0xff] %v2422
      %2431 = vst [vmem:[#allocation2 + $0x8a8] sm:$0xff] %v2423
      %2432 = vst [vmem:[#allocation2 + $0x8b0] sm:$0xff] %v2424
      %2433 = vst [vmem:[#allocation2 + $0x8b8] sm:$0xff] %v2425
      %v2434 = vld [vmem:[%s191 + $0x8] sm:$0xff]
      %v2435 = vld [vmem:[%s191 + $0x10] sm:$0xff]
      %v2436 = vld [vmem:[%s191 + $0x18] sm:$0xff]
      %v2437 = vld [vmem:[%s191 + $0x20] sm:$0xff]
      %v2438 = vld [vmem:[%s191 + $0x28] sm:$0xff]
      %2444 = vrot.lane.b32.xlu0 %v2434, 25
      %v2445 = vpop.permute.xlu0 %2444
      %2446 = vrot.lane.b32.xlu0 %v2435, 25
      %v2447 = vpop.permute.xlu0 %2446
      %2448 = vrot.lane.b32.xlu0 %v2436, 25
      %v2449 = vpop.permute.xlu0 %2448
      %2450 = vrot.lane.b32.xlu0 %v2437, 25
      %v2451 = vpop.permute.xlu0 %2450
      %2452 = vrot.lane.b32.xlu0 %v2438, 25
      %v2453 = vpop.permute.xlu0 %2452
      %v2454 = vsel %vm1324, %v2445, %v2447
      %v2455 = vsel %vm1324, %v2447, %v2449
      %v2456 = vsel %vm1324, %v2449, %v2451
      %v2457 = vsel %vm1324, %v2451, %v2453
      %2462 = vst [vmem:[#allocation2 + $0x8c0] sm:$0xff] %v2454
      %2463 = vst [vmem:[#allocation2 + $0x8c8] sm:$0xff] %v2455
      %2464 = vst [vmem:[#allocation2 + $0x8d0] sm:$0xff] %v2456
      %2465 = vst [vmem:[#allocation2 + $0x8d8] sm:$0xff] %v2457
      %v2466 = vld [vmem:[%s191 + $0x8] sm:$0xff]
      %v2467 = vld [vmem:[%s191 + $0x10] sm:$0xff]
      %v2468 = vld [vmem:[%s191 + $0x18] sm:$0xff]
      %v2469 = vld [vmem:[%s191 + $0x20] sm:$0xff]
      %v2470 = vld [vmem:[%s191 + $0x28] sm:$0xff]
      %2476 = vrot.lane.b32.xlu0 %v2466, 24
      %v2477 = vpop.permute.xlu0 %2476
      %2478 = vrot.lane.b32.xlu0 %v2467, 24
      %v2479 = vpop.permute.xlu0 %2478
      %2480 = vrot.lane.b32.xlu0 %v2468, 24
      %v2481 = vpop.permute.xlu0 %2480
      %2482 = vrot.lane.b32.xlu0 %v2469, 24
      %v2483 = vpop.permute.xlu0 %2482
      %2484 = vrot.lane.b32.xlu0 %v2470, 24
      %v2485 = vpop.permute.xlu0 %2484
      %v2486 = vsel %vm1357, %v2477, %v2479
      %v2487 = vsel %vm1357, %v2479, %v2481
      %v2488 = vsel %vm1357, %v2481, %v2483
      %v2489 = vsel %vm1357, %v2483, %v2485
      %2494 = vst [vmem:[#allocation2 + $0x8e0] sm:$0xff] %v2486
      %2495 = vst [vmem:[#allocation2 + $0x8e8] sm:$0xff] %v2487
      %2496 = vst [vmem:[#allocation2 + $0x8f0] sm:$0xff] %v2488
      %2497 = vst [vmem:[#allocation2 + $0x8f8] sm:$0xff] %v2489
      %v2498 = vld [vmem:[%s191 + $0x10] sm:$0xff]
      %v2499 = vld [vmem:[%s191 + $0x18] sm:$0xff]
      %v2500 = vld [vmem:[%s191 + $0x20] sm:$0xff]
      %v2501 = vld [vmem:[%s191 + $0x28] sm:$0xff]
      %2502 = vst [vmem:[#allocation2 + $0x900] sm:$0xff] %v2498
      %2503 = vst [vmem:[#allocation2 + $0x908] sm:$0xff] %v2499
      %2504 = vst [vmem:[#allocation2 + $0x910] sm:$0xff] %v2500
      %2505 = vst [vmem:[#allocation2 + $0x918] sm:$0xff] %v2501
      %v2506 = vld [vmem:[%s191 + $0x10] sm:$0xff]
      %v2507 = vld [vmem:[%s191 + $0x18] sm:$0xff]
      %v2508 = vld [vmem:[%s191 + $0x20] sm:$0xff]
      %v2509 = vld [vmem:[%s191 + $0x28] sm:$0xff]
      %v2510 = vld [vmem:[%s191 + $0x30] sm:$0xff]
      %2516 = vrot.lane.b32.xlu0 %v2506, 127
      %v2517 = vpop.permute.xlu0 %2516
      %2518 = vrot.lane.b32.xlu0 %v2507, 127
      %v2519 = vpop.permute.xlu0 %2518
      %2520 = vrot.lane.b32.xlu0 %v2508, 127
      %v2521 = vpop.permute.xlu0 %2520
      %2522 = vrot.lane.b32.xlu0 %v2509, 127
      %v2523 = vpop.permute.xlu0 %2522
      %2524 = vrot.lane.b32.xlu0 %v2510, 127
      %v2525 = vpop.permute.xlu0 %2524
      %v2526 = vsel %vm235, %v2517, %v2519
      %v2527 = vsel %vm235, %v2519, %v2521
      %v2528 = vsel %vm235, %v2521, %v2523
      %v2529 = vsel %vm235, %v2523, %v2525
      %2534 = vst [vmem:[#allocation2 + $0x920] sm:$0xff] %v2526
      %2535 = vst [vmem:[#allocation2 + $0x928] sm:$0xff] %v2527
      %2536 = vst [vmem:[#allocation2 + $0x930] sm:$0xff] %v2528
      %2537 = vst [vmem:[#allocation2 + $0x938] sm:$0xff] %v2529
      %v2538 = vld [vmem:[%s191 + $0x10] sm:$0xff]
      %v2539 = vld [vmem:[%s191 + $0x18] sm:$0xff]
      %v2540 = vld [vmem:[%s191 + $0x20] sm:$0xff]
      %v2541 = vld [vmem:[%s191 + $0x28] sm:$0xff]
      %v2542 = vld [vmem:[%s191 + $0x30] sm:$0xff]
      %2548 = vrot.lane.b32.xlu0 %v2538, 126
      %v2549 = vpop.permute.xlu0 %2548
      %2550 = vrot.lane.b32.xlu0 %v2539, 126
      %v2551 = vpop.permute.xlu0 %2550
      %2552 = vrot.lane.b32.xlu0 %v2540, 126
      %v2553 = vpop.permute.xlu0 %2552
      %2554 = vrot.lane.b32.xlu0 %v2541, 126
      %v2555 = vpop.permute.xlu0 %2554
      %2556 = vrot.lane.b32.xlu0 %v2542, 126
      %v2557 = vpop.permute.xlu0 %2556
      %v2558 = vsel %vm268, %v2549, %v2551
      %v2559 = vsel %vm268, %v2551, %v2553
      %v2560 = vsel %vm268, %v2553, %v2555
      %v2561 = vsel %vm268, %v2555, %v2557
      %2566 = vst [vmem:[#allocation2 + $0x940] sm:$0xff] %v2558
      %2567 = vst [vmem:[#allocation2 + $0x948] sm:$0xff] %v2559
      %2568 = vst [vmem:[#allocation2 + $0x950] sm:$0xff] %v2560
      %2569 = vst [vmem:[#allocation2 + $0x958] sm:$0xff] %v2561
      %v2570 = vld [vmem:[%s191 + $0x10] sm:$0xff]
      %v2571 = vld [vmem:[%s191 + $0x18] sm:$0xff]
      %v2572 = vld [vmem:[%s191 + $0x20] sm:$0xff]
      %v2573 = vld [vmem:[%s191 + $0x28] sm:$0xff]
      %v2574 = vld [vmem:[%s191 + $0x30] sm:$0xff]
      %2580 = vrot.lane.b32.xlu0 %v2570, 125
      %v2581 = vpop.permute.xlu0 %2580
      %2582 = vrot.lane.b32.xlu0 %v2571, 125
      %v2583 = vpop.permute.xlu0 %2582
      %2584 = vrot.lane.b32.xlu0 %v2572, 125
      %v2585 = vpop.permute.xlu0 %2584
      %2586 = vrot.lane.b32.xlu0 %v2573, 125
      %v2587 = vpop.permute.xlu0 %2586
      %2588 = vrot.lane.b32.xlu0 %v2574, 125
      %v2589 = vpop.permute.xlu0 %2588
      %v2590 = vsel %vm301, %v2581, %v2583
      %v2591 = vsel %vm301, %v2583, %v2585
      %v2592 = vsel %vm301, %v2585, %v2587
      %v2593 = vsel %vm301, %v2587, %v2589
      %2598 = vst [vmem:[#allocation2 + $0x960] sm:$0xff] %v2590
      %2599 = vst [vmem:[#allocation2 + $0x968] sm:$0xff] %v2591
      %2600 = vst [vmem:[#allocation2 + $0x970] sm:$0xff] %v2592
      %2601 = vst [vmem:[#allocation2 + $0x978] sm:$0xff] %v2593
      %v2602 = vld [vmem:[%s191 + $0x10] sm:$0xff]
      %v2603 = vld [vmem:[%s191 + $0x18] sm:$0xff]
      %v2604 = vld [vmem:[%s191 + $0x20] sm:$0xff]
      %v2605 = vld [vmem:[%s191 + $0x28] sm:$0xff]
      %v2606 = vld [vmem:[%s191 + $0x30] sm:$0xff]
      %2612 = vrot.lane.b32.xlu0 %v2602, 124
      %v2613 = vpop.permute.xlu0 %2612
      %2614 = vrot.lane.b32.xlu0 %v2603, 124
      %v2615 = vpop.permute.xlu0 %2614
      %2616 = vrot.lane.b32.xlu0 %v2604, 124
      %v2617 = vpop.permute.xlu0 %2616
      %2618 = vrot.lane.b32.xlu0 %v2605, 124
      %v2619 = vpop.permute.xlu0 %2618
      %2620 = vrot.lane.b32.xlu0 %v2606, 124
      %v2621 = vpop.permute.xlu0 %2620
      %v2622 = vsel %vm334, %v2613, %v2615
      %v2623 = vsel %vm334, %v2615, %v2617
      %v2624 = vsel %vm334, %v2617, %v2619
      %v2625 = vsel %vm334, %v2619, %v2621
      %2630 = vst [vmem:[#allocation2 + $0x980] sm:$0xff] %v2622
      %2631 = vst [vmem:[#allocation2 + $0x988] sm:$0xff] %v2623
      %2632 = vst [vmem:[#allocation2 + $0x990] sm:$0xff] %v2624
      %2633 = vst [vmem:[#allocation2 + $0x998] sm:$0xff] %v2625
      %v2634 = vld [vmem:[%s191 + $0x10] sm:$0xff]
      %v2635 = vld [vmem:[%s191 + $0x18] sm:$0xff]
      %v2636 = vld [vmem:[%s191 + $0x20] sm:$0xff]
      %v2637 = vld [vmem:[%s191 + $0x28] sm:$0xff]
      %v2638 = vld [vmem:[%s191 + $0x30] sm:$0xff]
      %2644 = vrot.lane.b32.xlu0 %v2634, 123
      %v2645 = vpop.permute.xlu0 %2644
      %2646 = vrot.lane.b32.xlu0 %v2635, 123
      %v2647 = vpop.permute.xlu0 %2646
      %2648 = vrot.lane.b32.xlu0 %v2636, 123
      %v2649 = vpop.permute.xlu0 %2648
      %2650 = vrot.lane.b32.xlu0 %v2637, 123
      %v2651 = vpop.permute.xlu0 %2650
      %2652 = vrot.lane.b32.xlu0 %v2638, 123
      %v2653 = vpop.permute.xlu0 %2652
      %v2654 = vsel %vm367, %v2645, %v2647
      %v2655 = vsel %vm367, %v2647, %v2649
      %v2656 = vsel %vm367, %v2649, %v2651
      %v2657 = vsel %vm367, %v2651, %v2653
      %2662 = vst [vmem:[#allocation2 + $0x9a0] sm:$0xff] %v2654
      %2663 = vst [vmem:[#allocation2 + $0x9a8] sm:$0xff] %v2655
      %2664 = vst [vmem:[#allocation2 + $0x9b0] sm:$0xff] %v2656
      %2665 = vst [vmem:[#allocation2 + $0x9b8] sm:$0xff] %v2657
      %v2666 = vld [vmem:[%s191 + $0x10] sm:$0xff]
      %v2667 = vld [vmem:[%s191 + $0x18] sm:$0xff]
      %v2668 = vld [vmem:[%s191 + $0x20] sm:$0xff]
      %v2669 = vld [vmem:[%s191 + $0x28] sm:$0xff]
      %v2670 = vld [vmem:[%s191 + $0x30] sm:$0xff]
      %2676 = vrot.lane.b32.xlu0 %v2666, 122
      %v2677 = vpop.permute.xlu0 %2676
      %2678 = vrot.lane.b32.xlu0 %v2667, 122
      %v2679 = vpop.permute.xlu0 %2678
      %2680 = vrot.lane.b32.xlu0 %v2668, 122
      %v2681 = vpop.permute.xlu0 %2680
      %2682 = vrot.lane.b32.xlu0 %v2669, 122
      %v2683 = vpop.permute.xlu0 %2682
      %2684 = vrot.lane.b32.xlu0 %v2670, 122
      %v2685 = vpop.permute.xlu0 %2684
      %v2686 = vsel %vm400, %v2677, %v2679
      %v2687 = vsel %vm400, %v2679, %v2681
      %v2688 = vsel %vm400, %v2681, %v2683
      %v2689 = vsel %vm400, %v2683, %v2685
      %2694 = vst [vmem:[#allocation2 + $0x9c0] sm:$0xff] %v2686
      %2695 = vst [vmem:[#allocation2 + $0x9c8] sm:$0xff] %v2687
      %2696 = vst [vmem:[#allocation2 + $0x9d0] sm:$0xff] %v2688
      %2697 = vst [vmem:[#allocation2 + $0x9d8] sm:$0xff] %v2689
      %v2698 = vld [vmem:[%s191 + $0x10] sm:$0xff]
      %v2699 = vld [vmem:[%s191 + $0x18] sm:$0xff]
      %v2700 = vld [vmem:[%s191 + $0x20] sm:$0xff]
      %v2701 = vld [vmem:[%s191 + $0x28] sm:$0xff]
      %v2702 = vld [vmem:[%s191 + $0x30] sm:$0xff]
      %2708 = vrot.lane.b32.xlu0 %v2698, 121
      %v2709 = vpop.permute.xlu0 %2708
      %2710 = vrot.lane.b32.xlu0 %v2699, 121
      %v2711 = vpop.permute.xlu0 %2710
      %2712 = vrot.lane.b32.xlu0 %v2700, 121
      %v2713 = vpop.permute.xlu0 %2712
      %2714 = vrot.lane.b32.xlu0 %v2701, 121
      %v2715 = vpop.permute.xlu0 %2714
      %2716 = vrot.lane.b32.xlu0 %v2702, 121
      %v2717 = vpop.permute.xlu0 %2716
      %v2718 = vsel %vm433, %v2709, %v2711
      %v2719 = vsel %vm433, %v2711, %v2713
      %v2720 = vsel %vm433, %v2713, %v2715
      %v2721 = vsel %vm433, %v2715, %v2717
      %2726 = vst [vmem:[#allocation2 + $0x9e0] sm:$0xff] %v2718
      %2727 = vst [vmem:[#allocation2 + $0x9e8] sm:$0xff] %v2719
      %2728 = vst [vmem:[#allocation2 + $0x9f0] sm:$0xff] %v2720
      %2729 = vst [vmem:[#allocation2 + $0x9f8] sm:$0xff] %v2721
      %v2730 = vld [vmem:[%s191 + $0x10] sm:$0xff]
      %v2731 = vld [vmem:[%s191 + $0x18] sm:$0xff]
      %v2732 = vld [vmem:[%s191 + $0x20] sm:$0xff]
      %v2733 = vld [vmem:[%s191 + $0x28] sm:$0xff]
      %v2734 = vld [vmem:[%s191 + $0x30] sm:$0xff]
      %2740 = vrot.lane.b32.xlu0 %v2730, 120
      %v2741 = vpop.permute.xlu0 %2740
      %2742 = vrot.lane.b32.xlu0 %v2731, 120
      %v2743 = vpop.permute.xlu0 %2742
      %2744 = vrot.lane.b32.xlu0 %v2732, 120
      %v2745 = vpop.permute.xlu0 %2744
      %2746 = vrot.lane.b32.xlu0 %v2733, 120
      %v2747 = vpop.permute.xlu0 %2746
      %2748 = vrot.lane.b32.xlu0 %v2734, 120
      %v2749 = vpop.permute.xlu0 %2748
      %v2750 = vsel %vm466, %v2741, %v2743
      %v2751 = vsel %vm466, %v2743, %v2745
      %v2752 = vsel %vm466, %v2745, %v2747
      %v2753 = vsel %vm466, %v2747, %v2749
      %2758 = vst [vmem:[#allocation2 + $0xa00] sm:$0xff] %v2750
      %2759 = vst [vmem:[#allocation2 + $0xa08] sm:$0xff] %v2751
      %2760 = vst [vmem:[#allocation2 + $0xa10] sm:$0xff] %v2752
      %2761 = vst [vmem:[#allocation2 + $0xa18] sm:$0xff] %v2753
      %v2762 = vld [vmem:[%s1] sm:$0xff]
      %v2763 = vld [vmem:[%s1 + $0x8] sm:$0xff]
      %v2764 = vld [vmem:[%s1 + $0x10] sm:$0xff]
      %v2765 = vld [vmem:[%s1 + $0x18] sm:$0xff]
      %v2766 = vld [vmem:[%s1 + $0x20] sm:$0xff]
      %v2767 = vld [vmem:[%s1 + $0x28] sm:$0xff]
      %v2768 = vld [vmem:[#allocation2] sm:$0xff]
      %v2769 = vld [vmem:[#allocation2 + $0x8] sm:$0xff]
      %v2770 = vld [vmem:[#allocation2 + $0x10] sm:$0xff]
      %v2771 = vld [vmem:[#allocation2 + $0x18] sm:$0xff]
      %v2772 = vld [vmem:[#allocation2 + $0x20] sm:$0xff]
      %v2773 = vld [vmem:[#allocation2 + $0x28] sm:$0xff]
      %v2774 = vld [vmem:[#allocation2 + $0x30] sm:$0xff]
      %v2775 = vld [vmem:[#allocation2 + $0x38] sm:$0xff]
      %v2776 = vld [vmem:[#allocation2 + $0x40] sm:$0xff]
      %v2777 = vld [vmem:[#allocation2 + $0x48] sm:$0xff]
      %v2778 = vld [vmem:[#allocation2 + $0x50] sm:$0xff]
      %v2779 = vld [vmem:[#allocation2 + $0x58] sm:$0xff]
      %v2780 = vld [vmem:[#allocation2 + $0x60] sm:$0xff]
      %v2781 = vld [vmem:[#allocation2 + $0x68] sm:$0xff]
      %v2782 = vld [vmem:[#allocation2 + $0x70] sm:$0xff]
      %v2783 = vld [vmem:[#allocation2 + $0x78] sm:$0xff]
      %v2784 = vld [vmem:[#allocation2 + $0x80] sm:$0xff]
      %v2785 = vld [vmem:[#allocation2 + $0x88] sm:$0xff]
      %v2786 = vld [vmem:[#allocation2 + $0x90] sm:$0xff]
      %v2787 = vld [vmem:[#allocation2 + $0x98] sm:$0xff]
      %v2788 = vld [vmem:[#allocation2 + $0xa0] sm:$0xff]
      %v2789 = vld [vmem:[#allocation2 + $0xa8] sm:$0xff]
      %v2790 = vld [vmem:[#allocation2 + $0xb0] sm:$0xff]
      %v2791 = vld [vmem:[#allocation2 + $0xb8] sm:$0xff]
      %v2792 = vld [vmem:[#allocation2 + $0xc0] sm:$0xff]
      %v2793 = vld [vmem:[#allocation2 + $0xc8] sm:$0xff]
      %v2794 = vld [vmem:[#allocation2 + $0xd0] sm:$0xff]
      %v2795 = vld [vmem:[#allocation2 + $0xd8] sm:$0xff]
      %v2796 = vld [vmem:[#allocation2 + $0xe0] sm:$0xff]
      %v2797 = vld [vmem:[#allocation2 + $0xe8] sm:$0xff]
      %v2798 = vld [vmem:[#allocation2 + $0xf0] sm:$0xff]
      %v2799 = vld [vmem:[#allocation2 + $0xf8] sm:$0xff]
      %v2800 = vld [vmem:[#allocation2 + $0x100] sm:$0xff]
      %v2801 = vld [vmem:[#allocation2 + $0x108] sm:$0xff]
      %v2802 = vld [vmem:[#allocation2 + $0x110] sm:$0xff]
      %v2803 = vld [vmem:[#allocation2 + $0x118] sm:$0xff]
      %v2804 = vld [vmem:[#allocation2 + $0x120] sm:$0xff]
      %v2805 = vld [vmem:[#allocation2 + $0x128] sm:$0xff]
      %v2806 = vld [vmem:[#allocation2 + $0x130] sm:$0xff]
      %v2807 = vld [vmem:[#allocation2 + $0x138] sm:$0xff]
      %v2808 = vld [vmem:[#allocation2 + $0x140] sm:$0xff]
      %v2809 = vld [vmem:[#allocation2 + $0x148] sm:$0xff]
      %v2810 = vld [vmem:[#allocation2 + $0x150] sm:$0xff]
      %v2811 = vld [vmem:[#allocation2 + $0x158] sm:$0xff]
      %v2812 = vld [vmem:[#allocation2 + $0x160] sm:$0xff]
      %v2813 = vld [vmem:[#allocation2 + $0x168] sm:$0xff]
      %v2814 = vld [vmem:[#allocation2 + $0x170] sm:$0xff]
      %v2815 = vld [vmem:[#allocation2 + $0x178] sm:$0xff]
      %v2816 = vld [vmem:[#allocation2 + $0x180] sm:$0xff]
      %v2817 = vld [vmem:[#allocation2 + $0x188] sm:$0xff]
      %v2818 = vld [vmem:[#allocation2 + $0x190] sm:$0xff]
      %v2819 = vld [vmem:[#allocation2 + $0x198] sm:$0xff]
      %v2820 = vld [vmem:[#allocation2 + $0x1a0] sm:$0xff]
      %v2821 = vld [vmem:[#allocation2 + $0x1a8] sm:$0xff]
      %v2822 = vld [vmem:[#allocation2 + $0x1b0] sm:$0xff]
      %v2823 = vld [vmem:[#allocation2 + $0x1b8] sm:$0xff]
      %v2824 = vld [vmem:[#allocation2 + $0x1c0] sm:$0xff]
      %v2825 = vld [vmem:[#allocation2 + $0x1c8] sm:$0xff]
      %v2826 = vld [vmem:[#allocation2 + $0x1d0] sm:$0xff]
      %v2827 = vld [vmem:[#allocation2 + $0x1d8] sm:$0xff]
      %v2828 = vld [vmem:[#allocation2 + $0x1e0] sm:$0xff]
      %v2829 = vld [vmem:[#allocation2 + $0x1e8] sm:$0xff]
      %v2830 = vld [vmem:[#allocation2 + $0x1f0] sm:$0xff]
      %v2831 = vld [vmem:[#allocation2 + $0x1f8] sm:$0xff]
      %v2832 = vld [vmem:[#allocation2 + $0x200] sm:$0xff]
      %v2833 = vld [vmem:[#allocation2 + $0x208] sm:$0xff]
      %v2834 = vld [vmem:[#allocation2 + $0x210] sm:$0xff]
      %v2835 = vld [vmem:[#allocation2 + $0x218] sm:$0xff]
      %v2836 = vld [vmem:[#allocation2 + $0x220] sm:$0xff]
      %v2837 = vld [vmem:[#allocation2 + $0x228] sm:$0xff]
      %v2838 = vld [vmem:[#allocation2 + $0x230] sm:$0xff]
      %v2839 = vld [vmem:[#allocation2 + $0x238] sm:$0xff]
      %v2840 = vld [vmem:[#allocation2 + $0x240] sm:$0xff]
      %v2841 = vld [vmem:[#allocation2 + $0x248] sm:$0xff]
      %v2842 = vld [vmem:[#allocation2 + $0x250] sm:$0xff]
      %v2843 = vld [vmem:[#allocation2 + $0x258] sm:$0xff]
      %v2844 = vld [vmem:[#allocation2 + $0x260] sm:$0xff]
      %v2845 = vld [vmem:[#allocation2 + $0x268] sm:$0xff]
      %v2846 = vld [vmem:[#allocation2 + $0x270] sm:$0xff]
      %v2847 = vld [vmem:[#allocation2 + $0x278] sm:$0xff]
      %v2848 = vld [vmem:[#allocation2 + $0x280] sm:$0xff]
      %v2849 = vld [vmem:[#allocation2 + $0x288] sm:$0xff]
      %v2850 = vld [vmem:[#allocation2 + $0x290] sm:$0xff]
      %v2851 = vld [vmem:[#allocation2 + $0x298] sm:$0xff]
      %v2852 = vld [vmem:[#allocation2 + $0x2a0] sm:$0xff]
      %v2853 = vld [vmem:[#allocation2 + $0x2a8] sm:$0xff]
      %v2854 = vld [vmem:[#allocation2 + $0x2b0] sm:$0xff]
      %v2855 = vld [vmem:[#allocation2 + $0x2b8] sm:$0xff]
      %v2856 = vld [vmem:[#allocation2 + $0x2c0] sm:$0xff]
      %v2857 = vld [vmem:[#allocation2 + $0x2c8] sm:$0xff]
      %v2858 = vld [vmem:[#allocation2 + $0x2d0] sm:$0xff]
      %v2859 = vld [vmem:[#allocation2 + $0x2d8] sm:$0xff]
      %v2860 = vld [vmem:[#allocation2 + $0x2e0] sm:$0xff]
      %v2861 = vld [vmem:[#allocation2 + $0x2e8] sm:$0xff]
      %v2862 = vld [vmem:[#allocation2 + $0x2f0] sm:$0xff]
      %v2863 = vld [vmem:[#allocation2 + $0x2f8] sm:$0xff]
      %v2864 = vld [vmem:[#allocation2 + $0x300] sm:$0xff]
      %v2865 = vld [vmem:[#allocation2 + $0x308] sm:$0xff]
      %v2866 = vld [vmem:[#allocation2 + $0x310] sm:$0xff]
      %v2867 = vld [vmem:[#allocation2 + $0x318] sm:$0xff]
      %v2868 = vld [vmem:[#allocation2 + $0x320] sm:$0xff]
      %v2869 = vld [vmem:[#allocation2 + $0x328] sm:$0xff]
      %v2870 = vld [vmem:[#allocation2 + $0x330] sm:$0xff]
      %v2871 = vld [vmem:[#allocation2 + $0x338] sm:$0xff]
      %v2872 = vld [vmem:[#allocation2 + $0x340] sm:$0xff]
      %v2873 = vld [vmem:[#allocation2 + $0x348] sm:$0xff]
      %v2874 = vld [vmem:[#allocation2 + $0x350] sm:$0xff]
      %v2875 = vld [vmem:[#allocation2 + $0x358] sm:$0xff]
      %v2876 = vld [vmem:[#allocation2 + $0x360] sm:$0xff]
      %v2877 = vld [vmem:[#allocation2 + $0x368] sm:$0xff]
      %v2878 = vld [vmem:[#allocation2 + $0x370] sm:$0xff]
      %v2879 = vld [vmem:[#allocation2 + $0x378] sm:$0xff]
      %v2880 = vld [vmem:[#allocation2 + $0x380] sm:$0xff]
      %v2881 = vld [vmem:[#allocation2 + $0x388] sm:$0xff]
      %v2882 = vld [vmem:[#allocation2 + $0x390] sm:$0xff]
      %v2883 = vld [vmem:[#allocation2 + $0x398] sm:$0xff]
      %v2884 = vld [vmem:[#allocation2 + $0x3a0] sm:$0xff]
      %v2885 = vld [vmem:[#allocation2 + $0x3a8] sm:$0xff]
      %v2886 = vld [vmem:[#allocation2 + $0x3b0] sm:$0xff]
      %v2887 = vld [vmem:[#allocation2 + $0x3b8] sm:$0xff]
      %v2888 = vld [vmem:[#allocation2 + $0x3c0] sm:$0xff]
      %v2889 = vld [vmem:[#allocation2 + $0x3c8] sm:$0xff]
      %v2890 = vld [vmem:[#allocation2 + $0x3d0] sm:$0xff]
      %v2891 = vld [vmem:[#allocation2 + $0x3d8] sm:$0xff]
      %v2892 = vld [vmem:[#allocation2 + $0x3e0] sm:$0xff]
      %v2893 = vld [vmem:[#allocation2 + $0x3e8] sm:$0xff]
      %v2894 = vld [vmem:[#allocation2 + $0x3f0] sm:$0xff]
      %v2895 = vld [vmem:[#allocation2 + $0x3f8] sm:$0xff]
      %v2896 = vld [vmem:[#allocation2 + $0x400] sm:$0xff]
      %v2897 = vld [vmem:[#allocation2 + $0x408] sm:$0xff]
      %v2898 = vld [vmem:[#allocation2 + $0x410] sm:$0xff]
      %v2899 = vld [vmem:[#allocation2 + $0x418] sm:$0xff]
      %v2900 = vld [vmem:[#allocation2 + $0x420] sm:$0xff]
      %v2901 = vld [vmem:[#allocation2 + $0x428] sm:$0xff]
      %v2902 = vld [vmem:[#allocation2 + $0x430] sm:$0xff]
      %v2903 = vld [vmem:[#allocation2 + $0x438] sm:$0xff]
      %v2904 = vld [vmem:[#allocation2 + $0x440] sm:$0xff]
      %v2905 = vld [vmem:[#allocation2 + $0x448] sm:$0xff]
      %v2906 = vld [vmem:[#allocation2 + $0x450] sm:$0xff]
      %v2907 = vld [vmem:[#allocation2 + $0x458] sm:$0xff]
      %v2908 = vld [vmem:[#allocation2 + $0x460] sm:$0xff]
      %v2909 = vld [vmem:[#allocation2 + $0x468] sm:$0xff]
      %v2910 = vld [vmem:[#allocation2 + $0x470] sm:$0xff]
      %v2911 = vld [vmem:[#allocation2 + $0x478] sm:$0xff]
      %v2912 = vld [vmem:[#allocation2 + $0x480] sm:$0xff]
      %v2913 = vld [vmem:[#allocation2 + $0x488] sm:$0xff]
      %v2914 = vld [vmem:[#allocation2 + $0x490] sm:$0xff]
      %v2915 = vld [vmem:[#allocation2 + $0x498] sm:$0xff]
      %v2916 = vld [vmem:[#allocation2 + $0x4a0] sm:$0xff]
      %v2917 = vld [vmem:[#allocation2 + $0x4a8] sm:$0xff]
      %v2918 = vld [vmem:[#allocation2 + $0x4b0] sm:$0xff]
      %v2919 = vld [vmem:[#allocation2 + $0x4b8] sm:$0xff]
      %v2920 = vld [vmem:[#allocation2 + $0x4c0] sm:$0xff]
      %v2921 = vld [vmem:[#allocation2 + $0x4c8] sm:$0xff]
      %v2922 = vld [vmem:[#allocation2 + $0x4d0] sm:$0xff]
      %v2923 = vld [vmem:[#allocation2 + $0x4d8] sm:$0xff]
      %v2924 = vld [vmem:[#allocation2 + $0x4e0] sm:$0xff]
      %v2925 = vld [vmem:[#allocation2 + $0x4e8] sm:$0xff]
      %v2926 = vld [vmem:[#allocation2 + $0x4f0] sm:$0xff]
      %v2927 = vld [vmem:[#allocation2 + $0x4f8] sm:$0xff]
      %v2928 = vld [vmem:[#allocation2 + $0x500] sm:$0xff]
      %v2929 = vld [vmem:[#allocation2 + $0x508] sm:$0xff]
      %v2930 = vld [vmem:[#allocation2 + $0x510] sm:$0xff]
      %v2931 = vld [vmem:[#allocation2 + $0x518] sm:$0xff]
      %v2932 = vld [vmem:[#allocation2 + $0x520] sm:$0xff]
      %v2933 = vld [vmem:[#allocation2 + $0x528] sm:$0xff]
      %v2934 = vld [vmem:[#allocation2 + $0x530] sm:$0xff]
      %v2935 = vld [vmem:[#allocation2 + $0x538] sm:$0xff]
      %v2936 = vld [vmem:[#allocation2 + $0x540] sm:$0xff]
      %v2937 = vld [vmem:[#allocation2 + $0x548] sm:$0xff]
      %v2938 = vld [vmem:[#allocation2 + $0x550] sm:$0xff]
      %v2939 = vld [vmem:[#allocation2 + $0x558] sm:$0xff]
      %v2940 = vld [vmem:[#allocation2 + $0x560] sm:$0xff]
      %v2941 = vld [vmem:[#allocation2 + $0x568] sm:$0xff]
      %v2942 = vld [vmem:[#allocation2 + $0x570] sm:$0xff]
      %v2943 = vld [vmem:[#allocation2 + $0x578] sm:$0xff]
      %v2944 = vld [vmem:[#allocation2 + $0x580] sm:$0xff]
      %v2945 = vld [vmem:[#allocation2 + $0x588] sm:$0xff]
      %v2946 = vld [vmem:[#allocation2 + $0x590] sm:$0xff]
      %v2947 = vld [vmem:[#allocation2 + $0x598] sm:$0xff]
      %v2948 = vld [vmem:[#allocation2 + $0x5a0] sm:$0xff]
      %v2949 = vld [vmem:[#allocation2 + $0x5a8] sm:$0xff]
      %v2950 = vld [vmem:[#allocation2 + $0x5b0] sm:$0xff]
      %v2951 = vld [vmem:[#allocation2 + $0x5b8] sm:$0xff]
      %v2952 = vld [vmem:[#allocation2 + $0x5c0] sm:$0xff]
      %v2953 = vld [vmem:[#allocation2 + $0x5c8] sm:$0xff]
      %v2954 = vld [vmem:[#allocation2 + $0x5d0] sm:$0xff]
      %v2955 = vld [vmem:[#allocation2 + $0x5d8] sm:$0xff]
      %v2956 = vld [vmem:[#allocation2 + $0x5e0] sm:$0xff]
      %v2957 = vld [vmem:[#allocation2 + $0x5e8] sm:$0xff]
      %v2958 = vld [vmem:[#allocation2 + $0x5f0] sm:$0xff]
      %v2959 = vld [vmem:[#allocation2 + $0x5f8] sm:$0xff]
      %v2960 = vld [vmem:[#allocation2 + $0x600] sm:$0xff]
      %v2961 = vld [vmem:[#allocation2 + $0x608] sm:$0xff]
      %v2962 = vld [vmem:[#allocation2 + $0x610] sm:$0xff]
      %v2963 = vld [vmem:[#allocation2 + $0x618] sm:$0xff]
      %v2964 = vld [vmem:[#allocation2 + $0x620] sm:$0xff]
      %v2965 = vld [vmem:[#allocation2 + $0x628] sm:$0xff]
      %v2966 = vld [vmem:[#allocation2 + $0x630] sm:$0xff]
      %v2967 = vld [vmem:[#allocation2 + $0x638] sm:$0xff]
      %v2968 = vld [vmem:[#allocation2 + $0x640] sm:$0xff]
      %v2969 = vld [vmem:[#allocation2 + $0x648] sm:$0xff]
      %v2970 = vld [vmem:[#allocation2 + $0x650] sm:$0xff]
      %v2971 = vld [vmem:[#allocation2 + $0x658] sm:$0xff]
      %v2972 = vld [vmem:[#allocation2 + $0x660] sm:$0xff]
      %v2973 = vld [vmem:[#allocation2 + $0x668] sm:$0xff]
      %v2974 = vld [vmem:[#allocation2 + $0x670] sm:$0xff]
      %v2975 = vld [vmem:[#allocation2 + $0x678] sm:$0xff]
      %v2976 = vld [vmem:[#allocation2 + $0x680] sm:$0xff]
      %v2977 = vld [vmem:[#allocation2 + $0x688] sm:$0xff]
      %v2978 = vld [vmem:[#allocation2 + $0x690] sm:$0xff]
      %v2979 = vld [vmem:[#allocation2 + $0x698] sm:$0xff]
      %v2980 = vld [vmem:[#allocation2 + $0x6a0] sm:$0xff]
      %v2981 = vld [vmem:[#allocation2 + $0x6a8] sm:$0xff]
      %v2982 = vld [vmem:[#allocation2 + $0x6b0] sm:$0xff]
      %v2983 = vld [vmem:[#allocation2 + $0x6b8] sm:$0xff]
      %v2984 = vld [vmem:[#allocation2 + $0x6c0] sm:$0xff]
      %v2985 = vld [vmem:[#allocation2 + $0x6c8] sm:$0xff]
      %v2986 = vld [vmem:[#allocation2 + $0x6d0] sm:$0xff]
      %v2987 = vld [vmem:[#allocation2 + $0x6d8] sm:$0xff]
      %v2988 = vld [vmem:[#allocation2 + $0x6e0] sm:$0xff]
      %v2989 = vld [vmem:[#allocation2 + $0x6e8] sm:$0xff]
      %v2990 = vld [vmem:[#allocation2 + $0x6f0] sm:$0xff]
      %v2991 = vld [vmem:[#allocation2 + $0x6f8] sm:$0xff]
      %v2992 = vld [vmem:[#allocation2 + $0x700] sm:$0xff]
      %v2993 = vld [vmem:[#allocation2 + $0x708] sm:$0xff]
      %v2994 = vld [vmem:[#allocation2 + $0x710] sm:$0xff]
      %v2995 = vld [vmem:[#allocation2 + $0x718] sm:$0xff]
      %v2996 = vld [vmem:[#allocation2 + $0x720] sm:$0xff]
      %v2997 = vld [vmem:[#allocation2 + $0x728] sm:$0xff]
      %v2998 = vld [vmem:[#allocation2 + $0x730] sm:$0xff]
      %v2999 = vld [vmem:[#allocation2 + $0x738] sm:$0xff]
      %v3000 = vld [vmem:[#allocation2 + $0x740] sm:$0xff]
      %v3001 = vld [vmem:[#allocation2 + $0x748] sm:$0xff]
      %v3002 = vld [vmem:[#allocation2 + $0x750] sm:$0xff]
      %v3003 = vld [vmem:[#allocation2 + $0x758] sm:$0xff]
      %v3004 = vld [vmem:[#allocation2 + $0x760] sm:$0xff]
      %v3005 = vld [vmem:[#allocation2 + $0x768] sm:$0xff]
      %v3006 = vld [vmem:[#allocation2 + $0x770] sm:$0xff]
      %v3007 = vld [vmem:[#allocation2 + $0x778] sm:$0xff]
      %v3008 = vld [vmem:[#allocation2 + $0x780] sm:$0xff]
      %v3009 = vld [vmem:[#allocation2 + $0x788] sm:$0xff]
      %v3010 = vld [vmem:[#allocation2 + $0x790] sm:$0xff]
      %v3011 = vld [vmem:[#allocation2 + $0x798] sm:$0xff]
      %v3012 = vld [vmem:[#allocation2 + $0x7a0] sm:$0xff]
      %v3013 = vld [vmem:[#allocation2 + $0x7a8] sm:$0xff]
      %v3014 = vld [vmem:[#allocation2 + $0x7b0] sm:$0xff]
      %v3015 = vld [vmem:[#allocation2 + $0x7b8] sm:$0xff]
      %v3016 = vld [vmem:[#allocation2 + $0x7c0] sm:$0xff]
      %v3017 = vld [vmem:[#allocation2 + $0x7c8] sm:$0xff]
      %v3018 = vld [vmem:[#allocation2 + $0x7d0] sm:$0xff]
      %v3019 = vld [vmem:[#allocation2 + $0x7d8] sm:$0xff]
      %v3020 = vld [vmem:[#allocation2 + $0x7e0] sm:$0xff]
      %v3021 = vld [vmem:[#allocation2 + $0x7e8] sm:$0xff]
      %v3022 = vld [vmem:[#allocation2 + $0x7f0] sm:$0xff]
      %v3023 = vld [vmem:[#allocation2 + $0x7f8] sm:$0xff]
      %v3024 = vld [vmem:[#allocation2 + $0x800] sm:$0xff]
      %v3025 = vld [vmem:[#allocation2 + $0x808] sm:$0xff]
      %v3026 = vld [vmem:[#allocation2 + $0x810] sm:$0xff]
      %v3027 = vld [vmem:[#allocation2 + $0x818] sm:$0xff]
      %v3028 = vld [vmem:[#allocation2 + $0x820] sm:$0xff]
      %v3029 = vld [vmem:[#allocation2 + $0x828] sm:$0xff]
      %v3030 = vld [vmem:[#allocation2 + $0x830] sm:$0xff]
      %v3031 = vld [vmem:[#allocation2 + $0x838] sm:$0xff]
      %v3032 = vld [vmem:[#allocation2 + $0x840] sm:$0xff]
      %v3033 = vld [vmem:[#allocation2 + $0x848] sm:$0xff]
      %v3034 = vld [vmem:[#allocation2 + $0x850] sm:$0xff]
      %v3035 = vld [vmem:[#allocation2 + $0x858] sm:$0xff]
      %v3036 = vld [vmem:[#allocation2 + $0x860] sm:$0xff]
      %v3037 = vld [vmem:[#allocation2 + $0x868] sm:$0xff]
      %v3038 = vld [vmem:[#allocation2 + $0x870] sm:$0xff]
      %v3039 = vld [vmem:[#allocation2 + $0x878] sm:$0xff]
      %v3040 = vld [vmem:[#allocation2 + $0x880] sm:$0xff]
      %v3041 = vld [vmem:[#allocation2 + $0x888] sm:$0xff]
      %v3042 = vld [vmem:[#allocation2 + $0x890] sm:$0xff]
      %v3043 = vld [vmem:[#allocation2 + $0x898] sm:$0xff]
      %v3044 = vld [vmem:[#allocation2 + $0x8a0] sm:$0xff]
      %v3045 = vld [vmem:[#allocation2 + $0x8a8] sm:$0xff]
      %v3046 = vld [vmem:[#allocation2 + $0x8b0] sm:$0xff]
      %v3047 = vld [vmem:[#allocation2 + $0x8b8] sm:$0xff]
      %v3048 = vld [vmem:[#allocation2 + $0x8c0] sm:$0xff]
      %v3049 = vld [vmem:[#allocation2 + $0x8c8] sm:$0xff]
      %v3050 = vld [vmem:[#allocation2 + $0x8d0] sm:$0xff]
      %v3051 = vld [vmem:[#allocation2 + $0x8d8] sm:$0xff]
      %v3052 = vld [vmem:[#allocation2 + $0x8e0] sm:$0xff]
      %v3053 = vld [vmem:[#allocation2 + $0x8e8] sm:$0xff]
      %v3054 = vld [vmem:[#allocation2 + $0x8f0] sm:$0xff]
      %v3055 = vld [vmem:[#allocation2 + $0x8f8] sm:$0xff]
      %v3056 = vld [vmem:[#allocation2 + $0x900] sm:$0xff]
      %v3057 = vld [vmem:[#allocation2 + $0x908] sm:$0xff]
      %v3058 = vld [vmem:[#allocation2 + $0x910] sm:$0xff]
      %v3059 = vld [vmem:[#allocation2 + $0x918] sm:$0xff]
      %v3060 = vld [vmem:[#allocation2 + $0x920] sm:$0xff]
      %v3061 = vld [vmem:[#allocation2 + $0x928] sm:$0xff]
      %v3062 = vld [vmem:[#allocation2 + $0x930] sm:$0xff]
      %v3063 = vld [vmem:[#allocation2 + $0x938] sm:$0xff]
      %v3064 = vld [vmem:[#allocation2 + $0x940] sm:$0xff]
      %v3065 = vld [vmem:[#allocation2 + $0x948] sm:$0xff]
      %v3066 = vld [vmem:[#allocation2 + $0x950] sm:$0xff]
      %v3067 = vld [vmem:[#allocation2 + $0x958] sm:$0xff]
      %v3068 = vld [vmem:[#allocation2 + $0x960] sm:$0xff]
      %v3069 = vld [vmem:[#allocation2 + $0x968] sm:$0xff]
      %v3070 = vld [vmem:[#allocation2 + $0x970] sm:$0xff]
      %v3071 = vld [vmem:[#allocation2 + $0x978] sm:$0xff]
      %v3072 = vld [vmem:[#allocation2 + $0x980] sm:$0xff]
      %v3073 = vld [vmem:[#allocation2 + $0x988] sm:$0xff]
      %v3074 = vld [vmem:[#allocation2 + $0x990] sm:$0xff]
      %v3075 = vld [vmem:[#allocation2 + $0x998] sm:$0xff]
      %v3076 = vld [vmem:[#allocation2 + $0x9a0] sm:$0xff]
      %v3077 = vld [vmem:[#allocation2 + $0x9a8] sm:$0xff]
      %v3078 = vld [vmem:[#allocation2 + $0x9b0] sm:$0xff]
      %v3079 = vld [vmem:[#allocation2 + $0x9b8] sm:$0xff]
      %v3080 = vld [vmem:[#allocation2 + $0x9c0] sm:$0xff]
      %v3081 = vld [vmem:[#allocation2 + $0x9c8] sm:$0xff]
      %v3082 = vld [vmem:[#allocation2 + $0x9d0] sm:$0xff]
      %v3083 = vld [vmem:[#allocation2 + $0x9d8] sm:$0xff]
      %v3084 = vld [vmem:[#allocation2 + $0x9e0] sm:$0xff]
      %v3085 = vld [vmem:[#allocation2 + $0x9e8] sm:$0xff]
      %v3086 = vld [vmem:[#allocation2 + $0x9f0] sm:$0xff]
      %v3087 = vld [vmem:[#allocation2 + $0x9f8] sm:$0xff]
      %v3088 = vld [vmem:[#allocation2 + $0xa00] sm:$0xff]
      %v3089 = vld [vmem:[#allocation2 + $0xa08] sm:$0xff]
      %v3090 = vld [vmem:[#allocation2 + $0xa10] sm:$0xff]
      %v3091 = vld [vmem:[#allocation2 + $0xa18] sm:$0xff]
      %v3092 = vld [vmem:[#allocation2 + $0xa20] sm:$0xff]
      %v3093 = vld [vmem:[#allocation2 + $0xa28] sm:$0xff]
      %v3094 = vld [vmem:[#allocation2 + $0xa30] sm:$0xff]
      %v3095 = vld [vmem:[#allocation2 + $0xa38] sm:$0xff]
      %vm3096 = vcmask 130048
      %v3098 = vsel %vm3096, %v2767, 0
      %3100 = vmatprep.subr.mxu0 %v2829
      %3101 = vmatpush1.msra.mxu0 %v2828
      %3102 = vmatprep.subr.mxu0 %v2825
      %3103 = vmatpush1.msra.mxu0 %v2824
      %3104 = vmatprep.subr.mxu0 %v2821
      %3105 = vmatpush1.msra.mxu0 %v2820
      %3106 = vmatprep.subr.mxu0 %v2817
      %3107 = vmatpush1.msra.mxu0 %v2816
      %3108 = vmatprep.subr.mxu0 %v2813
      %3109 = vmatpush1.msra.mxu0 %v2812
      %3110 = vmatprep.subr.mxu0 %v2809
      %3111 = vmatpush1.msra.mxu0 %v2808
      %3112 = vmatprep.subr.mxu0 %v2805
      %3113 = vmatpush1.msra.mxu0 %v2804
      %3114 = vmatprep.subr.mxu0 %v2801
      %3115 = vmatpush1.msra.mxu0 %v2800
      %3116 = vmatprep.subr.mxu0 %v2797
      %3117 = vmatpush1.msra.mxu0 %v2796
      %3118 = vmatprep.subr.mxu0 %v2793
      %3119 = vmatpush1.msra.mxu0 %v2792
      %3120 = vmatprep.subr.mxu0 %v2789
      %3121 = vmatpush1.msra.mxu0 %v2788
      %3122 = vmatprep.subr.mxu0 %v2785
      %3123 = vmatpush1.msra.mxu0 %v2784
      %3124 = vmatprep.subr.mxu0 %v2781
      %3125 = vmatpush1.msra.mxu0 %v2780
      %3126 = vmatprep.subr.mxu0 %v2777
      %3127 = vmatpush1.msra.mxu0 %v2776
      %3128 = vmatprep.subr.mxu0 %v2773
      %3129 = vmatpush1.msra.mxu0 %v2772
      %3130 = vmatprep.subr.mxu0 %v2769
      %3131 = vmatpush1.msra.mxu0 %v2768
      %3132 = vmatprep.subr.mxu0 %v2893
      %3133 = vmatpush2.msra.mxu0 %v2892
      %3134 = vmatprep.subr.mxu0 %v2889
      %3135 = vmatpush2.msra.mxu0 %v2888
      %3136 = vmatprep.subr.mxu0 %v2885
      %3137 = vmatpush2.msra.mxu0 %v2884
      %3138 = vmatprep.subr.mxu0 %v2881
      %3139 = vmatpush2.msra.mxu0 %v2880
      %3140 = vmatprep.subr.mxu0 %v2877
      %3141 = vmatpush2.msra.mxu0 %v2876
      %3142 = vmatprep.subr.mxu0 %v2873
      %3143 = vmatpush2.msra.mxu0 %v2872
      %3144 = vmatprep.subr.mxu0 %v2869
      %3145 = vmatpush2.msra.mxu0 %v2868
      %3146 = vmatprep.subr.mxu0 %v2865
      %3147 = vmatpush2.msra.mxu0 %v2864
      %3148 = vmatprep.subr.mxu0 %v2861
      %3149 = vmatpush2.msra.mxu0 %v2860
      %3150 = vmatprep.subr.mxu0 %v2857
      %3151 = vmatpush2.msra.mxu0 %v2856
      %3152 = vmatprep.subr.mxu0 %v2853
      %3153 = vmatpush2.msra.mxu0 %v2852
      %3154 = vmatprep.subr.mxu0 %v2849
      %3155 = vmatpush2.msra.mxu0 %v2848
      %3156 = vmatprep.subr.mxu0 %v2845
      %3157 = vmatpush2.msra.mxu0 %v2844
      %3158 = vmatprep.subr.mxu0 %v2841
      %3159 = vmatpush2.msra.mxu0 %v2840
      %3160 = vmatprep.subr.mxu0 %v2837
      %3161 = vmatpush2.msra.mxu0 %v2836
      %3162 = vmatprep.subr.mxu0 %v2833
      %3163 = vmatpush2.msra.mxu0 %v2832
      %3164 = vmatprep.mubr.f32.mxu0 %v2763
      %3165 = vmatmul.mubr.f32.gmra.mxu0 %v2762
      %v3166 = vpop.f32.mrf.mxu0
      %v3167 = vadd.f32 0.0, %v3166
      %v3168 = vpop.f32.mrf.mxu0
      %v3169 = vadd.f32 0.0, %v3168
      %3170 = vdwg.mxu0
      %3171 = vmatprep.subr.mxu0 %v2957
      %3172 = vmatpush1.msra.mxu0 %v2956
      %3173 = vmatprep.subr.mxu0 %v2953
      %3174 = vmatpush1.msra.mxu0 %v2952
      %3175 = vmatprep.subr.mxu0 %v2949
      %3176 = vmatpush1.msra.mxu0 %v2948
      %3177 = vmatprep.subr.mxu0 %v2945
      %3178 = vmatpush1.msra.mxu0 %v2944
      %3179 = vmatprep.subr.mxu0 %v2941
      %3180 = vmatpush1.msra.mxu0 %v2940
      %3181 = vmatprep.subr.mxu0 %v2937
      %3182 = vmatpush1.msra.mxu0 %v2936
      %3183 = vmatprep.subr.mxu0 %v2933
      %3184 = vmatpush1.msra.mxu0 %v2932
      %3185 = vmatprep.subr.mxu0 %v2929
      %3186 = vmatpush1.msra.mxu0 %v2928
      %3187 = vmatprep.subr.mxu0 %v2925
      %3188 = vmatpush1.msra.mxu0 %v2924
      %3189 = vmatprep.subr.mxu0 %v2921
      %3190 = vmatpush1.msra.mxu0 %v2920
      %3191 = vmatprep.subr.mxu0 %v2917
      %3192 = vmatpush1.msra.mxu0 %v2916
      %3193 = vmatprep.subr.mxu0 %v2913
      %3194 = vmatpush1.msra.mxu0 %v2912
      %3195 = vmatprep.subr.mxu0 %v2909
      %3196 = vmatpush1.msra.mxu0 %v2908
      %3197 = vmatprep.subr.mxu0 %v2905
      %3198 = vmatpush1.msra.mxu0 %v2904
      %3199 = vmatprep.subr.mxu0 %v2901
      %3200 = vmatpush1.msra.mxu0 %v2900
      %3201 = vmatprep.subr.mxu0 %v2897
      %3202 = vmatpush1.msra.mxu0 %v2896
      %3203 = vmatprep.subr.mxu0 %v3021
      %3204 = vmatpush2.msra.mxu0 %v3020
      %3205 = vmatprep.subr.mxu0 %v3017
      %3206 = vmatpush2.msra.mxu0 %v3016
      %3207 = vmatprep.subr.mxu0 %v3013
      %3208 = vmatpush2.msra.mxu0 %v3012
      %3209 = vmatprep.subr.mxu0 %v3009
      %3210 = vmatpush2.msra.mxu0 %v3008
      %3211 = vmatprep.subr.mxu0 %v3005
      %3212 = vmatpush2.msra.mxu0 %v3004
      %3213 = vmatprep.subr.mxu0 %v3001
      %3214 = vmatpush2.msra.mxu0 %v3000
      %3215 = vmatprep.subr.mxu0 %v2997
      %3216 = vmatpush2.msra.mxu0 %v2996
      %3217 = vmatprep.subr.mxu0 %v2993
      %3218 = vmatpush2.msra.mxu0 %v2992
      %3219 = vmatprep.subr.mxu0 %v2989
      %3220 = vmatpush2.msra.mxu0 %v2988
      %3221 = vmatprep.subr.mxu0 %v2985
      %3222 = vmatpush2.msra.mxu0 %v2984
      %3223 = vmatprep.subr.mxu0 %v2981
      %3224 = vmatpush2.msra.mxu0 %v2980
      %3225 = vmatprep.subr.mxu0 %v2977
      %3226 = vmatpush2.msra.mxu0 %v2976
      %3227 = vmatprep.subr.mxu0 %v2973
      %3228 = vmatpush2.msra.mxu0 %v2972
      %3229 = vmatprep.subr.mxu0 %v2969
      %3230 = vmatpush2.msra.mxu0 %v2968
      %3231 = vmatprep.subr.mxu0 %v2965
      %3232 = vmatpush2.msra.mxu0 %v2964
      %3233 = vmatprep.subr.mxu0 %v2961
      %3234 = vmatpush2.msra.mxu0 %v2960
      %3235 = vmatprep.mubr.f32.mxu0 %v2765
      %3236 = vmatmul.mubr.f32.gmra.mxu0 %v2764
      %v3237 = vpop.f32.mrf.mxu0
      %v3238 = vadd.f32 %v3167, %v3237
      %v3239 = vpop.f32.mrf.mxu0
      %v3240 = vadd.f32 %v3169, %v3239
      %3241 = vdwg.mxu0
      %3242 = vmatprep.subr.mxu0 %v3085
      %3243 = vmatpush1.msra.mxu0 %v3084
      %3244 = vmatprep.subr.mxu0 %v3081
      %3245 = vmatpush1.msra.mxu0 %v3080
      %3246 = vmatprep.subr.mxu0 %v3077
      %3247 = vmatpush1.msra.mxu0 %v3076
      %3248 = vmatprep.subr.mxu0 %v3073
      %3249 = vmatpush1.msra.mxu0 %v3072
      %3250 = vmatprep.subr.mxu0 %v3069
      %3251 = vmatpush1.msra.mxu0 %v3068
      %3252 = vmatprep.subr.mxu0 %v3065
      %3253 = vmatpush1.msra.mxu0 %v3064
      %3254 = vmatprep.subr.mxu0 %v3061
      %3255 = vmatpush1.msra.mxu0 %v3060
      %3256 = vmatprep.subr.mxu0 %v3057
      %3257 = vmatpush1.msra.mxu0 %v3056
      %3258 = vmatprep.subr.mxu0 %v3053
      %3259 = vmatpush1.msra.mxu0 %v3052
      %3260 = vmatprep.subr.mxu0 %v3049
      %3261 = vmatpush1.msra.mxu0 %v3048
      %3262 = vmatprep.subr.mxu0 %v3045
      %3263 = vmatpush1.msra.mxu0 %v3044
      %3264 = vmatprep.subr.mxu0 %v3041
      %3265 = vmatpush1.msra.mxu0 %v3040
      %3266 = vmatprep.subr.mxu0 %v3037
      %3267 = vmatpush1.msra.mxu0 %v3036
      %3268 = vmatprep.subr.mxu0 %v3033
      %3269 = vmatpush1.msra.mxu0 %v3032
      %3270 = vmatprep.subr.mxu0 %v3029
      %3271 = vmatpush1.msra.mxu0 %v3028
      %3272 = vmatprep.subr.mxu0 %v3025
      %3273 = vmatpush1.msra.mxu0 %v3024
      %3274 = vmatprep.subr.mxu0 0.0
      %3275 = vmatpush2.msra.mxu0 0.0
      %3276 = vmatprep.subr.mxu0 0.0
      %3277 = vmatpush2.msra.mxu0 0.0
      %3278 = vmatprep.subr.mxu0 0.0
      %3279 = vmatpush2.msra.mxu0 0.0
      %3280 = vmatprep.subr.mxu0 0.0
      %3281 = vmatpush2.msra.mxu0 0.0
      %3282 = vmatprep.subr.mxu0 0.0
      %3283 = vmatpush2.msra.mxu0 0.0
      %3284 = vmatprep.subr.mxu0 0.0
      %3285 = vmatpush2.msra.mxu0 0.0
      %3286 = vmatprep.subr.mxu0 0.0
      %3287 = vmatpush2.msra.mxu0 0.0
      %3288 = vmatprep.subr.mxu0 0.0
      %3289 = vmatpush2.msra.mxu0 0.0
      %3290 = vmatprep.subr.mxu0 0.0
      %3291 = vmatpush2.msra.mxu0 0.0
      %3292 = vmatprep.subr.mxu0 0.0
      %3293 = vmatpush2.msra.mxu0 0.0
      %3294 = vmatprep.subr.mxu0 0.0
      %3295 = vmatpush2.msra.mxu0 0.0
      %3296 = vmatprep.subr.mxu0 0.0
      %3297 = vmatpush2.msra.mxu0 0.0
      %3298 = vmatprep.subr.mxu0 0.0
      %3299 = vmatpush2.msra.mxu0 0.0
      %3300 = vmatprep.subr.mxu0 0.0
      %3301 = vmatpush2.msra.mxu0 0.0
      %3302 = vmatprep.subr.mxu0 %v3093
      %3303 = vmatpush2.msra.mxu0 %v3092
      %3304 = vmatprep.subr.mxu0 %v3089
      %3305 = vmatpush2.msra.mxu0 %v3088
      %3306 = vmatprep.mubr.f32.mxu0 %v3098
      %3307 = vmatmul.mubr.f32.gmra.mxu0 %v2766
      %v3308 = vpop.f32.mrf.mxu0
      %v3309 = vadd.f32 %v3238, %v3308
      %v3310 = vpop.f32.mrf.mxu0
      %v3311 = vadd.f32 %v3240, %v3310
      %3312 = vdwg.mxu0
      %3313 = vmatprep.subr.mxu0 %v2831
      %3314 = vmatpush1.msra.mxu0 %v2830
      %3315 = vmatprep.subr.mxu0 %v2827
      %3316 = vmatpush1.msra.mxu0 %v2826
      %3317 = vmatprep.subr.mxu0 %v2823
      %3318 = vmatpush1.msra.mxu0 %v2822
      %3319 = vmatprep.subr.mxu0 %v2819
      %3320 = vmatpush1.msra.mxu0 %v2818
      %3321 = vmatprep.subr.mxu0 %v2815
      %3322 = vmatpush1.msra.mxu0 %v2814
      %3323 = vmatprep.subr.mxu0 %v2811
      %3324 = vmatpush1.msra.mxu0 %v2810
      %3325 = vmatprep.subr.mxu0 %v2807
      %3326 = vmatpush1.msra.mxu0 %v2806
      %3327 = vmatprep.subr.mxu0 %v2803
      %3328 = vmatpush1.msra.mxu0 %v2802
      %3329 = vmatprep.subr.mxu0 %v2799
      %3330 = vmatpush1.msra.mxu0 %v2798
      %3331 = vmatprep.subr.mxu0 %v2795
      %3332 = vmatpush1.msra.mxu0 %v2794
      %3333 = vmatprep.subr.mxu0 %v2791
      %3334 = vmatpush1.msra.mxu0 %v2790
      %3335 = vmatprep.subr.mxu0 %v2787
      %3336 = vmatpush1.msra.mxu0 %v2786
      %3337 = vmatprep.subr.mxu0 %v2783
      %3338 = vmatpush1.msra.mxu0 %v2782
      %3339 = vmatprep.subr.mxu0 %v2779
      %3340 = vmatpush1.msra.mxu0 %v2778
      %3341 = vmatprep.subr.mxu0 %v2775
      %3342 = vmatpush1.msra.mxu0 %v2774
      %3343 = vmatprep.subr.mxu0 %v2771
      %3344 = vmatpush1.msra.mxu0 %v2770
      %3345 = vmatprep.subr.mxu0 %v2895
      %3346 = vmatpush2.msra.mxu0 %v2894
      %3347 = vmatprep.subr.mxu0 %v2891
      %3348 = vmatpush2.msra.mxu0 %v2890
      %3349 = vmatprep.subr.mxu0 %v2887
      %3350 = vmatpush2.msra.mxu0 %v2886
      %3351 = vmatprep.subr.mxu0 %v2883
      %3352 = vmatpush2.msra.mxu0 %v2882
      %3353 = vmatprep.subr.mxu0 %v2879
      %3354 = vmatpush2.msra.mxu0 %v2878
      %3355 = vmatprep.subr.mxu0 %v2875
      %3356 = vmatpush2.msra.mxu0 %v2874
      %3357 = vmatprep.subr.mxu0 %v2871
      %3358 = vmatpush2.msra.mxu0 %v2870
      %3359 = vmatprep.subr.mxu0 %v2867
      %3360 = vmatpush2.msra.mxu0 %v2866
      %3361 = vmatprep.subr.mxu0 %v2863
      %3362 = vmatpush2.msra.mxu0 %v2862
      %3363 = vmatprep.subr.mxu0 %v2859
      %3364 = vmatpush2.msra.mxu0 %v2858
      %3365 = vmatprep.subr.mxu0 %v2855
      %3366 = vmatpush2.msra.mxu0 %v2854
      %3367 = vmatprep.subr.mxu0 %v2851
      %3368 = vmatpush2.msra.mxu0 %v2850
      %3369 = vmatprep.subr.mxu0 %v2847
      %3370 = vmatpush2.msra.mxu0 %v2846
      %3371 = vmatprep.subr.mxu0 %v2843
      %3372 = vmatpush2.msra.mxu0 %v2842
      %3373 = vmatprep.subr.mxu0 %v2839
      %3374 = vmatpush2.msra.mxu0 %v2838
      %3375 = vmatprep.subr.mxu0 %v2835
      %3376 = vmatpush2.msra.mxu0 %v2834
      %3377 = vmatprep.mubr.f32.mxu0 %v2763
      %3378 = vmatmul.mubr.f32.gmra.mxu0 %v2762
      %v3379 = vpop.f32.mrf.mxu0
      %v3380 = vadd.f32 0.0, %v3379
      %v3381 = vpop.f32.mrf.mxu0
      %v3382 = vadd.f32 0.0, %v3381
      %3383 = vdwg.mxu0
      %3384 = vmatprep.subr.mxu0 %v2959
      %3385 = vmatpush1.msra.mxu0 %v2958
      %3386 = vmatprep.subr.mxu0 %v2955
      %3387 = vmatpush1.msra.mxu0 %v2954
      %3388 = vmatprep.subr.mxu0 %v2951
      %3389 = vmatpush1.msra.mxu0 %v2950
      %3390 = vmatprep.subr.mxu0 %v2947
      %3391 = vmatpush1.msra.mxu0 %v2946
      %3392 = vmatprep.subr.mxu0 %v2943
      %3393 = vmatpush1.msra.mxu0 %v2942
      %3394 = vmatprep.subr.mxu0 %v2939
      %3395 = vmatpush1.msra.mxu0 %v2938
      %3396 = vmatprep.subr.mxu0 %v2935
      %3397 = vmatpush1.msra.mxu0 %v2934
      %3398 = vmatprep.subr.mxu0 %v2931
      %3399 = vmatpush1.msra.mxu0 %v2930
      %3400 = vmatprep.subr.mxu0 %v2927
      %3401 = vmatpush1.msra.mxu0 %v2926
      %3402 = vmatprep.subr.mxu0 %v2923
      %3403 = vmatpush1.msra.mxu0 %v2922
      %3404 = vmatprep.subr.mxu0 %v2919
      %3405 = vmatpush1.msra.mxu0 %v2918
      %3406 = vmatprep.subr.mxu0 %v2915
      %3407 = vmatpush1.msra.mxu0 %v2914
      %3408 = vmatprep.subr.mxu0 %v2911
      %3409 = vmatpush1.msra.mxu0 %v2910
      %3410 = vmatprep.subr.mxu0 %v2907
      %3411 = vmatpush1.msra.mxu0 %v2906
      %3412 = vmatprep.subr.mxu0 %v2903
      %3413 = vmatpush1.msra.mxu0 %v2902
      %3414 = vmatprep.subr.mxu0 %v2899
      %3415 = vmatpush1.msra.mxu0 %v2898
      %3416 = vmatprep.subr.mxu0 %v3023
      %3417 = vmatpush2.msra.mxu0 %v3022
      %3418 = vmatprep.subr.mxu0 %v3019
      %3419 = vmatpush2.msra.mxu0 %v3018
      %3420 = vmatprep.subr.mxu0 %v3015
      %3421 = vmatpush2.msra.mxu0 %v3014
      %3422 = vmatprep.subr.mxu0 %v3011
      %3423 = vmatpush2.msra.mxu0 %v3010
      %3424 = vmatprep.subr.mxu0 %v3007
      %3425 = vmatpush2.msra.mxu0 %v3006
      %3426 = vmatprep.subr.mxu0 %v3003
      %3427 = vmatpush2.msra.mxu0 %v3002
      %3428 = vmatprep.subr.mxu0 %v2999
      %3429 = vmatpush2.msra.mxu0 %v2998
      %3430 = vmatprep.subr.mxu0 %v2995
      %3431 = vmatpush2.msra.mxu0 %v2994
      %3432 = vmatprep.subr.mxu0 %v2991
      %3433 = vmatpush2.msra.mxu0 %v2990
      %3434 = vmatprep.subr.mxu0 %v2987
      %3435 = vmatpush2.msra.mxu0 %v2986
      %3436 = vmatprep.subr.mxu0 %v2983
      %3437 = vmatpush2.msra.mxu0 %v2982
      %3438 = vmatprep.subr.mxu0 %v2979
      %3439 = vmatpush2.msra.mxu0 %v2978
      %3440 = vmatprep.subr.mxu0 %v2975
      %3441 = vmatpush2.msra.mxu0 %v2974
      %3442 = vmatprep.subr.mxu0 %v2971
      %3443 = vmatpush2.msra.mxu0 %v2970
      %3444 = vmatprep.subr.mxu0 %v2967
      %3445 = vmatpush2.msra.mxu0 %v2966
      %3446 = vmatprep.subr.mxu0 %v2963
      %3447 = vmatpush2.msra.mxu0 %v2962
      %3448 = vmatprep.mubr.f32.mxu0 %v2765
      %3449 = vmatmul.mubr.f32.gmra.mxu0 %v2764
      %v3450 = vpop.f32.mrf.mxu0
      %v3451 = vadd.f32 %v3380, %v3450
      %v3452 = vpop.f32.mrf.mxu0
      %v3453 = vadd.f32 %v3382, %v3452
      %3454 = vdwg.mxu0
      %3455 = vmatprep.subr.mxu0 %v3087
      %3456 = vmatpush1.msra.mxu0 %v3086
      %3457 = vmatprep.subr.mxu0 %v3083
      %3458 = vmatpush1.msra.mxu0 %v3082
      %3459 = vmatprep.subr.mxu0 %v3079
      %3460 = vmatpush1.msra.mxu0 %v3078
      %3461 = vmatprep.subr.mxu0 %v3075
      %3462 = vmatpush1.msra.mxu0 %v3074
      %3463 = vmatprep.subr.mxu0 %v3071
      %3464 = vmatpush1.msra.mxu0 %v3070
      %3465 = vmatprep.subr.mxu0 %v3067
      %3466 = vmatpush1.msra.mxu0 %v3066
      %3467 = vmatprep.subr.mxu0 %v3063
      %3468 = vmatpush1.msra.mxu0 %v3062
      %3469 = vmatprep.subr.mxu0 %v3059
      %3470 = vmatpush1.msra.mxu0 %v3058
      %3471 = vmatprep.subr.mxu0 %v3055
      %3472 = vmatpush1.msra.mxu0 %v3054
      %3473 = vmatprep.subr.mxu0 %v3051
      %3474 = vmatpush1.msra.mxu0 %v3050
      %3475 = vmatprep.subr.mxu0 %v3047
      %3476 = vmatpush1.msra.mxu0 %v3046
      %3477 = vmatprep.subr.mxu0 %v3043
      %3478 = vmatpush1.msra.mxu0 %v3042
      %3479 = vmatprep.subr.mxu0 %v3039
      %3480 = vmatpush1.msra.mxu0 %v3038
      %3481 = vmatprep.subr.mxu0 %v3035
      %3482 = vmatpush1.msra.mxu0 %v3034
      %3483 = vmatprep.subr.mxu0 %v3031
      %3484 = vmatpush1.msra.mxu0 %v3030
      %3485 = vmatprep.subr.mxu0 %v3027
      %3486 = vmatpush1.msra.mxu0 %v3026
      %3487 = vmatprep.subr.mxu0 0.0
      %3488 = vmatpush2.msra.mxu0 0.0
      %3489 = vmatprep.subr.mxu0 0.0
      %3490 = vmatpush2.msra.mxu0 0.0
      %3491 = vmatprep.subr.mxu0 0.0
      %3492 = vmatpush2.msra.mxu0 0.0
      %3493 = vmatprep.subr.mxu0 0.0
      %3494 = vmatpush2.msra.mxu0 0.0
      %3495 = vmatprep.subr.mxu0 0.0
      %3496 = vmatpush2.msra.mxu0 0.0
      %3497 = vmatprep.subr.mxu0 0.0
      %3498 = vmatpush2.msra.mxu0 0.0
      %3499 = vmatprep.subr.mxu0 0.0
      %3500 = vmatpush2.msra.mxu0 0.0
      %3501 = vmatprep.subr.mxu0 0.0
      %3502 = vmatpush2.msra.mxu0 0.0
      %3503 = vmatprep.subr.mxu0 0.0
      %3504 = vmatpush2.msra.mxu0 0.0
      %3505 = vmatprep.subr.mxu0 0.0
      %3506 = vmatpush2.msra.mxu0 0.0
      %3507 = vmatprep.subr.mxu0 0.0
      %3508 = vmatpush2.msra.mxu0 0.0
      %3509 = vmatprep.subr.mxu0 0.0
      %3510 = vmatpush2.msra.mxu0 0.0
      %3511 = vmatprep.subr.mxu0 0.0
      %3512 = vmatpush2.msra.mxu0 0.0
      %3513 = vmatprep.subr.mxu0 0.0
      %3514 = vmatpush2.msra.mxu0 0.0
      %3515 = vmatprep.subr.mxu0 %v3095
      %3516 = vmatpush2.msra.mxu0 %v3094
      %3517 = vmatprep.subr.mxu0 %v3091
      %3518 = vmatpush2.msra.mxu0 %v3090
      %3519 = vmatprep.mubr.f32.mxu0 %v3098
      %3520 = vmatmul.mubr.f32.gmra.mxu0 %v2766
      %v3521 = vpop.f32.mrf.mxu0
      %v3522 = vadd.f32 %v3451, %v3521
      %v3523 = vpop.f32.mrf.mxu0
      %v3524 = vadd.f32 %v3453, %v3523
      %3525 = vdwg.mxu0
      %v3526 = vmax.f32 %v3309, 0.0
      %v3527 = vmax.f32 %v3311, 0.0
      %v3528 = vmax.f32 %v3522, 0.0
      %v3529 = vmax.f32 %v3524, 0.0
      %v3530 = vld [vmem:[%s3] sm:$0xf]
      %3531 = vst [vmem:[#allocation3] sm:$0xff] 0.0
      %vm3532 = vcmask 31744
      %3533 = vst.msk [vmem:[#allocation3 + $0x8] sm:$0xff] %vm3532, 0.0
      %vm3534 = vcmask 1047584
      %3535 = vst.msk [vmem:[#allocation3 + $0x28] sm:$0xff] %vm3534, 0.0
      %3536 = vst [vmem:[#allocation3 + $0x30] sm:$0xff] 0.0
      %v3538 = vlaneseq
      %v3539 = vshrl.u32 %v3538, 7
      %v3540 = vsub.s32 0, %v3539
      %v3541 = vrot.slane %v3530, %v3540
      %v3542 = vlaneseq
      %v3543 = vshrl.u32 %v3542, 7
      %v3544 = vsub.s32 1, %v3543
      %v3545 = vrot.slane %v3530, %v3544
      %v3546 = vlaneseq
      %v3547 = vshrl.u32 %v3546, 7
      %v3548 = vsub.s32 2, %v3547
      %v3549 = vrot.slane %v3530, %v3548
      %v3550 = vlaneseq
      %v3551 = vshrl.u32 %v3550, 7
      %v3552 = vsub.s32 3, %v3551
      %v3553 = vrot.slane %v3530, %v3552
      %v3558 = vmul.f32 %v3526, %v3541
      %v3559 = vmul.f32 %v3527, %v3545
      %v3560 = vmul.f32 %v3528, %v3549
      %v3561 = vmul.f32 %v3529, %v3553
      %3566 = vrot.lane.b32.xlu0 %v3558, 4
      %v3567 = vpop.permute.xlu0 %3566
      %3568 = vrot.lane.b32.xlu0 %v3559, 4
      %v3569 = vpop.permute.xlu0 %3568
      %3570 = vrot.lane.b32.xlu0 %v3560, 4
      %v3571 = vpop.permute.xlu0 %3570
      %3572 = vrot.lane.b32.xlu0 %v3561, 4
      %v3573 = vpop.permute.xlu0 %3572
      %v3574 = vsel %vm3532, %v3567, %v3569
      %v3575 = vsel %vm3532, %v3569, %v3571
      %v3576 = vsel %vm3532, %v3571, %v3573
      %3582 = vst.msk [vmem:[#allocation3 + $0x8] sm:$0xff] %vm3534, %v3567
      %3583 = vst [vmem:[#allocation3 + $0x10] sm:$0xff] %v3574
      %3584 = vst [vmem:[#allocation3 + $0x18] sm:$0xff] %v3575
      %3585 = vst [vmem:[#allocation3 + $0x20] sm:$0xff] %v3576
      %3586 = vst.msk [vmem:[#allocation3 + $0x28] sm:$0xff] %vm3532, %v3573
      %v3587 = vld [vmem:[#allocation3] sm:$0xff]
      %v3588 = vld [vmem:[#allocation3 + $0x8] sm:$0xff]
      %v3589 = vld [vmem:[#allocation3 + $0x10] sm:$0xff]
      %v3590 = vld [vmem:[#allocation3 + $0x18] sm:$0xff]
      %3591 = vst [vmem:[#allocation2] sm:$0xff] %v3587
      %3592 = vst [vmem:[#allocation2 + $0x8] sm:$0xff] %v3588
      %3593 = vst [vmem:[#allocation2 + $0x10] sm:$0xff] %v3589
      %3594 = vst [vmem:[#allocation2 + $0x18] sm:$0xff] %v3590
      %v3595 = vld [vmem:[#allocation3] sm:$0xff]
      %v3596 = vld [vmem:[#allocation3 + $0x8] sm:$0xff]
      %v3597 = vld [vmem:[#allocation3 + $0x10] sm:$0xff]
      %v3598 = vld [vmem:[#allocation3 + $0x18] sm:$0xff]
      %v3599 = vld [vmem:[#allocation3 + $0x20] sm:$0xff]
      %3605 = vrot.lane.b32.xlu0 %v3595, 127
      %v3606 = vpop.permute.xlu0 %3605
      %3607 = vrot.lane.b32.xlu0 %v3596, 127
      %v3608 = vpop.permute.xlu0 %3607
      %3609 = vrot.lane.b32.xlu0 %v3597, 127
      %v3610 = vpop.permute.xlu0 %3609
      %3611 = vrot.lane.b32.xlu0 %v3598, 127
      %v3612 = vpop.permute.xlu0 %3611
      %3613 = vrot.lane.b32.xlu0 %v3599, 127
      %v3614 = vpop.permute.xlu0 %3613
      %v3615 = vsel %vm235, %v3606, %v3608
      %v3616 = vsel %vm235, %v3608, %v3610
      %v3617 = vsel %vm235, %v3610, %v3612
      %v3618 = vsel %vm235, %v3612, %v3614
      %3623 = vst [vmem:[#allocation2 + $0x20] sm:$0xff] %v3615
      %3624 = vst [vmem:[#allocation2 + $0x28] sm:$0xff] %v3616
      %3625 = vst [vmem:[#allocation2 + $0x30] sm:$0xff] %v3617
      %3626 = vst [vmem:[#allocation2 + $0x38] sm:$0xff] %v3618
      %v3627 = vld [vmem:[#allocation3] sm:$0xff]
      %v3628 = vld [vmem:[#allocation3 + $0x8] sm:$0xff]
      %v3629 = vld [vmem:[#allocation3 + $0x10] sm:$0xff]
      %v3630 = vld [vmem:[#allocation3 + $0x18] sm:$0xff]
      %v3631 = vld [vmem:[#allocation3 + $0x20] sm:$0xff]
      %3637 = vrot.lane.b32.xlu0 %v3627, 126
      %v3638 = vpop.permute.xlu0 %3637
      %3639 = vrot.lane.b32.xlu0 %v3628, 126
      %v3640 = vpop.permute.xlu0 %3639
      %3641 = vrot.lane.b32.xlu0 %v3629, 126
      %v3642 = vpop.permute.xlu0 %3641
      %3643 = vrot.lane.b32.xlu0 %v3630, 126
      %v3644 = vpop.permute.xlu0 %3643
      %3645 = vrot.lane.b32.xlu0 %v3631, 126
      %v3646 = vpop.permute.xlu0 %3645
      %v3647 = vsel %vm268, %v3638, %v3640
      %v3648 = vsel %vm268, %v3640, %v3642
      %v3649 = vsel %vm268, %v3642, %v3644
      %v3650 = vsel %vm268, %v3644, %v3646
      %3655 = vst [vmem:[#allocation2 + $0x40] sm:$0xff] %v3647
      %3656 = vst [vmem:[#allocation2 + $0x48] sm:$0xff] %v3648
      %3657 = vst [vmem:[#allocation2 + $0x50] sm:$0xff] %v3649
      %3658 = vst [vmem:[#allocation2 + $0x58] sm:$0xff] %v3650
      %v3659 = vld [vmem:[#allocation3] sm:$0xff]
      %v3660 = vld [vmem:[#allocation3 + $0x8] sm:$0xff]
      %v3661 = vld [vmem:[#allocation3 + $0x10] sm:$0xff]
      %v3662 = vld [vmem:[#allocation3 + $0x18] sm:$0xff]
      %v3663 = vld [vmem:[#allocation3 + $0x20] sm:$0xff]
      %3669 = vrot.lane.b32.xlu0 %v3659, 125
      %v3670 = vpop.permute.xlu0 %3669
      %3671 = vrot.lane.b32.xlu0 %v3660, 125
      %v3672 = vpop.permute.xlu0 %3671
      %3673 = vrot.lane.b32.xlu0 %v3661, 125
      %v3674 = vpop.permute.xlu0 %3673
      %3675 = vrot.lane.b32.xlu0 %v3662, 125
      %v3676 = vpop.permute.xlu0 %3675
      %3677 = vrot.lane.b32.xlu0 %v3663, 125
      %v3678 = vpop.permute.xlu0 %3677
      %v3679 = vsel %vm301, %v3670, %v3672
      %v3680 = vsel %vm301, %v3672, %v3674
      %v3681 = vsel %vm301, %v3674, %v3676
      %v3682 = vsel %vm301, %v3676, %v3678
      %3687 = vst [vmem:[#allocation2 + $0x60] sm:$0xff] %v3679
      %3688 = vst [vmem:[#allocation2 + $0x68] sm:$0xff] %v3680
      %3689 = vst [vmem:[#allocation2 + $0x70] sm:$0xff] %v3681
      %3690 = vst [vmem:[#allocation2 + $0x78] sm:$0xff] %v3682
      %v3691 = vld [vmem:[#allocation3] sm:$0xff]
      %v3692 = vld [vmem:[#allocation3 + $0x8] sm:$0xff]
      %v3693 = vld [vmem:[#allocation3 + $0x10] sm:$0xff]
      %v3694 = vld [vmem:[#allocation3 + $0x18] sm:$0xff]
      %v3695 = vld [vmem:[#allocation3 + $0x20] sm:$0xff]
      %3701 = vrot.lane.b32.xlu0 %v3691, 124
      %v3702 = vpop.permute.xlu0 %3701
      %3703 = vrot.lane.b32.xlu0 %v3692, 124
      %v3704 = vpop.permute.xlu0 %3703
      %3705 = vrot.lane.b32.xlu0 %v3693, 124
      %v3706 = vpop.permute.xlu0 %3705
      %3707 = vrot.lane.b32.xlu0 %v3694, 124
      %v3708 = vpop.permute.xlu0 %3707
      %3709 = vrot.lane.b32.xlu0 %v3695, 124
      %v3710 = vpop.permute.xlu0 %3709
      %v3711 = vsel %vm334, %v3702, %v3704
      %v3712 = vsel %vm334, %v3704, %v3706
      %v3713 = vsel %vm334, %v3706, %v3708
      %v3714 = vsel %vm334, %v3708, %v3710
      %3719 = vst [vmem:[#allocation2 + $0x80] sm:$0xff] %v3711
      %3720 = vst [vmem:[#allocation2 + $0x88] sm:$0xff] %v3712
      %3721 = vst [vmem:[#allocation2 + $0x90] sm:$0xff] %v3713
      %3722 = vst [vmem:[#allocation2 + $0x98] sm:$0xff] %v3714
      %v3723 = vld [vmem:[#allocation3] sm:$0xff]
      %v3724 = vld [vmem:[#allocation3 + $0x8] sm:$0xff]
      %v3725 = vld [vmem:[#allocation3 + $0x10] sm:$0xff]
      %v3726 = vld [vmem:[#allocation3 + $0x18] sm:$0xff]
      %v3727 = vld [vmem:[#allocation3 + $0x20] sm:$0xff]
      %3733 = vrot.lane.b32.xlu0 %v3723, 123
      %v3734 = vpop.permute.xlu0 %3733
      %3735 = vrot.lane.b32.xlu0 %v3724, 123
      %v3736 = vpop.permute.xlu0 %3735
      %3737 = vrot.lane.b32.xlu0 %v3725, 123
      %v3738 = vpop.permute.xlu0 %3737
      %3739 = vrot.lane.b32.xlu0 %v3726, 123
      %v3740 = vpop.permute.xlu0 %3739
      %3741 = vrot.lane.b32.xlu0 %v3727, 123
      %v3742 = vpop.permute.xlu0 %3741
      %v3743 = vsel %vm367, %v3734, %v3736
      %v3744 = vsel %vm367, %v3736, %v3738
      %v3745 = vsel %vm367, %v3738, %v3740
      %v3746 = vsel %vm367, %v3740, %v3742
      %3751 = vst [vmem:[#allocation2 + $0xa0] sm:$0xff] %v3743
      %3752 = vst [vmem:[#allocation2 + $0xa8] sm:$0xff] %v3744
      %3753 = vst [vmem:[#allocation2 + $0xb0] sm:$0xff] %v3745
      %3754 = vst [vmem:[#allocation2 + $0xb8] sm:$0xff] %v3746
      %v3755 = vld [vmem:[#allocation3] sm:$0xff]
      %v3756 = vld [vmem:[#allocation3 + $0x8] sm:$0xff]
      %v3757 = vld [vmem:[#allocation3 + $0x10] sm:$0xff]
      %v3758 = vld [vmem:[#allocation3 + $0x18] sm:$0xff]
      %v3759 = vld [vmem:[#allocation3 + $0x20] sm:$0xff]
      %3765 = vrot.lane.b32.xlu0 %v3755, 122
      %v3766 = vpop.permute.xlu0 %3765
      %3767 = vrot.lane.b32.xlu0 %v3756, 122
      %v3768 = vpop.permute.xlu0 %3767
      %3769 = vrot.lane.b32.xlu0 %v3757, 122
      %v3770 = vpop.permute.xlu0 %3769
      %3771 = vrot.lane.b32.xlu0 %v3758, 122
      %v3772 = vpop.permute.xlu0 %3771
      %3773 = vrot.lane.b32.xlu0 %v3759, 122
      %v3774 = vpop.permute.xlu0 %3773
      %v3775 = vsel %vm400, %v3766, %v3768
      %v3776 = vsel %vm400, %v3768, %v3770
      %v3777 = vsel %vm400, %v3770, %v3772
      %v3778 = vsel %vm400, %v3772, %v3774
      %3783 = vst [vmem:[#allocation2 + $0xc0] sm:$0xff] %v3775
      %3784 = vst [vmem:[#allocation2 + $0xc8] sm:$0xff] %v3776
      %3785 = vst [vmem:[#allocation2 + $0xd0] sm:$0xff] %v3777
      %3786 = vst [vmem:[#allocation2 + $0xd8] sm:$0xff] %v3778
      %v3787 = vld [vmem:[#allocation3] sm:$0xff]
      %v3788 = vld [vmem:[#allocation3 + $0x8] sm:$0xff]
      %v3789 = vld [vmem:[#allocation3 + $0x10] sm:$0xff]
      %v3790 = vld [vmem:[#allocation3 + $0x18] sm:$0xff]
      %v3791 = vld [vmem:[#allocation3 + $0x20] sm:$0xff]
      %3797 = vrot.lane.b32.xlu0 %v3787, 121
      %v3798 = vpop.permute.xlu0 %3797
      %3799 = vrot.lane.b32.xlu0 %v3788, 121
      %v3800 = vpop.permute.xlu0 %3799
      %3801 = vrot.lane.b32.xlu0 %v3789, 121
      %v3802 = vpop.permute.xlu0 %3801
      %3803 = vrot.lane.b32.xlu0 %v3790, 121
      %v3804 = vpop.permute.xlu0 %3803
      %3805 = vrot.lane.b32.xlu0 %v3791, 121
      %v3806 = vpop.permute.xlu0 %3805
      %v3807 = vsel %vm433, %v3798, %v3800
      %v3808 = vsel %vm433, %v3800, %v3802
      %v3809 = vsel %vm433, %v3802, %v3804
      %v3810 = vsel %vm433, %v3804, %v3806
      %3815 = vst [vmem:[#allocation2 + $0xe0] sm:$0xff] %v3807
      %3816 = vst [vmem:[#allocation2 + $0xe8] sm:$0xff] %v3808
      %3817 = vst [vmem:[#allocation2 + $0xf0] sm:$0xff] %v3809
      %3818 = vst [vmem:[#allocation2 + $0xf8] sm:$0xff] %v3810
      %v3819 = vld [vmem:[#allocation3] sm:$0xff]
      %v3820 = vld [vmem:[#allocation3 + $0x8] sm:$0xff]
      %v3821 = vld [vmem:[#allocation3 + $0x10] sm:$0xff]
      %v3822 = vld [vmem:[#allocation3 + $0x18] sm:$0xff]
      %v3823 = vld [vmem:[#allocation3 + $0x20] sm:$0xff]
      %3829 = vrot.lane.b32.xlu0 %v3819, 120
      %v3830 = vpop.permute.xlu0 %3829
      %3831 = vrot.lane.b32.xlu0 %v3820, 120
      %v3832 = vpop.permute.xlu0 %3831
      %3833 = vrot.lane.b32.xlu0 %v3821, 120
      %v3834 = vpop.permute.xlu0 %3833
      %3835 = vrot.lane.b32.xlu0 %v3822, 120
      %v3836 = vpop.permute.xlu0 %3835
      %3837 = vrot.lane.b32.xlu0 %v3823, 120
      %v3838 = vpop.permute.xlu0 %3837
      %v3839 = vsel %vm466, %v3830, %v3832
      %v3840 = vsel %vm466, %v3832, %v3834
      %v3841 = vsel %vm466, %v3834, %v3836
      %v3842 = vsel %vm466, %v3836, %v3838
      %3847 = vst [vmem:[#allocation2 + $0x100] sm:$0xff] %v3839
      %3848 = vst [vmem:[#allocation2 + $0x108] sm:$0xff] %v3840
      %3849 = vst [vmem:[#allocation2 + $0x110] sm:$0xff] %v3841
      %3850 = vst [vmem:[#allocation2 + $0x118] sm:$0xff] %v3842
      %v3851 = vld [vmem:[#allocation3] sm:$0xff]
      %v3852 = vld [vmem:[#allocation3 + $0x8] sm:$0xff]
      %v3853 = vld [vmem:[#allocation3 + $0x10] sm:$0xff]
      %v3854 = vld [vmem:[#allocation3 + $0x18] sm:$0xff]
      %v3855 = vld [vmem:[#allocation3 + $0x20] sm:$0xff]
      %3861 = vrot.lane.b32.xlu0 %v3851, 96
      %v3862 = vpop.permute.xlu0 %3861
      %3863 = vrot.lane.b32.xlu0 %v3852, 96
      %v3864 = vpop.permute.xlu0 %3863
      %3865 = vrot.lane.b32.xlu0 %v3853, 96
      %v3866 = vpop.permute.xlu0 %3865
      %3867 = vrot.lane.b32.xlu0 %v3854, 96
      %v3868 = vpop.permute.xlu0 %3867
      %3869 = vrot.lane.b32.xlu0 %v3855, 96
      %v3870 = vpop.permute.xlu0 %3869
      %v3871 = vsel %vm499, %v3862, %v3864
      %v3872 = vsel %vm499, %v3864, %v3866
      %v3873 = vsel %vm499, %v3866, %v3868
      %v3874 = vsel %vm499, %v3868, %v3870
      %3879 = vst [vmem:[#allocation2 + $0x120] sm:$0xff] %v3871
      %3880 = vst [vmem:[#allocation2 + $0x128] sm:$0xff] %v3872
      %3881 = vst [vmem:[#allocation2 + $0x130] sm:$0xff] %v3873
      %3882 = vst [vmem:[#allocation2 + $0x138] sm:$0xff] %v3874
      %v3883 = vld [vmem:[#allocation3] sm:$0xff]
      %v3884 = vld [vmem:[#allocation3 + $0x8] sm:$0xff]
      %v3885 = vld [vmem:[#allocation3 + $0x10] sm:$0xff]
      %v3886 = vld [vmem:[#allocation3 + $0x18] sm:$0xff]
      %v3887 = vld [vmem:[#allocation3 + $0x20] sm:$0xff]
      %3893 = vrot.lane.b32.xlu0 %v3883, 95
      %v3894 = vpop.permute.xlu0 %3893
      %3895 = vrot.lane.b32.xlu0 %v3884, 95
      %v3896 = vpop.permute.xlu0 %3895
      %3897 = vrot.lane.b32.xlu0 %v3885, 95
      %v3898 = vpop.permute.xlu0 %3897
      %3899 = vrot.lane.b32.xlu0 %v3886, 95
      %v3900 = vpop.permute.xlu0 %3899
      %3901 = vrot.lane.b32.xlu0 %v3887, 95
      %v3902 = vpop.permute.xlu0 %3901
      %v3903 = vsel %vm532, %v3894, %v3896
      %v3904 = vsel %vm532, %v3896, %v3898
      %v3905 = vsel %vm532, %v3898, %v3900
      %v3906 = vsel %vm532, %v3900, %v3902
      %3911 = vst [vmem:[#allocation2 + $0x140] sm:$0xff] %v3903
      %3912 = vst [vmem:[#allocation2 + $0x148] sm:$0xff] %v3904
      %3913 = vst [vmem:[#allocation2 + $0x150] sm:$0xff] %v3905
      %3914 = vst [vmem:[#allocation2 + $0x158] sm:$0xff] %v3906
      %v3915 = vld [vmem:[#allocation3] sm:$0xff]
      %v3916 = vld [vmem:[#allocation3 + $0x8] sm:$0xff]
      %v3917 = vld [vmem:[#allocation3 + $0x10] sm:$0xff]
      %v3918 = vld [vmem:[#allocation3 + $0x18] sm:$0xff]
      %v3919 = vld [vmem:[#allocation3 + $0x20] sm:$0xff]
      %3925 = vrot.lane.b32.xlu0 %v3915, 94
      %v3926 = vpop.permute.xlu0 %3925
      %3927 = vrot.lane.b32.xlu0 %v3916, 94
      %v3928 = vpop.permute.xlu0 %3927
      %3929 = vrot.lane.b32.xlu0 %v3917, 94
      %v3930 = vpop.permute.xlu0 %3929
      %3931 = vrot.lane.b32.xlu0 %v3918, 94
      %v3932 = vpop.permute.xlu0 %3931
      %3933 = vrot.lane.b32.xlu0 %v3919, 94
      %v3934 = vpop.permute.xlu0 %3933
      %v3935 = vsel %vm565, %v3926, %v3928
      %v3936 = vsel %vm565, %v3928, %v3930
      %v3937 = vsel %vm565, %v3930, %v3932
      %v3938 = vsel %vm565, %v3932, %v3934
      %3943 = vst [vmem:[#allocation2 + $0x160] sm:$0xff] %v3935
      %3944 = vst [vmem:[#allocation2 + $0x168] sm:$0xff] %v3936
      %3945 = vst [vmem:[#allocation2 + $0x170] sm:$0xff] %v3937
      %3946 = vst [vmem:[#allocation2 + $0x178] sm:$0xff] %v3938
      %v3947 = vld [vmem:[#allocation3] sm:$0xff]
      %v3948 = vld [vmem:[#allocation3 + $0x8] sm:$0xff]
      %v3949 = vld [vmem:[#allocation3 + $0x10] sm:$0xff]
      %v3950 = vld [vmem:[#allocation3 + $0x18] sm:$0xff]
      %v3951 = vld [vmem:[#allocation3 + $0x20] sm:$0xff]
      %3957 = vrot.lane.b32.xlu0 %v3947, 93
      %v3958 = vpop.permute.xlu0 %3957
      %3959 = vrot.lane.b32.xlu0 %v3948, 93
      %v3960 = vpop.permute.xlu0 %3959
      %3961 = vrot.lane.b32.xlu0 %v3949, 93
      %v3962 = vpop.permute.xlu0 %3961
      %3963 = vrot.lane.b32.xlu0 %v3950, 93
      %v3964 = vpop.permute.xlu0 %3963
      %3965 = vrot.lane.b32.xlu0 %v3951, 93
      %v3966 = vpop.permute.xlu0 %3965
      %v3967 = vsel %vm598, %v3958, %v3960
      %v3968 = vsel %vm598, %v3960, %v3962
      %v3969 = vsel %vm598, %v3962, %v3964
      %v3970 = vsel %vm598, %v3964, %v3966
      %3975 = vst [vmem:[#allocation2 + $0x180] sm:$0xff] %v3967
      %3976 = vst [vmem:[#allocation2 + $0x188] sm:$0xff] %v3968
      %3977 = vst [vmem:[#allocation2 + $0x190] sm:$0xff] %v3969
      %3978 = vst [vmem:[#allocation2 + $0x198] sm:$0xff] %v3970
      %v3979 = vld [vmem:[#allocation3] sm:$0xff]
      %v3980 = vld [vmem:[#allocation3 + $0x8] sm:$0xff]
      %v3981 = vld [vmem:[#allocation3 + $0x10] sm:$0xff]
      %v3982 = vld [vmem:[#allocation3 + $0x18] sm:$0xff]
      %v3983 = vld [vmem:[#allocation3 + $0x20] sm:$0xff]
      %3989 = vrot.lane.b32.xlu0 %v3979, 92
      %v3990 = vpop.permute.xlu0 %3989
      %3991 = vrot.lane.b32.xlu0 %v3980, 92
      %v3992 = vpop.permute.xlu0 %3991
      %3993 = vrot.lane.b32.xlu0 %v3981, 92
      %v3994 = vpop.permute.xlu0 %3993
      %3995 = vrot.lane.b32.xlu0 %v3982, 92
      %v3996 = vpop.permute.xlu0 %3995
      %3997 = vrot.lane.b32.xlu0 %v3983, 92
      %v3998 = vpop.permute.xlu0 %3997
      %v3999 = vsel %vm631, %v3990, %v3992
      %v4000 = vsel %vm631, %v3992, %v3994
      %v4001 = vsel %vm631, %v3994, %v3996
      %v4002 = vsel %vm631, %v3996, %v3998
      %4007 = vst [vmem:[#allocation2 + $0x1a0] sm:$0xff] %v3999
      %4008 = vst [vmem:[#allocation2 + $0x1a8] sm:$0xff] %v4000
      %4009 = vst [vmem:[#allocation2 + $0x1b0] sm:$0xff] %v4001
      %4010 = vst [vmem:[#allocation2 + $0x1b8] sm:$0xff] %v4002
      %v4011 = vld [vmem:[#allocation3] sm:$0xff]
      %v4012 = vld [vmem:[#allocation3 + $0x8] sm:$0xff]
      %v4013 = vld [vmem:[#allocation3 + $0x10] sm:$0xff]
      %v4014 = vld [vmem:[#allocation3 + $0x18] sm:$0xff]
      %v4015 = vld [vmem:[#allocation3 + $0x20] sm:$0xff]
      %4021 = vrot.lane.b32.xlu0 %v4011, 91
      %v4022 = vpop.permute.xlu0 %4021
      %4023 = vrot.lane.b32.xlu0 %v4012, 91
      %v4024 = vpop.permute.xlu0 %4023
      %4025 = vrot.lane.b32.xlu0 %v4013, 91
      %v4026 = vpop.permute.xlu0 %4025
      %4027 = vrot.lane.b32.xlu0 %v4014, 91
      %v4028 = vpop.permute.xlu0 %4027
      %4029 = vrot.lane.b32.xlu0 %v4015, 91
      %v4030 = vpop.permute.xlu0 %4029
      %v4031 = vsel %vm664, %v4022, %v4024
      %v4032 = vsel %vm664, %v4024, %v4026
      %v4033 = vsel %vm664, %v4026, %v4028
      %v4034 = vsel %vm664, %v4028, %v4030
      %4039 = vst [vmem:[#allocation2 + $0x1c0] sm:$0xff] %v4031
      %4040 = vst [vmem:[#allocation2 + $0x1c8] sm:$0xff] %v4032
      %4041 = vst [vmem:[#allocation2 + $0x1d0] sm:$0xff] %v4033
      %4042 = vst [vmem:[#allocation2 + $0x1d8] sm:$0xff] %v4034
      %v4043 = vld [vmem:[#allocation3] sm:$0xff]
      %v4044 = vld [vmem:[#allocation3 + $0x8] sm:$0xff]
      %v4045 = vld [vmem:[#allocation3 + $0x10] sm:$0xff]
      %v4046 = vld [vmem:[#allocation3 + $0x18] sm:$0xff]
      %v4047 = vld [vmem:[#allocation3 + $0x20] sm:$0xff]
      %4053 = vrot.lane.b32.xlu0 %v4043, 90
      %v4054 = vpop.permute.xlu0 %4053
      %4055 = vrot.lane.b32.xlu0 %v4044, 90
      %v4056 = vpop.permute.xlu0 %4055
      %4057 = vrot.lane.b32.xlu0 %v4045, 90
      %v4058 = vpop.permute.xlu0 %4057
      %4059 = vrot.lane.b32.xlu0 %v4046, 90
      %v4060 = vpop.permute.xlu0 %4059
      %4061 = vrot.lane.b32.xlu0 %v4047, 90
      %v4062 = vpop.permute.xlu0 %4061
      %v4063 = vsel %vm697, %v4054, %v4056
      %v4064 = vsel %vm697, %v4056, %v4058
      %v4065 = vsel %vm697, %v4058, %v4060
      %v4066 = vsel %vm697, %v4060, %v4062
      %4071 = vst [vmem:[#allocation2 + $0x1e0] sm:$0xff] %v4063
      %4072 = vst [vmem:[#allocation2 + $0x1e8] sm:$0xff] %v4064
      %4073 = vst [vmem:[#allocation2 + $0x1f0] sm:$0xff] %v4065
      %4074 = vst [vmem:[#allocation2 + $0x1f8] sm:$0xff] %v4066
      %v4075 = vld [vmem:[#allocation3] sm:$0xff]
      %v4076 = vld [vmem:[#allocation3 + $0x8] sm:$0xff]
      %v4077 = vld [vmem:[#allocation3 + $0x10] sm:$0xff]
      %v4078 = vld [vmem:[#allocation3 + $0x18] sm:$0xff]
      %v4079 = vld [vmem:[#allocation3 + $0x20] sm:$0xff]
      %4085 = vrot.lane.b32.xlu0 %v4075, 89
      %v4086 = vpop.permute.xlu0 %4085
      %4087 = vrot.lane.b32.xlu0 %v4076, 89
      %v4088 = vpop.permute.xlu0 %4087
      %4089 = vrot.lane.b32.xlu0 %v4077, 89
      %v4090 = vpop.permute.xlu0 %4089
      %4091 = vrot.lane.b32.xlu0 %v4078, 89
      %v4092 = vpop.permute.xlu0 %4091
      %4093 = vrot.lane.b32.xlu0 %v4079, 89
      %v4094 = vpop.permute.xlu0 %4093
      %v4095 = vsel %vm730, %v4086, %v4088
      %v4096 = vsel %vm730, %v4088, %v4090
      %v4097 = vsel %vm730, %v4090, %v4092
      %v4098 = vsel %vm730, %v4092, %v4094
      %4103 = vst [vmem:[#allocation2 + $0x200] sm:$0xff] %v4095
      %4104 = vst [vmem:[#allocation2 + $0x208] sm:$0xff] %v4096
      %4105 = vst [vmem:[#allocation2 + $0x210] sm:$0xff] %v4097
      %4106 = vst [vmem:[#allocation2 + $0x218] sm:$0xff] %v4098
      %v4107 = vld [vmem:[#allocation3] sm:$0xff]
      %v4108 = vld [vmem:[#allocation3 + $0x8] sm:$0xff]
      %v4109 = vld [vmem:[#allocation3 + $0x10] sm:$0xff]
      %v4110 = vld [vmem:[#allocation3 + $0x18] sm:$0xff]
      %v4111 = vld [vmem:[#allocation3 + $0x20] sm:$0xff]
      %4117 = vrot.lane.b32.xlu0 %v4107, 88
      %v4118 = vpop.permute.xlu0 %4117
      %4119 = vrot.lane.b32.xlu0 %v4108, 88
      %v4120 = vpop.permute.xlu0 %4119
      %4121 = vrot.lane.b32.xlu0 %v4109, 88
      %v4122 = vpop.permute.xlu0 %4121
      %4123 = vrot.lane.b32.xlu0 %v4110, 88
      %v4124 = vpop.permute.xlu0 %4123
      %4125 = vrot.lane.b32.xlu0 %v4111, 88
      %v4126 = vpop.permute.xlu0 %4125
      %v4127 = vsel %vm763, %v4118, %v4120
      %v4128 = vsel %vm763, %v4120, %v4122
      %v4129 = vsel %vm763, %v4122, %v4124
      %v4130 = vsel %vm763, %v4124, %v4126
      %4135 = vst [vmem:[#allocation2 + $0x220] sm:$0xff] %v4127
      %4136 = vst [vmem:[#allocation2 + $0x228] sm:$0xff] %v4128
      %4137 = vst [vmem:[#allocation2 + $0x230] sm:$0xff] %v4129
      %4138 = vst [vmem:[#allocation2 + $0x238] sm:$0xff] %v4130
      %v4139 = vld [vmem:[#allocation3] sm:$0xff]
      %v4140 = vld [vmem:[#allocation3 + $0x8] sm:$0xff]
      %v4141 = vld [vmem:[#allocation3 + $0x10] sm:$0xff]
      %v4142 = vld [vmem:[#allocation3 + $0x18] sm:$0xff]
      %v4143 = vld [vmem:[#allocation3 + $0x20] sm:$0xff]
      %4149 = vrot.lane.b32.xlu0 %v4139, 64
      %v4150 = vpop.permute.xlu0 %4149
      %4151 = vrot.lane.b32.xlu0 %v4140, 64
      %v4152 = vpop.permute.xlu0 %4151
      %4153 = vrot.lane.b32.xlu0 %v4141, 64
      %v4154 = vpop.permute.xlu0 %4153
      %4155 = vrot.lane.b32.xlu0 %v4142, 64
      %v4156 = vpop.permute.xlu0 %4155
      %4157 = vrot.lane.b32.xlu0 %v4143, 64
      %v4158 = vpop.permute.xlu0 %4157
      %v4159 = vsel %vm796, %v4150, %v4152
      %v4160 = vsel %vm796, %v4152, %v4154
      %v4161 = vsel %vm796, %v4154, %v4156
      %v4162 = vsel %vm796, %v4156, %v4158
      %4167 = vst [vmem:[#allocation2 + $0x240] sm:$0xff] %v4159
      %4168 = vst [vmem:[#allocation2 + $0x248] sm:$0xff] %v4160
      %4169 = vst [vmem:[#allocation2 + $0x250] sm:$0xff] %v4161
      %4170 = vst [vmem:[#allocation2 + $0x258] sm:$0xff] %v4162
      %v4171 = vld [vmem:[#allocation3] sm:$0xff]
      %v4172 = vld [vmem:[#allocation3 + $0x8] sm:$0xff]
      %v4173 = vld [vmem:[#allocation3 + $0x10] sm:$0xff]
      %v4174 = vld [vmem:[#allocation3 + $0x18] sm:$0xff]
      %v4175 = vld [vmem:[#allocation3 + $0x20] sm:$0xff]
      %4181 = vrot.lane.b32.xlu0 %v4171, 63
      %v4182 = vpop.permute.xlu0 %4181
      %4183 = vrot.lane.b32.xlu0 %v4172, 63
      %v4184 = vpop.permute.xlu0 %4183
      %4185 = vrot.lane.b32.xlu0 %v4173, 63
      %v4186 = vpop.permute.xlu0 %4185
      %4187 = vrot.lane.b32.xlu0 %v4174, 63
      %v4188 = vpop.permute.xlu0 %4187
      %4189 = vrot.lane.b32.xlu0 %v4175, 63
      %v4190 = vpop.permute.xlu0 %4189
      %v4191 = vsel %vm829, %v4182, %v4184
      %v4192 = vsel %vm829, %v4184, %v4186
      %v4193 = vsel %vm829, %v4186, %v4188
      %v4194 = vsel %vm829, %v4188, %v4190
      %4199 = vst [vmem:[#allocation2 + $0x260] sm:$0xff] %v4191
      %4200 = vst [vmem:[#allocation2 + $0x268] sm:$0xff] %v4192
      %4201 = vst [vmem:[#allocation2 + $0x270] sm:$0xff] %v4193
      %4202 = vst [vmem:[#allocation2 + $0x278] sm:$0xff] %v4194
      %v4203 = vld [vmem:[#allocation3] sm:$0xff]
      %v4204 = vld [vmem:[#allocation3 + $0x8] sm:$0xff]
      %v4205 = vld [vmem:[#allocation3 + $0x10] sm:$0xff]
      %v4206 = vld [vmem:[#allocation3 + $0x18] sm:$0xff]
      %v4207 = vld [vmem:[#allocation3 + $0x20] sm:$0xff]
      %4213 = vrot.lane.b32.xlu0 %v4203, 62
      %v4214 = vpop.permute.xlu0 %4213
      %4215 = vrot.lane.b32.xlu0 %v4204, 62
      %v4216 = vpop.permute.xlu0 %4215
      %4217 = vrot.lane.b32.xlu0 %v4205, 62
      %v4218 = vpop.permute.xlu0 %4217
      %4219 = vrot.lane.b32.xlu0 %v4206, 62
      %v4220 = vpop.permute.xlu0 %4219
      %4221 = vrot.lane.b32.xlu0 %v4207, 62
      %v4222 = vpop.permute.xlu0 %4221
      %v4223 = vsel %vm862, %v4214, %v4216
      %v4224 = vsel %vm862, %v4216, %v4218
      %v4225 = vsel %vm862, %v4218, %v4220
      %v4226 = vsel %vm862, %v4220, %v4222
      %4231 = vst [vmem:[#allocation2 + $0x280] sm:$0xff] %v4223
      %4232 = vst [vmem:[#allocation2 + $0x288] sm:$0xff] %v4224
      %4233 = vst [vmem:[#allocation2 + $0x290] sm:$0xff] %v4225
      %4234 = vst [vmem:[#allocation2 + $0x298] sm:$0xff] %v4226
      %v4235 = vld [vmem:[#allocation3] sm:$0xff]
      %v4236 = vld [vmem:[#allocation3 + $0x8] sm:$0xff]
      %v4237 = vld [vmem:[#allocation3 + $0x10] sm:$0xff]
      %v4238 = vld [vmem:[#allocation3 + $0x18] sm:$0xff]
      %v4239 = vld [vmem:[#allocation3 + $0x20] sm:$0xff]
      %4245 = vrot.lane.b32.xlu0 %v4235, 61
      %v4246 = vpop.permute.xlu0 %4245
      %4247 = vrot.lane.b32.xlu0 %v4236, 61
      %v4248 = vpop.permute.xlu0 %4247
      %4249 = vrot.lane.b32.xlu0 %v4237, 61
      %v4250 = vpop.permute.xlu0 %4249
      %4251 = vrot.lane.b32.xlu0 %v4238, 61
      %v4252 = vpop.permute.xlu0 %4251
      %4253 = vrot.lane.b32.xlu0 %v4239, 61
      %v4254 = vpop.permute.xlu0 %4253
      %v4255 = vsel %vm895, %v4246, %v4248
      %v4256 = vsel %vm895, %v4248, %v4250
      %v4257 = vsel %vm895, %v4250, %v4252
      %v4258 = vsel %vm895, %v4252, %v4254
      %4263 = vst [vmem:[#allocation2 + $0x2a0] sm:$0xff] %v4255
      %4264 = vst [vmem:[#allocation2 + $0x2a8] sm:$0xff] %v4256
      %4265 = vst [vmem:[#allocation2 + $0x2b0] sm:$0xff] %v4257
      %4266 = vst [vmem:[#allocation2 + $0x2b8] sm:$0xff] %v4258
      %v4267 = vld [vmem:[#allocation3] sm:$0xff]
      %v4268 = vld [vmem:[#allocation3 + $0x8] sm:$0xff]
      %v4269 = vld [vmem:[#allocation3 + $0x10] sm:$0xff]
      %v4270 = vld [vmem:[#allocation3 + $0x18] sm:$0xff]
      %v4271 = vld [vmem:[#allocation3 + $0x20] sm:$0xff]
      %4277 = vrot.lane.b32.xlu0 %v4267, 60
      %v4278 = vpop.permute.xlu0 %4277
      %4279 = vrot.lane.b32.xlu0 %v4268, 60
      %v4280 = vpop.permute.xlu0 %4279
      %4281 = vrot.lane.b32.xlu0 %v4269, 60
      %v4282 = vpop.permute.xlu0 %4281
      %4283 = vrot.lane.b32.xlu0 %v4270, 60
      %v4284 = vpop.permute.xlu0 %4283
      %4285 = vrot.lane.b32.xlu0 %v4271, 60
      %v4286 = vpop.permute.xlu0 %4285
      %v4287 = vsel %vm928, %v4278, %v4280
      %v4288 = vsel %vm928, %v4280, %v4282
      %v4289 = vsel %vm928, %v4282, %v4284
      %v4290 = vsel %vm928, %v4284, %v4286
      %4295 = vst [vmem:[#allocation2 + $0x2c0] sm:$0xff] %v4287
      %4296 = vst [vmem:[#allocation2 + $0x2c8] sm:$0xff] %v4288
      %4297 = vst [vmem:[#allocation2 + $0x2d0] sm:$0xff] %v4289
      %4298 = vst [vmem:[#allocation2 + $0x2d8] sm:$0xff] %v4290
      %v4299 = vld [vmem:[#allocation3] sm:$0xff]
      %v4300 = vld [vmem:[#allocation3 + $0x8] sm:$0xff]
      %v4301 = vld [vmem:[#allocation3 + $0x10] sm:$0xff]
      %v4302 = vld [vmem:[#allocation3 + $0x18] sm:$0xff]
      %v4303 = vld [vmem:[#allocation3 + $0x20] sm:$0xff]
      %4309 = vrot.lane.b32.xlu0 %v4299, 59
      %v4310 = vpop.permute.xlu0 %4309
      %4311 = vrot.lane.b32.xlu0 %v4300, 59
      %v4312 = vpop.permute.xlu0 %4311
      %4313 = vrot.lane.b32.xlu0 %v4301, 59
      %v4314 = vpop.permute.xlu0 %4313
      %4315 = vrot.lane.b32.xlu0 %v4302, 59
      %v4316 = vpop.permute.xlu0 %4315
      %4317 = vrot.lane.b32.xlu0 %v4303, 59
      %v4318 = vpop.permute.xlu0 %4317
      %v4319 = vsel %vm961, %v4310, %v4312
      %v4320 = vsel %vm961, %v4312, %v4314
      %v4321 = vsel %vm961, %v4314, %v4316
      %v4322 = vsel %vm961, %v4316, %v4318
      %4327 = vst [vmem:[#allocation2 + $0x2e0] sm:$0xff] %v4319
      %4328 = vst [vmem:[#allocation2 + $0x2e8] sm:$0xff] %v4320
      %4329 = vst [vmem:[#allocation2 + $0x2f0] sm:$0xff] %v4321
      %4330 = vst [vmem:[#allocation2 + $0x2f8] sm:$0xff] %v4322
      %v4331 = vld [vmem:[#allocation3] sm:$0xff]
      %v4332 = vld [vmem:[#allocation3 + $0x8] sm:$0xff]
      %v4333 = vld [vmem:[#allocation3 + $0x10] sm:$0xff]
      %v4334 = vld [vmem:[#allocation3 + $0x18] sm:$0xff]
      %v4335 = vld [vmem:[#allocation3 + $0x20] sm:$0xff]
      %4341 = vrot.lane.b32.xlu0 %v4331, 58
      %v4342 = vpop.permute.xlu0 %4341
      %4343 = vrot.lane.b32.xlu0 %v4332, 58
      %v4344 = vpop.permute.xlu0 %4343
      %4345 = vrot.lane.b32.xlu0 %v4333, 58
      %v4346 = vpop.permute.xlu0 %4345
      %4347 = vrot.lane.b32.xlu0 %v4334, 58
      %v4348 = vpop.permute.xlu0 %4347
      %4349 = vrot.lane.b32.xlu0 %v4335, 58
      %v4350 = vpop.permute.xlu0 %4349
      %v4351 = vsel %vm994, %v4342, %v4344
      %v4352 = vsel %vm994, %v4344, %v4346
      %v4353 = vsel %vm994, %v4346, %v4348
      %v4354 = vsel %vm994, %v4348, %v4350
      %4359 = vst [vmem:[#allocation2 + $0x300] sm:$0xff] %v4351
      %4360 = vst [vmem:[#allocation2 + $0x308] sm:$0xff] %v4352
      %4361 = vst [vmem:[#allocation2 + $0x310] sm:$0xff] %v4353
      %4362 = vst [vmem:[#allocation2 + $0x318] sm:$0xff] %v4354
      %v4363 = vld [vmem:[#allocation3] sm:$0xff]
      %v4364 = vld [vmem:[#allocation3 + $0x8] sm:$0xff]
      %v4365 = vld [vmem:[#allocation3 + $0x10] sm:$0xff]
      %v4366 = vld [vmem:[#allocation3 + $0x18] sm:$0xff]
      %v4367 = vld [vmem:[#allocation3 + $0x20] sm:$0xff]
      %4373 = vrot.lane.b32.xlu0 %v4363, 57
      %v4374 = vpop.permute.xlu0 %4373
      %4375 = vrot.lane.b32.xlu0 %v4364, 57
      %v4376 = vpop.permute.xlu0 %4375
      %4377 = vrot.lane.b32.xlu0 %v4365, 57
      %v4378 = vpop.permute.xlu0 %4377
      %4379 = vrot.lane.b32.xlu0 %v4366, 57
      %v4380 = vpop.permute.xlu0 %4379
      %4381 = vrot.lane.b32.xlu0 %v4367, 57
      %v4382 = vpop.permute.xlu0 %4381
      %v4383 = vsel %vm1027, %v4374, %v4376
      %v4384 = vsel %vm1027, %v4376, %v4378
      %v4385 = vsel %vm1027, %v4378, %v4380
      %v4386 = vsel %vm1027, %v4380, %v4382
      %4391 = vst [vmem:[#allocation2 + $0x320] sm:$0xff] %v4383
      %4392 = vst [vmem:[#allocation2 + $0x328] sm:$0xff] %v4384
      %4393 = vst [vmem:[#allocation2 + $0x330] sm:$0xff] %v4385
      %4394 = vst [vmem:[#allocation2 + $0x338] sm:$0xff] %v4386
      %v4395 = vld [vmem:[#allocation3] sm:$0xff]
      %v4396 = vld [vmem:[#allocation3 + $0x8] sm:$0xff]
      %v4397 = vld [vmem:[#allocation3 + $0x10] sm:$0xff]
      %v4398 = vld [vmem:[#allocation3 + $0x18] sm:$0xff]
      %v4399 = vld [vmem:[#allocation3 + $0x20] sm:$0xff]
      %4405 = vrot.lane.b32.xlu0 %v4395, 56
      %v4406 = vpop.permute.xlu0 %4405
      %4407 = vrot.lane.b32.xlu0 %v4396, 56
      %v4408 = vpop.permute.xlu0 %4407
      %4409 = vrot.lane.b32.xlu0 %v4397, 56
      %v4410 = vpop.permute.xlu0 %4409
      %4411 = vrot.lane.b32.xlu0 %v4398, 56
      %v4412 = vpop.permute.xlu0 %4411
      %4413 = vrot.lane.b32.xlu0 %v4399, 56
      %v4414 = vpop.permute.xlu0 %4413
      %v4415 = vsel %vm1060, %v4406, %v4408
      %v4416 = vsel %vm1060, %v4408, %v4410
      %v4417 = vsel %vm1060, %v4410, %v4412
      %v4418 = vsel %vm1060, %v4412, %v4414
      %4423 = vst [vmem:[#allocation2 + $0x340] sm:$0xff] %v4415
      %4424 = vst [vmem:[#allocation2 + $0x348] sm:$0xff] %v4416
      %4425 = vst [vmem:[#allocation2 + $0x350] sm:$0xff] %v4417
      %4426 = vst [vmem:[#allocation2 + $0x358] sm:$0xff] %v4418
      %v4427 = vld [vmem:[#allocation3] sm:$0xff]
      %v4428 = vld [vmem:[#allocation3 + $0x8] sm:$0xff]
      %v4429 = vld [vmem:[#allocation3 + $0x10] sm:$0xff]
      %v4430 = vld [vmem:[#allocation3 + $0x18] sm:$0xff]
      %v4431 = vld [vmem:[#allocation3 + $0x20] sm:$0xff]
      %4437 = vrot.lane.b32.xlu0 %v4427, 32
      %v4438 = vpop.permute.xlu0 %4437
      %4439 = vrot.lane.b32.xlu0 %v4428, 32
      %v4440 = vpop.permute.xlu0 %4439
      %4441 = vrot.lane.b32.xlu0 %v4429, 32
      %v4442 = vpop.permute.xlu0 %4441
      %4443 = vrot.lane.b32.xlu0 %v4430, 32
      %v4444 = vpop.permute.xlu0 %4443
      %4445 = vrot.lane.b32.xlu0 %v4431, 32
      %v4446 = vpop.permute.xlu0 %4445
      %v4447 = vsel %vm1093, %v4438, %v4440
      %v4448 = vsel %vm1093, %v4440, %v4442
      %v4449 = vsel %vm1093, %v4442, %v4444
      %v4450 = vsel %vm1093, %v4444, %v4446
      %4455 = vst [vmem:[#allocation2 + $0x360] sm:$0xff] %v4447
      %4456 = vst [vmem:[#allocation2 + $0x368] sm:$0xff] %v4448
      %4457 = vst [vmem:[#allocation2 + $0x370] sm:$0xff] %v4449
      %4458 = vst [vmem:[#allocation2 + $0x378] sm:$0xff] %v4450
      %v4459 = vld [vmem:[#allocation3] sm:$0xff]
      %v4460 = vld [vmem:[#allocation3 + $0x8] sm:$0xff]
      %v4461 = vld [vmem:[#allocation3 + $0x10] sm:$0xff]
      %v4462 = vld [vmem:[#allocation3 + $0x18] sm:$0xff]
      %v4463 = vld [vmem:[#allocation3 + $0x20] sm:$0xff]
      %4469 = vrot.lane.b32.xlu0 %v4459, 31
      %v4470 = vpop.permute.xlu0 %4469
      %4471 = vrot.lane.b32.xlu0 %v4460, 31
      %v4472 = vpop.permute.xlu0 %4471
      %4473 = vrot.lane.b32.xlu0 %v4461, 31
      %v4474 = vpop.permute.xlu0 %4473
      %4475 = vrot.lane.b32.xlu0 %v4462, 31
      %v4476 = vpop.permute.xlu0 %4475
      %4477 = vrot.lane.b32.xlu0 %v4463, 31
      %v4478 = vpop.permute.xlu0 %4477
      %v4479 = vsel %vm1126, %v4470, %v4472
      %v4480 = vsel %vm1126, %v4472, %v4474
      %v4481 = vsel %vm1126, %v4474, %v4476
      %v4482 = vsel %vm1126, %v4476, %v4478
      %4487 = vst [vmem:[#allocation2 + $0x380] sm:$0xff] %v4479
      %4488 = vst [vmem:[#allocation2 + $0x388] sm:$0xff] %v4480
      %4489 = vst [vmem:[#allocation2 + $0x390] sm:$0xff] %v4481
      %4490 = vst [vmem:[#allocation2 + $0x398] sm:$0xff] %v4482
      %v4491 = vld [vmem:[#allocation3] sm:$0xff]
      %v4492 = vld [vmem:[#allocation3 + $0x8] sm:$0xff]
      %v4493 = vld [vmem:[#allocation3 + $0x10] sm:$0xff]
      %v4494 = vld [vmem:[#allocation3 + $0x18] sm:$0xff]
      %v4495 = vld [vmem:[#allocation3 + $0x20] sm:$0xff]
      %4501 = vrot.lane.b32.xlu0 %v4491, 30
      %v4502 = vpop.permute.xlu0 %4501
      %4503 = vrot.lane.b32.xlu0 %v4492, 30
      %v4504 = vpop.permute.xlu0 %4503
      %4505 = vrot.lane.b32.xlu0 %v4493, 30
      %v4506 = vpop.permute.xlu0 %4505
      %4507 = vrot.lane.b32.xlu0 %v4494, 30
      %v4508 = vpop.permute.xlu0 %4507
      %4509 = vrot.lane.b32.xlu0 %v4495, 30
      %v4510 = vpop.permute.xlu0 %4509
      %v4511 = vsel %vm1159, %v4502, %v4504
      %v4512 = vsel %vm1159, %v4504, %v4506
      %v4513 = vsel %vm1159, %v4506, %v4508
      %v4514 = vsel %vm1159, %v4508, %v4510
      %4519 = vst [vmem:[#allocation2 + $0x3a0] sm:$0xff] %v4511
      %4520 = vst [vmem:[#allocation2 + $0x3a8] sm:$0xff] %v4512
      %4521 = vst [vmem:[#allocation2 + $0x3b0] sm:$0xff] %v4513
      %4522 = vst [vmem:[#allocation2 + $0x3b8] sm:$0xff] %v4514
      %v4523 = vld [vmem:[#allocation3] sm:$0xff]
      %v4524 = vld [vmem:[#allocation3 + $0x8] sm:$0xff]
      %v4525 = vld [vmem:[#allocation3 + $0x10] sm:$0xff]
      %v4526 = vld [vmem:[#allocation3 + $0x18] sm:$0xff]
      %v4527 = vld [vmem:[#allocation3 + $0x20] sm:$0xff]
      %4533 = vrot.lane.b32.xlu0 %v4523, 29
      %v4534 = vpop.permute.xlu0 %4533
      %4535 = vrot.lane.b32.xlu0 %v4524, 29
      %v4536 = vpop.permute.xlu0 %4535
      %4537 = vrot.lane.b32.xlu0 %v4525, 29
      %v4538 = vpop.permute.xlu0 %4537
      %4539 = vrot.lane.b32.xlu0 %v4526, 29
      %v4540 = vpop.permute.xlu0 %4539
      %4541 = vrot.lane.b32.xlu0 %v4527, 29
      %v4542 = vpop.permute.xlu0 %4541
      %v4543 = vsel %vm1192, %v4534, %v4536
      %v4544 = vsel %vm1192, %v4536, %v4538
      %v4545 = vsel %vm1192, %v4538, %v4540
      %v4546 = vsel %vm1192, %v4540, %v4542
      %4551 = vst [vmem:[#allocation2 + $0x3c0] sm:$0xff] %v4543
      %4552 = vst [vmem:[#allocation2 + $0x3c8] sm:$0xff] %v4544
      %4553 = vst [vmem:[#allocation2 + $0x3d0] sm:$0xff] %v4545
      %4554 = vst [vmem:[#allocation2 + $0x3d8] sm:$0xff] %v4546
      %v4555 = vld [vmem:[#allocation3] sm:$0xff]
      %v4556 = vld [vmem:[#allocation3 + $0x8] sm:$0xff]
      %v4557 = vld [vmem:[#allocation3 + $0x10] sm:$0xff]
      %v4558 = vld [vmem:[#allocation3 + $0x18] sm:$0xff]
      %v4559 = vld [vmem:[#allocation3 + $0x20] sm:$0xff]
      %4565 = vrot.lane.b32.xlu0 %v4555, 28
      %v4566 = vpop.permute.xlu0 %4565
      %4567 = vrot.lane.b32.xlu0 %v4556, 28
      %v4568 = vpop.permute.xlu0 %4567
      %4569 = vrot.lane.b32.xlu0 %v4557, 28
      %v4570 = vpop.permute.xlu0 %4569
      %4571 = vrot.lane.b32.xlu0 %v4558, 28
      %v4572 = vpop.permute.xlu0 %4571
      %4573 = vrot.lane.b32.xlu0 %v4559, 28
      %v4574 = vpop.permute.xlu0 %4573
      %v4575 = vsel %vm1225, %v4566, %v4568
      %v4576 = vsel %vm1225, %v4568, %v4570
      %v4577 = vsel %vm1225, %v4570, %v4572
      %v4578 = vsel %vm1225, %v4572, %v4574
      %4583 = vst [vmem:[#allocation2 + $0x3e0] sm:$0xff] %v4575
      %4584 = vst [vmem:[#allocation2 + $0x3e8] sm:$0xff] %v4576
      %4585 = vst [vmem:[#allocation2 + $0x3f0] sm:$0xff] %v4577
      %4586 = vst [vmem:[#allocation2 + $0x3f8] sm:$0xff] %v4578
      %v4587 = vld [vmem:[#allocation3] sm:$0xff]
      %v4588 = vld [vmem:[#allocation3 + $0x8] sm:$0xff]
      %v4589 = vld [vmem:[#allocation3 + $0x10] sm:$0xff]
      %v4590 = vld [vmem:[#allocation3 + $0x18] sm:$0xff]
      %v4591 = vld [vmem:[#allocation3 + $0x20] sm:$0xff]
      %4597 = vrot.lane.b32.xlu0 %v4587, 27
      %v4598 = vpop.permute.xlu0 %4597
      %4599 = vrot.lane.b32.xlu0 %v4588, 27
      %v4600 = vpop.permute.xlu0 %4599
      %4601 = vrot.lane.b32.xlu0 %v4589, 27
      %v4602 = vpop.permute.xlu0 %4601
      %4603 = vrot.lane.b32.xlu0 %v4590, 27
      %v4604 = vpop.permute.xlu0 %4603
      %4605 = vrot.lane.b32.xlu0 %v4591, 27
      %v4606 = vpop.permute.xlu0 %4605
      %v4607 = vsel %vm1258, %v4598, %v4600
      %v4608 = vsel %vm1258, %v4600, %v4602
      %v4609 = vsel %vm1258, %v4602, %v4604
      %v4610 = vsel %vm1258, %v4604, %v4606
      %4615 = vst [vmem:[#allocation2 + $0x400] sm:$0xff] %v4607
      %4616 = vst [vmem:[#allocation2 + $0x408] sm:$0xff] %v4608
      %4617 = vst [vmem:[#allocation2 + $0x410] sm:$0xff] %v4609
      %4618 = vst [vmem:[#allocation2 + $0x418] sm:$0xff] %v4610
      %v4619 = vld [vmem:[#allocation3] sm:$0xff]
      %v4620 = vld [vmem:[#allocation3 + $0x8] sm:$0xff]
      %v4621 = vld [vmem:[#allocation3 + $0x10] sm:$0xff]
      %v4622 = vld [vmem:[#allocation3 + $0x18] sm:$0xff]
      %v4623 = vld [vmem:[#allocation3 + $0x20] sm:$0xff]
      %4629 = vrot.lane.b32.xlu0 %v4619, 26
      %v4630 = vpop.permute.xlu0 %4629
      %4631 = vrot.lane.b32.xlu0 %v4620, 26
      %v4632 = vpop.permute.xlu0 %4631
      %4633 = vrot.lane.b32.xlu0 %v4621, 26
      %v4634 = vpop.permute.xlu0 %4633
      %4635 = vrot.lane.b32.xlu0 %v4622, 26
      %v4636 = vpop.permute.xlu0 %4635
      %4637 = vrot.lane.b32.xlu0 %v4623, 26
      %v4638 = vpop.permute.xlu0 %4637
      %v4639 = vsel %vm1291, %v4630, %v4632
      %v4640 = vsel %vm1291, %v4632, %v4634
      %v4641 = vsel %vm1291, %v4634, %v4636
      %v4642 = vsel %vm1291, %v4636, %v4638
      %4647 = vst [vmem:[#allocation2 + $0x420] sm:$0xff] %v4639
      %4648 = vst [vmem:[#allocation2 + $0x428] sm:$0xff] %v4640
      %4649 = vst [vmem:[#allocation2 + $0x430] sm:$0xff] %v4641
      %4650 = vst [vmem:[#allocation2 + $0x438] sm:$0xff] %v4642
      %v4651 = vld [vmem:[#allocation3] sm:$0xff]
      %v4652 = vld [vmem:[#allocation3 + $0x8] sm:$0xff]
      %v4653 = vld [vmem:[#allocation3 + $0x10] sm:$0xff]
      %v4654 = vld [vmem:[#allocation3 + $0x18] sm:$0xff]
      %v4655 = vld [vmem:[#allocation3 + $0x20] sm:$0xff]
      %4661 = vrot.lane.b32.xlu0 %v4651, 25
      %v4662 = vpop.permute.xlu0 %4661
      %4663 = vrot.lane.b32.xlu0 %v4652, 25
      %v4664 = vpop.permute.xlu0 %4663
      %4665 = vrot.lane.b32.xlu0 %v4653, 25
      %v4666 = vpop.permute.xlu0 %4665
      %4667 = vrot.lane.b32.xlu0 %v4654, 25
      %v4668 = vpop.permute.xlu0 %4667
      %4669 = vrot.lane.b32.xlu0 %v4655, 25
      %v4670 = vpop.permute.xlu0 %4669
      %v4671 = vsel %vm1324, %v4662, %v4664
      %v4672 = vsel %vm1324, %v4664, %v4666
      %v4673 = vsel %vm1324, %v4666, %v4668
      %v4674 = vsel %vm1324, %v4668, %v4670
      %4679 = vst [vmem:[#allocation2 + $0x440] sm:$0xff] %v4671
      %4680 = vst [vmem:[#allocation2 + $0x448] sm:$0xff] %v4672
      %4681 = vst [vmem:[#allocation2 + $0x450] sm:$0xff] %v4673
      %4682 = vst [vmem:[#allocation2 + $0x458] sm:$0xff] %v4674
      %v4683 = vld [vmem:[#allocation3] sm:$0xff]
      %v4684 = vld [vmem:[#allocation3 + $0x8] sm:$0xff]
      %v4685 = vld [vmem:[#allocation3 + $0x10] sm:$0xff]
      %v4686 = vld [vmem:[#allocation3 + $0x18] sm:$0xff]
      %v4687 = vld [vmem:[#allocation3 + $0x20] sm:$0xff]
      %4693 = vrot.lane.b32.xlu0 %v4683, 24
      %v4694 = vpop.permute.xlu0 %4693
      %4695 = vrot.lane.b32.xlu0 %v4684, 24
      %v4696 = vpop.permute.xlu0 %4695
      %4697 = vrot.lane.b32.xlu0 %v4685, 24
      %v4698 = vpop.permute.xlu0 %4697
      %4699 = vrot.lane.b32.xlu0 %v4686, 24
      %v4700 = vpop.permute.xlu0 %4699
      %4701 = vrot.lane.b32.xlu0 %v4687, 24
      %v4702 = vpop.permute.xlu0 %4701
      %v4703 = vsel %vm1357, %v4694, %v4696
      %v4704 = vsel %vm1357, %v4696, %v4698
      %v4705 = vsel %vm1357, %v4698, %v4700
      %v4706 = vsel %vm1357, %v4700, %v4702
      %4711 = vst [vmem:[#allocation2 + $0x460] sm:$0xff] %v4703
      %4712 = vst [vmem:[#allocation2 + $0x468] sm:$0xff] %v4704
      %4713 = vst [vmem:[#allocation2 + $0x470] sm:$0xff] %v4705
      %4714 = vst [vmem:[#allocation2 + $0x478] sm:$0xff] %v4706
      %v4715 = vld [vmem:[#allocation3 + $0x8] sm:$0xff]
      %v4716 = vld [vmem:[#allocation3 + $0x10] sm:$0xff]
      %v4717 = vld [vmem:[#allocation3 + $0x18] sm:$0xff]
      %v4718 = vld [vmem:[#allocation3 + $0x20] sm:$0xff]
      %4719 = vst [vmem:[#allocation2 + $0x480] sm:$0xff] %v4715
      %4720 = vst [vmem:[#allocation2 + $0x488] sm:$0xff] %v4716
      %4721 = vst [vmem:[#allocation2 + $0x490] sm:$0xff] %v4717
      %4722 = vst [vmem:[#allocation2 + $0x498] sm:$0xff] %v4718
      %v4723 = vld [vmem:[#allocation3 + $0x8] sm:$0xff]
      %v4724 = vld [vmem:[#allocation3 + $0x10] sm:$0xff]
      %v4725 = vld [vmem:[#allocation3 + $0x18] sm:$0xff]
      %v4726 = vld [vmem:[#allocation3 + $0x20] sm:$0xff]
      %v4727 = vld [vmem:[#allocation3 + $0x28] sm:$0xff]
      %4733 = vrot.lane.b32.xlu0 %v4723, 127
      %v4734 = vpop.permute.xlu0 %4733
      %4735 = vrot.lane.b32.xlu0 %v4724, 127
      %v4736 = vpop.permute.xlu0 %4735
      %4737 = vrot.lane.b32.xlu0 %v4725, 127
      %v4738 = vpop.permute.xlu0 %4737
      %4739 = vrot.lane.b32.xlu0 %v4726, 127
      %v4740 = vpop.permute.xlu0 %4739
      %4741 = vrot.lane.b32.xlu0 %v4727, 127
      %v4742 = vpop.permute.xlu0 %4741
      %v4743 = vsel %vm235, %v4734, %v4736
      %v4744 = vsel %vm235, %v4736, %v4738
      %v4745 = vsel %vm235, %v4738, %v4740
      %v4746 = vsel %vm235, %v4740, %v4742
      %4751 = vst [vmem:[#allocation2 + $0x4a0] sm:$0xff] %v4743
      %4752 = vst [vmem:[#allocation2 + $0x4a8] sm:$0xff] %v4744
      %4753 = vst [vmem:[#allocation2 + $0x4b0] sm:$0xff] %v4745
      %4754 = vst [vmem:[#allocation2 + $0x4b8] sm:$0xff] %v4746
      %v4755 = vld [vmem:[#allocation3 + $0x8] sm:$0xff]
      %v4756 = vld [vmem:[#allocation3 + $0x10] sm:$0xff]
      %v4757 = vld [vmem:[#allocation3 + $0x18] sm:$0xff]
      %v4758 = vld [vmem:[#allocation3 + $0x20] sm:$0xff]
      %v4759 = vld [vmem:[#allocation3 + $0x28] sm:$0xff]
      %4765 = vrot.lane.b32.xlu0 %v4755, 126
      %v4766 = vpop.permute.xlu0 %4765
      %4767 = vrot.lane.b32.xlu0 %v4756, 126
      %v4768 = vpop.permute.xlu0 %4767
      %4769 = vrot.lane.b32.xlu0 %v4757, 126
      %v4770 = vpop.permute.xlu0 %4769
      %4771 = vrot.lane.b32.xlu0 %v4758, 126
      %v4772 = vpop.permute.xlu0 %4771
      %4773 = vrot.lane.b32.xlu0 %v4759, 126
      %v4774 = vpop.permute.xlu0 %4773
      %v4775 = vsel %vm268, %v4766, %v4768
      %v4776 = vsel %vm268, %v4768, %v4770
      %v4777 = vsel %vm268, %v4770, %v4772
      %v4778 = vsel %vm268, %v4772, %v4774
      %4783 = vst [vmem:[#allocation2 + $0x4c0] sm:$0xff] %v4775
      %4784 = vst [vmem:[#allocation2 + $0x4c8] sm:$0xff] %v4776
      %4785 = vst [vmem:[#allocation2 + $0x4d0] sm:$0xff] %v4777
      %4786 = vst [vmem:[#allocation2 + $0x4d8] sm:$0xff] %v4778
      %v4787 = vld [vmem:[#allocation3 + $0x8] sm:$0xff]
      %v4788 = vld [vmem:[#allocation3 + $0x10] sm:$0xff]
      %v4789 = vld [vmem:[#allocation3 + $0x18] sm:$0xff]
      %v4790 = vld [vmem:[#allocation3 + $0x20] sm:$0xff]
      %v4791 = vld [vmem:[#allocation3 + $0x28] sm:$0xff]
      %4797 = vrot.lane.b32.xlu0 %v4787, 125
      %v4798 = vpop.permute.xlu0 %4797
      %4799 = vrot.lane.b32.xlu0 %v4788, 125
      %v4800 = vpop.permute.xlu0 %4799
      %4801 = vrot.lane.b32.xlu0 %v4789, 125
      %v4802 = vpop.permute.xlu0 %4801
      %4803 = vrot.lane.b32.xlu0 %v4790, 125
      %v4804 = vpop.permute.xlu0 %4803
      %4805 = vrot.lane.b32.xlu0 %v4791, 125
      %v4806 = vpop.permute.xlu0 %4805
      %v4807 = vsel %vm301, %v4798, %v4800
      %v4808 = vsel %vm301, %v4800, %v4802
      %v4809 = vsel %vm301, %v4802, %v4804
      %v4810 = vsel %vm301, %v4804, %v4806
      %4815 = vst [vmem:[#allocation2 + $0x4e0] sm:$0xff] %v4807
      %4816 = vst [vmem:[#allocation2 + $0x4e8] sm:$0xff] %v4808
      %4817 = vst [vmem:[#allocation2 + $0x4f0] sm:$0xff] %v4809
      %4818 = vst [vmem:[#allocation2 + $0x4f8] sm:$0xff] %v4810
      %v4819 = vld [vmem:[#allocation3 + $0x8] sm:$0xff]
      %v4820 = vld [vmem:[#allocation3 + $0x10] sm:$0xff]
      %v4821 = vld [vmem:[#allocation3 + $0x18] sm:$0xff]
      %v4822 = vld [vmem:[#allocation3 + $0x20] sm:$0xff]
      %v4823 = vld [vmem:[#allocation3 + $0x28] sm:$0xff]
      %4829 = vrot.lane.b32.xlu0 %v4819, 124
      %v4830 = vpop.permute.xlu0 %4829
      %4831 = vrot.lane.b32.xlu0 %v4820, 124
      %v4832 = vpop.permute.xlu0 %4831
      %4833 = vrot.lane.b32.xlu0 %v4821, 124
      %v4834 = vpop.permute.xlu0 %4833
      %4835 = vrot.lane.b32.xlu0 %v4822, 124
      %v4836 = vpop.permute.xlu0 %4835
      %4837 = vrot.lane.b32.xlu0 %v4823, 124
      %v4838 = vpop.permute.xlu0 %4837
      %v4839 = vsel %vm334, %v4830, %v4832
      %v4840 = vsel %vm334, %v4832, %v4834
      %v4841 = vsel %vm334, %v4834, %v4836
      %v4842 = vsel %vm334, %v4836, %v4838
      %4847 = vst [vmem:[#allocation2 + $0x500] sm:$0xff] %v4839
      %4848 = vst [vmem:[#allocation2 + $0x508] sm:$0xff] %v4840
      %4849 = vst [vmem:[#allocation2 + $0x510] sm:$0xff] %v4841
      %4850 = vst [vmem:[#allocation2 + $0x518] sm:$0xff] %v4842
      %v4851 = vld [vmem:[#allocation3 + $0x8] sm:$0xff]
      %v4852 = vld [vmem:[#allocation3 + $0x10] sm:$0xff]
      %v4853 = vld [vmem:[#allocation3 + $0x18] sm:$0xff]
      %v4854 = vld [vmem:[#allocation3 + $0x20] sm:$0xff]
      %v4855 = vld [vmem:[#allocation3 + $0x28] sm:$0xff]
      %4861 = vrot.lane.b32.xlu0 %v4851, 123
      %v4862 = vpop.permute.xlu0 %4861
      %4863 = vrot.lane.b32.xlu0 %v4852, 123
      %v4864 = vpop.permute.xlu0 %4863
      %4865 = vrot.lane.b32.xlu0 %v4853, 123
      %v4866 = vpop.permute.xlu0 %4865
      %4867 = vrot.lane.b32.xlu0 %v4854, 123
      %v4868 = vpop.permute.xlu0 %4867
      %4869 = vrot.lane.b32.xlu0 %v4855, 123
      %v4870 = vpop.permute.xlu0 %4869
      %v4871 = vsel %vm367, %v4862, %v4864
      %v4872 = vsel %vm367, %v4864, %v4866
      %v4873 = vsel %vm367, %v4866, %v4868
      %v4874 = vsel %vm367, %v4868, %v4870
      %4879 = vst [vmem:[#allocation2 + $0x520] sm:$0xff] %v4871
      %4880 = vst [vmem:[#allocation2 + $0x528] sm:$0xff] %v4872
      %4881 = vst [vmem:[#allocation2 + $0x530] sm:$0xff] %v4873
      %4882 = vst [vmem:[#allocation2 + $0x538] sm:$0xff] %v4874
      %v4883 = vld [vmem:[#allocation3 + $0x8] sm:$0xff]
      %v4884 = vld [vmem:[#allocation3 + $0x10] sm:$0xff]
      %v4885 = vld [vmem:[#allocation3 + $0x18] sm:$0xff]
      %v4886 = vld [vmem:[#allocation3 + $0x20] sm:$0xff]
      %v4887 = vld [vmem:[#allocation3 + $0x28] sm:$0xff]
      %4893 = vrot.lane.b32.xlu0 %v4883, 122
      %v4894 = vpop.permute.xlu0 %4893
      %4895 = vrot.lane.b32.xlu0 %v4884, 122
      %v4896 = vpop.permute.xlu0 %4895
      %4897 = vrot.lane.b32.xlu0 %v4885, 122
      %v4898 = vpop.permute.xlu0 %4897
      %4899 = vrot.lane.b32.xlu0 %v4886, 122
      %v4900 = vpop.permute.xlu0 %4899
      %4901 = vrot.lane.b32.xlu0 %v4887, 122
      %v4902 = vpop.permute.xlu0 %4901
      %v4903 = vsel %vm400, %v4894, %v4896
      %v4904 = vsel %vm400, %v4896, %v4898
      %v4905 = vsel %vm400, %v4898, %v4900
      %v4906 = vsel %vm400, %v4900, %v4902
      %4911 = vst [vmem:[#allocation2 + $0x540] sm:$0xff] %v4903
      %4912 = vst [vmem:[#allocation2 + $0x548] sm:$0xff] %v4904
      %4913 = vst [vmem:[#allocation2 + $0x550] sm:$0xff] %v4905
      %4914 = vst [vmem:[#allocation2 + $0x558] sm:$0xff] %v4906
      %v4915 = vld [vmem:[#allocation3 + $0x8] sm:$0xff]
      %v4916 = vld [vmem:[#allocation3 + $0x10] sm:$0xff]
      %v4917 = vld [vmem:[#allocation3 + $0x18] sm:$0xff]
      %v4918 = vld [vmem:[#allocation3 + $0x20] sm:$0xff]
      %v4919 = vld [vmem:[#allocation3 + $0x28] sm:$0xff]
      %4925 = vrot.lane.b32.xlu0 %v4915, 121
      %v4926 = vpop.permute.xlu0 %4925
      %4927 = vrot.lane.b32.xlu0 %v4916, 121
      %v4928 = vpop.permute.xlu0 %4927
      %4929 = vrot.lane.b32.xlu0 %v4917, 121
      %v4930 = vpop.permute.xlu0 %4929
      %4931 = vrot.lane.b32.xlu0 %v4918, 121
      %v4932 = vpop.permute.xlu0 %4931
      %4933 = vrot.lane.b32.xlu0 %v4919, 121
      %v4934 = vpop.permute.xlu0 %4933
      %v4935 = vsel %vm433, %v4926, %v4928
      %v4936 = vsel %vm433, %v4928, %v4930
      %v4937 = vsel %vm433, %v4930, %v4932
      %v4938 = vsel %vm433, %v4932, %v4934
      %4943 = vst [vmem:[#allocation2 + $0x560] sm:$0xff] %v4935
      %4944 = vst [vmem:[#allocation2 + $0x568] sm:$0xff] %v4936
      %4945 = vst [vmem:[#allocation2 + $0x570] sm:$0xff] %v4937
      %4946 = vst [vmem:[#allocation2 + $0x578] sm:$0xff] %v4938
      %v4947 = vld [vmem:[#allocation3 + $0x8] sm:$0xff]
      %v4948 = vld [vmem:[#allocation3 + $0x10] sm:$0xff]
      %v4949 = vld [vmem:[#allocation3 + $0x18] sm:$0xff]
      %v4950 = vld [vmem:[#allocation3 + $0x20] sm:$0xff]
      %v4951 = vld [vmem:[#allocation3 + $0x28] sm:$0xff]
      %4957 = vrot.lane.b32.xlu0 %v4947, 120
      %v4958 = vpop.permute.xlu0 %4957
      %4959 = vrot.lane.b32.xlu0 %v4948, 120
      %v4960 = vpop.permute.xlu0 %4959
      %4961 = vrot.lane.b32.xlu0 %v4949, 120
      %v4962 = vpop.permute.xlu0 %4961
      %4963 = vrot.lane.b32.xlu0 %v4950, 120
      %v4964 = vpop.permute.xlu0 %4963
      %4965 = vrot.lane.b32.xlu0 %v4951, 120
      %v4966 = vpop.permute.xlu0 %4965
      %v4967 = vsel %vm466, %v4958, %v4960
      %v4968 = vsel %vm466, %v4960, %v4962
      %v4969 = vsel %vm466, %v4962, %v4964
      %v4970 = vsel %vm466, %v4964, %v4966
      %4975 = vst [vmem:[#allocation2 + $0x580] sm:$0xff] %v4967
      %4976 = vst [vmem:[#allocation2 + $0x588] sm:$0xff] %v4968
      %4977 = vst [vmem:[#allocation2 + $0x590] sm:$0xff] %v4969
      %4978 = vst [vmem:[#allocation2 + $0x598] sm:$0xff] %v4970
      %v4979 = vld [vmem:[#allocation3 + $0x8] sm:$0xff]
      %v4980 = vld [vmem:[#allocation3 + $0x10] sm:$0xff]
      %v4981 = vld [vmem:[#allocation3 + $0x18] sm:$0xff]
      %v4982 = vld [vmem:[#allocation3 + $0x20] sm:$0xff]
      %v4983 = vld [vmem:[#allocation3 + $0x28] sm:$0xff]
      %4989 = vrot.lane.b32.xlu0 %v4979, 96
      %v4990 = vpop.permute.xlu0 %4989
      %4991 = vrot.lane.b32.xlu0 %v4980, 96
      %v4992 = vpop.permute.xlu0 %4991
      %4993 = vrot.lane.b32.xlu0 %v4981, 96
      %v4994 = vpop.permute.xlu0 %4993
      %4995 = vrot.lane.b32.xlu0 %v4982, 96
      %v4996 = vpop.permute.xlu0 %4995
      %4997 = vrot.lane.b32.xlu0 %v4983, 96
      %v4998 = vpop.permute.xlu0 %4997
      %v4999 = vsel %vm499, %v4990, %v4992
      %v5000 = vsel %vm499, %v4992, %v4994
      %v5001 = vsel %vm499, %v4994, %v4996
      %v5002 = vsel %vm499, %v4996, %v4998
      %5007 = vst [vmem:[#allocation2 + $0x5a0] sm:$0xff] %v4999
      %5008 = vst [vmem:[#allocation2 + $0x5a8] sm:$0xff] %v5000
      %5009 = vst [vmem:[#allocation2 + $0x5b0] sm:$0xff] %v5001
      %5010 = vst [vmem:[#allocation2 + $0x5b8] sm:$0xff] %v5002
      %v5011 = vld [vmem:[#allocation3 + $0x8] sm:$0xff]
      %v5012 = vld [vmem:[#allocation3 + $0x10] sm:$0xff]
      %v5013 = vld [vmem:[#allocation3 + $0x18] sm:$0xff]
      %v5014 = vld [vmem:[#allocation3 + $0x20] sm:$0xff]
      %v5015 = vld [vmem:[#allocation3 + $0x28] sm:$0xff]
      %5021 = vrot.lane.b32.xlu0 %v5011, 95
      %v5022 = vpop.permute.xlu0 %5021
      %5023 = vrot.lane.b32.xlu0 %v5012, 95
      %v5024 = vpop.permute.xlu0 %5023
      %5025 = vrot.lane.b32.xlu0 %v5013, 95
      %v5026 = vpop.permute.xlu0 %5025
      %5027 = vrot.lane.b32.xlu0 %v5014, 95
      %v5028 = vpop.permute.xlu0 %5027
      %5029 = vrot.lane.b32.xlu0 %v5015, 95
      %v5030 = vpop.permute.xlu0 %5029
      %v5031 = vsel %vm532, %v5022, %v5024
      %v5032 = vsel %vm532, %v5024, %v5026
      %v5033 = vsel %vm532, %v5026, %v5028
      %v5034 = vsel %vm532, %v5028, %v5030
      %5039 = vst [vmem:[#allocation2 + $0x5c0] sm:$0xff] %v5031
      %5040 = vst [vmem:[#allocation2 + $0x5c8] sm:$0xff] %v5032
      %5041 = vst [vmem:[#allocation2 + $0x5d0] sm:$0xff] %v5033
      %5042 = vst [vmem:[#allocation2 + $0x5d8] sm:$0xff] %v5034
      %v5043 = vld [vmem:[#allocation3 + $0x8] sm:$0xff]
      %v5044 = vld [vmem:[#allocation3 + $0x10] sm:$0xff]
      %v5045 = vld [vmem:[#allocation3 + $0x18] sm:$0xff]
      %v5046 = vld [vmem:[#allocation3 + $0x20] sm:$0xff]
      %v5047 = vld [vmem:[#allocation3 + $0x28] sm:$0xff]
      %5053 = vrot.lane.b32.xlu0 %v5043, 94
      %v5054 = vpop.permute.xlu0 %5053
      %5055 = vrot.lane.b32.xlu0 %v5044, 94
      %v5056 = vpop.permute.xlu0 %5055
      %5057 = vrot.lane.b32.xlu0 %v5045, 94
      %v5058 = vpop.permute.xlu0 %5057
      %5059 = vrot.lane.b32.xlu0 %v5046, 94
      %v5060 = vpop.permute.xlu0 %5059
      %5061 = vrot.lane.b32.xlu0 %v5047, 94
      %v5062 = vpop.permute.xlu0 %5061
      %v5063 = vsel %vm565, %v5054, %v5056
      %v5064 = vsel %vm565, %v5056, %v5058
      %v5065 = vsel %vm565, %v5058, %v5060
      %v5066 = vsel %vm565, %v5060, %v5062
      %5071 = vst [vmem:[#allocation2 + $0x5e0] sm:$0xff] %v5063
      %5072 = vst [vmem:[#allocation2 + $0x5e8] sm:$0xff] %v5064
      %5073 = vst [vmem:[#allocation2 + $0x5f0] sm:$0xff] %v5065
      %5074 = vst [vmem:[#allocation2 + $0x5f8] sm:$0xff] %v5066
      %v5075 = vld [vmem:[#allocation3 + $0x8] sm:$0xff]
      %v5076 = vld [vmem:[#allocation3 + $0x10] sm:$0xff]
      %v5077 = vld [vmem:[#allocation3 + $0x18] sm:$0xff]
      %v5078 = vld [vmem:[#allocation3 + $0x20] sm:$0xff]
      %v5079 = vld [vmem:[#allocation3 + $0x28] sm:$0xff]
      %5085 = vrot.lane.b32.xlu0 %v5075, 93
      %v5086 = vpop.permute.xlu0 %5085
      %5087 = vrot.lane.b32.xlu0 %v5076, 93
      %v5088 = vpop.permute.xlu0 %5087
      %5089 = vrot.lane.b32.xlu0 %v5077, 93
      %v5090 = vpop.permute.xlu0 %5089
      %5091 = vrot.lane.b32.xlu0 %v5078, 93
      %v5092 = vpop.permute.xlu0 %5091
      %5093 = vrot.lane.b32.xlu0 %v5079, 93
      %v5094 = vpop.permute.xlu0 %5093
      %v5095 = vsel %vm598, %v5086, %v5088
      %v5096 = vsel %vm598, %v5088, %v5090
      %v5097 = vsel %vm598, %v5090, %v5092
      %v5098 = vsel %vm598, %v5092, %v5094
      %5103 = vst [vmem:[#allocation2 + $0x600] sm:$0xff] %v5095
      %5104 = vst [vmem:[#allocation2 + $0x608] sm:$0xff] %v5096
      %5105 = vst [vmem:[#allocation2 + $0x610] sm:$0xff] %v5097
      %5106 = vst [vmem:[#allocation2 + $0x618] sm:$0xff] %v5098
      %v5107 = vld [vmem:[#allocation3 + $0x8] sm:$0xff]
      %v5108 = vld [vmem:[#allocation3 + $0x10] sm:$0xff]
      %v5109 = vld [vmem:[#allocation3 + $0x18] sm:$0xff]
      %v5110 = vld [vmem:[#allocation3 + $0x20] sm:$0xff]
      %v5111 = vld [vmem:[#allocation3 + $0x28] sm:$0xff]
      %5117 = vrot.lane.b32.xlu0 %v5107, 92
      %v5118 = vpop.permute.xlu0 %5117
      %5119 = vrot.lane.b32.xlu0 %v5108, 92
      %v5120 = vpop.permute.xlu0 %5119
      %5121 = vrot.lane.b32.xlu0 %v5109, 92
      %v5122 = vpop.permute.xlu0 %5121
      %5123 = vrot.lane.b32.xlu0 %v5110, 92
      %v5124 = vpop.permute.xlu0 %5123
      %5125 = vrot.lane.b32.xlu0 %v5111, 92
      %v5126 = vpop.permute.xlu0 %5125
      %v5127 = vsel %vm631, %v5118, %v5120
      %v5128 = vsel %vm631, %v5120, %v5122
      %v5129 = vsel %vm631, %v5122, %v5124
      %v5130 = vsel %vm631, %v5124, %v5126
      %5135 = vst [vmem:[#allocation2 + $0x620] sm:$0xff] %v5127
      %5136 = vst [vmem:[#allocation2 + $0x628] sm:$0xff] %v5128
      %5137 = vst [vmem:[#allocation2 + $0x630] sm:$0xff] %v5129
      %5138 = vst [vmem:[#allocation2 + $0x638] sm:$0xff] %v5130
      %v5139 = vld [vmem:[#allocation3 + $0x8] sm:$0xff]
      %v5140 = vld [vmem:[#allocation3 + $0x10] sm:$0xff]
      %v5141 = vld [vmem:[#allocation3 + $0x18] sm:$0xff]
      %v5142 = vld [vmem:[#allocation3 + $0x20] sm:$0xff]
      %v5143 = vld [vmem:[#allocation3 + $0x28] sm:$0xff]
      %5149 = vrot.lane.b32.xlu0 %v5139, 91
      %v5150 = vpop.permute.xlu0 %5149
      %5151 = vrot.lane.b32.xlu0 %v5140, 91
      %v5152 = vpop.permute.xlu0 %5151
      %5153 = vrot.lane.b32.xlu0 %v5141, 91
      %v5154 = vpop.permute.xlu0 %5153
      %5155 = vrot.lane.b32.xlu0 %v5142, 91
      %v5156 = vpop.permute.xlu0 %5155
      %5157 = vrot.lane.b32.xlu0 %v5143, 91
      %v5158 = vpop.permute.xlu0 %5157
      %v5159 = vsel %vm664, %v5150, %v5152
      %v5160 = vsel %vm664, %v5152, %v5154
      %v5161 = vsel %vm664, %v5154, %v5156
      %v5162 = vsel %vm664, %v5156, %v5158
      %5167 = vst [vmem:[#allocation2 + $0x640] sm:$0xff] %v5159
      %5168 = vst [vmem:[#allocation2 + $0x648] sm:$0xff] %v5160
      %5169 = vst [vmem:[#allocation2 + $0x650] sm:$0xff] %v5161
      %5170 = vst [vmem:[#allocation2 + $0x658] sm:$0xff] %v5162
      %v5171 = vld [vmem:[#allocation3 + $0x8] sm:$0xff]
      %v5172 = vld [vmem:[#allocation3 + $0x10] sm:$0xff]
      %v5173 = vld [vmem:[#allocation3 + $0x18] sm:$0xff]
      %v5174 = vld [vmem:[#allocation3 + $0x20] sm:$0xff]
      %v5175 = vld [vmem:[#allocation3 + $0x28] sm:$0xff]
      %5181 = vrot.lane.b32.xlu0 %v5171, 90
      %v5182 = vpop.permute.xlu0 %5181
      %5183 = vrot.lane.b32.xlu0 %v5172, 90
      %v5184 = vpop.permute.xlu0 %5183
      %5185 = vrot.lane.b32.xlu0 %v5173, 90
      %v5186 = vpop.permute.xlu0 %5185
      %5187 = vrot.lane.b32.xlu0 %v5174, 90
      %v5188 = vpop.permute.xlu0 %5187
      %5189 = vrot.lane.b32.xlu0 %v5175, 90
      %v5190 = vpop.permute.xlu0 %5189
      %v5191 = vsel %vm697, %v5182, %v5184
      %v5192 = vsel %vm697, %v5184, %v5186
      %v5193 = vsel %vm697, %v5186, %v5188
      %v5194 = vsel %vm697, %v5188, %v5190
      %5199 = vst [vmem:[#allocation2 + $0x660] sm:$0xff] %v5191
      %5200 = vst [vmem:[#allocation2 + $0x668] sm:$0xff] %v5192
      %5201 = vst [vmem:[#allocation2 + $0x670] sm:$0xff] %v5193
      %5202 = vst [vmem:[#allocation2 + $0x678] sm:$0xff] %v5194
      %v5203 = vld [vmem:[#allocation3 + $0x8] sm:$0xff]
      %v5204 = vld [vmem:[#allocation3 + $0x10] sm:$0xff]
      %v5205 = vld [vmem:[#allocation3 + $0x18] sm:$0xff]
      %v5206 = vld [vmem:[#allocation3 + $0x20] sm:$0xff]
      %v5207 = vld [vmem:[#allocation3 + $0x28] sm:$0xff]
      %5213 = vrot.lane.b32.xlu0 %v5203, 89
      %v5214 = vpop.permute.xlu0 %5213
      %5215 = vrot.lane.b32.xlu0 %v5204, 89
      %v5216 = vpop.permute.xlu0 %5215
      %5217 = vrot.lane.b32.xlu0 %v5205, 89
      %v5218 = vpop.permute.xlu0 %5217
      %5219 = vrot.lane.b32.xlu0 %v5206, 89
      %v5220 = vpop.permute.xlu0 %5219
      %5221 = vrot.lane.b32.xlu0 %v5207, 89
      %v5222 = vpop.permute.xlu0 %5221
      %v5223 = vsel %vm730, %v5214, %v5216
      %v5224 = vsel %vm730, %v5216, %v5218
      %v5225 = vsel %vm730, %v5218, %v5220
      %v5226 = vsel %vm730, %v5220, %v5222
      %5231 = vst [vmem:[#allocation2 + $0x680] sm:$0xff] %v5223
      %5232 = vst [vmem:[#allocation2 + $0x688] sm:$0xff] %v5224
      %5233 = vst [vmem:[#allocation2 + $0x690] sm:$0xff] %v5225
      %5234 = vst [vmem:[#allocation2 + $0x698] sm:$0xff] %v5226
      %v5235 = vld [vmem:[#allocation3 + $0x8] sm:$0xff]
      %v5236 = vld [vmem:[#allocation3 + $0x10] sm:$0xff]
      %v5237 = vld [vmem:[#allocation3 + $0x18] sm:$0xff]
      %v5238 = vld [vmem:[#allocation3 + $0x20] sm:$0xff]
      %v5239 = vld [vmem:[#allocation3 + $0x28] sm:$0xff]
      %5245 = vrot.lane.b32.xlu0 %v5235, 88
      %v5246 = vpop.permute.xlu0 %5245
      %5247 = vrot.lane.b32.xlu0 %v5236, 88
      %v5248 = vpop.permute.xlu0 %5247
      %5249 = vrot.lane.b32.xlu0 %v5237, 88
      %v5250 = vpop.permute.xlu0 %5249
      %5251 = vrot.lane.b32.xlu0 %v5238, 88
      %v5252 = vpop.permute.xlu0 %5251
      %5253 = vrot.lane.b32.xlu0 %v5239, 88
      %v5254 = vpop.permute.xlu0 %5253
      %v5255 = vsel %vm763, %v5246, %v5248
      %v5256 = vsel %vm763, %v5248, %v5250
      %v5257 = vsel %vm763, %v5250, %v5252
      %v5258 = vsel %vm763, %v5252, %v5254
      %5263 = vst [vmem:[#allocation2 + $0x6a0] sm:$0xff] %v5255
      %5264 = vst [vmem:[#allocation2 + $0x6a8] sm:$0xff] %v5256
      %5265 = vst [vmem:[#allocation2 + $0x6b0] sm:$0xff] %v5257
      %5266 = vst [vmem:[#allocation2 + $0x6b8] sm:$0xff] %v5258
      %v5267 = vld [vmem:[#allocation3 + $0x8] sm:$0xff]
      %v5268 = vld [vmem:[#allocation3 + $0x10] sm:$0xff]
      %v5269 = vld [vmem:[#allocation3 + $0x18] sm:$0xff]
      %v5270 = vld [vmem:[#allocation3 + $0x20] sm:$0xff]
      %v5271 = vld [vmem:[#allocation3 + $0x28] sm:$0xff]
      %5277 = vrot.lane.b32.xlu0 %v5267, 64
      %v5278 = vpop.permute.xlu0 %5277
      %5279 = vrot.lane.b32.xlu0 %v5268, 64
      %v5280 = vpop.permute.xlu0 %5279
      %5281 = vrot.lane.b32.xlu0 %v5269, 64
      %v5282 = vpop.permute.xlu0 %5281
      %5283 = vrot.lane.b32.xlu0 %v5270, 64
      %v5284 = vpop.permute.xlu0 %5283
      %5285 = vrot.lane.b32.xlu0 %v5271, 64
      %v5286 = vpop.permute.xlu0 %5285
      %v5287 = vsel %vm796, %v5278, %v5280
      %v5288 = vsel %vm796, %v5280, %v5282
      %v5289 = vsel %vm796, %v5282, %v5284
      %v5290 = vsel %vm796, %v5284, %v5286
      %5295 = vst [vmem:[#allocation2 + $0x6c0] sm:$0xff] %v5287
      %5296 = vst [vmem:[#allocation2 + $0x6c8] sm:$0xff] %v5288
      %5297 = vst [vmem:[#allocation2 + $0x6d0] sm:$0xff] %v5289
      %5298 = vst [vmem:[#allocation2 + $0x6d8] sm:$0xff] %v5290
      %v5299 = vld [vmem:[#allocation3 + $0x8] sm:$0xff]
      %v5300 = vld [vmem:[#allocation3 + $0x10] sm:$0xff]
      %v5301 = vld [vmem:[#allocation3 + $0x18] sm:$0xff]
      %v5302 = vld [vmem:[#allocation3 + $0x20] sm:$0xff]
      %v5303 = vld [vmem:[#allocation3 + $0x28] sm:$0xff]
      %5309 = vrot.lane.b32.xlu0 %v5299, 63
      %v5310 = vpop.permute.xlu0 %5309
      %5311 = vrot.lane.b32.xlu0 %v5300, 63
      %v5312 = vpop.permute.xlu0 %5311
      %5313 = vrot.lane.b32.xlu0 %v5301, 63
      %v5314 = vpop.permute.xlu0 %5313
      %5315 = vrot.lane.b32.xlu0 %v5302, 63
      %v5316 = vpop.permute.xlu0 %5315
      %5317 = vrot.lane.b32.xlu0 %v5303, 63
      %v5318 = vpop.permute.xlu0 %5317
      %v5319 = vsel %vm829, %v5310, %v5312
      %v5320 = vsel %vm829, %v5312, %v5314
      %v5321 = vsel %vm829, %v5314, %v5316
      %v5322 = vsel %vm829, %v5316, %v5318
      %5327 = vst [vmem:[#allocation2 + $0x6e0] sm:$0xff] %v5319
      %5328 = vst [vmem:[#allocation2 + $0x6e8] sm:$0xff] %v5320
      %5329 = vst [vmem:[#allocation2 + $0x6f0] sm:$0xff] %v5321
      %5330 = vst [vmem:[#allocation2 + $0x6f8] sm:$0xff] %v5322
      %v5331 = vld [vmem:[#allocation3 + $0x8] sm:$0xff]
      %v5332 = vld [vmem:[#allocation3 + $0x10] sm:$0xff]
      %v5333 = vld [vmem:[#allocation3 + $0x18] sm:$0xff]
      %v5334 = vld [vmem:[#allocation3 + $0x20] sm:$0xff]
      %v5335 = vld [vmem:[#allocation3 + $0x28] sm:$0xff]
      %5341 = vrot.lane.b32.xlu0 %v5331, 62
      %v5342 = vpop.permute.xlu0 %5341
      %5343 = vrot.lane.b32.xlu0 %v5332, 62
      %v5344 = vpop.permute.xlu0 %5343
      %5345 = vrot.lane.b32.xlu0 %v5333, 62
      %v5346 = vpop.permute.xlu0 %5345
      %5347 = vrot.lane.b32.xlu0 %v5334, 62
      %v5348 = vpop.permute.xlu0 %5347
      %5349 = vrot.lane.b32.xlu0 %v5335, 62
      %v5350 = vpop.permute.xlu0 %5349
      %v5351 = vsel %vm862, %v5342, %v5344
      %v5352 = vsel %vm862, %v5344, %v5346
      %v5353 = vsel %vm862, %v5346, %v5348
      %v5354 = vsel %vm862, %v5348, %v5350
      %5359 = vst [vmem:[#allocation2 + $0x700] sm:$0xff] %v5351
      %5360 = vst [vmem:[#allocation2 + $0x708] sm:$0xff] %v5352
      %5361 = vst [vmem:[#allocation2 + $0x710] sm:$0xff] %v5353
      %5362 = vst [vmem:[#allocation2 + $0x718] sm:$0xff] %v5354
      %v5363 = vld [vmem:[#allocation3 + $0x8] sm:$0xff]
      %v5364 = vld [vmem:[#allocation3 + $0x10] sm:$0xff]
      %v5365 = vld [vmem:[#allocation3 + $0x18] sm:$0xff]
      %v5366 = vld [vmem:[#allocation3 + $0x20] sm:$0xff]
      %v5367 = vld [vmem:[#allocation3 + $0x28] sm:$0xff]
      %5373 = vrot.lane.b32.xlu0 %v5363, 61
      %v5374 = vpop.permute.xlu0 %5373
      %5375 = vrot.lane.b32.xlu0 %v5364, 61
      %v5376 = vpop.permute.xlu0 %5375
      %5377 = vrot.lane.b32.xlu0 %v5365, 61
      %v5378 = vpop.permute.xlu0 %5377
      %5379 = vrot.lane.b32.xlu0 %v5366, 61
      %v5380 = vpop.permute.xlu0 %5379
      %5381 = vrot.lane.b32.xlu0 %v5367, 61
      %v5382 = vpop.permute.xlu0 %5381
      %v5383 = vsel %vm895, %v5374, %v5376
      %v5384 = vsel %vm895, %v5376, %v5378
      %v5385 = vsel %vm895, %v5378, %v5380
      %v5386 = vsel %vm895, %v5380, %v5382
      %5391 = vst [vmem:[#allocation2 + $0x720] sm:$0xff] %v5383
      %5392 = vst [vmem:[#allocation2 + $0x728] sm:$0xff] %v5384
      %5393 = vst [vmem:[#allocation2 + $0x730] sm:$0xff] %v5385
      %5394 = vst [vmem:[#allocation2 + $0x738] sm:$0xff] %v5386
      %v5395 = vld [vmem:[#allocation3 + $0x8] sm:$0xff]
      %v5396 = vld [vmem:[#allocation3 + $0x10] sm:$0xff]
      %v5397 = vld [vmem:[#allocation3 + $0x18] sm:$0xff]
      %v5398 = vld [vmem:[#allocation3 + $0x20] sm:$0xff]
      %v5399 = vld [vmem:[#allocation3 + $0x28] sm:$0xff]
      %5405 = vrot.lane.b32.xlu0 %v5395, 60
      %v5406 = vpop.permute.xlu0 %5405
      %5407 = vrot.lane.b32.xlu0 %v5396, 60
      %v5408 = vpop.permute.xlu0 %5407
      %5409 = vrot.lane.b32.xlu0 %v5397, 60
      %v5410 = vpop.permute.xlu0 %5409
      %5411 = vrot.lane.b32.xlu0 %v5398, 60
      %v5412 = vpop.permute.xlu0 %5411
      %5413 = vrot.lane.b32.xlu0 %v5399, 60
      %v5414 = vpop.permute.xlu0 %5413
      %v5415 = vsel %vm928, %v5406, %v5408
      %v5416 = vsel %vm928, %v5408, %v5410
      %v5417 = vsel %vm928, %v5410, %v5412
      %v5418 = vsel %vm928, %v5412, %v5414
      %5423 = vst [vmem:[#allocation2 + $0x740] sm:$0xff] %v5415
      %5424 = vst [vmem:[#allocation2 + $0x748] sm:$0xff] %v5416
      %5425 = vst [vmem:[#allocation2 + $0x750] sm:$0xff] %v5417
      %5426 = vst [vmem:[#allocation2 + $0x758] sm:$0xff] %v5418
      %v5427 = vld [vmem:[#allocation3 + $0x8] sm:$0xff]
      %v5428 = vld [vmem:[#allocation3 + $0x10] sm:$0xff]
      %v5429 = vld [vmem:[#allocation3 + $0x18] sm:$0xff]
      %v5430 = vld [vmem:[#allocation3 + $0x20] sm:$0xff]
      %v5431 = vld [vmem:[#allocation3 + $0x28] sm:$0xff]
      %5437 = vrot.lane.b32.xlu0 %v5427, 59
      %v5438 = vpop.permute.xlu0 %5437
      %5439 = vrot.lane.b32.xlu0 %v5428, 59
      %v5440 = vpop.permute.xlu0 %5439
      %5441 = vrot.lane.b32.xlu0 %v5429, 59
      %v5442 = vpop.permute.xlu0 %5441
      %5443 = vrot.lane.b32.xlu0 %v5430, 59
      %v5444 = vpop.permute.xlu0 %5443
      %5445 = vrot.lane.b32.xlu0 %v5431, 59
      %v5446 = vpop.permute.xlu0 %5445
      %v5447 = vsel %vm961, %v5438, %v5440
      %v5448 = vsel %vm961, %v5440, %v5442
      %v5449 = vsel %vm961, %v5442, %v5444
      %v5450 = vsel %vm961, %v5444, %v5446
      %5455 = vst [vmem:[#allocation2 + $0x760] sm:$0xff] %v5447
      %5456 = vst [vmem:[#allocation2 + $0x768] sm:$0xff] %v5448
      %5457 = vst [vmem:[#allocation2 + $0x770] sm:$0xff] %v5449
      %5458 = vst [vmem:[#allocation2 + $0x778] sm:$0xff] %v5450
      %v5459 = vld [vmem:[#allocation3 + $0x8] sm:$0xff]
      %v5460 = vld [vmem:[#allocation3 + $0x10] sm:$0xff]
      %v5461 = vld [vmem:[#allocation3 + $0x18] sm:$0xff]
      %v5462 = vld [vmem:[#allocation3 + $0x20] sm:$0xff]
      %v5463 = vld [vmem:[#allocation3 + $0x28] sm:$0xff]
      %5469 = vrot.lane.b32.xlu0 %v5459, 58
      %v5470 = vpop.permute.xlu0 %5469
      %5471 = vrot.lane.b32.xlu0 %v5460, 58
      %v5472 = vpop.permute.xlu0 %5471
      %5473 = vrot.lane.b32.xlu0 %v5461, 58
      %v5474 = vpop.permute.xlu0 %5473
      %5475 = vrot.lane.b32.xlu0 %v5462, 58
      %v5476 = vpop.permute.xlu0 %5475
      %5477 = vrot.lane.b32.xlu0 %v5463, 58
      %v5478 = vpop.permute.xlu0 %5477
      %v5479 = vsel %vm994, %v5470, %v5472
      %v5480 = vsel %vm994, %v5472, %v5474
      %v5481 = vsel %vm994, %v5474, %v5476
      %v5482 = vsel %vm994, %v5476, %v5478
      %5487 = vst [vmem:[#allocation2 + $0x780] sm:$0xff] %v5479
      %5488 = vst [vmem:[#allocation2 + $0x788] sm:$0xff] %v5480
      %5489 = vst [vmem:[#allocation2 + $0x790] sm:$0xff] %v5481
      %5490 = vst [vmem:[#allocation2 + $0x798] sm:$0xff] %v5482
      %v5491 = vld [vmem:[#allocation3 + $0x8] sm:$0xff]
      %v5492 = vld [vmem:[#allocation3 + $0x10] sm:$0xff]
      %v5493 = vld [vmem:[#allocation3 + $0x18] sm:$0xff]
      %v5494 = vld [vmem:[#allocation3 + $0x20] sm:$0xff]
      %v5495 = vld [vmem:[#allocation3 + $0x28] sm:$0xff]
      %5501 = vrot.lane.b32.xlu0 %v5491, 57
      %v5502 = vpop.permute.xlu0 %5501
      %5503 = vrot.lane.b32.xlu0 %v5492, 57
      %v5504 = vpop.permute.xlu0 %5503
      %5505 = vrot.lane.b32.xlu0 %v5493, 57
      %v5506 = vpop.permute.xlu0 %5505
      %5507 = vrot.lane.b32.xlu0 %v5494, 57
      %v5508 = vpop.permute.xlu0 %5507
      %5509 = vrot.lane.b32.xlu0 %v5495, 57
      %v5510 = vpop.permute.xlu0 %5509
      %v5511 = vsel %vm1027, %v5502, %v5504
      %v5512 = vsel %vm1027, %v5504, %v5506
      %v5513 = vsel %vm1027, %v5506, %v5508
      %v5514 = vsel %vm1027, %v5508, %v5510
      %5519 = vst [vmem:[#allocation2 + $0x7a0] sm:$0xff] %v5511
      %5520 = vst [vmem:[#allocation2 + $0x7a8] sm:$0xff] %v5512
      %5521 = vst [vmem:[#allocation2 + $0x7b0] sm:$0xff] %v5513
      %5522 = vst [vmem:[#allocation2 + $0x7b8] sm:$0xff] %v5514
      %v5523 = vld [vmem:[#allocation3 + $0x8] sm:$0xff]
      %v5524 = vld [vmem:[#allocation3 + $0x10] sm:$0xff]
      %v5525 = vld [vmem:[#allocation3 + $0x18] sm:$0xff]
      %v5526 = vld [vmem:[#allocation3 + $0x20] sm:$0xff]
      %v5527 = vld [vmem:[#allocation3 + $0x28] sm:$0xff]
      %5533 = vrot.lane.b32.xlu0 %v5523, 56
      %v5534 = vpop.permute.xlu0 %5533
      %5535 = vrot.lane.b32.xlu0 %v5524, 56
      %v5536 = vpop.permute.xlu0 %5535
      %5537 = vrot.lane.b32.xlu0 %v5525, 56
      %v5538 = vpop.permute.xlu0 %5537
      %5539 = vrot.lane.b32.xlu0 %v5526, 56
      %v5540 = vpop.permute.xlu0 %5539
      %5541 = vrot.lane.b32.xlu0 %v5527, 56
      %v5542 = vpop.permute.xlu0 %5541
      %v5543 = vsel %vm1060, %v5534, %v5536
      %v5544 = vsel %vm1060, %v5536, %v5538
      %v5545 = vsel %vm1060, %v5538, %v5540
      %v5546 = vsel %vm1060, %v5540, %v5542
      %5551 = vst [vmem:[#allocation2 + $0x7c0] sm:$0xff] %v5543
      %5552 = vst [vmem:[#allocation2 + $0x7c8] sm:$0xff] %v5544
      %5553 = vst [vmem:[#allocation2 + $0x7d0] sm:$0xff] %v5545
      %5554 = vst [vmem:[#allocation2 + $0x7d8] sm:$0xff] %v5546
      %v5555 = vld [vmem:[#allocation3 + $0x8] sm:$0xff]
      %v5556 = vld [vmem:[#allocation3 + $0x10] sm:$0xff]
      %v5557 = vld [vmem:[#allocation3 + $0x18] sm:$0xff]
      %v5558 = vld [vmem:[#allocation3 + $0x20] sm:$0xff]
      %v5559 = vld [vmem:[#allocation3 + $0x28] sm:$0xff]
      %5565 = vrot.lane.b32.xlu0 %v5555, 32
      %v5566 = vpop.permute.xlu0 %5565
      %5567 = vrot.lane.b32.xlu0 %v5556, 32
      %v5568 = vpop.permute.xlu0 %5567
      %5569 = vrot.lane.b32.xlu0 %v5557, 32
      %v5570 = vpop.permute.xlu0 %5569
      %5571 = vrot.lane.b32.xlu0 %v5558, 32
      %v5572 = vpop.permute.xlu0 %5571
      %5573 = vrot.lane.b32.xlu0 %v5559, 32
      %v5574 = vpop.permute.xlu0 %5573
      %v5575 = vsel %vm1093, %v5566, %v5568
      %v5576 = vsel %vm1093, %v5568, %v5570
      %v5577 = vsel %vm1093, %v5570, %v5572
      %v5578 = vsel %vm1093, %v5572, %v5574
      %5583 = vst [vmem:[#allocation2 + $0x7e0] sm:$0xff] %v5575
      %5584 = vst [vmem:[#allocation2 + $0x7e8] sm:$0xff] %v5576
      %5585 = vst [vmem:[#allocation2 + $0x7f0] sm:$0xff] %v5577
      %5586 = vst [vmem:[#allocation2 + $0x7f8] sm:$0xff] %v5578
      %v5587 = vld [vmem:[#allocation3 + $0x8] sm:$0xff]
      %v5588 = vld [vmem:[#allocation3 + $0x10] sm:$0xff]
      %v5589 = vld [vmem:[#allocation3 + $0x18] sm:$0xff]
      %v5590 = vld [vmem:[#allocation3 + $0x20] sm:$0xff]
      %v5591 = vld [vmem:[#allocation3 + $0x28] sm:$0xff]
      %5597 = vrot.lane.b32.xlu0 %v5587, 31
      %v5598 = vpop.permute.xlu0 %5597
      %5599 = vrot.lane.b32.xlu0 %v5588, 31
      %v5600 = vpop.permute.xlu0 %5599
      %5601 = vrot.lane.b32.xlu0 %v5589, 31
      %v5602 = vpop.permute.xlu0 %5601
      %5603 = vrot.lane.b32.xlu0 %v5590, 31
      %v5604 = vpop.permute.xlu0 %5603
      %5605 = vrot.lane.b32.xlu0 %v5591, 31
      %v5606 = vpop.permute.xlu0 %5605
      %v5607 = vsel %vm1126, %v5598, %v5600
      %v5608 = vsel %vm1126, %v5600, %v5602
      %v5609 = vsel %vm1126, %v5602, %v5604
      %v5610 = vsel %vm1126, %v5604, %v5606
      %5615 = vst [vmem:[#allocation2 + $0x800] sm:$0xff] %v5607
      %5616 = vst [vmem:[#allocation2 + $0x808] sm:$0xff] %v5608
      %5617 = vst [vmem:[#allocation2 + $0x810] sm:$0xff] %v5609
      %5618 = vst [vmem:[#allocation2 + $0x818] sm:$0xff] %v5610
      %v5619 = vld [vmem:[#allocation3 + $0x8] sm:$0xff]
      %v5620 = vld [vmem:[#allocation3 + $0x10] sm:$0xff]
      %v5621 = vld [vmem:[#allocation3 + $0x18] sm:$0xff]
      %v5622 = vld [vmem:[#allocation3 + $0x20] sm:$0xff]
      %v5623 = vld [vmem:[#allocation3 + $0x28] sm:$0xff]
      %5629 = vrot.lane.b32.xlu0 %v5619, 30
      %v5630 = vpop.permute.xlu0 %5629
      %5631 = vrot.lane.b32.xlu0 %v5620, 30
      %v5632 = vpop.permute.xlu0 %5631
      %5633 = vrot.lane.b32.xlu0 %v5621, 30
      %v5634 = vpop.permute.xlu0 %5633
      %5635 = vrot.lane.b32.xlu0 %v5622, 30
      %v5636 = vpop.permute.xlu0 %5635
      %5637 = vrot.lane.b32.xlu0 %v5623, 30
      %v5638 = vpop.permute.xlu0 %5637
      %v5639 = vsel %vm1159, %v5630, %v5632
      %v5640 = vsel %vm1159, %v5632, %v5634
      %v5641 = vsel %vm1159, %v5634, %v5636
      %v5642 = vsel %vm1159, %v5636, %v5638
      %5647 = vst [vmem:[#allocation2 + $0x820] sm:$0xff] %v5639
      %5648 = vst [vmem:[#allocation2 + $0x828] sm:$0xff] %v5640
      %5649 = vst [vmem:[#allocation2 + $0x830] sm:$0xff] %v5641
      %5650 = vst [vmem:[#allocation2 + $0x838] sm:$0xff] %v5642
      %v5651 = vld [vmem:[#allocation3 + $0x8] sm:$0xff]
      %v5652 = vld [vmem:[#allocation3 + $0x10] sm:$0xff]
      %v5653 = vld [vmem:[#allocation3 + $0x18] sm:$0xff]
      %v5654 = vld [vmem:[#allocation3 + $0x20] sm:$0xff]
      %v5655 = vld [vmem:[#allocation3 + $0x28] sm:$0xff]
      %5661 = vrot.lane.b32.xlu0 %v5651, 29
      %v5662 = vpop.permute.xlu0 %5661
      %5663 = vrot.lane.b32.xlu0 %v5652, 29
      %v5664 = vpop.permute.xlu0 %5663
      %5665 = vrot.lane.b32.xlu0 %v5653, 29
      %v5666 = vpop.permute.xlu0 %5665
      %5667 = vrot.lane.b32.xlu0 %v5654, 29
      %v5668 = vpop.permute.xlu0 %5667
      %5669 = vrot.lane.b32.xlu0 %v5655, 29
      %v5670 = vpop.permute.xlu0 %5669
      %v5671 = vsel %vm1192, %v5662, %v5664
      %v5672 = vsel %vm1192, %v5664, %v5666
      %v5673 = vsel %vm1192, %v5666, %v5668
      %v5674 = vsel %vm1192, %v5668, %v5670
      %5679 = vst [vmem:[#allocation2 + $0x840] sm:$0xff] %v5671
      %5680 = vst [vmem:[#allocation2 + $0x848] sm:$0xff] %v5672
      %5681 = vst [vmem:[#allocation2 + $0x850] sm:$0xff] %v5673
      %5682 = vst [vmem:[#allocation2 + $0x858] sm:$0xff] %v5674
      %v5683 = vld [vmem:[#allocation3 + $0x8] sm:$0xff]
      %v5684 = vld [vmem:[#allocation3 + $0x10] sm:$0xff]
      %v5685 = vld [vmem:[#allocation3 + $0x18] sm:$0xff]
      %v5686 = vld [vmem:[#allocation3 + $0x20] sm:$0xff]
      %v5687 = vld [vmem:[#allocation3 + $0x28] sm:$0xff]
      %5693 = vrot.lane.b32.xlu0 %v5683, 28
      %v5694 = vpop.permute.xlu0 %5693
      %5695 = vrot.lane.b32.xlu0 %v5684, 28
      %v5696 = vpop.permute.xlu0 %5695
      %5697 = vrot.lane.b32.xlu0 %v5685, 28
      %v5698 = vpop.permute.xlu0 %5697
      %5699 = vrot.lane.b32.xlu0 %v5686, 28
      %v5700 = vpop.permute.xlu0 %5699
      %5701 = vrot.lane.b32.xlu0 %v5687, 28
      %v5702 = vpop.permute.xlu0 %5701
      %v5703 = vsel %vm1225, %v5694, %v5696
      %v5704 = vsel %vm1225, %v5696, %v5698
      %v5705 = vsel %vm1225, %v5698, %v5700
      %v5706 = vsel %vm1225, %v5700, %v5702
      %5711 = vst [vmem:[#allocation2 + $0x860] sm:$0xff] %v5703
      %5712 = vst [vmem:[#allocation2 + $0x868] sm:$0xff] %v5704
      %5713 = vst [vmem:[#allocation2 + $0x870] sm:$0xff] %v5705
      %5714 = vst [vmem:[#allocation2 + $0x878] sm:$0xff] %v5706
      %v5715 = vld [vmem:[#allocation3 + $0x8] sm:$0xff]
      %v5716 = vld [vmem:[#allocation3 + $0x10] sm:$0xff]
      %v5717 = vld [vmem:[#allocation3 + $0x18] sm:$0xff]
      %v5718 = vld [vmem:[#allocation3 + $0x20] sm:$0xff]
      %v5719 = vld [vmem:[#allocation3 + $0x28] sm:$0xff]
      %5725 = vrot.lane.b32.xlu0 %v5715, 27
      %v5726 = vpop.permute.xlu0 %5725
      %5727 = vrot.lane.b32.xlu0 %v5716, 27
      %v5728 = vpop.permute.xlu0 %5727
      %5729 = vrot.lane.b32.xlu0 %v5717, 27
      %v5730 = vpop.permute.xlu0 %5729
      %5731 = vrot.lane.b32.xlu0 %v5718, 27
      %v5732 = vpop.permute.xlu0 %5731
      %5733 = vrot.lane.b32.xlu0 %v5719, 27
      %v5734 = vpop.permute.xlu0 %5733
      %v5735 = vsel %vm1258, %v5726, %v5728
      %v5736 = vsel %vm1258, %v5728, %v5730
      %v5737 = vsel %vm1258, %v5730, %v5732
      %v5738 = vsel %vm1258, %v5732, %v5734
      %5743 = vst [vmem:[#allocation2 + $0x880] sm:$0xff] %v5735
      %5744 = vst [vmem:[#allocation2 + $0x888] sm:$0xff] %v5736
      %5745 = vst [vmem:[#allocation2 + $0x890] sm:$0xff] %v5737
      %5746 = vst [vmem:[#allocation2 + $0x898] sm:$0xff] %v5738
      %v5747 = vld [vmem:[#allocation3 + $0x8] sm:$0xff]
      %v5748 = vld [vmem:[#allocation3 + $0x10] sm:$0xff]
      %v5749 = vld [vmem:[#allocation3 + $0x18] sm:$0xff]
      %v5750 = vld [vmem:[#allocation3 + $0x20] sm:$0xff]
      %v5751 = vld [vmem:[#allocation3 + $0x28] sm:$0xff]
      %5757 = vrot.lane.b32.xlu0 %v5747, 26
      %v5758 = vpop.permute.xlu0 %5757
      %5759 = vrot.lane.b32.xlu0 %v5748, 26
      %v5760 = vpop.permute.xlu0 %5759
      %5761 = vrot.lane.b32.xlu0 %v5749, 26
      %v5762 = vpop.permute.xlu0 %5761
      %5763 = vrot.lane.b32.xlu0 %v5750, 26
      %v5764 = vpop.permute.xlu0 %5763
      %5765 = vrot.lane.b32.xlu0 %v5751, 26
      %v5766 = vpop.permute.xlu0 %5765
      %v5767 = vsel %vm1291, %v5758, %v5760
      %v5768 = vsel %vm1291, %v5760, %v5762
      %v5769 = vsel %vm1291, %v5762, %v5764
      %v5770 = vsel %vm1291, %v5764, %v5766
      %5775 = vst [vmem:[#allocation2 + $0x8a0] sm:$0xff] %v5767
      %5776 = vst [vmem:[#allocation2 + $0x8a8] sm:$0xff] %v5768
      %5777 = vst [vmem:[#allocation2 + $0x8b0] sm:$0xff] %v5769
      %5778 = vst [vmem:[#allocation2 + $0x8b8] sm:$0xff] %v5770
      %v5779 = vld [vmem:[#allocation3 + $0x8] sm:$0xff]
      %v5780 = vld [vmem:[#allocation3 + $0x10] sm:$0xff]
      %v5781 = vld [vmem:[#allocation3 + $0x18] sm:$0xff]
      %v5782 = vld [vmem:[#allocation3 + $0x20] sm:$0xff]
      %v5783 = vld [vmem:[#allocation3 + $0x28] sm:$0xff]
      %5789 = vrot.lane.b32.xlu0 %v5779, 25
      %v5790 = vpop.permute.xlu0 %5789
      %5791 = vrot.lane.b32.xlu0 %v5780, 25
      %v5792 = vpop.permute.xlu0 %5791
      %5793 = vrot.lane.b32.xlu0 %v5781, 25
      %v5794 = vpop.permute.xlu0 %5793
      %5795 = vrot.lane.b32.xlu0 %v5782, 25
      %v5796 = vpop.permute.xlu0 %5795
      %5797 = vrot.lane.b32.xlu0 %v5783, 25
      %v5798 = vpop.permute.xlu0 %5797
      %v5799 = vsel %vm1324, %v5790, %v5792
      %v5800 = vsel %vm1324, %v5792, %v5794
      %v5801 = vsel %vm1324, %v5794, %v5796
      %v5802 = vsel %vm1324, %v5796, %v5798
      %5807 = vst [vmem:[#allocation2 + $0x8c0] sm:$0xff] %v5799
      %5808 = vst [vmem:[#allocation2 + $0x8c8] sm:$0xff] %v5800
      %5809 = vst [vmem:[#allocation2 + $0x8d0] sm:$0xff] %v5801
      %5810 = vst [vmem:[#allocation2 + $0x8d8] sm:$0xff] %v5802
      %v5811 = vld [vmem:[#allocation3 + $0x8] sm:$0xff]
      %v5812 = vld [vmem:[#allocation3 + $0x10] sm:$0xff]
      %v5813 = vld [vmem:[#allocation3 + $0x18] sm:$0xff]
      %v5814 = vld [vmem:[#allocation3 + $0x20] sm:$0xff]
      %v5815 = vld [vmem:[#allocation3 + $0x28] sm:$0xff]
      %5821 = vrot.lane.b32.xlu0 %v5811, 24
      %v5822 = vpop.permute.xlu0 %5821
      %5823 = vrot.lane.b32.xlu0 %v5812, 24
      %v5824 = vpop.permute.xlu0 %5823
      %5825 = vrot.lane.b32.xlu0 %v5813, 24
      %v5826 = vpop.permute.xlu0 %5825
      %5827 = vrot.lane.b32.xlu0 %v5814, 24
      %v5828 = vpop.permute.xlu0 %5827
      %5829 = vrot.lane.b32.xlu0 %v5815, 24
      %v5830 = vpop.permute.xlu0 %5829
      %v5831 = vsel %vm1357, %v5822, %v5824
      %v5832 = vsel %vm1357, %v5824, %v5826
      %v5833 = vsel %vm1357, %v5826, %v5828
      %v5834 = vsel %vm1357, %v5828, %v5830
      %5839 = vst [vmem:[#allocation2 + $0x8e0] sm:$0xff] %v5831
      %5840 = vst [vmem:[#allocation2 + $0x8e8] sm:$0xff] %v5832
      %5841 = vst [vmem:[#allocation2 + $0x8f0] sm:$0xff] %v5833
      %5842 = vst [vmem:[#allocation2 + $0x8f8] sm:$0xff] %v5834
      %v5843 = vld [vmem:[#allocation3 + $0x10] sm:$0xff]
      %v5844 = vld [vmem:[#allocation3 + $0x18] sm:$0xff]
      %v5845 = vld [vmem:[#allocation3 + $0x20] sm:$0xff]
      %v5846 = vld [vmem:[#allocation3 + $0x28] sm:$0xff]
      %5847 = vst [vmem:[#allocation2 + $0x900] sm:$0xff] %v5843
      %5848 = vst [vmem:[#allocation2 + $0x908] sm:$0xff] %v5844
      %5849 = vst [vmem:[#allocation2 + $0x910] sm:$0xff] %v5845
      %5850 = vst [vmem:[#allocation2 + $0x918] sm:$0xff] %v5846
      %v5851 = vld [vmem:[#allocation3 + $0x10] sm:$0xff]
      %v5852 = vld [vmem:[#allocation3 + $0x18] sm:$0xff]
      %v5853 = vld [vmem:[#allocation3 + $0x20] sm:$0xff]
      %v5854 = vld [vmem:[#allocation3 + $0x28] sm:$0xff]
      %v5855 = vld [vmem:[#allocation3 + $0x30] sm:$0xff]
      %5861 = vrot.lane.b32.xlu0 %v5851, 127
      %v5862 = vpop.permute.xlu0 %5861
      %5863 = vrot.lane.b32.xlu0 %v5852, 127
      %v5864 = vpop.permute.xlu0 %5863
      %5865 = vrot.lane.b32.xlu0 %v5853, 127
      %v5866 = vpop.permute.xlu0 %5865
      %5867 = vrot.lane.b32.xlu0 %v5854, 127
      %v5868 = vpop.permute.xlu0 %5867
      %5869 = vrot.lane.b32.xlu0 %v5855, 127
      %v5870 = vpop.permute.xlu0 %5869
      %v5871 = vsel %vm235, %v5862, %v5864
      %v5872 = vsel %vm235, %v5864, %v5866
      %v5873 = vsel %vm235, %v5866, %v5868
      %v5874 = vsel %vm235, %v5868, %v5870
      %5879 = vst [vmem:[#allocation2 + $0x920] sm:$0xff] %v5871
      %5880 = vst [vmem:[#allocation2 + $0x928] sm:$0xff] %v5872
      %5881 = vst [vmem:[#allocation2 + $0x930] sm:$0xff] %v5873
      %5882 = vst [vmem:[#allocation2 + $0x938] sm:$0xff] %v5874
      %v5883 = vld [vmem:[#allocation3 + $0x10] sm:$0xff]
      %v5884 = vld [vmem:[#allocation3 + $0x18] sm:$0xff]
      %v5885 = vld [vmem:[#allocation3 + $0x20] sm:$0xff]
      %v5886 = vld [vmem:[#allocation3 + $0x28] sm:$0xff]
      %v5887 = vld [vmem:[#allocation3 + $0x30] sm:$0xff]
      %5893 = vrot.lane.b32.xlu0 %v5883, 126
      %v5894 = vpop.permute.xlu0 %5893
      %5895 = vrot.lane.b32.xlu0 %v5884, 126
      %v5896 = vpop.permute.xlu0 %5895
      %5897 = vrot.lane.b32.xlu0 %v5885, 126
      %v5898 = vpop.permute.xlu0 %5897
      %5899 = vrot.lane.b32.xlu0 %v5886, 126
      %v5900 = vpop.permute.xlu0 %5899
      %5901 = vrot.lane.b32.xlu0 %v5887, 126
      %v5902 = vpop.permute.xlu0 %5901
      %v5903 = vsel %vm268, %v5894, %v5896
      %v5904 = vsel %vm268, %v5896, %v5898
      %v5905 = vsel %vm268, %v5898, %v5900
      %v5906 = vsel %vm268, %v5900, %v5902
      %5911 = vst [vmem:[#allocation2 + $0x940] sm:$0xff] %v5903
      %5912 = vst [vmem:[#allocation2 + $0x948] sm:$0xff] %v5904
      %5913 = vst [vmem:[#allocation2 + $0x950] sm:$0xff] %v5905
      %5914 = vst [vmem:[#allocation2 + $0x958] sm:$0xff] %v5906
      %v5915 = vld [vmem:[#allocation3 + $0x10] sm:$0xff]
      %v5916 = vld [vmem:[#allocation3 + $0x18] sm:$0xff]
      %v5917 = vld [vmem:[#allocation3 + $0x20] sm:$0xff]
      %v5918 = vld [vmem:[#allocation3 + $0x28] sm:$0xff]
      %v5919 = vld [vmem:[#allocation3 + $0x30] sm:$0xff]
      %5925 = vrot.lane.b32.xlu0 %v5915, 125
      %v5926 = vpop.permute.xlu0 %5925
      %5927 = vrot.lane.b32.xlu0 %v5916, 125
      %v5928 = vpop.permute.xlu0 %5927
      %5929 = vrot.lane.b32.xlu0 %v5917, 125
      %v5930 = vpop.permute.xlu0 %5929
      %5931 = vrot.lane.b32.xlu0 %v5918, 125
      %v5932 = vpop.permute.xlu0 %5931
      %5933 = vrot.lane.b32.xlu0 %v5919, 125
      %v5934 = vpop.permute.xlu0 %5933
      %v5935 = vsel %vm301, %v5926, %v5928
      %v5936 = vsel %vm301, %v5928, %v5930
      %v5937 = vsel %vm301, %v5930, %v5932
      %v5938 = vsel %vm301, %v5932, %v5934
      %5943 = vst [vmem:[#allocation2 + $0x960] sm:$0xff] %v5935
      %5944 = vst [vmem:[#allocation2 + $0x968] sm:$0xff] %v5936
      %5945 = vst [vmem:[#allocation2 + $0x970] sm:$0xff] %v5937
      %5946 = vst [vmem:[#allocation2 + $0x978] sm:$0xff] %v5938
      %v5947 = vld [vmem:[#allocation3 + $0x10] sm:$0xff]
      %v5948 = vld [vmem:[#allocation3 + $0x18] sm:$0xff]
      %v5949 = vld [vmem:[#allocation3 + $0x20] sm:$0xff]
      %v5950 = vld [vmem:[#allocation3 + $0x28] sm:$0xff]
      %v5951 = vld [vmem:[#allocation3 + $0x30] sm:$0xff]
      %5957 = vrot.lane.b32.xlu0 %v5947, 124
      %v5958 = vpop.permute.xlu0 %5957
      %5959 = vrot.lane.b32.xlu0 %v5948, 124
      %v5960 = vpop.permute.xlu0 %5959
      %5961 = vrot.lane.b32.xlu0 %v5949, 124
      %v5962 = vpop.permute.xlu0 %5961
      %5963 = vrot.lane.b32.xlu0 %v5950, 124
      %v5964 = vpop.permute.xlu0 %5963
      %5965 = vrot.lane.b32.xlu0 %v5951, 124
      %v5966 = vpop.permute.xlu0 %5965
      %v5967 = vsel %vm334, %v5958, %v5960
      %v5968 = vsel %vm334, %v5960, %v5962
      %v5969 = vsel %vm334, %v5962, %v5964
      %v5970 = vsel %vm334, %v5964, %v5966
      %5975 = vst [vmem:[#allocation2 + $0x980] sm:$0xff] %v5967
      %5976 = vst [vmem:[#allocation2 + $0x988] sm:$0xff] %v5968
      %5977 = vst [vmem:[#allocation2 + $0x990] sm:$0xff] %v5969
      %5978 = vst [vmem:[#allocation2 + $0x998] sm:$0xff] %v5970
      %v5979 = vld [vmem:[#allocation3 + $0x10] sm:$0xff]
      %v5980 = vld [vmem:[#allocation3 + $0x18] sm:$0xff]
      %v5981 = vld [vmem:[#allocation3 + $0x20] sm:$0xff]
      %v5982 = vld [vmem:[#allocation3 + $0x28] sm:$0xff]
      %v5983 = vld [vmem:[#allocation3 + $0x30] sm:$0xff]
      %5989 = vrot.lane.b32.xlu0 %v5979, 123
      %v5990 = vpop.permute.xlu0 %5989
      %5991 = vrot.lane.b32.xlu0 %v5980, 123
      %v5992 = vpop.permute.xlu0 %5991
      %5993 = vrot.lane.b32.xlu0 %v5981, 123
      %v5994 = vpop.permute.xlu0 %5993
      %5995 = vrot.lane.b32.xlu0 %v5982, 123
      %v5996 = vpop.permute.xlu0 %5995
      %5997 = vrot.lane.b32.xlu0 %v5983, 123
      %v5998 = vpop.permute.xlu0 %5997
      %v5999 = vsel %vm367, %v5990, %v5992
      %v6000 = vsel %vm367, %v5992, %v5994
      %v6001 = vsel %vm367, %v5994, %v5996
      %v6002 = vsel %vm367, %v5996, %v5998
      %6007 = vst [vmem:[#allocation2 + $0x9a0] sm:$0xff] %v5999
      %6008 = vst [vmem:[#allocation2 + $0x9a8] sm:$0xff] %v6000
      %6009 = vst [vmem:[#allocation2 + $0x9b0] sm:$0xff] %v6001
      %6010 = vst [vmem:[#allocation2 + $0x9b8] sm:$0xff] %v6002
      %v6011 = vld [vmem:[#allocation3 + $0x10] sm:$0xff]
      %v6012 = vld [vmem:[#allocation3 + $0x18] sm:$0xff]
      %v6013 = vld [vmem:[#allocation3 + $0x20] sm:$0xff]
      %v6014 = vld [vmem:[#allocation3 + $0x28] sm:$0xff]
      %v6015 = vld [vmem:[#allocation3 + $0x30] sm:$0xff]
      %6021 = vrot.lane.b32.xlu0 %v6011, 122
      %v6022 = vpop.permute.xlu0 %6021
      %6023 = vrot.lane.b32.xlu0 %v6012, 122
      %v6024 = vpop.permute.xlu0 %6023
      %6025 = vrot.lane.b32.xlu0 %v6013, 122
      %v6026 = vpop.permute.xlu0 %6025
      %6027 = vrot.lane.b32.xlu0 %v6014, 122
      %v6028 = vpop.permute.xlu0 %6027
      %6029 = vrot.lane.b32.xlu0 %v6015, 122
      %v6030 = vpop.permute.xlu0 %6029
      %v6031 = vsel %vm400, %v6022, %v6024
      %v6032 = vsel %vm400, %v6024, %v6026
      %v6033 = vsel %vm400, %v6026, %v6028
      %v6034 = vsel %vm400, %v6028, %v6030
      %6039 = vst [vmem:[#allocation2 + $0x9c0] sm:$0xff] %v6031
      %6040 = vst [vmem:[#allocation2 + $0x9c8] sm:$0xff] %v6032
      %6041 = vst [vmem:[#allocation2 + $0x9d0] sm:$0xff] %v6033
      %6042 = vst [vmem:[#allocation2 + $0x9d8] sm:$0xff] %v6034
      %v6043 = vld [vmem:[#allocation3 + $0x10] sm:$0xff]
      %v6044 = vld [vmem:[#allocation3 + $0x18] sm:$0xff]
      %v6045 = vld [vmem:[#allocation3 + $0x20] sm:$0xff]
      %v6046 = vld [vmem:[#allocation3 + $0x28] sm:$0xff]
      %v6047 = vld [vmem:[#allocation3 + $0x30] sm:$0xff]
      %6053 = vrot.lane.b32.xlu0 %v6043, 121
      %v6054 = vpop.permute.xlu0 %6053
      %6055 = vrot.lane.b32.xlu0 %v6044, 121
      %v6056 = vpop.permute.xlu0 %6055
      %6057 = vrot.lane.b32.xlu0 %v6045, 121
      %v6058 = vpop.permute.xlu0 %6057
      %6059 = vrot.lane.b32.xlu0 %v6046, 121
      %v6060 = vpop.permute.xlu0 %6059
      %6061 = vrot.lane.b32.xlu0 %v6047, 121
      %v6062 = vpop.permute.xlu0 %6061
      %v6063 = vsel %vm433, %v6054, %v6056
      %v6064 = vsel %vm433, %v6056, %v6058
      %v6065 = vsel %vm433, %v6058, %v6060
      %v6066 = vsel %vm433, %v6060, %v6062
      %6071 = vst [vmem:[#allocation2 + $0x9e0] sm:$0xff] %v6063
      %6072 = vst [vmem:[#allocation2 + $0x9e8] sm:$0xff] %v6064
      %6073 = vst [vmem:[#allocation2 + $0x9f0] sm:$0xff] %v6065
      %6074 = vst [vmem:[#allocation2 + $0x9f8] sm:$0xff] %v6066
      %v6075 = vld [vmem:[#allocation3 + $0x10] sm:$0xff]
      %v6076 = vld [vmem:[#allocation3 + $0x18] sm:$0xff]
      %v6077 = vld [vmem:[#allocation3 + $0x20] sm:$0xff]
      %v6078 = vld [vmem:[#allocation3 + $0x28] sm:$0xff]
      %v6079 = vld [vmem:[#allocation3 + $0x30] sm:$0xff]
      %6085 = vrot.lane.b32.xlu0 %v6075, 120
      %v6086 = vpop.permute.xlu0 %6085
      %6087 = vrot.lane.b32.xlu0 %v6076, 120
      %v6088 = vpop.permute.xlu0 %6087
      %6089 = vrot.lane.b32.xlu0 %v6077, 120
      %v6090 = vpop.permute.xlu0 %6089
      %6091 = vrot.lane.b32.xlu0 %v6078, 120
      %v6092 = vpop.permute.xlu0 %6091
      %6093 = vrot.lane.b32.xlu0 %v6079, 120
      %v6094 = vpop.permute.xlu0 %6093
      %v6095 = vsel %vm466, %v6086, %v6088
      %v6096 = vsel %vm466, %v6088, %v6090
      %v6097 = vsel %vm466, %v6090, %v6092
      %v6098 = vsel %vm466, %v6092, %v6094
      %6103 = vst [vmem:[#allocation2 + $0xa00] sm:$0xff] %v6095
      %6104 = vst [vmem:[#allocation2 + $0xa08] sm:$0xff] %v6096
      %6105 = vst [vmem:[#allocation2 + $0xa10] sm:$0xff] %v6097
      %6106 = vst [vmem:[#allocation2 + $0xa18] sm:$0xff] %v6098
      %v6107 = vld [vmem:[%s2] sm:$0xff]
      %v6108 = vld [vmem:[%s2 + $0x8] sm:$0xf]
      %v6109 = vld [vmem:[#allocation2] sm:$0xff]
      %v6110 = vld [vmem:[#allocation2 + $0x8] sm:$0xff]
      %v6111 = vld [vmem:[#allocation2 + $0x10] sm:$0xff]
      %v6112 = vld [vmem:[#allocation2 + $0x18] sm:$0xff]
      %v6113 = vld [vmem:[#allocation2 + $0x20] sm:$0xff]
      %v6114 = vld [vmem:[#allocation2 + $0x28] sm:$0xff]
      %v6115 = vld [vmem:[#allocation2 + $0x30] sm:$0xff]
      %v6116 = vld [vmem:[#allocation2 + $0x38] sm:$0xff]
      %v6117 = vld [vmem:[#allocation2 + $0x40] sm:$0xff]
      %v6118 = vld [vmem:[#allocation2 + $0x48] sm:$0xff]
      %v6119 = vld [vmem:[#allocation2 + $0x50] sm:$0xff]
      %v6120 = vld [vmem:[#allocation2 + $0x58] sm:$0xff]
      %v6121 = vld [vmem:[#allocation2 + $0x60] sm:$0xff]
      %v6122 = vld [vmem:[#allocation2 + $0x68] sm:$0xff]
      %v6123 = vld [vmem:[#allocation2 + $0x70] sm:$0xff]
      %v6124 = vld [vmem:[#allocation2 + $0x78] sm:$0xff]
      %v6125 = vld [vmem:[#allocation2 + $0x80] sm:$0xff]
      %v6126 = vld [vmem:[#allocation2 + $0x88] sm:$0xff]
      %v6127 = vld [vmem:[#allocation2 + $0x90] sm:$0xff]
      %v6128 = vld [vmem:[#allocation2 + $0x98] sm:$0xff]
      %v6129 = vld [vmem:[#allocation2 + $0xa0] sm:$0xff]
      %v6130 = vld [vmem:[#allocation2 + $0xa8] sm:$0xff]
      %v6131 = vld [vmem:[#allocation2 + $0xb0] sm:$0xff]
      %v6132 = vld [vmem:[#allocation2 + $0xb8] sm:$0xff]
      %v6133 = vld [vmem:[#allocation2 + $0xc0] sm:$0xff]
      %v6134 = vld [vmem:[#allocation2 + $0xc8] sm:$0xff]
      %v6135 = vld [vmem:[#allocation2 + $0xd0] sm:$0xff]
      %v6136 = vld [vmem:[#allocation2 + $0xd8] sm:$0xff]
      %v6137 = vld [vmem:[#allocation2 + $0xe0] sm:$0xff]
      %v6138 = vld [vmem:[#allocation2 + $0xe8] sm:$0xff]
      %v6139 = vld [vmem:[#allocation2 + $0xf0] sm:$0xff]
      %v6140 = vld [vmem:[#allocation2 + $0xf8] sm:$0xff]
      %v6141 = vld [vmem:[#allocation2 + $0x100] sm:$0xff]
      %v6142 = vld [vmem:[#allocation2 + $0x108] sm:$0xff]
      %v6143 = vld [vmem:[#allocation2 + $0x110] sm:$0xff]
      %v6144 = vld [vmem:[#allocation2 + $0x118] sm:$0xff]
      %v6145 = vld [vmem:[#allocation2 + $0x120] sm:$0xff]
      %v6146 = vld [vmem:[#allocation2 + $0x128] sm:$0xff]
      %v6147 = vld [vmem:[#allocation2 + $0x130] sm:$0xff]
      %v6148 = vld [vmem:[#allocation2 + $0x138] sm:$0xff]
      %v6149 = vld [vmem:[#allocation2 + $0x140] sm:$0xff]
      %v6150 = vld [vmem:[#allocation2 + $0x148] sm:$0xff]
      %v6151 = vld [vmem:[#allocation2 + $0x150] sm:$0xff]
      %v6152 = vld [vmem:[#allocation2 + $0x158] sm:$0xff]
      %v6153 = vld [vmem:[#allocation2 + $0x160] sm:$0xff]
      %v6154 = vld [vmem:[#allocation2 + $0x168] sm:$0xff]
      %v6155 = vld [vmem:[#allocation2 + $0x170] sm:$0xff]
      %v6156 = vld [vmem:[#allocation2 + $0x178] sm:$0xff]
      %v6157 = vld [vmem:[#allocation2 + $0x180] sm:$0xff]
      %v6158 = vld [vmem:[#allocation2 + $0x188] sm:$0xff]
      %v6159 = vld [vmem:[#allocation2 + $0x190] sm:$0xff]
      %v6160 = vld [vmem:[#allocation2 + $0x198] sm:$0xff]
      %v6161 = vld [vmem:[#allocation2 + $0x1a0] sm:$0xff]
      %v6162 = vld [vmem:[#allocation2 + $0x1a8] sm:$0xff]
      %v6163 = vld [vmem:[#allocation2 + $0x1b0] sm:$0xff]
      %v6164 = vld [vmem:[#allocation2 + $0x1b8] sm:$0xff]
      %v6165 = vld [vmem:[#allocation2 + $0x1c0] sm:$0xff]
      %v6166 = vld [vmem:[#allocation2 + $0x1c8] sm:$0xff]
      %v6167 = vld [vmem:[#allocation2 + $0x1d0] sm:$0xff]
      %v6168 = vld [vmem:[#allocation2 + $0x1d8] sm:$0xff]
      %v6169 = vld [vmem:[#allocation2 + $0x1e0] sm:$0xff]
      %v6170 = vld [vmem:[#allocation2 + $0x1e8] sm:$0xff]
      %v6171 = vld [vmem:[#allocation2 + $0x1f0] sm:$0xff]
      %v6172 = vld [vmem:[#allocation2 + $0x1f8] sm:$0xff]
      %v6173 = vld [vmem:[#allocation2 + $0x200] sm:$0xff]
      %v6174 = vld [vmem:[#allocation2 + $0x208] sm:$0xff]
      %v6175 = vld [vmem:[#allocation2 + $0x210] sm:$0xff]
      %v6176 = vld [vmem:[#allocation2 + $0x218] sm:$0xff]
      %v6177 = vld [vmem:[#allocation2 + $0x220] sm:$0xff]
      %v6178 = vld [vmem:[#allocation2 + $0x228] sm:$0xff]
      %v6179 = vld [vmem:[#allocation2 + $0x230] sm:$0xff]
      %v6180 = vld [vmem:[#allocation2 + $0x238] sm:$0xff]
      %v6181 = vld [vmem:[#allocation2 + $0x240] sm:$0xff]
      %v6182 = vld [vmem:[#allocation2 + $0x248] sm:$0xff]
      %v6183 = vld [vmem:[#allocation2 + $0x250] sm:$0xff]
      %v6184 = vld [vmem:[#allocation2 + $0x258] sm:$0xff]
      %v6185 = vld [vmem:[#allocation2 + $0x260] sm:$0xff]
      %v6186 = vld [vmem:[#allocation2 + $0x268] sm:$0xff]
      %v6187 = vld [vmem:[#allocation2 + $0x270] sm:$0xff]
      %v6188 = vld [vmem:[#allocation2 + $0x278] sm:$0xff]
      %v6189 = vld [vmem:[#allocation2 + $0x280] sm:$0xff]
      %v6190 = vld [vmem:[#allocation2 + $0x288] sm:$0xff]
      %v6191 = vld [vmem:[#allocation2 + $0x290] sm:$0xff]
      %v6192 = vld [vmem:[#allocation2 + $0x298] sm:$0xff]
      %v6193 = vld [vmem:[#allocation2 + $0x2a0] sm:$0xff]
      %v6194 = vld [vmem:[#allocation2 + $0x2a8] sm:$0xff]
      %v6195 = vld [vmem:[#allocation2 + $0x2b0] sm:$0xff]
      %v6196 = vld [vmem:[#allocation2 + $0x2b8] sm:$0xff]
      %v6197 = vld [vmem:[#allocation2 + $0x2c0] sm:$0xff]
      %v6198 = vld [vmem:[#allocation2 + $0x2c8] sm:$0xff]
      %v6199 = vld [vmem:[#allocation2 + $0x2d0] sm:$0xff]
      %v6200 = vld [vmem:[#allocation2 + $0x2d8] sm:$0xff]
      %v6201 = vld [vmem:[#allocation2 + $0x2e0] sm:$0xff]
      %v6202 = vld [vmem:[#allocation2 + $0x2e8] sm:$0xff]
      %v6203 = vld [vmem:[#allocation2 + $0x2f0] sm:$0xff]
      %v6204 = vld [vmem:[#allocation2 + $0x2f8] sm:$0xff]
      %v6205 = vld [vmem:[#allocation2 + $0x300] sm:$0xff]
      %v6206 = vld [vmem:[#allocation2 + $0x308] sm:$0xff]
      %v6207 = vld [vmem:[#allocation2 + $0x310] sm:$0xff]
      %v6208 = vld [vmem:[#allocation2 + $0x318] sm:$0xff]
      %v6209 = vld [vmem:[#allocation2 + $0x320] sm:$0xff]
      %v6210 = vld [vmem:[#allocation2 + $0x328] sm:$0xff]
      %v6211 = vld [vmem:[#allocation2 + $0x330] sm:$0xff]
      %v6212 = vld [vmem:[#allocation2 + $0x338] sm:$0xff]
      %v6213 = vld [vmem:[#allocation2 + $0x340] sm:$0xff]
      %v6214 = vld [vmem:[#allocation2 + $0x348] sm:$0xff]
      %v6215 = vld [vmem:[#allocation2 + $0x350] sm:$0xff]
      %v6216 = vld [vmem:[#allocation2 + $0x358] sm:$0xff]
      %v6217 = vld [vmem:[#allocation2 + $0x360] sm:$0xff]
      %v6218 = vld [vmem:[#allocation2 + $0x368] sm:$0xff]
      %v6219 = vld [vmem:[#allocation2 + $0x370] sm:$0xff]
      %v6220 = vld [vmem:[#allocation2 + $0x378] sm:$0xff]
      %v6221 = vld [vmem:[#allocation2 + $0x380] sm:$0xff]
      %v6222 = vld [vmem:[#allocation2 + $0x388] sm:$0xff]
      %v6223 = vld [vmem:[#allocation2 + $0x390] sm:$0xff]
      %v6224 = vld [vmem:[#allocation2 + $0x398] sm:$0xff]
      %v6225 = vld [vmem:[#allocation2 + $0x3a0] sm:$0xff]
      %v6226 = vld [vmem:[#allocation2 + $0x3a8] sm:$0xff]
      %v6227 = vld [vmem:[#allocation2 + $0x3b0] sm:$0xff]
      %v6228 = vld [vmem:[#allocation2 + $0x3b8] sm:$0xff]
      %v6229 = vld [vmem:[#allocation2 + $0x3c0] sm:$0xff]
      %v6230 = vld [vmem:[#allocation2 + $0x3c8] sm:$0xff]
      %v6231 = vld [vmem:[#allocation2 + $0x3d0] sm:$0xff]
      %v6232 = vld [vmem:[#allocation2 + $0x3d8] sm:$0xff]
      %v6233 = vld [vmem:[#allocation2 + $0x3e0] sm:$0xff]
      %v6234 = vld [vmem:[#allocation2 + $0x3e8] sm:$0xff]
      %v6235 = vld [vmem:[#allocation2 + $0x3f0] sm:$0xff]
      %v6236 = vld [vmem:[#allocation2 + $0x3f8] sm:$0xff]
      %v6237 = vld [vmem:[#allocation2 + $0x400] sm:$0xff]
      %v6238 = vld [vmem:[#allocation2 + $0x408] sm:$0xff]
      %v6239 = vld [vmem:[#allocation2 + $0x410] sm:$0xff]
      %v6240 = vld [vmem:[#allocation2 + $0x418] sm:$0xff]
      %v6241 = vld [vmem:[#allocation2 + $0x420] sm:$0xff]
      %v6242 = vld [vmem:[#allocation2 + $0x428] sm:$0xff]
      %v6243 = vld [vmem:[#allocation2 + $0x430] sm:$0xff]
      %v6244 = vld [vmem:[#allocation2 + $0x438] sm:$0xff]
      %v6245 = vld [vmem:[#allocation2 + $0x440] sm:$0xff]
      %v6246 = vld [vmem:[#allocation2 + $0x448] sm:$0xff]
      %v6247 = vld [vmem:[#allocation2 + $0x450] sm:$0xff]
      %v6248 = vld [vmem:[#allocation2 + $0x458] sm:$0xff]
      %v6249 = vld [vmem:[#allocation2 + $0x460] sm:$0xff]
      %v6250 = vld [vmem:[#allocation2 + $0x468] sm:$0xff]
      %v6251 = vld [vmem:[#allocation2 + $0x470] sm:$0xff]
      %v6252 = vld [vmem:[#allocation2 + $0x478] sm:$0xff]
      %v6253 = vld [vmem:[#allocation2 + $0x480] sm:$0xff]
      %v6254 = vld [vmem:[#allocation2 + $0x488] sm:$0xff]
      %v6255 = vld [vmem:[#allocation2 + $0x490] sm:$0xff]
      %v6256 = vld [vmem:[#allocation2 + $0x498] sm:$0xff]
      %v6257 = vld [vmem:[#allocation2 + $0x4a0] sm:$0xff]
      %v6258 = vld [vmem:[#allocation2 + $0x4a8] sm:$0xff]
      %v6259 = vld [vmem:[#allocation2 + $0x4b0] sm:$0xff]
      %v6260 = vld [vmem:[#allocation2 + $0x4b8] sm:$0xff]
      %v6261 = vld [vmem:[#allocation2 + $0x4c0] sm:$0xff]
      %v6262 = vld [vmem:[#allocation2 + $0x4c8] sm:$0xff]
      %v6263 = vld [vmem:[#allocation2 + $0x4d0] sm:$0xff]
      %v6264 = vld [vmem:[#allocation2 + $0x4d8] sm:$0xff]
      %v6265 = vld [vmem:[#allocation2 + $0x4e0] sm:$0xff]
      %v6266 = vld [vmem:[#allocation2 + $0x4e8] sm:$0xff]
      %v6267 = vld [vmem:[#allocation2 + $0x4f0] sm:$0xff]
      %v6268 = vld [vmem:[#allocation2 + $0x4f8] sm:$0xff]
      %v6269 = vld [vmem:[#allocation2 + $0x500] sm:$0xff]
      %v6270 = vld [vmem:[#allocation2 + $0x508] sm:$0xff]
      %v6271 = vld [vmem:[#allocation2 + $0x510] sm:$0xff]
      %v6272 = vld [vmem:[#allocation2 + $0x518] sm:$0xff]
      %v6273 = vld [vmem:[#allocation2 + $0x520] sm:$0xff]
      %v6274 = vld [vmem:[#allocation2 + $0x528] sm:$0xff]
      %v6275 = vld [vmem:[#allocation2 + $0x530] sm:$0xff]
      %v6276 = vld [vmem:[#allocation2 + $0x538] sm:$0xff]
      %v6277 = vld [vmem:[#allocation2 + $0x540] sm:$0xff]
      %v6278 = vld [vmem:[#allocation2 + $0x548] sm:$0xff]
      %v6279 = vld [vmem:[#allocation2 + $0x550] sm:$0xff]
      %v6280 = vld [vmem:[#allocation2 + $0x558] sm:$0xff]
      %v6281 = vld [vmem:[#allocation2 + $0x560] sm:$0xff]
      %v6282 = vld [vmem:[#allocation2 + $0x568] sm:$0xff]
      %v6283 = vld [vmem:[#allocation2 + $0x570] sm:$0xff]
      %v6284 = vld [vmem:[#allocation2 + $0x578] sm:$0xff]
      %v6285 = vld [vmem:[#allocation2 + $0x580] sm:$0xff]
      %v6286 = vld [vmem:[#allocation2 + $0x588] sm:$0xff]
      %v6287 = vld [vmem:[#allocation2 + $0x590] sm:$0xff]
      %v6288 = vld [vmem:[#allocation2 + $0x598] sm:$0xff]
      %v6289 = vld [vmem:[#allocation2 + $0x5a0] sm:$0xff]
      %v6290 = vld [vmem:[#allocation2 + $0x5a8] sm:$0xff]
      %v6291 = vld [vmem:[#allocation2 + $0x5b0] sm:$0xff]
      %v6292 = vld [vmem:[#allocation2 + $0x5b8] sm:$0xff]
      %v6293 = vld [vmem:[#allocation2 + $0x5c0] sm:$0xff]
      %v6294 = vld [vmem:[#allocation2 + $0x5c8] sm:$0xff]
      %v6295 = vld [vmem:[#allocation2 + $0x5d0] sm:$0xff]
      %v6296 = vld [vmem:[#allocation2 + $0x5d8] sm:$0xff]
      %v6297 = vld [vmem:[#allocation2 + $0x5e0] sm:$0xff]
      %v6298 = vld [vmem:[#allocation2 + $0x5e8] sm:$0xff]
      %v6299 = vld [vmem:[#allocation2 + $0x5f0] sm:$0xff]
      %v6300 = vld [vmem:[#allocation2 + $0x5f8] sm:$0xff]
      %v6301 = vld [vmem:[#allocation2 + $0x600] sm:$0xff]
      %v6302 = vld [vmem:[#allocation2 + $0x608] sm:$0xff]
      %v6303 = vld [vmem:[#allocation2 + $0x610] sm:$0xff]
      %v6304 = vld [vmem:[#allocation2 + $0x618] sm:$0xff]
      %v6305 = vld [vmem:[#allocation2 + $0x620] sm:$0xff]
      %v6306 = vld [vmem:[#allocation2 + $0x628] sm:$0xff]
      %v6307 = vld [vmem:[#allocation2 + $0x630] sm:$0xff]
      %v6308 = vld [vmem:[#allocation2 + $0x638] sm:$0xff]
      %v6309 = vld [vmem:[#allocation2 + $0x640] sm:$0xff]
      %v6310 = vld [vmem:[#allocation2 + $0x648] sm:$0xff]
      %v6311 = vld [vmem:[#allocation2 + $0x650] sm:$0xff]
      %v6312 = vld [vmem:[#allocation2 + $0x658] sm:$0xff]
      %v6313 = vld [vmem:[#allocation2 + $0x660] sm:$0xff]
      %v6314 = vld [vmem:[#allocation2 + $0x668] sm:$0xff]
      %v6315 = vld [vmem:[#allocation2 + $0x670] sm:$0xff]
      %v6316 = vld [vmem:[#allocation2 + $0x678] sm:$0xff]
      %v6317 = vld [vmem:[#allocation2 + $0x680] sm:$0xff]
      %v6318 = vld [vmem:[#allocation2 + $0x688] sm:$0xff]
      %v6319 = vld [vmem:[#allocation2 + $0x690] sm:$0xff]
      %v6320 = vld [vmem:[#allocation2 + $0x698] sm:$0xff]
      %v6321 = vld [vmem:[#allocation2 + $0x6a0] sm:$0xff]
      %v6322 = vld [vmem:[#allocation2 + $0x6a8] sm:$0xff]
      %v6323 = vld [vmem:[#allocation2 + $0x6b0] sm:$0xff]
      %v6324 = vld [vmem:[#allocation2 + $0x6b8] sm:$0xff]
      %v6325 = vld [vmem:[#allocation2 + $0x6c0] sm:$0xff]
      %v6326 = vld [vmem:[#allocation2 + $0x6c8] sm:$0xff]
      %v6327 = vld [vmem:[#allocation2 + $0x6d0] sm:$0xff]
      %v6328 = vld [vmem:[#allocation2 + $0x6d8] sm:$0xff]
      %v6329 = vld [vmem:[#allocation2 + $0x6e0] sm:$0xff]
      %v6330 = vld [vmem:[#allocation2 + $0x6e8] sm:$0xff]
      %v6331 = vld [vmem:[#allocation2 + $0x6f0] sm:$0xff]
      %v6332 = vld [vmem:[#allocation2 + $0x6f8] sm:$0xff]
      %v6333 = vld [vmem:[#allocation2 + $0x700] sm:$0xff]
      %v6334 = vld [vmem:[#allocation2 + $0x708] sm:$0xff]
      %v6335 = vld [vmem:[#allocation2 + $0x710] sm:$0xff]
      %v6336 = vld [vmem:[#allocation2 + $0x718] sm:$0xff]
      %v6337 = vld [vmem:[#allocation2 + $0x720] sm:$0xff]
      %v6338 = vld [vmem:[#allocation2 + $0x728] sm:$0xff]
      %v6339 = vld [vmem:[#allocation2 + $0x730] sm:$0xff]
      %v6340 = vld [vmem:[#allocation2 + $0x738] sm:$0xff]
      %v6341 = vld [vmem:[#allocation2 + $0x740] sm:$0xff]
      %v6342 = vld [vmem:[#allocation2 + $0x748] sm:$0xff]
      %v6343 = vld [vmem:[#allocation2 + $0x750] sm:$0xff]
      %v6344 = vld [vmem:[#allocation2 + $0x758] sm:$0xff]
      %v6345 = vld [vmem:[#allocation2 + $0x760] sm:$0xff]
      %v6346 = vld [vmem:[#allocation2 + $0x768] sm:$0xff]
      %v6347 = vld [vmem:[#allocation2 + $0x770] sm:$0xff]
      %v6348 = vld [vmem:[#allocation2 + $0x778] sm:$0xff]
      %v6349 = vld [vmem:[#allocation2 + $0x780] sm:$0xff]
      %v6350 = vld [vmem:[#allocation2 + $0x788] sm:$0xff]
      %v6351 = vld [vmem:[#allocation2 + $0x790] sm:$0xff]
      %v6352 = vld [vmem:[#allocation2 + $0x798] sm:$0xff]
      %v6353 = vld [vmem:[#allocation2 + $0x7a0] sm:$0xff]
      %v6354 = vld [vmem:[#allocation2 + $0x7a8] sm:$0xff]
      %v6355 = vld [vmem:[#allocation2 + $0x7b0] sm:$0xff]
      %v6356 = vld [vmem:[#allocation2 + $0x7b8] sm:$0xff]
      %v6357 = vld [vmem:[#allocation2 + $0x7c0] sm:$0xff]
      %v6358 = vld [vmem:[#allocation2 + $0x7c8] sm:$0xff]
      %v6359 = vld [vmem:[#allocation2 + $0x7d0] sm:$0xff]
      %v6360 = vld [vmem:[#allocation2 + $0x7d8] sm:$0xff]
      %v6361 = vld [vmem:[#allocation2 + $0x7e0] sm:$0xff]
      %v6362 = vld [vmem:[#allocation2 + $0x7e8] sm:$0xff]
      %v6363 = vld [vmem:[#allocation2 + $0x7f0] sm:$0xff]
      %v6364 = vld [vmem:[#allocation2 + $0x7f8] sm:$0xff]
      %v6365 = vld [vmem:[#allocation2 + $0x800] sm:$0xff]
      %v6366 = vld [vmem:[#allocation2 + $0x808] sm:$0xff]
      %v6367 = vld [vmem:[#allocation2 + $0x810] sm:$0xff]
      %v6368 = vld [vmem:[#allocation2 + $0x818] sm:$0xff]
      %v6369 = vld [vmem:[#allocation2 + $0x820] sm:$0xff]
      %v6370 = vld [vmem:[#allocation2 + $0x828] sm:$0xff]
      %v6371 = vld [vmem:[#allocation2 + $0x830] sm:$0xff]
      %v6372 = vld [vmem:[#allocation2 + $0x838] sm:$0xff]
      %v6373 = vld [vmem:[#allocation2 + $0x840] sm:$0xff]
      %v6374 = vld [vmem:[#allocation2 + $0x848] sm:$0xff]
      %v6375 = vld [vmem:[#allocation2 + $0x850] sm:$0xff]
      %v6376 = vld [vmem:[#allocation2 + $0x858] sm:$0xff]
      %v6377 = vld [vmem:[#allocation2 + $0x860] sm:$0xff]
      %v6378 = vld [vmem:[#allocation2 + $0x868] sm:$0xff]
      %v6379 = vld [vmem:[#allocation2 + $0x870] sm:$0xff]
      %v6380 = vld [vmem:[#allocation2 + $0x878] sm:$0xff]
      %v6381 = vld [vmem:[#allocation2 + $0x880] sm:$0xff]
      %v6382 = vld [vmem:[#allocation2 + $0x888] sm:$0xff]
      %v6383 = vld [vmem:[#allocation2 + $0x890] sm:$0xff]
      %v6384 = vld [vmem:[#allocation2 + $0x898] sm:$0xff]
      %v6385 = vld [vmem:[#allocation2 + $0x8a0] sm:$0xff]
      %v6386 = vld [vmem:[#allocation2 + $0x8a8] sm:$0xff]
      %v6387 = vld [vmem:[#allocation2 + $0x8b0] sm:$0xff]
      %v6388 = vld [vmem:[#allocation2 + $0x8b8] sm:$0xff]
      %v6389 = vld [vmem:[#allocation2 + $0x8c0] sm:$0xff]
      %v6390 = vld [vmem:[#allocation2 + $0x8c8] sm:$0xff]
      %v6391 = vld [vmem:[#allocation2 + $0x8d0] sm:$0xff]
      %v6392 = vld [vmem:[#allocation2 + $0x8d8] sm:$0xff]
      %v6393 = vld [vmem:[#allocation2 + $0x8e0] sm:$0xff]
      %v6394 = vld [vmem:[#allocation2 + $0x8e8] sm:$0xff]
      %v6395 = vld [vmem:[#allocation2 + $0x8f0] sm:$0xff]
      %v6396 = vld [vmem:[#allocation2 + $0x8f8] sm:$0xff]
      %v6397 = vld [vmem:[#allocation2 + $0x900] sm:$0xff]
      %v6398 = vld [vmem:[#allocation2 + $0x908] sm:$0xff]
      %v6399 = vld [vmem:[#allocation2 + $0x910] sm:$0xff]
      %v6400 = vld [vmem:[#allocation2 + $0x918] sm:$0xff]
      %v6401 = vld [vmem:[#allocation2 + $0x920] sm:$0xff]
      %v6402 = vld [vmem:[#allocation2 + $0x928] sm:$0xff]
      %v6403 = vld [vmem:[#allocation2 + $0x930] sm:$0xff]
      %v6404 = vld [vmem:[#allocation2 + $0x938] sm:$0xff]
      %v6405 = vld [vmem:[#allocation2 + $0x940] sm:$0xff]
      %v6406 = vld [vmem:[#allocation2 + $0x948] sm:$0xff]
      %v6407 = vld [vmem:[#allocation2 + $0x950] sm:$0xff]
      %v6408 = vld [vmem:[#allocation2 + $0x958] sm:$0xff]
      %v6409 = vld [vmem:[#allocation2 + $0x960] sm:$0xff]
      %v6410 = vld [vmem:[#allocation2 + $0x968] sm:$0xff]
      %v6411 = vld [vmem:[#allocation2 + $0x970] sm:$0xff]
      %v6412 = vld [vmem:[#allocation2 + $0x978] sm:$0xff]
      %v6413 = vld [vmem:[#allocation2 + $0x980] sm:$0xff]
      %v6414 = vld [vmem:[#allocation2 + $0x988] sm:$0xff]
      %v6415 = vld [vmem:[#allocation2 + $0x990] sm:$0xff]
      %v6416 = vld [vmem:[#allocation2 + $0x998] sm:$0xff]
      %v6417 = vld [vmem:[#allocation2 + $0x9a0] sm:$0xff]
      %v6418 = vld [vmem:[#allocation2 + $0x9a8] sm:$0xff]
      %v6419 = vld [vmem:[#allocation2 + $0x9b0] sm:$0xff]
      %v6420 = vld [vmem:[#allocation2 + $0x9b8] sm:$0xff]
      %v6421 = vld [vmem:[#allocation2 + $0x9c0] sm:$0xff]
      %v6422 = vld [vmem:[#allocation2 + $0x9c8] sm:$0xff]
      %v6423 = vld [vmem:[#allocation2 + $0x9d0] sm:$0xff]
      %v6424 = vld [vmem:[#allocation2 + $0x9d8] sm:$0xff]
      %v6425 = vld [vmem:[#allocation2 + $0x9e0] sm:$0xff]
      %v6426 = vld [vmem:[#allocation2 + $0x9e8] sm:$0xff]
      %v6427 = vld [vmem:[#allocation2 + $0x9f0] sm:$0xff]
      %v6428 = vld [vmem:[#allocation2 + $0x9f8] sm:$0xff]
      %v6429 = vld [vmem:[#allocation2 + $0xa00] sm:$0xff]
      %v6430 = vld [vmem:[#allocation2 + $0xa08] sm:$0xff]
      %v6431 = vld [vmem:[#allocation2 + $0xa10] sm:$0xff]
      %v6432 = vld [vmem:[#allocation2 + $0xa18] sm:$0xff]
      %v6433 = vld [vmem:[#allocation2 + $0xa20] sm:$0xff]
      %v6434 = vld [vmem:[#allocation2 + $0xa28] sm:$0xff]
      %v6435 = vld [vmem:[#allocation2 + $0xa30] sm:$0xff]
      %v6436 = vld [vmem:[#allocation2 + $0xa38] sm:$0xff]
      %v6439 = vcombine.high %v6107, %v6107
      %v6441 = vunpack.c.l.s4 1983009808
      %v6442 = vunpack.c.0.s8 %v6441
      %v6443 = vlaneseq
      %v6444 = vshrl.u32 %v6443, 7
      %v6445 = vsub.s32 %v6442, %v6444
      %v6446 = vrot.slane %v6107, %v6445
      %v6448 = vunpack.c.l.s4 1983009808
      %v6449 = vunpack.c.0.s8 %v6448
      %v6450 = vlaneseq
      %v6451 = vshrl.u32 %v6450, 7
      %v6452 = vsub.s32 %v6449, %v6451
      %v6453 = vrot.slane %v6439, %v6452
      %v6454 = vcombine.high %v6446, %v6446
      %v6455 = vcombine.high %v6453, %v6453
      %v6457 = vunpack.c.l.s4 1983009808
      %v6458 = vunpack.c.0.s8 %v6457
      %v6459 = vlaneseq
      %v6460 = vshrl.u32 %v6459, 7
      %v6461 = vsub.s32 %v6458, %v6460
      %v6462 = vrot.slane %v6108, %v6461
      %v6463 = vcombine.high %v6462, %v6462
      %v6469 = vsel %vm3096, %v6463, 0
      %6471 = vmatprep.subr.mxu0 %v6170
      %6472 = vmatpush1.msra.mxu0 %v6169
      %6473 = vmatprep.subr.mxu0 %v6166
      %6474 = vmatpush1.msra.mxu0 %v6165
      %6475 = vmatprep.subr.mxu0 %v6162
      %6476 = vmatpush1.msra.mxu0 %v6161
      %6477 = vmatprep.subr.mxu0 %v6158
      %6478 = vmatpush1.msra.mxu0 %v6157
      %6479 = vmatprep.subr.mxu0 %v6154
      %6480 = vmatpush1.msra.mxu0 %v6153
      %6481 = vmatprep.subr.mxu0 %v6150
      %6482 = vmatpush1.msra.mxu0 %v6149
      %6483 = vmatprep.subr.mxu0 %v6146
      %6484 = vmatpush1.msra.mxu0 %v6145
      %6485 = vmatprep.subr.mxu0 %v6142
      %6486 = vmatpush1.msra.mxu0 %v6141
      %6487 = vmatprep.subr.mxu0 %v6138
      %6488 = vmatpush1.msra.mxu0 %v6137
      %6489 = vmatprep.subr.mxu0 %v6134
      %6490 = vmatpush1.msra.mxu0 %v6133
      %6491 = vmatprep.subr.mxu0 %v6130
      %6492 = vmatpush1.msra.mxu0 %v6129
      %6493 = vmatprep.subr.mxu0 %v6126
      %6494 = vmatpush1.msra.mxu0 %v6125
      %6495 = vmatprep.subr.mxu0 %v6122
      %6496 = vmatpush1.msra.mxu0 %v6121
      %6497 = vmatprep.subr.mxu0 %v6118
      %6498 = vmatpush1.msra.mxu0 %v6117
      %6499 = vmatprep.subr.mxu0 %v6114
      %6500 = vmatpush1.msra.mxu0 %v6113
      %6501 = vmatprep.subr.mxu0 %v6110
      %6502 = vmatpush1.msra.mxu0 %v6109
      %6503 = vmatprep.subr.mxu0 %v6234
      %6504 = vmatpush2.msra.mxu0 %v6233
      %6505 = vmatprep.subr.mxu0 %v6230
      %6506 = vmatpush2.msra.mxu0 %v6229
      %6507 = vmatprep.subr.mxu0 %v6226
      %6508 = vmatpush2.msra.mxu0 %v6225
      %6509 = vmatprep.subr.mxu0 %v6222
      %6510 = vmatpush2.msra.mxu0 %v6221
      %6511 = vmatprep.subr.mxu0 %v6218
      %6512 = vmatpush2.msra.mxu0 %v6217
      %6513 = vmatprep.subr.mxu0 %v6214
      %6514 = vmatpush2.msra.mxu0 %v6213
      %6515 = vmatprep.subr.mxu0 %v6210
      %6516 = vmatpush2.msra.mxu0 %v6209
      %6517 = vmatprep.subr.mxu0 %v6206
      %6518 = vmatpush2.msra.mxu0 %v6205
      %6519 = vmatprep.subr.mxu0 %v6202
      %6520 = vmatpush2.msra.mxu0 %v6201
      %6521 = vmatprep.subr.mxu0 %v6198
      %6522 = vmatpush2.msra.mxu0 %v6197
      %6523 = vmatprep.subr.mxu0 %v6194
      %6524 = vmatpush2.msra.mxu0 %v6193
      %6525 = vmatprep.subr.mxu0 %v6190
      %6526 = vmatpush2.msra.mxu0 %v6189
      %6527 = vmatprep.subr.mxu0 %v6186
      %6528 = vmatpush2.msra.mxu0 %v6185
      %6529 = vmatprep.subr.mxu0 %v6182
      %6530 = vmatpush2.msra.mxu0 %v6181
      %6531 = vmatprep.subr.mxu0 %v6178
      %6532 = vmatpush2.msra.mxu0 %v6177
      %6533 = vmatprep.subr.mxu0 %v6174
      %6534 = vmatpush2.msra.mxu0 %v6173
      %6535 = vmatprep.mubr.f32.mxu0 %v6454
      %6536 = vmatmul.mubr.f32.gmra.mxu0 %v6446
      %v6537 = vpop.f32.mrf.mxu0
      %v6538 = vadd.f32 0.0, %v6537
      %v6539 = vpop.f32.mrf.mxu0
      %v6540 = vadd.f32 0.0, %v6539
      %6541 = vdwg.mxu0
      %6542 = vmatprep.subr.mxu0 %v6298
      %6543 = vmatpush1.msra.mxu0 %v6297
      %6544 = vmatprep.subr.mxu0 %v6294
      %6545 = vmatpush1.msra.mxu0 %v6293
      %6546 = vmatprep.subr.mxu0 %v6290
      %6547 = vmatpush1.msra.mxu0 %v6289
      %6548 = vmatprep.subr.mxu0 %v6286
      %6549 = vmatpush1.msra.mxu0 %v6285
      %6550 = vmatprep.subr.mxu0 %v6282
      %6551 = vmatpush1.msra.mxu0 %v6281
      %6552 = vmatprep.subr.mxu0 %v6278
      %6553 = vmatpush1.msra.mxu0 %v6277
      %6554 = vmatprep.subr.mxu0 %v6274
      %6555 = vmatpush1.msra.mxu0 %v6273
      %6556 = vmatprep.subr.mxu0 %v6270
      %6557 = vmatpush1.msra.mxu0 %v6269
      %6558 = vmatprep.subr.mxu0 %v6266
      %6559 = vmatpush1.msra.mxu0 %v6265
      %6560 = vmatprep.subr.mxu0 %v6262
      %6561 = vmatpush1.msra.mxu0 %v6261
      %6562 = vmatprep.subr.mxu0 %v6258
      %6563 = vmatpush1.msra.mxu0 %v6257
      %6564 = vmatprep.subr.mxu0 %v6254
      %6565 = vmatpush1.msra.mxu0 %v6253
      %6566 = vmatprep.subr.mxu0 %v6250
      %6567 = vmatpush1.msra.mxu0 %v6249
      %6568 = vmatprep.subr.mxu0 %v6246
      %6569 = vmatpush1.msra.mxu0 %v6245
      %6570 = vmatprep.subr.mxu0 %v6242
      %6571 = vmatpush1.msra.mxu0 %v6241
      %6572 = vmatprep.subr.mxu0 %v6238
      %6573 = vmatpush1.msra.mxu0 %v6237
      %6574 = vmatprep.subr.mxu0 %v6362
      %6575 = vmatpush2.msra.mxu0 %v6361
      %6576 = vmatprep.subr.mxu0 %v6358
      %6577 = vmatpush2.msra.mxu0 %v6357
      %6578 = vmatprep.subr.mxu0 %v6354
      %6579 = vmatpush2.msra.mxu0 %v6353
      %6580 = vmatprep.subr.mxu0 %v6350
      %6581 = vmatpush2.msra.mxu0 %v6349
      %6582 = vmatprep.subr.mxu0 %v6346
      %6583 = vmatpush2.msra.mxu0 %v6345
      %6584 = vmatprep.subr.mxu0 %v6342
      %6585 = vmatpush2.msra.mxu0 %v6341
      %6586 = vmatprep.subr.mxu0 %v6338
      %6587 = vmatpush2.msra.mxu0 %v6337
      %6588 = vmatprep.subr.mxu0 %v6334
      %6589 = vmatpush2.msra.mxu0 %v6333
      %6590 = vmatprep.subr.mxu0 %v6330
      %6591 = vmatpush2.msra.mxu0 %v6329
      %6592 = vmatprep.subr.mxu0 %v6326
      %6593 = vmatpush2.msra.mxu0 %v6325
      %6594 = vmatprep.subr.mxu0 %v6322
      %6595 = vmatpush2.msra.mxu0 %v6321
      %6596 = vmatprep.subr.mxu0 %v6318
      %6597 = vmatpush2.msra.mxu0 %v6317
      %6598 = vmatprep.subr.mxu0 %v6314
      %6599 = vmatpush2.msra.mxu0 %v6313
      %6600 = vmatprep.subr.mxu0 %v6310
      %6601 = vmatpush2.msra.mxu0 %v6309
      %6602 = vmatprep.subr.mxu0 %v6306
      %6603 = vmatpush2.msra.mxu0 %v6305
      %6604 = vmatprep.subr.mxu0 %v6302
      %6605 = vmatpush2.msra.mxu0 %v6301
      %6606 = vmatprep.mubr.f32.mxu0 %v6455
      %6607 = vmatmul.mubr.f32.gmra.mxu0 %v6453
      %v6608 = vpop.f32.mrf.mxu0
      %v6609 = vadd.f32 %v6538, %v6608
      %v6610 = vpop.f32.mrf.mxu0
      %v6611 = vadd.f32 %v6540, %v6610
      %6612 = vdwg.mxu0
      %6613 = vmatprep.subr.mxu0 %v6426
      %6614 = vmatpush1.msra.mxu0 %v6425
      %6615 = vmatprep.subr.mxu0 %v6422
      %6616 = vmatpush1.msra.mxu0 %v6421
      %6617 = vmatprep.subr.mxu0 %v6418
      %6618 = vmatpush1.msra.mxu0 %v6417
      %6619 = vmatprep.subr.mxu0 %v6414
      %6620 = vmatpush1.msra.mxu0 %v6413
      %6621 = vmatprep.subr.mxu0 %v6410
      %6622 = vmatpush1.msra.mxu0 %v6409
      %6623 = vmatprep.subr.mxu0 %v6406
      %6624 = vmatpush1.msra.mxu0 %v6405
      %6625 = vmatprep.subr.mxu0 %v6402
      %6626 = vmatpush1.msra.mxu0 %v6401
      %6627 = vmatprep.subr.mxu0 %v6398
      %6628 = vmatpush1.msra.mxu0 %v6397
      %6629 = vmatprep.subr.mxu0 %v6394
      %6630 = vmatpush1.msra.mxu0 %v6393
      %6631 = vmatprep.subr.mxu0 %v6390
      %6632 = vmatpush1.msra.mxu0 %v6389
      %6633 = vmatprep.subr.mxu0 %v6386
      %6634 = vmatpush1.msra.mxu0 %v6385
      %6635 = vmatprep.subr.mxu0 %v6382
      %6636 = vmatpush1.msra.mxu0 %v6381
      %6637 = vmatprep.subr.mxu0 %v6378
      %6638 = vmatpush1.msra.mxu0 %v6377
      %6639 = vmatprep.subr.mxu0 %v6374
      %6640 = vmatpush1.msra.mxu0 %v6373
      %6641 = vmatprep.subr.mxu0 %v6370
      %6642 = vmatpush1.msra.mxu0 %v6369
      %6643 = vmatprep.subr.mxu0 %v6366
      %6644 = vmatpush1.msra.mxu0 %v6365
      %6645 = vmatprep.subr.mxu0 0.0
      %6646 = vmatpush2.msra.mxu0 0.0
      %6647 = vmatprep.subr.mxu0 0.0
      %6648 = vmatpush2.msra.mxu0 0.0
      %6649 = vmatprep.subr.mxu0 0.0
      %6650 = vmatpush2.msra.mxu0 0.0
      %6651 = vmatprep.subr.mxu0 0.0
      %6652 = vmatpush2.msra.mxu0 0.0
      %6653 = vmatprep.subr.mxu0 0.0
      %6654 = vmatpush2.msra.mxu0 0.0
      %6655 = vmatprep.subr.mxu0 0.0
      %6656 = vmatpush2.msra.mxu0 0.0
      %6657 = vmatprep.subr.mxu0 0.0
      %6658 = vmatpush2.msra.mxu0 0.0
      %6659 = vmatprep.subr.mxu0 0.0
      %6660 = vmatpush2.msra.mxu0 0.0
      %6661 = vmatprep.subr.mxu0 0.0
      %6662 = vmatpush2.msra.mxu0 0.0
      %6663 = vmatprep.subr.mxu0 0.0
      %6664 = vmatpush2.msra.mxu0 0.0
      %6665 = vmatprep.subr.mxu0 0.0
      %6666 = vmatpush2.msra.mxu0 0.0
      %6667 = vmatprep.subr.mxu0 0.0
      %6668 = vmatpush2.msra.mxu0 0.0
      %6669 = vmatprep.subr.mxu0 0.0
      %6670 = vmatpush2.msra.mxu0 0.0
      %6671 = vmatprep.subr.mxu0 0.0
      %6672 = vmatpush2.msra.mxu0 0.0
      %6673 = vmatprep.subr.mxu0 %v6434
      %6674 = vmatpush2.msra.mxu0 %v6433
      %6675 = vmatprep.subr.mxu0 %v6430
      %6676 = vmatpush2.msra.mxu0 %v6429
      %6677 = vmatprep.mubr.f32.mxu0 %v6469
      %6678 = vmatmul.mubr.f32.gmra.mxu0 %v6462
      %v6679 = vpop.f32.mrf.mxu0
      %v6680 = vadd.f32 %v6609, %v6679
      %v6681 = vpop.f32.mrf.mxu0
      %v6682 = vadd.f32 %v6611, %v6681
      %6683 = vdwg.mxu0
      %6684 = vmatprep.subr.mxu0 %v6172
      %6685 = vmatpush1.msra.mxu0 %v6171
      %6686 = vmatprep.subr.mxu0 %v6168
      %6687 = vmatpush1.msra.mxu0 %v6167
      %6688 = vmatprep.subr.mxu0 %v6164
      %6689 = vmatpush1.msra.mxu0 %v6163
      %6690 = vmatprep.subr.mxu0 %v6160
      %6691 = vmatpush1.msra.mxu0 %v6159
      %6692 = vmatprep.subr.mxu0 %v6156
      %6693 = vmatpush1.msra.mxu0 %v6155
      %6694 = vmatprep.subr.mxu0 %v6152
      %6695 = vmatpush1.msra.mxu0 %v6151
      %6696 = vmatprep.subr.mxu0 %v6148
      %6697 = vmatpush1.msra.mxu0 %v6147
      %6698 = vmatprep.subr.mxu0 %v6144
      %6699 = vmatpush1.msra.mxu0 %v6143
      %6700 = vmatprep.subr.mxu0 %v6140
      %6701 = vmatpush1.msra.mxu0 %v6139
      %6702 = vmatprep.subr.mxu0 %v6136
      %6703 = vmatpush1.msra.mxu0 %v6135
      %6704 = vmatprep.subr.mxu0 %v6132
      %6705 = vmatpush1.msra.mxu0 %v6131
      %6706 = vmatprep.subr.mxu0 %v6128
      %6707 = vmatpush1.msra.mxu0 %v6127
      %6708 = vmatprep.subr.mxu0 %v6124
      %6709 = vmatpush1.msra.mxu0 %v6123
      %6710 = vmatprep.subr.mxu0 %v6120
      %6711 = vmatpush1.msra.mxu0 %v6119
      %6712 = vmatprep.subr.mxu0 %v6116
      %6713 = vmatpush1.msra.mxu0 %v6115
      %6714 = vmatprep.subr.mxu0 %v6112
      %6715 = vmatpush1.msra.mxu0 %v6111
      %6716 = vmatprep.subr.mxu0 %v6236
      %6717 = vmatpush2.msra.mxu0 %v6235
      %6718 = vmatprep.subr.mxu0 %v6232
      %6719 = vmatpush2.msra.mxu0 %v6231
      %6720 = vmatprep.subr.mxu0 %v6228
      %6721 = vmatpush2.msra.mxu0 %v6227
      %6722 = vmatprep.subr.mxu0 %v6224
      %6723 = vmatpush2.msra.mxu0 %v6223
      %6724 = vmatprep.subr.mxu0 %v6220
      %6725 = vmatpush2.msra.mxu0 %v6219
      %6726 = vmatprep.subr.mxu0 %v6216
      %6727 = vmatpush2.msra.mxu0 %v6215
      %6728 = vmatprep.subr.mxu0 %v6212
      %6729 = vmatpush2.msra.mxu0 %v6211
      %6730 = vmatprep.subr.mxu0 %v6208
      %6731 = vmatpush2.msra.mxu0 %v6207
      %6732 = vmatprep.subr.mxu0 %v6204
      %6733 = vmatpush2.msra.mxu0 %v6203
      %6734 = vmatprep.subr.mxu0 %v6200
      %6735 = vmatpush2.msra.mxu0 %v6199
      %6736 = vmatprep.subr.mxu0 %v6196
      %6737 = vmatpush2.msra.mxu0 %v6195
      %6738 = vmatprep.subr.mxu0 %v6192
      %6739 = vmatpush2.msra.mxu0 %v6191
      %6740 = vmatprep.subr.mxu0 %v6188
      %6741 = vmatpush2.msra.mxu0 %v6187
      %6742 = vmatprep.subr.mxu0 %v6184
      %6743 = vmatpush2.msra.mxu0 %v6183
      %6744 = vmatprep.subr.mxu0 %v6180
      %6745 = vmatpush2.msra.mxu0 %v6179
      %6746 = vmatprep.subr.mxu0 %v6176
      %6747 = vmatpush2.msra.mxu0 %v6175
      %6748 = vmatprep.mubr.f32.mxu0 %v6454
      %6749 = vmatmul.mubr.f32.gmra.mxu0 %v6446
      %v6750 = vpop.f32.mrf.mxu0
      %v6751 = vadd.f32 0.0, %v6750
      %v6752 = vpop.f32.mrf.mxu0
      %v6753 = vadd.f32 0.0, %v6752
      %6754 = vdwg.mxu0
      %6755 = vmatprep.subr.mxu0 %v6300
      %6756 = vmatpush1.msra.mxu0 %v6299
      %6757 = vmatprep.subr.mxu0 %v6296
      %6758 = vmatpush1.msra.mxu0 %v6295
      %6759 = vmatprep.subr.mxu0 %v6292
      %6760 = vmatpush1.msra.mxu0 %v6291
      %6761 = vmatprep.subr.mxu0 %v6288
      %6762 = vmatpush1.msra.mxu0 %v6287
      %6763 = vmatprep.subr.mxu0 %v6284
      %6764 = vmatpush1.msra.mxu0 %v6283
      %6765 = vmatprep.subr.mxu0 %v6280
      %6766 = vmatpush1.msra.mxu0 %v6279
      %6767 = vmatprep.subr.mxu0 %v6276
      %6768 = vmatpush1.msra.mxu0 %v6275
      %6769 = vmatprep.subr.mxu0 %v6272
      %6770 = vmatpush1.msra.mxu0 %v6271
      %6771 = vmatprep.subr.mxu0 %v6268
      %6772 = vmatpush1.msra.mxu0 %v6267
      %6773 = vmatprep.subr.mxu0 %v6264
      %6774 = vmatpush1.msra.mxu0 %v6263
      %6775 = vmatprep.subr.mxu0 %v6260
      %6776 = vmatpush1.msra.mxu0 %v6259
      %6777 = vmatprep.subr.mxu0 %v6256
      %6778 = vmatpush1.msra.mxu0 %v6255
      %6779 = vmatprep.subr.mxu0 %v6252
      %6780 = vmatpush1.msra.mxu0 %v6251
      %6781 = vmatprep.subr.mxu0 %v6248
      %6782 = vmatpush1.msra.mxu0 %v6247
      %6783 = vmatprep.subr.mxu0 %v6244
      %6784 = vmatpush1.msra.mxu0 %v6243
      %6785 = vmatprep.subr.mxu0 %v6240
      %6786 = vmatpush1.msra.mxu0 %v6239
      %6787 = vmatprep.subr.mxu0 %v6364
      %6788 = vmatpush2.msra.mxu0 %v6363
      %6789 = vmatprep.subr.mxu0 %v6360
      %6790 = vmatpush2.msra.mxu0 %v6359
      %6791 = vmatprep.subr.mxu0 %v6356
      %6792 = vmatpush2.msra.mxu0 %v6355
      %6793 = vmatprep.subr.mxu0 %v6352
      %6794 = vmatpush2.msra.mxu0 %v6351
      %6795 = vmatprep.subr.mxu0 %v6348
      %6796 = vmatpush2.msra.mxu0 %v6347
      %6797 = vmatprep.subr.mxu0 %v6344
      %6798 = vmatpush2.msra.mxu0 %v6343
      %6799 = vmatprep.subr.mxu0 %v6340
      %6800 = vmatpush2.msra.mxu0 %v6339
      %6801 = vmatprep.subr.mxu0 %v6336
      %6802 = vmatpush2.msra.mxu0 %v6335
      %6803 = vmatprep.subr.mxu0 %v6332
      %6804 = vmatpush2.msra.mxu0 %v6331
      %6805 = vmatprep.subr.mxu0 %v6328
      %6806 = vmatpush2.msra.mxu0 %v6327
      %6807 = vmatprep.subr.mxu0 %v6324
      %6808 = vmatpush2.msra.mxu0 %v6323
      %6809 = vmatprep.subr.mxu0 %v6320
      %6810 = vmatpush2.msra.mxu0 %v6319
      %6811 = vmatprep.subr.mxu0 %v6316
      %6812 = vmatpush2.msra.mxu0 %v6315
      %6813 = vmatprep.subr.mxu0 %v6312
      %6814 = vmatpush2.msra.mxu0 %v6311
      %6815 = vmatprep.subr.mxu0 %v6308
      %6816 = vmatpush2.msra.mxu0 %v6307
      %6817 = vmatprep.subr.mxu0 %v6304
      %6818 = vmatpush2.msra.mxu0 %v6303
      %6819 = vmatprep.mubr.f32.mxu0 %v6455
      %6820 = vmatmul.mubr.f32.gmra.mxu0 %v6453
      %v6821 = vpop.f32.mrf.mxu0
      %v6822 = vadd.f32 %v6751, %v6821
      %v6823 = vpop.f32.mrf.mxu0
      %v6824 = vadd.f32 %v6753, %v6823
      %6825 = vdwg.mxu0
      %6826 = vmatprep.subr.mxu0 %v6428
      %6827 = vmatpush1.msra.mxu0 %v6427
      %6828 = vmatprep.subr.mxu0 %v6424
      %6829 = vmatpush1.msra.mxu0 %v6423
      %6830 = vmatprep.subr.mxu0 %v6420
      %6831 = vmatpush1.msra.mxu0 %v6419
      %6832 = vmatprep.subr.mxu0 %v6416
      %6833 = vmatpush1.msra.mxu0 %v6415
      %6834 = vmatprep.subr.mxu0 %v6412
      %6835 = vmatpush1.msra.mxu0 %v6411
      %6836 = vmatprep.subr.mxu0 %v6408
      %6837 = vmatpush1.msra.mxu0 %v6407
      %6838 = vmatprep.subr.mxu0 %v6404
      %6839 = vmatpush1.msra.mxu0 %v6403
      %6840 = vmatprep.subr.mxu0 %v6400
      %6841 = vmatpush1.msra.mxu0 %v6399
      %6842 = vmatprep.subr.mxu0 %v6396
      %6843 = vmatpush1.msra.mxu0 %v6395
      %6844 = vmatprep.subr.mxu0 %v6392
      %6845 = vmatpush1.msra.mxu0 %v6391
      %6846 = vmatprep.subr.mxu0 %v6388
      %6847 = vmatpush1.msra.mxu0 %v6387
      %6848 = vmatprep.subr.mxu0 %v6384
      %6849 = vmatpush1.msra.mxu0 %v6383
      %6850 = vmatprep.subr.mxu0 %v6380
      %6851 = vmatpush1.msra.mxu0 %v6379
      %6852 = vmatprep.subr.mxu0 %v6376
      %6853 = vmatpush1.msra.mxu0 %v6375
      %6854 = vmatprep.subr.mxu0 %v6372
      %6855 = vmatpush1.msra.mxu0 %v6371
      %6856 = vmatprep.subr.mxu0 %v6368
      %6857 = vmatpush1.msra.mxu0 %v6367
      %6858 = vmatprep.subr.mxu0 0.0
      %6859 = vmatpush2.msra.mxu0 0.0
      %6860 = vmatprep.subr.mxu0 0.0
      %6861 = vmatpush2.msra.mxu0 0.0
      %6862 = vmatprep.subr.mxu0 0.0
      %6863 = vmatpush2.msra.mxu0 0.0
      %6864 = vmatprep.subr.mxu0 0.0
      %6865 = vmatpush2.msra.mxu0 0.0
      %6866 = vmatprep.subr.mxu0 0.0
      %6867 = vmatpush2.msra.mxu0 0.0
      %6868 = vmatprep.subr.mxu0 0.0
      %6869 = vmatpush2.msra.mxu0 0.0
      %6870 = vmatprep.subr.mxu0 0.0
      %6871 = vmatpush2.msra.mxu0 0.0
      %6872 = vmatprep.subr.mxu0 0.0
      %6873 = vmatpush2.msra.mxu0 0.0
      %6874 = vmatprep.subr.mxu0 0.0
      %6875 = vmatpush2.msra.mxu0 0.0
      %6876 = vmatprep.subr.mxu0 0.0
      %6877 = vmatpush2.msra.mxu0 0.0
      %6878 = vmatprep.subr.mxu0 0.0
      %6879 = vmatpush2.msra.mxu0 0.0
      %6880 = vmatprep.subr.mxu0 0.0
      %6881 = vmatpush2.msra.mxu0 0.0
      %6882 = vmatprep.subr.mxu0 0.0
      %6883 = vmatpush2.msra.mxu0 0.0
      %6884 = vmatprep.subr.mxu0 0.0
      %6885 = vmatpush2.msra.mxu0 0.0
      %6886 = vmatprep.subr.mxu0 %v6436
      %6887 = vmatpush2.msra.mxu0 %v6435
      %6888 = vmatprep.subr.mxu0 %v6432
      %6889 = vmatpush2.msra.mxu0 %v6431
      %6890 = vmatprep.mubr.f32.mxu0 %v6469
      %6891 = vmatmul.mubr.f32.gmra.mxu0 %v6462
      %v6892 = vpop.f32.mrf.mxu0
      %v6893 = vadd.f32 %v6822, %v6892
      %v6894 = vpop.f32.mrf.mxu0
      %v6895 = vadd.f32 %v6824, %v6894
      %6896 = vdwg.mxu0
      %v6897 = vxor.u32 %v6680, 2147483648
      %v6898 = vxor.u32 %v6682, 2147483648
      %v6899 = vxor.u32 %v6893, 2147483648
      %v6900 = vxor.u32 %v6895, 2147483648
      %v6901 = vmul.f32 %v6897, 1.442695
      %v6902 = vpow.pop %v6901
      %v6903 = vmul.f32 %v6898, 1.442695
      %v6904 = vpow.pop %v6903
      %v6905 = vmul.f32 %v6899, 1.442695
      %v6906 = vpow.pop %v6905
      %v6907 = vmul.f32 %v6900, 1.442695
      %v6908 = vpow.pop %v6907
      %v6909 = vadd.f32 %v6902, 1.0
      %v6910 = vadd.f32 %v6904, 1.0
      %v6911 = vadd.f32 %v6906, 1.0
      %v6912 = vadd.f32 %v6908, 1.0
      %v6913 = vrcp.pop %v6909
      %v6914 = vmul.f32 1.0, %v6913
      %v6915 = vrcp.pop %v6910
      %v6916 = vmul.f32 1.0, %v6915
      %v6917 = vrcp.pop %v6911
      %v6918 = vmul.f32 1.0, %v6917
      %v6919 = vrcp.pop %v6912
      %v6920 = vmul.f32 1.0, %v6919
      %v6925 = vrot.slane %v6914, 1
      %v6926 = vrot.slane %v6916, 1
      %v6927 = vrot.slane %v6918, 1
      %v6928 = vrot.slane %v6920, 1
      %v6933 = vmul.f32 %v6914, %v6925
      %v6934 = vmul.f32 %v6916, %v6926
      %v6935 = vmul.f32 %v6918, %v6927
      %v6936 = vmul.f32 %v6920, %v6928
      %v6941 = vcombine.low %v6933, %v6934
      %v6942 = vcombine.low %v6935, %v6936
      %v6944 = vunpack.c.l.s4 1966171168
      %v6945 = vunpack.c.0.s8 %v6944
      %v6946 = vlaneseq
      %v6947 = vshrl.u32 %v6946, 7
      %v6948 = vsub.s32 %v6945, %v6947
      %v6949 = vrot.slane %v6941, %v6948
      %v6951 = vunpack.c.l.s4 1966171168
      %v6952 = vunpack.c.0.s8 %v6951
      %v6953 = vlaneseq
      %v6954 = vshrl.u32 %v6953, 7
      %v6955 = vsub.s32 %v6952, %v6954
      %v6956 = vrot.slane %v6942, %v6955
      %v6957 = vcombine.low %v6949, %v6956
      %v6959 = vunpack.c.l.s4 1966171168
      %v6960 = vunpack.c.0.s8 %v6959
      %v6961 = vlaneseq
      %v6962 = vshrl.u32 %v6961, 7
      %v6963 = vsub.s32 %v6960, %v6962
      %v6964 = vrot.slane %v6957, %v6963
      %6966 = vst.msk [vmem:[%s195] sm:$0xf] %vm199, %v6964
      %p6967 = scmp.lt.s32.totalorder %s15, 1
      %s6968 = scalar_select %p6967, %s15, 1
      %s6969 = smul.addr %s6968, 4
      %s6970 = scalar_lea.vmem %s4, %s6969
      // Predicated region
      $region37: #{deep_network_forward.1} parent=35 // pred_check
        %p6971 = pneg %p122
      $region38: #{deep_network_forward.1} parent=35 // pred_check_branch
        %6973 = sbr.rel (%p6971) target = $region40
      $region39: #{deep_network_forward.1} parent=35 // pred_region
        _
      $region40: #{deep_network_forward.1} parent=35 // pred_fallthru
        _
    $region36: #{deep_network_forward.1} parent=5 // pred_fallthru
      _
    %p6974 = scmp.le.s32.totalorder 2, %s10
    // Predicated region
    $region41: #{deep_network_forward.1} parent=5 // pred_check
      %p6975 = pneg %p6974
    $region42: #{deep_network_forward.1} parent=5 // pred_check_branch
      %6977 = sbr.rel (%p6975) target = $region44
    $region43: #{deep_network_forward.1} parent=5 // pred_region
      %s6978 = ssub.s32 %s10, 2
      // Predicated region
      $region45: #{deep_network_forward.1} parent=43 // pred_check
        %p6979 = pneg %p128
      $region46: #{deep_network_forward.1} parent=43 // pred_check_branch
        %6981 = sbr.rel (%p6979) target = $region48
      $region47: #{deep_network_forward.1} parent=43 // pred_region
        %p6982 = scmp.lt.s32.totalorder %s16, 1
        %s6983 = scalar_select %p6982, %s16, 1
        %s6984 = smul.addr %s6983, 4
        %s6985 = scalar_lea.vmem %s4, %s6984
      $region48: #{deep_network_forward.1} parent=43 // pred_fallthru
        _
    $region44: #{deep_network_forward.1} parent=5 // pred_fallthru
      _
  $region6: #{deep_network_forward.1} parent=0 // loop_footer
    %s14 = sadd.s32 1, %s10
  $region7: #{deep_network_forward.1} parent=0 // loop_footer_branch
    %9 = sbr.rel target = $region3
  $region8: #{deep_network_forward.1} parent=0 // loop_exit
    _

</llo_original>
